<compile_context>
chip_gen: v7x
topology: tpu7x:2x2x1
jax: 0.10.0
libtpu: 0.0.40
codegen_flags: <defaults>
</compile_context>

<pallas_src>
import jax
import jax.numpy as jnp
from jax.experimental import pallas as pl
from jax.experimental.pallas import tpu as pltpu

# ---------------- module hyper-parameters (defaults of Anymal) ----------------
NUM_ACTIONS = 8
PROPRIO_DIM = 133
EXTERO_DIM = 52
PRIVILEGED_DIM = 50
NUM_LEGS = 4
LATENT_EXTERO_DIM = 24
LATENT_PRIVILEGED_DIM = 24
GRU_HIDDEN = 50
GRU_NUM_LAYERS = 2
BELIEF_STATE_DIM = 120
MLP_HIDDEN = (256, 160, 128)
RECON_LOSS_WEIGHT = 0.5
NOISE_STRENGTH = 0.1

# ---------------- packed-layout constants ----------------
GATE_SLOT = 128                      # each GRU gate (r / z / n) occupies a 128-lane slot
HEAD_HIDDEN = 64
NUM_HEADS = 5
# 128-lane-aligned output slots of the fused gru_out heads
BELIEF_OFF = 0                       # belief encoder       -> [0, 120)
LATGATE_OFF = 128                    # latent-extero gate   -> one 128-wide slot per leg (4x)
PRIV_OFF = 640                       # privileged decoder   -> [640, 690)
EXTDEC_OFF = 768                     # extero decoder       -> [768, 976)
EXTGATE_OFF = 1024                   # extero gate          -> [1024, 1232)
HEAD_OUT = 1280

# canonical ordering of the packed weight arrays fed to the kernel
PARAM_KEYS = (
    # teacher extero encoder
    'te_w1', 'te_b1', 'te_w2', 'te_b2', 'te_w3', 'te_b3',
    # teacher privileged encoder
    'tp_w1', 'tp_b1', 'tp_w2', 'tp_b2', 'tp_w3', 'tp_b3',
    # teacher policy (layer 1 pre-split: proprio / per-leg latent-extero / latent-priv rows)
    'tpo_w1p', 'tpo_w1e', 'tpo_w1v', 'tpo_b1',
    'tpo_w2', 'tpo_b2', 'tpo_w3', 'tpo_b3', 'tpo_w4', 'tpo_b4',
    # student extero encoder
    'se_w1', 'se_b1', 'se_w2', 'se_b2', 'se_w3', 'se_b3',
    # student GRU (gate-packed, 128-aligned gate slots)
    'g0_wip', 'g0_wie', 'g0_bi', 'g0_wh', 'g0_bh',
    'g1_wi', 'g1_bi', 'g1_wh', 'g1_bh',
    # student fused heads (belief / lat-extero-gate / priv-dec / extero-dec / extero-gate)
    'hd_w1', 'hd_b1', 'hd_w2', 'hd_b2', 'hd_w3', 'hd_b3',
    # student policy (layer 1 pre-split: proprio / belief / per-leg gated-latent rows)
    'spo_w1p', 'spo_w1b', 'spo_w1g', 'spo_b1',
    'spo_w2', 'spo_b2', 'spo_w3', 'spo_b3', 'spo_w4', 'spo_b4',
)


# ================================ fused Pallas kernel ================================

def _anymal_fused_kernel(
    # ---- data ----
    proprio_ref, extero_lm_ref, noise_lm_ref, extero_flat_ref, noise_flat_ref,
    privileged_ref, h0_prev_ref, h1_prev_ref,
    # ---- teacher extero encoder ----
    te_w1, te_b1, te_w2, te_b2, te_w3, te_b3,
    # ---- teacher privileged encoder ----
    tp_w1, tp_b1, tp_w2, tp_b2, tp_w3, tp_b3,
    # ---- teacher policy ----
    tpo_w1p, tpo_w1e, tpo_w1v, tpo_b1, tpo_w2, tpo_b2, tpo_w3, tpo_b3, tpo_w4, tpo_b4,
    # ---- student extero encoder ----
    se_w1, se_b1, se_w2, se_b2, se_w3, se_b3,
    # ---- student GRU ----
    g0_wip, g0_wie, g0_bi, g0_wh, g0_bh, g1_wi, g1_bi, g1_wh, g1_bh,
    # ---- student fused heads ----
    hd_w1, hd_b1, hd_w2, hd_b2, hd_w3, hd_b3,
    # ---- student policy ----
    spo_w1p, spo_w1b, spo_w1g, spo_b1, spo_w2, spo_b2, spo_w3, spo_b3, spo_w4, spo_b4,
    # ---- outputs ----
    loss_ref, h_out_ref,
):
    f32 = jnp.float32
    b = proprio_ref.shape[0]
    bp = extero_lm_ref.shape[0] // NUM_LEGS       # padded per-leg batch rows (multiple of 8)
    H = GRU_HIDDEN
    LE = LATENT_EXTERO_DIM
    ED = EXTERO_DIM * NUM_LEGS

    def leaky(x):
        return jnp.where(x > 0, x, 0.01 * x)      # nn.LeakyReLU(negative_slope=0.01)

    def dot(x, w):
        return jnp.dot(x, w, preferred_element_type=f32)

    def enc3(x, w1, b1, w2, b2, w3, b3):
        h = leaky(dot(x, w1[...]) + b1[...])
        h = leaky(dot(h, w2[...]) + b2[...])
        return dot(h, w3[...]) + b3[...]

    def gru_cell(gi, gh, h_prev):
        # PyTorch GRUCell:  r,z from summed pre-acts; n uses r * (W_hn h + b_hn).
        r = jax.nn.sigmoid(gi[:, 0:H] + gh[:, 0:H])
        u = jax.nn.sigmoid(gi[:, GATE_SLOT:GATE_SLOT + H] + gh[:, GATE_SLOT:GATE_SLOT + H])
        n = jnp.tanh(gi[:, 2 * GATE_SLOT:2 * GATE_SLOT + H]
                     + r * gh[:, 2 * GATE_SLOT:2 * GATE_SLOT + H])
        return (1.0 - u) * n + u * h_prev

    proprio = proprio_ref[...]
    privileged = privileged_ref[...]
    noised_lm = extero_lm_ref[...] + noise_lm_ref[...] * NOISE_STRENGTH
    extero_flat = extero_flat_ref[...]
    noised_flat = extero_flat + noise_flat_ref[...] * NOISE_STRENGTH

    # ========================= teacher (frozen; clean observations) =========================
    t_le = enc3(extero_lm_ref[...], te_w1, te_b1, te_w2, te_b2, te_w3, te_b3)   # (4*bp, 24)
    t_lp = enc3(privileged, tp_w1, tp_b1, tp_w2, tp_b2, tp_w3, tp_b3)           # (b, 24)

    # to_logits layer 1 of cat(proprio, latent_extero, latent_priv) as split matmuls
    z = dot(proprio, tpo_w1p[...]) + dot(t_lp, tpo_w1v[...]) + tpo_b1[...]
    for j in range(NUM_LEGS):
        z = z + dot(t_le[j * bp:j * bp + b, :], tpo_w1e[j])
    z = leaky(z)
    z = leaky(dot(z, tpo_w2[...]) + tpo_b2[...])
    z = leaky(dot(z, tpo_w3[...]) + tpo_b3[...])          # LeakyReLU of the action head
    teacher_logits = dot(z, tpo_w4[...]) + tpo_b4[...]    # (b, num_actions)

    # ========================= student (noised observations) =========================
    s_le = enc3(noised_lm, se_w1, se_b1, se_w2, se_b2, se_w3, se_b3)            # (4*bp, 24)

    # ---- GRU cell 0: input = cat(proprio, latent_extero), packed gates [r|z|n] ----
    h0_prev = h0_prev_ref[...]
    gi = dot(proprio, g0_wip[...]) + g0_bi[...]
    for j in range(NUM_LEGS):
        gi = gi + dot(s_le[j * bp:j * bp + b, :], g0_wie[j])
    gh = dot(h0_prev, g0_wh[...]) + g0_bh[...]
    h0 = gru_cell(gi, gh, h0_prev)

    # ---- GRU cell 1 ----
    h1_prev = h1_prev_ref[...]
    gi = dot(h0, g1_wi[...]) + g1_bi[...]
    gh = dot(h1_prev, g1_wh[...]) + g1_bh[...]
    h1 = gru_cell(gi, gh, h1_prev)

    h_out_ref[:, 0:H] = h0
    h_out_ref[:, H:2 * H] = h1
    gru_out = h1

    # ---- five gru_out heads fused into 3 matmuls ----
    hh = leaky(dot(gru_out, hd_w1[...]) + hd_b1[...])     # (b, 320)
    hh = leaky(dot(hh, hd_w2[...]) + hd_b2[...])          # (b, 320)  block-diag
    hh = dot(hh, hd_w3[...]) + hd_b3[...]                 # (b, HEAD_OUT), 128-aligned slots

    belief_raw = hh[:, BELIEF_OFF:BELIEF_OFF + BELIEF_STATE_DIM]     # (b, 120)
    recon_priv = hh[:, PRIV_OFF:PRIV_OFF + PRIVILEGED_DIM]           # (b, 50)
    recon_ext = hh[:, EXTDEC_OFF:EXTDEC_OFF + ED]                    # (b, 208)
    ext_gate = hh[:, EXTGATE_OFF:EXTGATE_OFF + ED]                   # (b, 208)

    # ---- student policy layer 1: cat(proprio, belief_raw + zero-pad(gated_latent_extero)) ----
    # sum_with_zeropad left-pads the 96-wide gated latent by 24, so its contribution hits
    # belief rows [24:120) of W1 -> folded into split matmuls via spo_w1g, no pad/concat.
    z = dot(proprio, spo_w1p[...]) + dot(belief_raw, spo_w1b[...]) + spo_b1[...]
    for j in range(NUM_LEGS):
        gate_j = jax.nn.sigmoid(
            hh[:, LATGATE_OFF + GATE_SLOT * j:LATGATE_OFF + GATE_SLOT * j + LE])
        gated_j = s_le[j * bp:j * bp + b, :] * gate_j
        z = z + dot(gated_j, spo_w1g[j])
    z = leaky(z)
    z = leaky(dot(z, spo_w2[...]) + spo_b2[...])
    z = leaky(dot(z, spo_w3[...]) + spo_b3[...])
    student_logits = dot(z, spo_w4[...]) + spo_b4[...]    # (b, num_actions)

    # ---- extero reconstruction, gated by the NOISED extero (what the student observes) ----
    recon_ext = recon_ext + noised_flat * jax.nn.sigmoid(ext_gate)

    # ---- losses (mse reduction='mean') ----
    behavior = jnp.mean((teacher_logits - student_logits) ** 2, keepdims=True)   # (1, 1)
    recon = (jnp.mean((recon_priv - privileged) ** 2, keepdims=True)
             + jnp.mean((recon_ext - extero_flat) ** 2, keepdims=True))
    loss_ref[...] = (behavior + RECON_LOSS_WEIGHT * recon).astype(f32)


# ============================= parameter construction =============================

def _init_linear(key, din, dout):
    kw, kb = jax.random.split(key)
    bound = 1.0 / (din ** 0.5)
    w = jax.random.uniform(kw, (din, dout), jnp.float32, -bound, bound)
    b = jax.random.uniform(kb, (1, dout), jnp.float32, -bound, bound)
    return w, b


def _init_mlp(key, dims):
    keys = jax.random.split(key, len(dims) - 1)
    return [_init_linear(k, di, do) for k, di, do in zip(keys, dims[:-1], dims[1:])]


def _init_gru_cell_packed(key, din, hidden):
    """PyTorch-style GRUCell init, packed as [r|z|n] with 128-lane-aligned gate slots."""
    keys = jax.random.split(key, 12)
    bound = 1.0 / (hidden ** 0.5)

    def u(k, shape):
        return jax.random.uniform(k, shape, jnp.float32, -bound, bound)

    wi = jnp.zeros((din, 3 * GATE_SLOT), jnp.float32)
    wh = jnp.zeros((hidden, 3 * GATE_SLOT), jnp.float32)
    bi = jnp.zeros((1, 3 * GATE_SLOT), jnp.float32)
    bh = jnp.zeros((1, 3 * GATE_SLOT), jnp.float32)
    for g in range(3):  # r, z, n
        s = g * GATE_SLOT
        wi = wi.at[:, s:s + hidden].set(u(keys[4 * g + 0], (din, hidden)))
        wh = wh.at[:, s:s + hidden].set(u(keys[4 * g + 1], (hidden, hidden)))
        bi = bi.at[:, s:s + hidden].set(u(keys[4 * g + 2], (1, hidden)))
        bh = bh.at[:, s:s + hidden].set(u(keys[4 * g + 3], (1, hidden)))
    return wi, wh, bi, bh


def _init_packed_heads(key):
    """Fuse the 5 gru_out MLP heads: col-concat L1, block-diag L2, slot-scatter L3."""
    dims = (BELIEF_STATE_DIM, LATENT_EXTERO_DIM * NUM_LEGS, PRIVILEGED_DIM,
            EXTERO_DIM * NUM_LEGS, EXTERO_DIM * NUM_LEGS)
    keys = jax.random.split(key, NUM_HEADS)
    heads = [_init_mlp(k, (GRU_HIDDEN, HEAD_HIDDEN, HEAD_HIDDEN, d))
             for k, d in zip(keys, dims)]

    w1 = jnp.concatenate([h[0][0] for h in heads], axis=1)     # (50, 320)
    b1 = jnp.concatenate([h[0][1] for h in heads], axis=1)     # (1, 320)

    w2 = jnp.zeros((NUM_HEADS * HEAD_HIDDEN, NUM_HEADS * HEAD_HIDDEN), jnp.float32)
    for i, h in enumerate(heads):
        w2 = w2.at[i * HEAD_HIDDEN:(i + 1) * HEAD_HIDDEN,
                   i * HEAD_HIDDEN:(i + 1) * HEAD_HIDDEN].set(h[1][0])
    b2 = jnp.concatenate([h[1][1] for h in heads], axis=1)     # (1, 320)

    w3 = jnp.zeros((NUM_HEADS * HEAD_HIDDEN, HEAD_OUT), jnp.float32)
    b3 = jnp.zeros((1, HEAD_OUT), jnp.float32)

    def place(w3, b3, idx, dst, width, src=0):
        w, bb = heads[idx][2]
        w3 = w3.at[idx * HEAD_HIDDEN:(idx + 1) * HEAD_HIDDEN,
                   dst:dst + width].set(w[:, src:src + width])
        b3 = b3.at[:, dst:dst + width].set(bb[:, src:src + width])
        return w3, b3

    w3, b3 = place(w3, b3, 0, BELIEF_OFF, BELIEF_STATE_DIM)
    for j in range(NUM_LEGS):   # latent-extero gate: one 128-wide slot per leg
        w3, b3 = place(w3, b3, 1, LATGATE_OFF + GATE_SLOT * j, LATENT_EXTERO_DIM,
                       src=LATENT_EXTERO_DIM * j)
    w3, b3 = place(w3, b3, 2, PRIV_OFF, PRIVILEGED_DIM)
    w3, b3 = place(w3, b3, 3, EXTDEC_OFF, EXTERO_DIM * NUM_LEGS)
    w3, b3 = place(w3, b3, 4, EXTGATE_OFF, EXTERO_DIM * NUM_LEGS)
    return w1, b1, w2, b2, w3, b3


def init_anymal_params(key, num_actions=NUM_ACTIONS):
    keys = jax.random.split(key, 8)
    p = {}

    def store_mlp(prefix, layers, start=1):
        for i, (w, b) in enumerate(layers, start=start):
            p[f'{prefix}_w{i}'] = w
            p[f'{prefix}_b{i}'] = b

    # ---------------- teacher ----------------
    store_mlp('te', _init_mlp(keys[0], (EXTERO_DIM, 80, 60, LATENT_EXTERO_DIM)))
    store_mlp('tp', _init_mlp(keys[1], (PRIVILEGED_DIM, 64, 32, LATENT_PRIVILEGED_DIM)))

    t_in = PROPRIO_DIM + LATENT_EXTERO_DIM * NUM_LEGS + LATENT_PRIVILEGED_DIM   # 253
    layers = _init_mlp(keys[2], (t_in, *MLP_HIDDEN, num_actions))
    w1, b1 = layers[0]
    p['tpo_w1p'] = w1[:PROPRIO_DIM]
    p['tpo_w1e'] = w1[PROPRIO_DIM:PROPRIO_DIM + LATENT_EXTERO_DIM * NUM_LEGS].reshape(
        NUM_LEGS, LATENT_EXTERO_DIM, -1)                                         # (4, 24, 256)
    p['tpo_w1v'] = w1[PROPRIO_DIM + LATENT_EXTERO_DIM * NUM_LEGS:]
    p['tpo_b1'] = b1
    store_mlp('tpo', layers[1:], start=2)

    # ---------------- student ----------------
    store_mlp('se', _init_mlp(keys[3], (EXTERO_DIM, 80, 60, LATENT_EXTERO_DIM)))

    gru_in = PROPRIO_DIM + LATENT_EXTERO_DIM * NUM_LEGS                          # 229
    wi0, wh0, bi0, bh0 = _init_gru_cell_packed(keys[4], gru_in, GRU_HIDDEN)
    p['g0_wip'] = wi0[:PROPRIO_DIM]
    p['g0_wie'] = wi0[PROPRIO_DIM:].reshape(NUM_LEGS, LATENT_EXTERO_DIM, -1)     # (4, 24, 384)
    p['g0_bi'], p['g0_wh'], p['g0_bh'] = bi0, wh0, bh0
    wi1, wh1, bi1, bh1 = _init_gru_cell_packed(keys[5], GRU_HIDDEN, GRU_HIDDEN)
    p['g1_wi'], p['g1_bi'], p['g1_wh'], p['g1_bh'] = wi1, bi1, wh1, bh1

    (p['hd_w1'], p['hd_b1'], p['hd_w2'], p['hd_b2'],
     p['hd_w3'], p['hd_b3']) = _init_packed_heads(keys[6])

    s_in = PROPRIO_DIM + BELIEF_STATE_DIM                                        # 253
    layers = _init_mlp(keys[7], (s_in, *MLP_HIDDEN, num_actions))
    w1, b1 = layers[0]
    p['spo_w1p'] = w1[:PROPRIO_DIM]
    p['spo_w1b'] = w1[PROPRIO_DIM:]                                              # (120, 256)
    # gated latent extero hits belief positions [24, 120) -> rows [157, 253) of W1
    p['spo_w1g'] = w1[PROPRIO_DIM + LATENT_EXTERO_DIM:].reshape(
        NUM_LEGS, LATENT_EXTERO_DIM, -1)                                         # (4, 24, 256)
    p['spo_b1'] = b1
    store_mlp('spo', layers[1:], start=2)

    return p


# ================================ full forward pass ================================

def _to_leg_major(x, bp):
    """(b, NUM_LEGS, D) -> (NUM_LEGS*bp, D) leg-major; rows [j*bp, j*bp+b) hold leg j."""
    b, n, d = x.shape
    x = jnp.swapaxes(x, 0, 1)                        # (NUM_LEGS, b, D)
    x = jnp.pad(x, ((0, 0), (0, bp - b), (0, 0)))    # pad batch rows to sublane multiple
    return x.reshape(n * bp, d)


def anymal_forward(params, proprio, extero, privileged, noise, hiddens=None):
    """Mirrors Anymal.forward(proprio, extero, privileged, hiddens=hiddens).

    `noise` plays the role of torch.rand_like(extero) (uniform in [0, 1)).
    Returns (loss, next_hiddens) with next_hiddens of shape (b, GRU_NUM_LAYERS, GRU_HIDDEN).
    """
    b = proprio.shape[0]
    bp = ((b + 7) // 8) * 8            # per-leg batch rows padded to the f32 sublane tile

    extero_lm = _to_leg_major(extero, bp)
    noise_lm = _to_leg_major(noise, bp)
    extero_flat = extero.reshape(b, NUM_LEGS * EXTERO_DIM)
    noise_flat = noise.reshape(b, NUM_LEGS * EXTERO_DIM)

    if hiddens is None:                # hiddens=None -> zero GRU state (PyTorch GRUCell)
        h0_prev = jnp.zeros((b, GRU_HIDDEN), jnp.float32)
        h1_prev = jnp.zeros((b, GRU_HIDDEN), jnp.float32)
    else:
        h0_prev = hiddens[:, 0, :]
        h1_prev = hiddens[:, 1, :]

    data = (proprio, extero_lm, noise_lm, extero_flat, noise_flat,
            privileged, h0_prev, h1_prev)
    weights = tuple(params[k] for k in PARAM_KEYS)

    out_shape = (jax.ShapeDtypeStruct((1, 1), jnp.float32),
                 jax.ShapeDtypeStruct((b, GRU_NUM_LAYERS * GRU_HIDDEN), jnp.float32))

    loss, h_cat = pl.pallas_call(
        _anymal_fused_kernel,
        out_shape=out_shape,
        compiler_params=pltpu.CompilerParams(vmem_limit_bytes=32 * 1024 * 1024),
    )(*data, *weights)

    next_hiddens = h_cat.reshape(b, GRU_NUM_LAYERS, GRU_HIDDEN)   # row = [h0 | h1]
    return loss[0, 0], next_hiddens


# ====================================== main ======================================

if __name__ == "__main__":
    key = jax.random.PRNGKey(0)
    k_p, k_e, k_pr, k_n, k_params = jax.random.split(key, 5)

    B = 2
    proprio = jax.random.normal(k_p, (B, PROPRIO_DIM), jnp.float32)
    extero = jax.random.normal(k_e, (B, NUM_LEGS, EXTERO_DIM), jnp.float32)
    privileged = jax.random.normal(k_pr, (B, PRIVILEGED_DIM), jnp.float32)
    noise = jax.random.uniform(k_n, extero.shape, jnp.float32)   # torch.rand_like analogue

    params = init_anymal_params(k_params, NUM_ACTIONS)

    fwd = jax.jit(anymal_forward)
    loss, hiddens = fwd(params, proprio, extero, privileged, noise)
    jax.block_until_ready((loss, hiddens))

    assert loss.shape == ()
    assert hiddens.shape == (B, GRU_NUM_LAYERS, GRU_HIDDEN)
    assert bool(jnp.isfinite(loss))
    print("KERNEL_OK")
</pallas_src>

<mosaic_0001>
module attributes {stable_mosaic.version = 11 : i64} {
  func.func @_anymal_fused_kernel(%arg0: memref<2x133xf32, #tpu.memory_space<vmem>>, %arg1: memref<32x52xf32, #tpu.memory_space<vmem>>, %arg2: memref<32x52xf32, #tpu.memory_space<vmem>>, %arg3: memref<2x208xf32, #tpu.memory_space<vmem>>, %arg4: memref<2x208xf32, #tpu.memory_space<vmem>>, %arg5: memref<2x50xf32, #tpu.memory_space<vmem>>, %arg6: memref<2x50xf32, #tpu.memory_space<vmem>>, %arg7: memref<2x50xf32, #tpu.memory_space<vmem>>, %arg8: memref<52x80xf32, #tpu.memory_space<vmem>>, %arg9: memref<1x80xf32, #tpu.memory_space<vmem>>, %arg10: memref<80x60xf32, #tpu.memory_space<vmem>>, %arg11: memref<1x60xf32, #tpu.memory_space<vmem>>, %arg12: memref<60x24xf32, #tpu.memory_space<vmem>>, %arg13: memref<1x24xf32, #tpu.memory_space<vmem>>, %arg14: memref<50x64xf32, #tpu.memory_space<vmem>>, %arg15: memref<1x64xf32, #tpu.memory_space<vmem>>, %arg16: memref<64x32xf32, #tpu.memory_space<vmem>>, %arg17: memref<1x32xf32, #tpu.memory_space<vmem>>, %arg18: memref<32x24xf32, #tpu.memory_space<vmem>>, %arg19: memref<1x24xf32, #tpu.memory_space<vmem>>, %arg20: memref<133x256xf32, #tpu.memory_space<vmem>>, %arg21: memref<4x24x256xf32, #tpu.memory_space<vmem>>, %arg22: memref<24x256xf32, #tpu.memory_space<vmem>>, %arg23: memref<1x256xf32, #tpu.memory_space<vmem>>, %arg24: memref<256x160xf32, #tpu.memory_space<vmem>>, %arg25: memref<1x160xf32, #tpu.memory_space<vmem>>, %arg26: memref<160x128xf32, #tpu.memory_space<vmem>>, %arg27: memref<1x128xf32, #tpu.memory_space<vmem>>, %arg28: memref<128x8xf32, #tpu.memory_space<vmem>>, %arg29: memref<1x8xf32, #tpu.memory_space<vmem>>, %arg30: memref<52x80xf32, #tpu.memory_space<vmem>>, %arg31: memref<1x80xf32, #tpu.memory_space<vmem>>, %arg32: memref<80x60xf32, #tpu.memory_space<vmem>>, %arg33: memref<1x60xf32, #tpu.memory_space<vmem>>, %arg34: memref<60x24xf32, #tpu.memory_space<vmem>>, %arg35: memref<1x24xf32, #tpu.memory_space<vmem>>, %arg36: memref<133x384xf32, #tpu.memory_space<vmem>>, %arg37: memref<4x24x384xf32, #tpu.memory_space<vmem>>, %arg38: memref<1x384xf32, #tpu.memory_space<vmem>>, %arg39: memref<50x384xf32, #tpu.memory_space<vmem>>, %arg40: memref<1x384xf32, #tpu.memory_space<vmem>>, %arg41: memref<50x384xf32, #tpu.memory_space<vmem>>, %arg42: memref<1x384xf32, #tpu.memory_space<vmem>>, %arg43: memref<50x384xf32, #tpu.memory_space<vmem>>, %arg44: memref<1x384xf32, #tpu.memory_space<vmem>>, %arg45: memref<50x320xf32, #tpu.memory_space<vmem>>, %arg46: memref<1x320xf32, #tpu.memory_space<vmem>>, %arg47: memref<320x320xf32, #tpu.memory_space<vmem>>, %arg48: memref<1x320xf32, #tpu.memory_space<vmem>>, %arg49: memref<320x1280xf32, #tpu.memory_space<vmem>>, %arg50: memref<1x1280xf32, #tpu.memory_space<vmem>>, %arg51: memref<133x256xf32, #tpu.memory_space<vmem>>, %arg52: memref<120x256xf32, #tpu.memory_space<vmem>>, %arg53: memref<4x24x256xf32, #tpu.memory_space<vmem>>, %arg54: memref<1x256xf32, #tpu.memory_space<vmem>>, %arg55: memref<256x160xf32, #tpu.memory_space<vmem>>, %arg56: memref<1x160xf32, #tpu.memory_space<vmem>>, %arg57: memref<160x128xf32, #tpu.memory_space<vmem>>, %arg58: memref<1x128xf32, #tpu.memory_space<vmem>>, %arg59: memref<128x8xf32, #tpu.memory_space<vmem>>, %arg60: memref<1x8xf32, #tpu.memory_space<vmem>>, %arg61: memref<1x1xf32, #tpu.memory_space<vmem>>, %arg62: memref<2x100xf32, #tpu.memory_space<vmem>>) attributes {dimension_semantics = [], scalar_prefetch = 0 : i64, scratch_operands = 0 : i64, tpu.core_type = #tpu.core_type<tc>} {
    %c0 = arith.constant 0 : index
    %c0_0 = arith.constant 0 : index
    %0 = vector.load %arg0[%c0, %c0_0] : memref<2x133xf32, #tpu.memory_space<vmem>>, vector<2x133xf32>
    %c0_1 = arith.constant 0 : index
    %c0_2 = arith.constant 0 : index
    %1 = vector.load %arg5[%c0_1, %c0_2] : memref<2x50xf32, #tpu.memory_space<vmem>>, vector<2x50xf32>
    %c0_3 = arith.constant 0 : index
    %c0_4 = arith.constant 0 : index
    %2 = vector.load %arg1[%c0_3, %c0_4] : memref<32x52xf32, #tpu.memory_space<vmem>>, vector<32x52xf32>
    %c0_5 = arith.constant 0 : index
    %c0_6 = arith.constant 0 : index
    %3 = vector.load %arg2[%c0_5, %c0_6] : memref<32x52xf32, #tpu.memory_space<vmem>>, vector<32x52xf32>
    %cst = arith.constant 1.000000e-01 : f32
    %4 = vector.broadcast %cst : f32 to vector<32x52xf32>
    %5 = arith.mulf %3, %4 : vector<32x52xf32>
    %6 = arith.addf %2, %5 : vector<32x52xf32>
    %c0_7 = arith.constant 0 : index
    %c0_8 = arith.constant 0 : index
    %7 = vector.load %arg3[%c0_7, %c0_8] : memref<2x208xf32, #tpu.memory_space<vmem>>, vector<2x208xf32>
    %c0_9 = arith.constant 0 : index
    %c0_10 = arith.constant 0 : index
    %8 = vector.load %arg4[%c0_9, %c0_10] : memref<2x208xf32, #tpu.memory_space<vmem>>, vector<2x208xf32>
    %cst_11 = arith.constant 1.000000e-01 : f32
    %9 = vector.broadcast %cst_11 : f32 to vector<2x208xf32>
    %10 = arith.mulf %8, %9 : vector<2x208xf32>
    %11 = arith.addf %7, %10 : vector<2x208xf32>
    %c0_12 = arith.constant 0 : index
    %c0_13 = arith.constant 0 : index
    %12 = vector.load %arg1[%c0_12, %c0_13] : memref<32x52xf32, #tpu.memory_space<vmem>>, vector<32x52xf32>
    %c0_14 = arith.constant 0 : index
    %c0_15 = arith.constant 0 : index
    %13 = vector.load %arg8[%c0_14, %c0_15] : memref<52x80xf32, #tpu.memory_space<vmem>>, vector<52x80xf32>
    %cst_16 = arith.constant dense<0.000000e+00> : vector<32x80xf32>
    %14 = tpu.matmul %12, %13, %cst_16 {dimension_numbers = #tpu.dot_dimension_numbers<[1], [0], [0], [1], [0, 0, 1, 1], [], []>} : vector<32x52xf32>, vector<52x80xf32>, vector<32x80xf32> -> vector<32x80xf32>
    %c0_17 = arith.constant 0 : index
    %c0_18 = arith.constant 0 : index
    %15 = vector.load %arg9[%c0_17, %c0_18] : memref<1x80xf32, #tpu.memory_space<vmem>>, vector<1x80xf32>
    %16 = vector.broadcast %15 : vector<1x80xf32> to vector<32x80xf32>
    %17 = arith.addf %14, %16 : vector<32x80xf32>
    %cst_19 = arith.constant 0.000000e+00 : f32
    %18 = vector.broadcast %cst_19 : f32 to vector<32x80xf32>
    %19 = arith.cmpf ogt, %17, %18 : vector<32x80xf32>
    %cst_20 = arith.constant 0.00999999977 : f32
    %20 = vector.broadcast %cst_20 : f32 to vector<32x80xf32>
    %21 = arith.mulf %20, %17 : vector<32x80xf32>
    %22 = arith.select %19, %17, %21 : vector<32x80xi1>, vector<32x80xf32>
    %c0_21 = arith.constant 0 : index
    %c0_22 = arith.constant 0 : index
    %23 = vector.load %arg10[%c0_21, %c0_22] : memref<80x60xf32, #tpu.memory_space<vmem>>, vector<80x60xf32>
    %cst_23 = arith.constant dense<0.000000e+00> : vector<32x60xf32>
    %24 = tpu.matmul %22, %23, %cst_23 {dimension_numbers = #tpu.dot_dimension_numbers<[1], [0], [0], [1], [0, 0, 1, 1], [], []>} : vector<32x80xf32>, vector<80x60xf32>, vector<32x60xf32> -> vector<32x60xf32>
    %c0_24 = arith.constant 0 : index
    %c0_25 = arith.constant 0 : index
    %25 = vector.load %arg11[%c0_24, %c0_25] : memref<1x60xf32, #tpu.memory_space<vmem>>, vector<1x60xf32>
    %26 = vector.broadcast %25 : vector<1x60xf32> to vector<32x60xf32>
    %27 = arith.addf %24, %26 : vector<32x60xf32>
    %cst_26 = arith.constant 0.000000e+00 : f32
    %28 = vector.broadcast %cst_26 : f32 to vector<32x60xf32>
    %29 = arith.cmpf ogt, %27, %28 : vector<32x60xf32>
    %cst_27 = arith.constant 0.00999999977 : f32
    %30 = vector.broadcast %cst_27 : f32 to vector<32x60xf32>
    %31 = arith.mulf %30, %27 : vector<32x60xf32>
    %32 = arith.select %29, %27, %31 : vector<32x60xi1>, vector<32x60xf32>
    %c0_28 = arith.constant 0 : index
    %c0_29 = arith.constant 0 : index
    %33 = vector.load %arg12[%c0_28, %c0_29] : memref<60x24xf32, #tpu.memory_space<vmem>>, vector<60x24xf32>
    %cst_30 = arith.constant dense<0.000000e+00> : vector<32x24xf32>
    %34 = tpu.matmul %32, %33, %cst_30 {dimension_numbers = #tpu.dot_dimension_numbers<[1], [0], [0], [1], [0, 0, 1, 1], [], []>} : vector<32x60xf32>, vector<60x24xf32>, vector<32x24xf32> -> vector<32x24xf32>
    %c0_31 = arith.constant 0 : index
    %c0_32 = arith.constant 0 : index
    %35 = vector.load %arg13[%c0_31, %c0_32] : memref<1x24xf32, #tpu.memory_space<vmem>>, vector<1x24xf32>
    %36 = vector.broadcast %35 : vector<1x24xf32> to vector<32x24xf32>
    %37 = arith.addf %34, %36 : vector<32x24xf32>
    %c0_33 = arith.constant 0 : index
    %c0_34 = arith.constant 0 : index
    %38 = vector.load %arg14[%c0_33, %c0_34] : memref<50x64xf32, #tpu.memory_space<vmem>>, vector<50x64xf32>
    %cst_35 = arith.constant dense<0.000000e+00> : vector<2x64xf32>
    %39 = tpu.matmul %1, %38, %cst_35 {dimension_numbers = #tpu.dot_dimension_numbers<[1], [0], [0], [1], [0, 0, 1, 1], [], []>} : vector<2x50xf32>, vector<50x64xf32>, vector<2x64xf32> -> vector<2x64xf32>
    %c0_36 = arith.constant 0 : index
    %c0_37 = arith.constant 0 : index
    %40 = vector.load %arg15[%c0_36, %c0_37] : memref<1x64xf32, #tpu.memory_space<vmem>>, vector<1x64xf32>
    %41 = vector.broadcast %40 : vector<1x64xf32> to vector<2x64xf32>
    %42 = arith.addf %39, %41 : vector<2x64xf32>
    %cst_38 = arith.constant 0.000000e+00 : f32
    %43 = vector.broadcast %cst_38 : f32 to vector<2x64xf32>
    %44 = arith.cmpf ogt, %42, %43 : vector<2x64xf32>
    %cst_39 = arith.constant 0.00999999977 : f32
    %45 = vector.broadcast %cst_39 : f32 to vector<2x64xf32>
    %46 = arith.mulf %45, %42 : vector<2x64xf32>
    %47 = arith.select %44, %42, %46 : vector<2x64xi1>, vector<2x64xf32>
    %c0_40 = arith.constant 0 : index
    %c0_41 = arith.constant 0 : index
    %48 = vector.load %arg16[%c0_40, %c0_41] : memref<64x32xf32, #tpu.memory_space<vmem>>, vector<64x32xf32>
    %cst_42 = arith.constant dense<0.000000e+00> : vector<2x32xf32>
    %49 = tpu.matmul %47, %48, %cst_42 {dimension_numbers = #tpu.dot_dimension_numbers<[1], [0], [0], [1], [0, 0, 1, 1], [], []>} : vector<2x64xf32>, vector<64x32xf32>, vector<2x32xf32> -> vector<2x32xf32>
    %c0_43 = arith.constant 0 : index
    %c0_44 = arith.constant 0 : index
    %50 = vector.load %arg17[%c0_43, %c0_44] : memref<1x32xf32, #tpu.memory_space<vmem>>, vector<1x32xf32>
    %51 = vector.broadcast %50 : vector<1x32xf32> to vector<2x32xf32>
    %52 = arith.addf %49, %51 : vector<2x32xf32>
    %cst_45 = arith.constant 0.000000e+00 : f32
    %53 = vector.broadcast %cst_45 : f32 to vector<2x32xf32>
    %54 = arith.cmpf ogt, %52, %53 : vector<2x32xf32>
    %cst_46 = arith.constant 0.00999999977 : f32
    %55 = vector.broadcast %cst_46 : f32 to vector<2x32xf32>
    %56 = arith.mulf %55, %52 : vector<2x32xf32>
    %57 = arith.select %54, %52, %56 : vector<2x32xi1>, vector<2x32xf32>
    %c0_47 = arith.constant 0 : index
    %c0_48 = arith.constant 0 : index
    %58 = vector.load %arg18[%c0_47, %c0_48] : memref<32x24xf32, #tpu.memory_space<vmem>>, vector<32x24xf32>
    %cst_49 = arith.constant dense<0.000000e+00> : vector<2x24xf32>
    %59 = tpu.matmul %57, %58, %cst_49 {dimension_numbers = #tpu.dot_dimension_numbers<[1], [0], [0], [1], [0, 0, 1, 1], [], []>} : vector<2x32xf32>, vector<32x24xf32>, vector<2x24xf32> -> vector<2x24xf32>
    %c0_50 = arith.constant 0 : index
    %c0_51 = arith.constant 0 : index
    %60 = vector.load %arg19[%c0_50, %c0_51] : memref<1x24xf32, #tpu.memory_space<vmem>>, vector<1x24xf32>
    %61 = vector.broadcast %60 : vector<1x24xf32> to vector<2x24xf32>
    %62 = arith.addf %59, %61 : vector<2x24xf32>
    %c0_52 = arith.constant 0 : index
    %c0_53 = arith.constant 0 : index
    %63 = vector.load %arg20[%c0_52, %c0_53] : memref<133x256xf32, #tpu.memory_space<vmem>>, vector<133x256xf32>
    %cst_54 = arith.constant dense<0.000000e+00> : vector<2x256xf32>
    %64 = tpu.matmul %0, %63, %cst_54 {dimension_numbers = #tpu.dot_dimension_numbers<[1], [0], [0], [1], [0, 0, 1, 1], [], []>} : vector<2x133xf32>, vector<133x256xf32>, vector<2x256xf32> -> vector<2x256xf32>
    %c0_55 = arith.constant 0 : index
    %c0_56 = arith.constant 0 : index
    %65 = vector.load %arg22[%c0_55, %c0_56] : memref<24x256xf32, #tpu.memory_space<vmem>>, vector<24x256xf32>
    %cst_57 = arith.constant dense<0.000000e+00> : vector<2x256xf32>
    %66 = tpu.matmul %62, %65, %cst_57 {dimension_numbers = #tpu.dot_dimension_numbers<[1], [0], [0], [1], [0, 0, 1, 1], [], []>} : vector<2x24xf32>, vector<24x256xf32>, vector<2x256xf32> -> vector<2x256xf32>
    %67 = arith.addf %64, %66 : vector<2x256xf32>
    %c0_58 = arith.constant 0 : index
    %c0_59 = arith.constant 0 : index
    %68 = vector.load %arg23[%c0_58, %c0_59] : memref<1x256xf32, #tpu.memory_space<vmem>>, vector<1x256xf32>
    %69 = vector.broadcast %68 : vector<1x256xf32> to vector<2x256xf32>
    %70 = arith.addf %67, %69 : vector<2x256xf32>
    %71 = vector.extract_strided_slice %37 {offsets = [0, 0], sizes = [2, 24], strides = [1, 1]} : vector<32x24xf32> to vector<2x24xf32>
    %c0_60 = arith.constant 0 : index
    %c0_61 = arith.constant 0 : index
    %c0_62 = arith.constant 0 : index
    %72 = vector.load %arg21[%c0_60, %c0_61, %c0_62] : memref<4x24x256xf32, #tpu.memory_space<vmem>>, vector<1x24x256xf32>
    %73 = vector.shape_cast %72 : vector<1x24x256xf32> to vector<24x256xf32>
    %cst_63 = arith.constant dense<0.000000e+00> : vector<2x256xf32>
    %74 = tpu.matmul %71, %73, %cst_63 {dimension_numbers = #tpu.dot_dimension_numbers<[1], [0], [0], [1], [0, 0, 1, 1], [], []>} : vector<2x24xf32>, vector<24x256xf32>, vector<2x256xf32> -> vector<2x256xf32>
    %75 = arith.addf %70, %74 : vector<2x256xf32>
    %76 = vector.extract_strided_slice %37 {offsets = [8, 0], sizes = [2, 24], strides = [1, 1]} : vector<32x24xf32> to vector<2x24xf32>
    %c1 = arith.constant 1 : index
    %c0_64 = arith.constant 0 : index
    %c0_65 = arith.constant 0 : index
    %77 = vector.load %arg21[%c1, %c0_64, %c0_65] : memref<4x24x256xf32, #tpu.memory_space<vmem>>, vector<1x24x256xf32>
    %78 = vector.shape_cast %77 : vector<1x24x256xf32> to vector<24x256xf32>
    %cst_66 = arith.constant dense<0.000000e+00> : vector<2x256xf32>
    %79 = tpu.matmul %76, %78, %cst_66 {dimension_numbers = #tpu.dot_dimension_numbers<[1], [0], [0], [1], [0, 0, 1, 1], [], []>} : vector<2x24xf32>, vector<24x256xf32>, vector<2x256xf32> -> vector<2x256xf32>
    %80 = arith.addf %75, %79 : vector<2x256xf32>
    %81 = vector.extract_strided_slice %37 {offsets = [16, 0], sizes = [2, 24], strides = [1, 1]} : vector<32x24xf32> to vector<2x24xf32>
    %c2 = arith.constant 2 : index
    %c0_67 = arith.constant 0 : index
    %c0_68 = arith.constant 0 : index
    %82 = vector.load %arg21[%c2, %c0_67, %c0_68] : memref<4x24x256xf32, #tpu.memory_space<vmem>>, vector<1x24x256xf32>
    %83 = vector.shape_cast %82 : vector<1x24x256xf32> to vector<24x256xf32>
    %cst_69 = arith.constant dense<0.000000e+00> : vector<2x256xf32>
    %84 = tpu.matmul %81, %83, %cst_69 {dimension_numbers = #tpu.dot_dimension_numbers<[1], [0], [0], [1], [0, 0, 1, 1], [], []>} : vector<2x24xf32>, vector<24x256xf32>, vector<2x256xf32> -> vector<2x256xf32>
    %85 = arith.addf %80, %84 : vector<2x256xf32>
    %86 = vector.extract_strided_slice %37 {offsets = [24, 0], sizes = [2, 24], strides = [1, 1]} : vector<32x24xf32> to vector<2x24xf32>
    %c3 = arith.constant 3 : index
    %c0_70 = arith.constant 0 : index
    %c0_71 = arith.constant 0 : index
    %87 = vector.load %arg21[%c3, %c0_70, %c0_71] : memref<4x24x256xf32, #tpu.memory_space<vmem>>, vector<1x24x256xf32>
    %88 = vector.shape_cast %87 : vector<1x24x256xf32> to vector<24x256xf32>
    %cst_72 = arith.constant dense<0.000000e+00> : vector<2x256xf32>
    %89 = tpu.matmul %86, %88, %cst_72 {dimension_numbers = #tpu.dot_dimension_numbers<[1], [0], [0], [1], [0, 0, 1, 1], [], []>} : vector<2x24xf32>, vector<24x256xf32>, vector<2x256xf32> -> vector<2x256xf32>
    %90 = arith.addf %85, %89 : vector<2x256xf32>
    %cst_73 = arith.constant 0.000000e+00 : f32
    %91 = vector.broadcast %cst_73 : f32 to vector<2x256xf32>
    %92 = arith.cmpf ogt, %90, %91 : vector<2x256xf32>
    %cst_74 = arith.constant 0.00999999977 : f32
    %93 = vector.broadcast %cst_74 : f32 to vector<2x256xf32>
    %94 = arith.mulf %93, %90 : vector<2x256xf32>
    %95 = arith.select %92, %90, %94 : vector<2x256xi1>, vector<2x256xf32>
    %c0_75 = arith.constant 0 : index
    %c0_76 = arith.constant 0 : index
    %96 = vector.load %arg24[%c0_75, %c0_76] : memref<256x160xf32, #tpu.memory_space<vmem>>, vector<256x160xf32>
    %cst_77 = arith.constant dense<0.000000e+00> : vector<2x160xf32>
    %97 = tpu.matmul %95, %96, %cst_77 {dimension_numbers = #tpu.dot_dimension_numbers<[1], [0], [0], [1], [0, 0, 1, 1], [], []>} : vector<2x256xf32>, vector<256x160xf32>, vector<2x160xf32> -> vector<2x160xf32>
    %c0_78 = arith.constant 0 : index
    %c0_79 = arith.constant 0 : index
    %98 = vector.load %arg25[%c0_78, %c0_79] : memref<1x160xf32, #tpu.memory_space<vmem>>, vector<1x160xf32>
    %99 = vector.broadcast %98 : vector<1x160xf32> to vector<2x160xf32>
    %100 = arith.addf %97, %99 : vector<2x160xf32>
    %cst_80 = arith.constant 0.000000e+00 : f32
    %101 = vector.broadcast %cst_80 : f32 to vector<2x160xf32>
    %102 = arith.cmpf ogt, %100, %101 : vector<2x160xf32>
    %cst_81 = arith.constant 0.00999999977 : f32
    %103 = vector.broadcast %cst_81 : f32 to vector<2x160xf32>
    %104 = arith.mulf %103, %100 : vector<2x160xf32>
    %105 = arith.select %102, %100, %104 : vector<2x160xi1>, vector<2x160xf32>
    %c0_82 = arith.constant 0 : index
    %c0_83 = arith.constant 0 : index
    %106 = vector.load %arg26[%c0_82, %c0_83] : memref<160x128xf32, #tpu.memory_space<vmem>>, vector<160x128xf32>
    %cst_84 = arith.constant dense<0.000000e+00> : vector<2x128xf32>
    %107 = tpu.matmul %105, %106, %cst_84 {dimension_numbers = #tpu.dot_dimension_numbers<[1], [0], [0], [1], [0, 0, 1, 1], [], []>} : vector<2x160xf32>, vector<160x128xf32>, vector<2x128xf32> -> vector<2x128xf32>
    %c0_85 = arith.constant 0 : index
    %c0_86 = arith.constant 0 : index
    %108 = vector.load %arg27[%c0_85, %c0_86] : memref<1x128xf32, #tpu.memory_space<vmem>>, vector<1x128xf32>
    %109 = vector.broadcast %108 : vector<1x128xf32> to vector<2x128xf32>
    %110 = arith.addf %107, %109 : vector<2x128xf32>
    %cst_87 = arith.constant 0.000000e+00 : f32
    %111 = vector.broadcast %cst_87 : f32 to vector<2x128xf32>
    %112 = arith.cmpf ogt, %110, %111 : vector<2x128xf32>
    %cst_88 = arith.constant 0.00999999977 : f32
    %113 = vector.broadcast %cst_88 : f32 to vector<2x128xf32>
    %114 = arith.mulf %113, %110 : vector<2x128xf32>
    %115 = arith.select %112, %110, %114 : vector<2x128xi1>, vector<2x128xf32>
    %c0_89 = arith.constant 0 : index
    %c0_90 = arith.constant 0 : index
    %116 = vector.load %arg28[%c0_89, %c0_90] : memref<128x8xf32, #tpu.memory_space<vmem>>, vector<128x8xf32>
    %cst_91 = arith.constant dense<0.000000e+00> : vector<2x8xf32>
    %117 = tpu.matmul %115, %116, %cst_91 {dimension_numbers = #tpu.dot_dimension_numbers<[1], [0], [0], [1], [0, 0, 1, 1], [], []>} : vector<2x128xf32>, vector<128x8xf32>, vector<2x8xf32> -> vector<2x8xf32>
    %c0_92 = arith.constant 0 : index
    %c0_93 = arith.constant 0 : index
    %118 = vector.load %arg29[%c0_92, %c0_93] : memref<1x8xf32, #tpu.memory_space<vmem>>, vector<1x8xf32>
    %119 = vector.broadcast %118 : vector<1x8xf32> to vector<2x8xf32>
    %120 = arith.addf %117, %119 : vector<2x8xf32>
    %c0_94 = arith.constant 0 : index
    %c0_95 = arith.constant 0 : index
    %121 = vector.load %arg30[%c0_94, %c0_95] : memref<52x80xf32, #tpu.memory_space<vmem>>, vector<52x80xf32>
    %cst_96 = arith.constant dense<0.000000e+00> : vector<32x80xf32>
    %122 = tpu.matmul %6, %121, %cst_96 {dimension_numbers = #tpu.dot_dimension_numbers<[1], [0], [0], [1], [0, 0, 1, 1], [], []>} : vector<32x52xf32>, vector<52x80xf32>, vector<32x80xf32> -> vector<32x80xf32>
    %c0_97 = arith.constant 0 : index
    %c0_98 = arith.constant 0 : index
    %123 = vector.load %arg31[%c0_97, %c0_98] : memref<1x80xf32, #tpu.memory_space<vmem>>, vector<1x80xf32>
    %124 = vector.broadcast %123 : vector<1x80xf32> to vector<32x80xf32>
    %125 = arith.addf %122, %124 : vector<32x80xf32>
    %cst_99 = arith.constant 0.000000e+00 : f32
    %126 = vector.broadcast %cst_99 : f32 to vector<32x80xf32>
    %127 = arith.cmpf ogt, %125, %126 : vector<32x80xf32>
    %cst_100 = arith.constant 0.00999999977 : f32
    %128 = vector.broadcast %cst_100 : f32 to vector<32x80xf32>
    %129 = arith.mulf %128, %125 : vector<32x80xf32>
    %130 = arith.select %127, %125, %129 : vector<32x80xi1>, vector<32x80xf32>
    %c0_101 = arith.constant 0 : index
    %c0_102 = arith.constant 0 : index
    %131 = vector.load %arg32[%c0_101, %c0_102] : memref<80x60xf32, #tpu.memory_space<vmem>>, vector<80x60xf32>
    %cst_103 = arith.constant dense<0.000000e+00> : vector<32x60xf32>
    %132 = tpu.matmul %130, %131, %cst_103 {dimension_numbers = #tpu.dot_dimension_numbers<[1], [0], [0], [1], [0, 0, 1, 1], [], []>} : vector<32x80xf32>, vector<80x60xf32>, vector<32x60xf32> -> vector<32x60xf32>
    %c0_104 = arith.constant 0 : index
    %c0_105 = arith.constant 0 : index
    %133 = vector.load %arg33[%c0_104, %c0_105] : memref<1x60xf32, #tpu.memory_space<vmem>>, vector<1x60xf32>
    %134 = vector.broadcast %133 : vector<1x60xf32> to vector<32x60xf32>
    %135 = arith.addf %132, %134 : vector<32x60xf32>
    %cst_106 = arith.constant 0.000000e+00 : f32
    %136 = vector.broadcast %cst_106 : f32 to vector<32x60xf32>
    %137 = arith.cmpf ogt, %135, %136 : vector<32x60xf32>
    %cst_107 = arith.constant 0.00999999977 : f32
    %138 = vector.broadcast %cst_107 : f32 to vector<32x60xf32>
    %139 = arith.mulf %138, %135 : vector<32x60xf32>
    %140 = arith.select %137, %135, %139 : vector<32x60xi1>, vector<32x60xf32>
    %c0_108 = arith.constant 0 : index
    %c0_109 = arith.constant 0 : index
    %141 = vector.load %arg34[%c0_108, %c0_109] : memref<60x24xf32, #tpu.memory_space<vmem>>, vector<60x24xf32>
    %cst_110 = arith.constant dense<0.000000e+00> : vector<32x24xf32>
    %142 = tpu.matmul %140, %141, %cst_110 {dimension_numbers = #tpu.dot_dimension_numbers<[1], [0], [0], [1], [0, 0, 1, 1], [], []>} : vector<32x60xf32>, vector<60x24xf32>, vector<32x24xf32> -> vector<32x24xf32>
    %c0_111 = arith.constant 0 : index
    %c0_112 = arith.constant 0 : index
    %143 = vector.load %arg35[%c0_111, %c0_112] : memref<1x24xf32, #tpu.memory_space<vmem>>, vector<1x24xf32>
    %144 = vector.broadcast %143 : vector<1x24xf32> to vector<32x24xf32>
    %145 = arith.addf %142, %144 : vector<32x24xf32>
    %c0_113 = arith.constant 0 : index
    %c0_114 = arith.constant 0 : index
    %146 = vector.load %arg6[%c0_113, %c0_114] : memref<2x50xf32, #tpu.memory_space<vmem>>, vector<2x50xf32>
    %c0_115 = arith.constant 0 : index
    %c0_116 = arith.constant 0 : index
    %147 = vector.load %arg36[%c0_115, %c0_116] : memref<133x384xf32, #tpu.memory_space<vmem>>, vector<133x384xf32>
    %cst_117 = arith.constant dense<0.000000e+00> : vector<2x384xf32>
    %148 = tpu.matmul %0, %147, %cst_117 {dimension_numbers = #tpu.dot_dimension_numbers<[1], [0], [0], [1], [0, 0, 1, 1], [], []>} : vector<2x133xf32>, vector<133x384xf32>, vector<2x384xf32> -> vector<2x384xf32>
    %c0_118 = arith.constant 0 : index
    %c0_119 = arith.constant 0 : index
    %149 = vector.load %arg38[%c0_118, %c0_119] : memref<1x384xf32, #tpu.memory_space<vmem>>, vector<1x384xf32>
    %150 = vector.broadcast %149 : vector<1x384xf32> to vector<2x384xf32>
    %151 = arith.addf %148, %150 : vector<2x384xf32>
    %152 = vector.extract_strided_slice %145 {offsets = [0, 0], sizes = [2, 24], strides = [1, 1]} : vector<32x24xf32> to vector<2x24xf32>
    %c0_120 = arith.constant 0 : index
    %c0_121 = arith.constant 0 : index
    %c0_122 = arith.constant 0 : index
    %153 = vector.load %arg37[%c0_120, %c0_121, %c0_122] : memref<4x24x384xf32, #tpu.memory_space<vmem>>, vector<1x24x384xf32>
    %154 = vector.shape_cast %153 : vector<1x24x384xf32> to vector<24x384xf32>
    %cst_123 = arith.constant dense<0.000000e+00> : vector<2x384xf32>
    %155 = tpu.matmul %152, %154, %cst_123 {dimension_numbers = #tpu.dot_dimension_numbers<[1], [0], [0], [1], [0, 0, 1, 1], [], []>} : vector<2x24xf32>, vector<24x384xf32>, vector<2x384xf32> -> vector<2x384xf32>
    %156 = arith.addf %151, %155 : vector<2x384xf32>
    %157 = vector.extract_strided_slice %145 {offsets = [8, 0], sizes = [2, 24], strides = [1, 1]} : vector<32x24xf32> to vector<2x24xf32>
    %c1_124 = arith.constant 1 : index
    %c0_125 = arith.constant 0 : index
    %c0_126 = arith.constant 0 : index
    %158 = vector.load %arg37[%c1_124, %c0_125, %c0_126] : memref<4x24x384xf32, #tpu.memory_space<vmem>>, vector<1x24x384xf32>
    %159 = vector.shape_cast %158 : vector<1x24x384xf32> to vector<24x384xf32>
    %cst_127 = arith.constant dense<0.000000e+00> : vector<2x384xf32>
    %160 = tpu.matmul %157, %159, %cst_127 {dimension_numbers = #tpu.dot_dimension_numbers<[1], [0], [0], [1], [0, 0, 1, 1], [], []>} : vector<2x24xf32>, vector<24x384xf32>, vector<2x384xf32> -> vector<2x384xf32>
    %161 = arith.addf %156, %160 : vector<2x384xf32>
    %162 = vector.extract_strided_slice %145 {offsets = [16, 0], sizes = [2, 24], strides = [1, 1]} : vector<32x24xf32> to vector<2x24xf32>
    %c2_128 = arith.constant 2 : index
    %c0_129 = arith.constant 0 : index
    %c0_130 = arith.constant 0 : index
    %163 = vector.load %arg37[%c2_128, %c0_129, %c0_130] : memref<4x24x384xf32, #tpu.memory_space<vmem>>, vector<1x24x384xf32>
    %164 = vector.shape_cast %163 : vector<1x24x384xf32> to vector<24x384xf32>
    %cst_131 = arith.constant dense<0.000000e+00> : vector<2x384xf32>
    %165 = tpu.matmul %162, %164, %cst_131 {dimension_numbers = #tpu.dot_dimension_numbers<[1], [0], [0], [1], [0, 0, 1, 1], [], []>} : vector<2x24xf32>, vector<24x384xf32>, vector<2x384xf32> -> vector<2x384xf32>
    %166 = arith.addf %161, %165 : vector<2x384xf32>
    %167 = vector.extract_strided_slice %145 {offsets = [24, 0], sizes = [2, 24], strides = [1, 1]} : vector<32x24xf32> to vector<2x24xf32>
    %c3_132 = arith.constant 3 : index
    %c0_133 = arith.constant 0 : index
    %c0_134 = arith.constant 0 : index
    %168 = vector.load %arg37[%c3_132, %c0_133, %c0_134] : memref<4x24x384xf32, #tpu.memory_space<vmem>>, vector<1x24x384xf32>
    %169 = vector.shape_cast %168 : vector<1x24x384xf32> to vector<24x384xf32>
    %cst_135 = arith.constant dense<0.000000e+00> : vector<2x384xf32>
    %170 = tpu.matmul %167, %169, %cst_135 {dimension_numbers = #tpu.dot_dimension_numbers<[1], [0], [0], [1], [0, 0, 1, 1], [], []>} : vector<2x24xf32>, vector<24x384xf32>, vector<2x384xf32> -> vector<2x384xf32>
    %171 = arith.addf %166, %170 : vector<2x384xf32>
    %c0_136 = arith.constant 0 : index
    %c0_137 = arith.constant 0 : index
    %172 = vector.load %arg39[%c0_136, %c0_137] : memref<50x384xf32, #tpu.memory_space<vmem>>, vector<50x384xf32>
    %cst_138 = arith.constant dense<0.000000e+00> : vector<2x384xf32>
    %173 = tpu.matmul %146, %172, %cst_138 {dimension_numbers = #tpu.dot_dimension_numbers<[1], [0], [0], [1], [0, 0, 1, 1], [], []>} : vector<2x50xf32>, vector<50x384xf32>, vector<2x384xf32> -> vector<2x384xf32>
    %c0_139 = arith.constant 0 : index
    %c0_140 = arith.constant 0 : index
    %174 = vector.load %arg40[%c0_139, %c0_140] : memref<1x384xf32, #tpu.memory_space<vmem>>, vector<1x384xf32>
    %175 = vector.broadcast %174 : vector<1x384xf32> to vector<2x384xf32>
    %176 = arith.addf %173, %175 : vector<2x384xf32>
    %177 = vector.extract_strided_slice %171 {offsets = [0, 0], sizes = [2, 50], strides = [1, 1]} : vector<2x384xf32> to vector<2x50xf32>
    %178 = vector.extract_strided_slice %176 {offsets = [0, 0], sizes = [2, 50], strides = [1, 1]} : vector<2x384xf32> to vector<2x50xf32>
    %179 = arith.addf %177, %178 : vector<2x50xf32>
    %180 = arith.negf %179 : vector<2x50xf32>
    %181 = math.exp %180 : vector<2x50xf32>
    %cst_141 = arith.constant 1.000000e+00 : f32
    %182 = vector.broadcast %cst_141 : f32 to vector<2x50xf32>
    %183 = arith.addf %182, %181 : vector<2x50xf32>
    %184 = arith.divf %182, %183 : vector<2x50xf32>
    %185 = vector.extract_strided_slice %171 {offsets = [0, 128], sizes = [2, 50], strides = [1, 1]} : vector<2x384xf32> to vector<2x50xf32>
    %186 = vector.extract_strided_slice %176 {offsets = [0, 128], sizes = [2, 50], strides = [1, 1]} : vector<2x384xf32> to vector<2x50xf32>
    %187 = arith.addf %185, %186 : vector<2x50xf32>
    %188 = arith.negf %187 : vector<2x50xf32>
    %189 = math.exp %188 : vector<2x50xf32>
    %cst_142 = arith.constant 1.000000e+00 : f32
    %190 = vector.broadcast %cst_142 : f32 to vector<2x50xf32>
    %191 = arith.addf %190, %189 : vector<2x50xf32>
    %192 = arith.divf %190, %191 : vector<2x50xf32>
    %193 = vector.extract_strided_slice %171 {offsets = [0, 256], sizes = [2, 50], strides = [1, 1]} : vector<2x384xf32> to vector<2x50xf32>
    %194 = vector.extract_strided_slice %176 {offsets = [0, 256], sizes = [2, 50], strides = [1, 1]} : vector<2x384xf32> to vector<2x50xf32>
    %195 = arith.mulf %184, %194 : vector<2x50xf32>
    %196 = arith.addf %193, %195 : vector<2x50xf32>
    %197 = math.tanh %196 : vector<2x50xf32>
    %cst_143 = arith.constant 1.000000e+00 : f32
    %198 = vector.broadcast %cst_143 : f32 to vector<2x50xf32>
    %199 = arith.subf %198, %192 : vector<2x50xf32>
    %200 = arith.mulf %199, %197 : vector<2x50xf32>
    %201 = arith.mulf %192, %146 : vector<2x50xf32>
    %202 = arith.addf %200, %201 : vector<2x50xf32>
    %c0_144 = arith.constant 0 : index
    %c0_145 = arith.constant 0 : index
    %203 = vector.load %arg7[%c0_144, %c0_145] : memref<2x50xf32, #tpu.memory_space<vmem>>, vector<2x50xf32>
    %c0_146 = arith.constant 0 : index
    %c0_147 = arith.constant 0 : index
    %204 = vector.load %arg41[%c0_146, %c0_147] : memref<50x384xf32, #tpu.memory_space<vmem>>, vector<50x384xf32>
    %cst_148 = arith.constant dense<0.000000e+00> : vector<2x384xf32>
    %205 = tpu.matmul %202, %204, %cst_148 {dimension_numbers = #tpu.dot_dimension_numbers<[1], [0], [0], [1], [0, 0, 1, 1], [], []>} : vector<2x50xf32>, vector<50x384xf32>, vector<2x384xf32> -> vector<2x384xf32>
    %c0_149 = arith.constant 0 : index
    %c0_150 = arith.constant 0 : index
    %206 = vector.load %arg42[%c0_149, %c0_150] : memref<1x384xf32, #tpu.memory_space<vmem>>, vector<1x384xf32>
    %207 = vector.broadcast %206 : vector<1x384xf32> to vector<2x384xf32>
    %208 = arith.addf %205, %207 : vector<2x384xf32>
    %c0_151 = arith.constant 0 : index
    %c0_152 = arith.constant 0 : index
    %209 = vector.load %arg43[%c0_151, %c0_152] : memref<50x384xf32, #tpu.memory_space<vmem>>, vector<50x384xf32>
    %cst_153 = arith.constant dense<0.000000e+00> : vector<2x384xf32>
    %210 = tpu.matmul %203, %209, %cst_153 {dimension_numbers = #tpu.dot_dimension_numbers<[1], [0], [0], [1], [0, 0, 1, 1], [], []>} : vector<2x50xf32>, vector<50x384xf32>, vector<2x384xf32> -> vector<2x384xf32>
    %c0_154 = arith.constant 0 : index
    %c0_155 = arith.constant 0 : index
    %211 = vector.load %arg44[%c0_154, %c0_155] : memref<1x384xf32, #tpu.memory_space<vmem>>, vector<1x384xf32>
    %212 = vector.broadcast %211 : vector<1x384xf32> to vector<2x384xf32>
    %213 = arith.addf %210, %212 : vector<2x384xf32>
    %214 = vector.extract_strided_slice %208 {offsets = [0, 0], sizes = [2, 50], strides = [1, 1]} : vector<2x384xf32> to vector<2x50xf32>
    %215 = vector.extract_strided_slice %213 {offsets = [0, 0], sizes = [2, 50], strides = [1, 1]} : vector<2x384xf32> to vector<2x50xf32>
    %216 = arith.addf %214, %215 : vector<2x50xf32>
    %217 = arith.negf %216 : vector<2x50xf32>
    %218 = math.exp %217 : vector<2x50xf32>
    %cst_156 = arith.constant 1.000000e+00 : f32
    %219 = vector.broadcast %cst_156 : f32 to vector<2x50xf32>
    %220 = arith.addf %219, %218 : vector<2x50xf32>
    %221 = arith.divf %219, %220 : vector<2x50xf32>
    %222 = vector.extract_strided_slice %208 {offsets = [0, 128], sizes = [2, 50], strides = [1, 1]} : vector<2x384xf32> to vector<2x50xf32>
    %223 = vector.extract_strided_slice %213 {offsets = [0, 128], sizes = [2, 50], strides = [1, 1]} : vector<2x384xf32> to vector<2x50xf32>
    %224 = arith.addf %222, %223 : vector<2x50xf32>
    %225 = arith.negf %224 : vector<2x50xf32>
    %226 = math.exp %225 : vector<2x50xf32>
    %cst_157 = arith.constant 1.000000e+00 : f32
    %227 = vector.broadcast %cst_157 : f32 to vector<2x50xf32>
    %228 = arith.addf %227, %226 : vector<2x50xf32>
    %229 = arith.divf %227, %228 : vector<2x50xf32>
    %230 = vector.extract_strided_slice %208 {offsets = [0, 256], sizes = [2, 50], strides = [1, 1]} : vector<2x384xf32> to vector<2x50xf32>
    %231 = vector.extract_strided_slice %213 {offsets = [0, 256], sizes = [2, 50], strides = [1, 1]} : vector<2x384xf32> to vector<2x50xf32>
    %232 = arith.mulf %221, %231 : vector<2x50xf32>
    %233 = arith.addf %230, %232 : vector<2x50xf32>
    %234 = math.tanh %233 : vector<2x50xf32>
    %cst_158 = arith.constant 1.000000e+00 : f32
    %235 = vector.broadcast %cst_158 : f32 to vector<2x50xf32>
    %236 = arith.subf %235, %229 : vector<2x50xf32>
    %237 = arith.mulf %236, %234 : vector<2x50xf32>
    %238 = arith.mulf %229, %203 : vector<2x50xf32>
    %239 = arith.addf %237, %238 : vector<2x50xf32>
    %c0_159 = arith.constant 0 : index
    %c0_160 = arith.constant 0 : index
    %240 = vector.load %arg62[%c0_159, %c0_160] : memref<2x100xf32, #tpu.memory_space<vmem>>, vector<2x50xf32>
    tpu.vector_store %arg62[%c0_159, %c0_160], %202 {strides = array<i32>} : memref<2x100xf32, #tpu.memory_space<vmem>>, vector<2x50xf32>,
    %c0_161 = arith.constant 0 : index
    %c50 = arith.constant 50 : index
    %241 = vector.load %arg62[%c0_161, %c50] : memref<2x100xf32, #tpu.memory_space<vmem>>, vector<2x50xf32>
    tpu.vector_store %arg62[%c0_161, %c50], %239 {strides = array<i32>} : memref<2x100xf32, #tpu.memory_space<vmem>>, vector<2x50xf32>,
    %c0_162 = arith.constant 0 : index
    %c0_163 = arith.constant 0 : index
    %242 = vector.load %arg45[%c0_162, %c0_163] : memref<50x320xf32, #tpu.memory_space<vmem>>, vector<50x320xf32>
    %cst_164 = arith.constant dense<0.000000e+00> : vector<2x320xf32>
    %243 = tpu.matmul %239, %242, %cst_164 {dimension_numbers = #tpu.dot_dimension_numbers<[1], [0], [0], [1], [0, 0, 1, 1], [], []>} : vector<2x50xf32>, vector<50x320xf32>, vector<2x320xf32> -> vector<2x320xf32>
    %c0_165 = arith.constant 0 : index
    %c0_166 = arith.constant 0 : index
    %244 = vector.load %arg46[%c0_165, %c0_166] : memref<1x320xf32, #tpu.memory_space<vmem>>, vector<1x320xf32>
    %245 = vector.broadcast %244 : vector<1x320xf32> to vector<2x320xf32>
    %246 = arith.addf %243, %245 : vector<2x320xf32>
    %cst_167 = arith.constant 0.000000e+00 : f32
    %247 = vector.broadcast %cst_167 : f32 to vector<2x320xf32>
    %248 = arith.cmpf ogt, %246, %247 : vector<2x320xf32>
    %cst_168 = arith.constant 0.00999999977 : f32
    %249 = vector.broadcast %cst_168 : f32 to vector<2x320xf32>
    %250 = arith.mulf %249, %246 : vector<2x320xf32>
    %251 = arith.select %248, %246, %250 : vector<2x320xi1>, vector<2x320xf32>
    %c0_169 = arith.constant 0 : index
    %c0_170 = arith.constant 0 : index
    %252 = vector.load %arg47[%c0_169, %c0_170] : memref<320x320xf32, #tpu.memory_space<vmem>>, vector<320x320xf32>
    %cst_171 = arith.constant dense<0.000000e+00> : vector<2x320xf32>
    %253 = tpu.matmul %251, %252, %cst_171 {dimension_numbers = #tpu.dot_dimension_numbers<[1], [0], [0], [1], [0, 0, 1, 1], [], []>} : vector<2x320xf32>, vector<320x320xf32>, vector<2x320xf32> -> vector<2x320xf32>
    %c0_172 = arith.constant 0 : index
    %c0_173 = arith.constant 0 : index
    %254 = vector.load %arg48[%c0_172, %c0_173] : memref<1x320xf32, #tpu.memory_space<vmem>>, vector<1x320xf32>
    %255 = vector.broadcast %254 : vector<1x320xf32> to vector<2x320xf32>
    %256 = arith.addf %253, %255 : vector<2x320xf32>
    %cst_174 = arith.constant 0.000000e+00 : f32
    %257 = vector.broadcast %cst_174 : f32 to vector<2x320xf32>
    %258 = arith.cmpf ogt, %256, %257 : vector<2x320xf32>
    %cst_175 = arith.constant 0.00999999977 : f32
    %259 = vector.broadcast %cst_175 : f32 to vector<2x320xf32>
    %260 = arith.mulf %259, %256 : vector<2x320xf32>
    %261 = arith.select %258, %256, %260 : vector<2x320xi1>, vector<2x320xf32>
    %c0_176 = arith.constant 0 : index
    %c0_177 = arith.constant 0 : index
    %262 = vector.load %arg49[%c0_176, %c0_177] : memref<320x1280xf32, #tpu.memory_space<vmem>>, vector<320x1280xf32>
    %cst_178 = arith.constant dense<0.000000e+00> : vector<2x1280xf32>
    %263 = tpu.matmul %261, %262, %cst_178 {dimension_numbers = #tpu.dot_dimension_numbers<[1], [0], [0], [1], [0, 0, 1, 1], [], []>} : vector<2x320xf32>, vector<320x1280xf32>, vector<2x1280xf32> -> vector<2x1280xf32>
    %c0_179 = arith.constant 0 : index
    %c0_180 = arith.constant 0 : index
    %264 = vector.load %arg50[%c0_179, %c0_180] : memref<1x1280xf32, #tpu.memory_space<vmem>>, vector<1x1280xf32>
    %265 = vector.broadcast %264 : vector<1x1280xf32> to vector<2x1280xf32>
    %266 = arith.addf %263, %265 : vector<2x1280xf32>
    %267 = vector.extract_strided_slice %266 {offsets = [0, 0], sizes = [2, 120], strides = [1, 1]} : vector<2x1280xf32> to vector<2x120xf32>
    %268 = vector.extract_strided_slice %266 {offsets = [0, 640], sizes = [2, 50], strides = [1, 1]} : vector<2x1280xf32> to vector<2x50xf32>
    %269 = vector.extract_strided_slice %266 {offsets = [0, 768], sizes = [2, 208], strides = [1, 1]} : vector<2x1280xf32> to vector<2x208xf32>
    %270 = vector.extract_strided_slice %266 {offsets = [0, 1024], sizes = [2, 208], strides = [1, 1]} : vector<2x1280xf32> to vector<2x208xf32>
    %c0_181 = arith.constant 0 : index
    %c0_182 = arith.constant 0 : index
    %271 = vector.load %arg51[%c0_181, %c0_182] : memref<133x256xf32, #tpu.memory_space<vmem>>, vector<133x256xf32>
    %cst_183 = arith.constant dense<0.000000e+00> : vector<2x256xf32>
    %272 = tpu.matmul %0, %271, %cst_183 {dimension_numbers = #tpu.dot_dimension_numbers<[1], [0], [0], [1], [0, 0, 1, 1], [], []>} : vector<2x133xf32>, vector<133x256xf32>, vector<2x256xf32> -> vector<2x256xf32>
    %c0_184 = arith.constant 0 : index
    %c0_185 = arith.constant 0 : index
    %273 = vector.load %arg52[%c0_184, %c0_185] : memref<120x256xf32, #tpu.memory_space<vmem>>, vector<120x256xf32>
    %cst_186 = arith.constant dense<0.000000e+00> : vector<2x256xf32>
    %274 = tpu.matmul %267, %273, %cst_186 {dimension_numbers = #tpu.dot_dimension_numbers<[1], [0], [0], [1], [0, 0, 1, 1], [], []>} : vector<2x120xf32>, vector<120x256xf32>, vector<2x256xf32> -> vector<2x256xf32>
    %275 = arith.addf %272, %274 : vector<2x256xf32>
    %c0_187 = arith.constant 0 : index
    %c0_188 = arith.constant 0 : index
    %276 = vector.load %arg54[%c0_187, %c0_188] : memref<1x256xf32, #tpu.memory_space<vmem>>, vector<1x256xf32>
    %277 = vector.broadcast %276 : vector<1x256xf32> to vector<2x256xf32>
    %278 = arith.addf %275, %277 : vector<2x256xf32>
    %279 = vector.extract_strided_slice %266 {offsets = [0, 128], sizes = [2, 24], strides = [1, 1]} : vector<2x1280xf32> to vector<2x24xf32>
    %280 = arith.negf %279 : vector<2x24xf32>
    %281 = math.exp %280 : vector<2x24xf32>
    %cst_189 = arith.constant 1.000000e+00 : f32
    %282 = vector.broadcast %cst_189 : f32 to vector<2x24xf32>
    %283 = arith.addf %282, %281 : vector<2x24xf32>
    %284 = arith.divf %282, %283 : vector<2x24xf32>
    %285 = vector.extract_strided_slice %145 {offsets = [0, 0], sizes = [2, 24], strides = [1, 1]} : vector<32x24xf32> to vector<2x24xf32>
    %286 = arith.mulf %285, %284 : vector<2x24xf32>
    %c0_190 = arith.constant 0 : index
    %c0_191 = arith.constant 0 : index
    %c0_192 = arith.constant 0 : index
    %287 = vector.load %arg53[%c0_190, %c0_191, %c0_192] : memref<4x24x256xf32, #tpu.memory_space<vmem>>, vector<1x24x256xf32>
    %288 = vector.shape_cast %287 : vector<1x24x256xf32> to vector<24x256xf32>
    %cst_193 = arith.constant dense<0.000000e+00> : vector<2x256xf32>
    %289 = tpu.matmul %286, %288, %cst_193 {dimension_numbers = #tpu.dot_dimension_numbers<[1], [0], [0], [1], [0, 0, 1, 1], [], []>} : vector<2x24xf32>, vector<24x256xf32>, vector<2x256xf32> -> vector<2x256xf32>
    %290 = arith.addf %278, %289 : vector<2x256xf32>
    %291 = vector.extract_strided_slice %266 {offsets = [0, 256], sizes = [2, 24], strides = [1, 1]} : vector<2x1280xf32> to vector<2x24xf32>
    %292 = arith.negf %291 : vector<2x24xf32>
    %293 = math.exp %292 : vector<2x24xf32>
    %cst_194 = arith.constant 1.000000e+00 : f32
    %294 = vector.broadcast %cst_194 : f32 to vector<2x24xf32>
    %295 = arith.addf %294, %293 : vector<2x24xf32>
    %296 = arith.divf %294, %295 : vector<2x24xf32>
    %297 = vector.extract_strided_slice %145 {offsets = [8, 0], sizes = [2, 24], strides = [1, 1]} : vector<32x24xf32> to vector<2x24xf32>
    %298 = arith.mulf %297, %296 : vector<2x24xf32>
    %c1_195 = arith.constant 1 : index
    %c0_196 = arith.constant 0 : index
    %c0_197 = arith.constant 0 : index
    %299 = vector.load %arg53[%c1_195, %c0_196, %c0_197] : memref<4x24x256xf32, #tpu.memory_space<vmem>>, vector<1x24x256xf32>
    %300 = vector.shape_cast %299 : vector<1x24x256xf32> to vector<24x256xf32>
    %cst_198 = arith.constant dense<0.000000e+00> : vector<2x256xf32>
    %301 = tpu.matmul %298, %300, %cst_198 {dimension_numbers = #tpu.dot_dimension_numbers<[1], [0], [0], [1], [0, 0, 1, 1], [], []>} : vector<2x24xf32>, vector<24x256xf32>, vector<2x256xf32> -> vector<2x256xf32>
    %302 = arith.addf %290, %301 : vector<2x256xf32>
    %303 = vector.extract_strided_slice %266 {offsets = [0, 384], sizes = [2, 24], strides = [1, 1]} : vector<2x1280xf32> to vector<2x24xf32>
    %304 = arith.negf %303 : vector<2x24xf32>
    %305 = math.exp %304 : vector<2x24xf32>
    %cst_199 = arith.constant 1.000000e+00 : f32
    %306 = vector.broadcast %cst_199 : f32 to vector<2x24xf32>
    %307 = arith.addf %306, %305 : vector<2x24xf32>
    %308 = arith.divf %306, %307 : vector<2x24xf32>
    %309 = vector.extract_strided_slice %145 {offsets = [16, 0], sizes = [2, 24], strides = [1, 1]} : vector<32x24xf32> to vector<2x24xf32>
    %310 = arith.mulf %309, %308 : vector<2x24xf32>
    %c2_200 = arith.constant 2 : index
    %c0_201 = arith.constant 0 : index
    %c0_202 = arith.constant 0 : index
    %311 = vector.load %arg53[%c2_200, %c0_201, %c0_202] : memref<4x24x256xf32, #tpu.memory_space<vmem>>, vector<1x24x256xf32>
    %312 = vector.shape_cast %311 : vector<1x24x256xf32> to vector<24x256xf32>
    %cst_203 = arith.constant dense<0.000000e+00> : vector<2x256xf32>
    %313 = tpu.matmul %310, %312, %cst_203 {dimension_numbers = #tpu.dot_dimension_numbers<[1], [0], [0], [1], [0, 0, 1, 1], [], []>} : vector<2x24xf32>, vector<24x256xf32>, vector<2x256xf32> -> vector<2x256xf32>
    %314 = arith.addf %302, %313 : vector<2x256xf32>
    %315 = vector.extract_strided_slice %266 {offsets = [0, 512], sizes = [2, 24], strides = [1, 1]} : vector<2x1280xf32> to vector<2x24xf32>
    %316 = arith.negf %315 : vector<2x24xf32>
    %317 = math.exp %316 : vector<2x24xf32>
    %cst_204 = arith.constant 1.000000e+00 : f32
    %318 = vector.broadcast %cst_204 : f32 to vector<2x24xf32>
    %319 = arith.addf %318, %317 : vector<2x24xf32>
    %320 = arith.divf %318, %319 : vector<2x24xf32>
    %321 = vector.extract_strided_slice %145 {offsets = [24, 0], sizes = [2, 24], strides = [1, 1]} : vector<32x24xf32> to vector<2x24xf32>
    %322 = arith.mulf %321, %320 : vector<2x24xf32>
    %c3_205 = arith.constant 3 : index
    %c0_206 = arith.constant 0 : index
    %c0_207 = arith.constant 0 : index
    %323 = vector.load %arg53[%c3_205, %c0_206, %c0_207] : memref<4x24x256xf32, #tpu.memory_space<vmem>>, vector<1x24x256xf32>
    %324 = vector.shape_cast %323 : vector<1x24x256xf32> to vector<24x256xf32>
    %cst_208 = arith.constant dense<0.000000e+00> : vector<2x256xf32>
    %325 = tpu.matmul %322, %324, %cst_208 {dimension_numbers = #tpu.dot_dimension_numbers<[1], [0], [0], [1], [0, 0, 1, 1], [], []>} : vector<2x24xf32>, vector<24x256xf32>, vector<2x256xf32> -> vector<2x256xf32>
    %326 = arith.addf %314, %325 : vector<2x256xf32>
    %cst_209 = arith.constant 0.000000e+00 : f32
    %327 = vector.broadcast %cst_209 : f32 to vector<2x256xf32>
    %328 = arith.cmpf ogt, %326, %327 : vector<2x256xf32>
    %cst_210 = arith.constant 0.00999999977 : f32
    %329 = vector.broadcast %cst_210 : f32 to vector<2x256xf32>
    %330 = arith.mulf %329, %326 : vector<2x256xf32>
    %331 = arith.select %328, %326, %330 : vector<2x256xi1>, vector<2x256xf32>
    %c0_211 = arith.constant 0 : index
    %c0_212 = arith.constant 0 : index
    %332 = vector.load %arg55[%c0_211, %c0_212] : memref<256x160xf32, #tpu.memory_space<vmem>>, vector<256x160xf32>
    %cst_213 = arith.constant dense<0.000000e+00> : vector<2x160xf32>
    %333 = tpu.matmul %331, %332, %cst_213 {dimension_numbers = #tpu.dot_dimension_numbers<[1], [0], [0], [1], [0, 0, 1, 1], [], []>} : vector<2x256xf32>, vector<256x160xf32>, vector<2x160xf32> -> vector<2x160xf32>
    %c0_214 = arith.constant 0 : index
    %c0_215 = arith.constant 0 : index
    %334 = vector.load %arg56[%c0_214, %c0_215] : memref<1x160xf32, #tpu.memory_space<vmem>>, vector<1x160xf32>
    %335 = vector.broadcast %334 : vector<1x160xf32> to vector<2x160xf32>
    %336 = arith.addf %333, %335 : vector<2x160xf32>
    %cst_216 = arith.constant 0.000000e+00 : f32
    %337 = vector.broadcast %cst_216 : f32 to vector<2x160xf32>
    %338 = arith.cmpf ogt, %336, %337 : vector<2x160xf32>
    %cst_217 = arith.constant 0.00999999977 : f32
    %339 = vector.broadcast %cst_217 : f32 to vector<2x160xf32>
    %340 = arith.mulf %339, %336 : vector<2x160xf32>
    %341 = arith.select %338, %336, %340 : vector<2x160xi1>, vector<2x160xf32>
    %c0_218 = arith.constant 0 : index
    %c0_219 = arith.constant 0 : index
    %342 = vector.load %arg57[%c0_218, %c0_219] : memref<160x128xf32, #tpu.memory_space<vmem>>, vector<160x128xf32>
    %cst_220 = arith.constant dense<0.000000e+00> : vector<2x128xf32>
    %343 = tpu.matmul %341, %342, %cst_220 {dimension_numbers = #tpu.dot_dimension_numbers<[1], [0], [0], [1], [0, 0, 1, 1], [], []>} : vector<2x160xf32>, vector<160x128xf32>, vector<2x128xf32> -> vector<2x128xf32>
    %c0_221 = arith.constant 0 : index
    %c0_222 = arith.constant 0 : index
    %344 = vector.load %arg58[%c0_221, %c0_222] : memref<1x128xf32, #tpu.memory_space<vmem>>, vector<1x128xf32>
    %345 = vector.broadcast %344 : vector<1x128xf32> to vector<2x128xf32>
    %346 = arith.addf %343, %345 : vector<2x128xf32>
    %cst_223 = arith.constant 0.000000e+00 : f32
    %347 = vector.broadcast %cst_223 : f32 to vector<2x128xf32>
    %348 = arith.cmpf ogt, %346, %347 : vector<2x128xf32>
    %cst_224 = arith.constant 0.00999999977 : f32
    %349 = vector.broadcast %cst_224 : f32 to vector<2x128xf32>
    %350 = arith.mulf %349, %346 : vector<2x128xf32>
    %351 = arith.select %348, %346, %350 : vector<2x128xi1>, vector<2x128xf32>
    %c0_225 = arith.constant 0 : index
    %c0_226 = arith.constant 0 : index
    %352 = vector.load %arg59[%c0_225, %c0_226] : memref<128x8xf32, #tpu.memory_space<vmem>>, vector<128x8xf32>
    %cst_227 = arith.constant dense<0.000000e+00> : vector<2x8xf32>
    %353 = tpu.matmul %351, %352, %cst_227 {dimension_numbers = #tpu.dot_dimension_numbers<[1], [0], [0], [1], [0, 0, 1, 1], [], []>} : vector<2x128xf32>, vector<128x8xf32>, vector<2x8xf32> -> vector<2x8xf32>
    %c0_228 = arith.constant 0 : index
    %c0_229 = arith.constant 0 : index
    %354 = vector.load %arg60[%c0_228, %c0_229] : memref<1x8xf32, #tpu.memory_space<vmem>>, vector<1x8xf32>
    %355 = vector.broadcast %354 : vector<1x8xf32> to vector<2x8xf32>
    %356 = arith.addf %353, %355 : vector<2x8xf32>
    %357 = arith.negf %270 : vector<2x208xf32>
    %358 = math.exp %357 : vector<2x208xf32>
    %cst_230 = arith.constant 1.000000e+00 : f32
    %359 = vector.broadcast %cst_230 : f32 to vector<2x208xf32>
    %360 = arith.addf %359, %358 : vector<2x208xf32>
    %361 = arith.divf %359, %360 : vector<2x208xf32>
    %362 = arith.mulf %11, %361 : vector<2x208xf32>
    %363 = arith.addf %269, %362 : vector<2x208xf32>
    %364 = arith.subf %120, %356 : vector<2x8xf32>
    %365 = arith.mulf %364, %364 : vector<2x8xf32>
    %366 = vector.shape_cast %365 : vector<2x8xf32> to vector<1x2x8xf32>
    %cst_231 = arith.constant dense<0.000000e+00> : vector<1xf32>
    %367 = vector.multi_reduction <add>, %366, %cst_231 [1, 2] : vector<1x2x8xf32> to vector<1xf32>
    %368 = vector.shape_cast %367 : vector<1xf32> to vector<1x1x1xf32>
    %369 = vector.extract %368[0, 0, 0] : f32 from vector<1x1x1xf32>
    %370 = vector.broadcast %369 : f32 to vector<1x1xf32>
    %cst_232 = arith.constant 1.600000e+01 : f32
    %371 = vector.broadcast %cst_232 : f32 to vector<1x1xf32>
    %372 = arith.divf %370, %371 : vector<1x1xf32>
    %373 = arith.subf %268, %1 : vector<2x50xf32>
    %374 = arith.mulf %373, %373 : vector<2x50xf32>
    %375 = vector.shape_cast %374 : vector<2x50xf32> to vector<1x2x50xf32>
    %cst_233 = arith.constant dense<0.000000e+00> : vector<1xf32>
    %376 = vector.multi_reduction <add>, %375, %cst_233 [1, 2] : vector<1x2x50xf32> to vector<1xf32>
    %377 = vector.shape_cast %376 : vector<1xf32> to vector<1x1x1xf32>
    %378 = vector.extract %377[0, 0, 0] : f32 from vector<1x1x1xf32>
    %379 = vector.broadcast %378 : f32 to vector<1x1xf32>
    %cst_234 = arith.constant 1.000000e+02 : f32
    %380 = vector.broadcast %cst_234 : f32 to vector<1x1xf32>
    %381 = arith.divf %379, %380 : vector<1x1xf32>
    %382 = arith.subf %363, %7 : vector<2x208xf32>
    %383 = arith.mulf %382, %382 : vector<2x208xf32>
    %384 = vector.shape_cast %383 : vector<2x208xf32> to vector<1x2x208xf32>
    %cst_235 = arith.constant dense<0.000000e+00> : vector<1xf32>
    %385 = vector.multi_reduction <add>, %384, %cst_235 [1, 2] : vector<1x2x208xf32> to vector<1xf32>
    %386 = vector.shape_cast %385 : vector<1xf32> to vector<1x1x1xf32>
    %387 = vector.extract %386[0, 0, 0] : f32 from vector<1x1x1xf32>
    %388 = vector.broadcast %387 : f32 to vector<1x1xf32>
    %cst_236 = arith.constant 4.160000e+02 : f32
    %389 = vector.broadcast %cst_236 : f32 to vector<1x1xf32>
    %390 = arith.divf %388, %389 : vector<1x1xf32>
    %391 = arith.addf %381, %390 : vector<1x1xf32>
    %cst_237 = arith.constant 5.000000e-01 : f32
    %392 = vector.broadcast %cst_237 : f32 to vector<1x1xf32>
    %393 = arith.mulf %392, %391 : vector<1x1xf32>
    %394 = arith.addf %372, %393 : vector<1x1xf32>
    %c0_238 = arith.constant 0 : index
    %c0_239 = arith.constant 0 : index
    %395 = vector.load %arg61[%c0_238, %c0_239] : memref<1x1xf32, #tpu.memory_space<vmem>>, vector<1x1xf32>
    tpu.vector_store %arg61[%c0_238, %c0_239], %394 {strides = array<i32>} : memref<1x1xf32, #tpu.memory_space<vmem>>, vector<1x1xf32>,
    return
  }
}

</mosaic_0001>

<llo_original>
// kernel: anymal_forward.1
$region0: #{anymal_forward.1}
  #allocation0 [shape = 'u32[]', space=smem, size = 0x4, offset = 0x4, fixed_abs, tag = 'smem constant byte address 0x4 - core index']
  #allocation1 [shape = 'u32[144,128]{1,0:T(1,128)}', space=vmem, size = 0x12000, scoped, tag = 'internal scratch']
  %s0 = inlined_call_operand.smem [shape: u32[63], index: -1, kind: input, shape index: {}]
  %s1 = sld [smem:[%s0]]
  %s2 = scalar_lea.smem %s0, 1
  %s3 = sld [smem:[%s2]]
  %s4 = scalar_lea.smem %s0, 2
  %s5 = sld [smem:[%s4]]
  %s6 = scalar_lea.smem %s0, 3
  %s7 = sld [smem:[%s6]]
  %s8 = scalar_lea.smem %s0, 4
  %s9 = sld [smem:[%s8]]
  %s10 = scalar_lea.smem %s0, 5
  %s11 = sld [smem:[%s10]]
  %s12 = scalar_lea.smem %s0, 6
  %s13 = sld [smem:[%s12]]
  %s14 = scalar_lea.smem %s0, 7
  %s15 = sld [smem:[%s14]]
  %s16 = scalar_lea.smem %s0, 8
  %s17 = sld [smem:[%s16]]
  %s18 = scalar_lea.smem %s0, 9
  %s19 = sld [smem:[%s18]]
  %s20 = scalar_lea.smem %s0, 10
  %s21 = sld [smem:[%s20]]
  %s22 = scalar_lea.smem %s0, 11
  %s23 = sld [smem:[%s22]]
  %s24 = scalar_lea.smem %s0, 12
  %s25 = sld [smem:[%s24]]
  %s26 = scalar_lea.smem %s0, 13
  %s27 = sld [smem:[%s26]]
  %s28 = scalar_lea.smem %s0, 14
  %s29 = sld [smem:[%s28]]
  %s30 = scalar_lea.smem %s0, 15
  %s31 = sld [smem:[%s30]]
  %s32 = scalar_lea.smem %s0, 16
  %s33 = sld [smem:[%s32]]
  %s34 = scalar_lea.smem %s0, 17
  %s35 = sld [smem:[%s34]]
  %s36 = scalar_lea.smem %s0, 18
  %s37 = sld [smem:[%s36]]
  %s38 = scalar_lea.smem %s0, 19
  %s39 = sld [smem:[%s38]]
  %s40 = scalar_lea.smem %s0, 20
  %s41 = sld [smem:[%s40]]
  %s42 = scalar_lea.smem %s0, 21
  %s43 = sld [smem:[%s42]]
  %s44 = scalar_lea.smem %s0, 22
  %s45 = sld [smem:[%s44]]
  %s46 = scalar_lea.smem %s0, 23
  %s47 = sld [smem:[%s46]]
  %s48 = scalar_lea.smem %s0, 24
  %s49 = sld [smem:[%s48]]
  %s50 = scalar_lea.smem %s0, 25
  %s51 = sld [smem:[%s50]]
  %s52 = scalar_lea.smem %s0, 26
  %s53 = sld [smem:[%s52]]
  %s54 = scalar_lea.smem %s0, 27
  %s55 = sld [smem:[%s54]]
  %s56 = scalar_lea.smem %s0, 28
  %s57 = sld [smem:[%s56]]
  %s58 = scalar_lea.smem %s0, 29
  %s59 = sld [smem:[%s58]]
  %s60 = scalar_lea.smem %s0, 30
  %s61 = sld [smem:[%s60]]
  %s62 = scalar_lea.smem %s0, 31
  %s63 = sld [smem:[%s62]]
  %s64 = scalar_lea.smem %s0, 32
  %s65 = sld [smem:[%s64]]
  %s66 = scalar_lea.smem %s0, 33
  %s67 = sld [smem:[%s66]]
  %s68 = scalar_lea.smem %s0, 34
  %s69 = sld [smem:[%s68]]
  %s70 = scalar_lea.smem %s0, 35
  %s71 = sld [smem:[%s70]]
  %s72 = scalar_lea.smem %s0, 36
  %s73 = sld [smem:[%s72]]
  %s74 = scalar_lea.smem %s0, 37
  %s75 = sld [smem:[%s74]]
  %s76 = scalar_lea.smem %s0, 38
  %s77 = sld [smem:[%s76]]
  %s78 = scalar_lea.smem %s0, 39
  %s79 = sld [smem:[%s78]]
  %s80 = scalar_lea.smem %s0, 40
  %s81 = sld [smem:[%s80]]
  %s82 = scalar_lea.smem %s0, 41
  %s83 = sld [smem:[%s82]]
  %s84 = scalar_lea.smem %s0, 42
  %s85 = sld [smem:[%s84]]
  %s86 = scalar_lea.smem %s0, 43
  %s87 = sld [smem:[%s86]]
  %s88 = scalar_lea.smem %s0, 44
  %s89 = sld [smem:[%s88]]
  %s90 = scalar_lea.smem %s0, 45
  %s91 = sld [smem:[%s90]]
  %s92 = scalar_lea.smem %s0, 46
  %s93 = sld [smem:[%s92]]
  %s94 = scalar_lea.smem %s0, 47
  %s95 = sld [smem:[%s94]]
  %s96 = scalar_lea.smem %s0, 48
  %s97 = sld [smem:[%s96]]
  %s98 = scalar_lea.smem %s0, 49
  %s99 = sld [smem:[%s98]]
  %s100 = scalar_lea.smem %s0, 50
  %s101 = sld [smem:[%s100]]
  %s102 = scalar_lea.smem %s0, 51
  %s103 = sld [smem:[%s102]]
  %s104 = scalar_lea.smem %s0, 52
  %s105 = sld [smem:[%s104]]
  %s106 = scalar_lea.smem %s0, 53
  %s107 = sld [smem:[%s106]]
  %s108 = scalar_lea.smem %s0, 54
  %s109 = sld [smem:[%s108]]
  %s110 = scalar_lea.smem %s0, 55
  %s111 = sld [smem:[%s110]]
  %s112 = scalar_lea.smem %s0, 56
  %s113 = sld [smem:[%s112]]
  %s114 = scalar_lea.smem %s0, 57
  %s115 = sld [smem:[%s114]]
  %s116 = scalar_lea.smem %s0, 58
  %s117 = sld [smem:[%s116]]
  %s118 = scalar_lea.smem %s0, 59
  %s119 = sld [smem:[%s118]]
  %s120 = scalar_lea.smem %s0, 60
  %s121 = sld [smem:[%s120]]
  %s122 = scalar_lea.smem %s0, 61
  %s123 = sld [smem:[%s122]]
  %s124 = scalar_lea.smem %s0, 62
  %s125 = sld [smem:[%s124]]
  %126 = xla_tuple %s123, %s125
  %s127 = sld [smem:[#allocation0]]
  $region438: #{anymal_forward.1} parent=0
    _
  %s129 = ssub.s32 1, %s127
  %s130 = scalar_select 0, %s129, %s127
  $region1: #{anymal_forward.1} parent=0
    #allocation2 [shape = 'u8[2048]{0}', space=vmem, size = 0x800, scoped, tag = 'input window, operand 0, single buffered']
    #allocation3 [shape = 's32[1]{0}', space=sflag, size = 0x4, scoped, tag = 'scoped memory for anymal_forward.1']
    #allocation4 [shape = 's32[1]{0}', space=sflag, size = 0x4, scoped, tag = 'scoped memory for anymal_forward.1']
    #allocation5 [shape = 'u8[1024]{0}', space=vmem, size = 0x400, scoped, tag = 'input window, operand 5, single buffered']
    #allocation6 [shape = 's32[1]{0}', space=sflag, size = 0x4, scoped, tag = 'scoped memory for anymal_forward.1']
    #allocation7 [shape = 'u8[28672]{0}', space=vmem, size = 0x7000, scoped, tag = 'input window, operand 8, single buffered']
    #allocation8 [shape = 'u8[512]{0}', space=vmem, size = 0x400, scoped, tag = 'input window, operand 9, single buffered']
    #allocation9 [shape = 's32[1]{0}', space=sflag, size = 0x4, scoped, tag = 'scoped memory for anymal_forward.1']
    #allocation10 [shape = 'u8[512]{0}', space=vmem, size = 0x400, scoped, tag = 'input window, operand 11, single buffered']
    #allocation11 [shape = 'u8[512]{0}', space=vmem, size = 0x400, scoped, tag = 'input window, operand 13, single buffered']
    #allocation12 [shape = 's32[1]{0}', space=sflag, size = 0x4, scoped, tag = 'scoped memory for anymal_forward.1']
    #allocation13 [shape = 'u8[28672]{0}', space=vmem, size = 0x7000, scoped, tag = 'input window, operand 14, single buffered']
    #allocation14 [shape = 'u8[512]{0}', space=vmem, size = 0x400, scoped, tag = 'input window, operand 15, single buffered']
    #allocation15 [shape = 's32[1]{0}', space=sflag, size = 0x4, scoped, tag = 'scoped memory for anymal_forward.1']
    #allocation16 [shape = 'u8[512]{0}', space=vmem, size = 0x400, scoped, tag = 'input window, operand 17, single buffered']
    #allocation17 [shape = 'u8[512]{0}', space=vmem, size = 0x400, scoped, tag = 'input window, operand 19, single buffered']
    #allocation18 [shape = 's32[1]{0}', space=sflag, size = 0x4, scoped, tag = 'scoped memory for anymal_forward.1']
    #allocation19 [shape = 'u8[139264]{0}', space=vmem, size = 0x22000, scoped, tag = 'input window, operand 20, single buffered']
    #allocation20 [shape = 'u8[98304]{0}', space=vmem, size = 0x18000, scoped, tag = 'input window, operand 21, single buffered']
    #allocation21 [shape = 's32[1]{0}', space=sflag, size = 0x4, scoped, tag = 'scoped memory for anymal_forward.1']
    #allocation22 [shape = 'u8[24576]{0}', space=vmem, size = 0x6000, scoped, tag = 'input window, operand 22, single buffered']
    #allocation23 [shape = 'u8[1024]{0}', space=vmem, size = 0x400, scoped, tag = 'input window, operand 23, single buffered']
    #allocation24 [shape = 's32[1]{0}', space=sflag, size = 0x4, scoped, tag = 'scoped memory for anymal_forward.1']
    #allocation25 [shape = 'u8[1024]{0}', space=vmem, size = 0x400, scoped, tag = 'input window, operand 25, single buffered']
    #allocation26 [shape = 'u8[81920]{0}', space=vmem, size = 0x14000, scoped, tag = 'input window, operand 26, single buffered']
    #allocation27 [shape = 's32[1]{0}', space=sflag, size = 0x4, scoped, tag = 'scoped memory for anymal_forward.1']
    #allocation28 [shape = 'u8[512]{0}', space=vmem, size = 0x400, scoped, tag = 'input window, operand 27, single buffered']
    #allocation29 [shape = 'u8[512]{0}', space=vmem, size = 0x400, scoped, tag = 'input window, operand 29, single buffered']
    #allocation30 [shape = 's32[1]{0}', space=sflag, size = 0x4, scoped, tag = 'scoped memory for anymal_forward.1']
    #allocation31 [shape = 'u8[28672]{0}', space=vmem, size = 0x7000, scoped, tag = 'input window, operand 30, single buffered']
    #allocation32 [shape = 'u8[512]{0}', space=vmem, size = 0x400, scoped, tag = 'input window, operand 31, single buffered']
    #allocation33 [shape = 's32[1]{0}', space=sflag, size = 0x4, scoped, tag = 'scoped memory for anymal_forward.1']
    #allocation34 [shape = 'u8[512]{0}', space=vmem, size = 0x400, scoped, tag = 'input window, operand 33, single buffered']
    #allocation35 [shape = 'u8[512]{0}', space=vmem, size = 0x400, scoped, tag = 'input window, operand 35, single buffered']
    #allocation36 [shape = 's32[1]{0}', space=sflag, size = 0x4, scoped, tag = 'scoped memory for anymal_forward.1']
    #allocation37 [shape = 'u8[208896]{0}', space=vmem, size = 0x33000, scoped, tag = 'input window, operand 36, single buffered']
    #allocation38 [shape = 'u8[147456]{0}', space=vmem, size = 0x24000, scoped, tag = 'input window, operand 37, single buffered']
    #allocation39 [shape = 's32[1]{0}', space=sflag, size = 0x4, scoped, tag = 'scoped memory for anymal_forward.1']
    #allocation40 [shape = 'u8[1536]{0}', space=vmem, size = 0x800, scoped, tag = 'input window, operand 38, single buffered']
    #allocation41 [shape = 'u8[86016]{0}', space=vmem, size = 0x15000, scoped, tag = 'input window, operand 39, single buffered']
    #allocation42 [shape = 's32[1]{0}', space=sflag, size = 0x4, scoped, tag = 'scoped memory for anymal_forward.1']
    #allocation43 [shape = 'u8[1536]{0}', space=vmem, size = 0x800, scoped, tag = 'input window, operand 40, single buffered']
    #allocation44 [shape = 'u8[86016]{0}', space=vmem, size = 0x15000, scoped, tag = 'input window, operand 41, single buffered']
    #allocation45 [shape = 's32[1]{0}', space=sflag, size = 0x4, scoped, tag = 'scoped memory for anymal_forward.1']
    #allocation46 [shape = 'u8[1536]{0}', space=vmem, size = 0x800, scoped, tag = 'input window, operand 42, single buffered']
    #allocation47 [shape = 'u8[86016]{0}', space=vmem, size = 0x15000, scoped, tag = 'input window, operand 43, single buffered']
    #allocation48 [shape = 's32[1]{0}', space=sflag, size = 0x4, scoped, tag = 'scoped memory for anymal_forward.1']
    #allocation49 [shape = 'u8[1536]{0}', space=vmem, size = 0x800, scoped, tag = 'input window, operand 44, single buffered']
    #allocation50 [shape = 'u8[86016]{0}', space=vmem, size = 0x15000, scoped, tag = 'input window, operand 45, single buffered']
    #allocation51 [shape = 's32[1]{0}', space=sflag, size = 0x4, scoped, tag = 'scoped memory for anymal_forward.1']
    #allocation52 [shape = 'u8[1536]{0}', space=vmem, size = 0x800, scoped, tag = 'input window, operand 46, single buffered']
    #allocation53 [shape = 'u8[1536]{0}', space=vmem, size = 0x800, scoped, tag = 'input window, operand 48, single buffered']
    #allocation54 [shape = 's32[1]{0}', space=sflag, size = 0x4, scoped, tag = 'scoped memory for anymal_forward.1']
    #allocation55 [shape = 'u8[1638400]{0}', space=vmem, size = 0x190000, scoped, tag = 'input window, operand 49, single buffered']
    #allocation56 [shape = 'u8[5120]{0}', space=vmem, size = 0x1400, scoped, tag = 'input window, operand 50, single buffered']
    #allocation57 [shape = 's32[1]{0}', space=sflag, size = 0x4, scoped, tag = 'scoped memory for anymal_forward.1']
    #allocation58 [shape = 'u8[139264]{0}', space=vmem, size = 0x22000, scoped, tag = 'input window, operand 51, single buffered']
    #allocation59 [shape = 'u8[122880]{0}', space=vmem, size = 0x1e000, scoped, tag = 'input window, operand 52, single buffered']
    #allocation60 [shape = 's32[1]{0}', space=sflag, size = 0x4, scoped, tag = 'scoped memory for anymal_forward.1']
    #allocation61 [shape = 'u8[98304]{0}', space=vmem, size = 0x18000, scoped, tag = 'input window, operand 53, single buffered']
    #allocation62 [shape = 'u8[1024]{0}', space=vmem, size = 0x400, scoped, tag = 'input window, operand 54, single buffered']
    #allocation63 [shape = 's32[1]{0}', space=sflag, size = 0x4, scoped, tag = 'scoped memory for anymal_forward.1']
    #allocation64 [shape = 'u8[1024]{0}', space=vmem, size = 0x400, scoped, tag = 'input window, operand 56, single buffered']
    #allocation65 [shape = 'u8[81920]{0}', space=vmem, size = 0x14000, scoped, tag = 'input window, operand 57, single buffered']
    #allocation66 [shape = 's32[1]{0}', space=sflag, size = 0x4, scoped, tag = 'scoped memory for anymal_forward.1']
    #allocation67 [shape = 'u8[512]{0}', space=vmem, size = 0x400, scoped, tag = 'input window, operand 58, single buffered']
    #allocation68 [shape = 'u8[512]{0}', space=vmem, size = 0x400, scoped, tag = 'input window, operand 60, single buffered']
    #allocation69 [shape = 's32[1]{0}', space=sflag, size = 0x4, scoped, tag = 'scoped memory for anymal_forward.1']
    #allocation70 [shape = 'u8[512]{0}', space=vmem, size = 0x400, scoped, tag = 'output window, operand 0, single buffered']
    %131 = vsyncpa [#allocation3], 0
    %132 = vsyncpa [#allocation6], 0
    %133 = vsyncpa [#allocation9], 0
    %134 = vsyncpa [#allocation12], 0
    %135 = vsyncpa [#allocation15], 0
    %136 = vsyncpa [#allocation18], 0
    %137 = vsyncpa [#allocation21], 0
    %138 = vsyncpa [#allocation24], 0
    %139 = vsyncpa [#allocation27], 0
    %140 = vsyncpa [#allocation30], 0
    %141 = vsyncpa [#allocation33], 0
    %142 = vsyncpa [#allocation36], 0
    %143 = vsyncpa [#allocation39], 0
    %144 = vsyncpa [#allocation42], 0
    %145 = vsyncpa [#allocation45], 0
    %146 = vsyncpa [#allocation48], 0
    %147 = vsyncpa [#allocation51], 0
    %148 = vsyncpa [#allocation54], 0
    %149 = vsyncpa [#allocation57], 0
    %150 = vsyncpa [#allocation60], 0
    %151 = vsyncpa [#allocation63], 0
    %152 = vsyncpa [#allocation66], 0
    %153 = vsyncpa [#allocation69], 0
    %154 = vsyncpa [#allocation4], 0
    // Predicated region
    $region2: #{anymal_forward.1} parent=1 // pred_check
      _
    $region3: #{anymal_forward.1} parent=1 // pred_check_branch
      %156 = sbr.rel (0) target = $region5
    $region4: #{anymal_forward.1} parent=1 // pred_region
      %s158 = ssub.s32 64, 64
      %159 = vsyncadd [#allocation3], %s158
      %s161 = sshll.u32 [#allocation2], 4
      %s162 = int_to_ptr.vmem [resolvable:$true] %s161
      %164 = dma.hbm_to_vmem [thread:$0]  %s1, 64, %s162, [#allocation3]
    $region5: #{anymal_forward.1} parent=1 // pred_fallthru
      _
    // Predicated region
    $region6: #{anymal_forward.1} parent=1 // pred_check
      _
    $region7: #{anymal_forward.1} parent=1 // pred_check_branch
      %166 = sbr.rel (0) target = $region9
    $region8: #{anymal_forward.1} parent=1 // pred_region
      _
    $region9: #{anymal_forward.1} parent=1 // pred_fallthru
      _
    // Predicated region
    $region10: #{anymal_forward.1} parent=1 // pred_check
      _
    $region11: #{anymal_forward.1} parent=1 // pred_check_branch
      %168 = sbr.rel (0) target = $region13
    $region12: #{anymal_forward.1} parent=1 // pred_region
      _
    $region13: #{anymal_forward.1} parent=1 // pred_fallthru
      _
    // Predicated region
    $region14: #{anymal_forward.1} parent=1 // pred_check
      _
    $region15: #{anymal_forward.1} parent=1 // pred_check_branch
      %170 = sbr.rel (0) target = $region17
    $region16: #{anymal_forward.1} parent=1 // pred_region
      _
    $region17: #{anymal_forward.1} parent=1 // pred_fallthru
      _
    // Predicated region
    $region18: #{anymal_forward.1} parent=1 // pred_check
      _
    $region19: #{anymal_forward.1} parent=1 // pred_check_branch
      %172 = sbr.rel (0) target = $region21
    $region20: #{anymal_forward.1} parent=1 // pred_region
      _
    $region21: #{anymal_forward.1} parent=1 // pred_fallthru
      _
    // Predicated region
    $region22: #{anymal_forward.1} parent=1 // pred_check
      _
    $region23: #{anymal_forward.1} parent=1 // pred_check_branch
      %174 = sbr.rel (0) target = $region25
    $region24: #{anymal_forward.1} parent=1 // pred_region
      %s176 = ssub.s32 32, 32
      %177 = vsyncadd [#allocation6], %s176
      %s179 = sshll.u32 [#allocation5], 4
      %s180 = int_to_ptr.vmem [resolvable:$true] %s179
      %182 = dma.hbm_to_vmem [thread:$0]  %s11, 32, %s180, [#allocation6]
    $region25: #{anymal_forward.1} parent=1 // pred_fallthru
      _
    // Predicated region
    $region26: #{anymal_forward.1} parent=1 // pred_check
      _
    $region27: #{anymal_forward.1} parent=1 // pred_check_branch
      %184 = sbr.rel (0) target = $region29
    $region28: #{anymal_forward.1} parent=1 // pred_region
      _
    $region29: #{anymal_forward.1} parent=1 // pred_fallthru
      _
    // Predicated region
    $region30: #{anymal_forward.1} parent=1 // pred_check
      _
    $region31: #{anymal_forward.1} parent=1 // pred_check_branch
      %186 = sbr.rel (0) target = $region33
    $region32: #{anymal_forward.1} parent=1 // pred_region
      _
    $region33: #{anymal_forward.1} parent=1 // pred_fallthru
      _
    // Predicated region
    $region34: #{anymal_forward.1} parent=1 // pred_check
      _
    $region35: #{anymal_forward.1} parent=1 // pred_check_branch
      %188 = sbr.rel (0) target = $region37
    $region36: #{anymal_forward.1} parent=1 // pred_region
      %s190 = ssub.s32 896, 896
      %191 = vsyncadd [#allocation6], %s190
      %s192 = sshll.u32 [#allocation7], 4
      %s193 = int_to_ptr.vmem [resolvable:$true] %s192
      %198 = dma.hbm_to_vmem [thread:$0]  %s17, 896, %s193, [#allocation6], 128, 128, 8
    $region37: #{anymal_forward.1} parent=1 // pred_fallthru
      _
    // Predicated region
    $region38: #{anymal_forward.1} parent=1 // pred_check
      _
    $region39: #{anymal_forward.1} parent=1 // pred_check_branch
      %200 = sbr.rel (0) target = $region41
    $region40: #{anymal_forward.1} parent=1 // pred_region
      %s202 = ssub.s32 16, 16
      %203 = vsyncadd [#allocation9], %s202
      %s205 = sshll.u32 [#allocation8], 4
      %s206 = int_to_ptr.vmem [resolvable:$true] %s205
      %208 = dma.hbm_to_vmem [thread:$0]  %s19, 16, %s206, [#allocation9]
    $region41: #{anymal_forward.1} parent=1 // pred_fallthru
      _
    // Predicated region
    $region42: #{anymal_forward.1} parent=1 // pred_check
      _
    $region43: #{anymal_forward.1} parent=1 // pred_check_branch
      %210 = sbr.rel (0) target = $region45
    $region44: #{anymal_forward.1} parent=1 // pred_region
      _
    $region45: #{anymal_forward.1} parent=1 // pred_fallthru
      _
    // Predicated region
    $region46: #{anymal_forward.1} parent=1 // pred_check
      _
    $region47: #{anymal_forward.1} parent=1 // pred_check_branch
      %212 = sbr.rel (0) target = $region49
    $region48: #{anymal_forward.1} parent=1 // pred_region
      %s214 = ssub.s32 16, 16
      %215 = vsyncadd [#allocation9], %s214
      %s217 = sshll.u32 [#allocation10], 4
      %s218 = int_to_ptr.vmem [resolvable:$true] %s217
      %220 = dma.hbm_to_vmem [thread:$0]  %s23, 16, %s218, [#allocation9]
    $region49: #{anymal_forward.1} parent=1 // pred_fallthru
      _
    // Predicated region
    $region50: #{anymal_forward.1} parent=1 // pred_check
      _
    $region51: #{anymal_forward.1} parent=1 // pred_check_branch
      %222 = sbr.rel (0) target = $region53
    $region52: #{anymal_forward.1} parent=1 // pred_region
      _
    $region53: #{anymal_forward.1} parent=1 // pred_fallthru
      _
    // Predicated region
    $region54: #{anymal_forward.1} parent=1 // pred_check
      _
    $region55: #{anymal_forward.1} parent=1 // pred_check_branch
      %224 = sbr.rel (0) target = $region57
    $region56: #{anymal_forward.1} parent=1 // pred_region
      %s226 = ssub.s32 16, 16
      %227 = vsyncadd [#allocation12], %s226
      %s229 = sshll.u32 [#allocation11], 4
      %s230 = int_to_ptr.vmem [resolvable:$true] %s229
      %232 = dma.hbm_to_vmem [thread:$0]  %s27, 16, %s230, [#allocation12]
    $region57: #{anymal_forward.1} parent=1 // pred_fallthru
      _
    // Predicated region
    $region58: #{anymal_forward.1} parent=1 // pred_check
      _
    $region59: #{anymal_forward.1} parent=1 // pred_check_branch
      %234 = sbr.rel (0) target = $region61
    $region60: #{anymal_forward.1} parent=1 // pred_region
      %s236 = ssub.s32 896, 896
      %237 = vsyncadd [#allocation12], %s236
      %s238 = sshll.u32 [#allocation13], 4
      %s239 = int_to_ptr.vmem [resolvable:$true] %s238
      %244 = dma.hbm_to_vmem [thread:$0]  %s29, 896, %s239, [#allocation12], 128, 128, 8
    $region61: #{anymal_forward.1} parent=1 // pred_fallthru
      _
    // Predicated region
    $region62: #{anymal_forward.1} parent=1 // pred_check
      _
    $region63: #{anymal_forward.1} parent=1 // pred_check_branch
      %246 = sbr.rel (0) target = $region65
    $region64: #{anymal_forward.1} parent=1 // pred_region
      %s248 = ssub.s32 16, 16
      %249 = vsyncadd [#allocation15], %s248
      %s251 = sshll.u32 [#allocation14], 4
      %s252 = int_to_ptr.vmem [resolvable:$true] %s251
      %254 = dma.hbm_to_vmem [thread:$0]  %s31, 16, %s252, [#allocation15]
    $region65: #{anymal_forward.1} parent=1 // pred_fallthru
      _
    // Predicated region
    $region66: #{anymal_forward.1} parent=1 // pred_check
      _
    $region67: #{anymal_forward.1} parent=1 // pred_check_branch
      %256 = sbr.rel (0) target = $region69
    $region68: #{anymal_forward.1} parent=1 // pred_region
      _
    $region69: #{anymal_forward.1} parent=1 // pred_fallthru
      _
    // Predicated region
    $region70: #{anymal_forward.1} parent=1 // pred_check
      _
    $region71: #{anymal_forward.1} parent=1 // pred_check_branch
      %258 = sbr.rel (0) target = $region73
    $region72: #{anymal_forward.1} parent=1 // pred_region
      %s260 = ssub.s32 16, 16
      %261 = vsyncadd [#allocation15], %s260
      %s263 = sshll.u32 [#allocation16], 4
      %s264 = int_to_ptr.vmem [resolvable:$true] %s263
      %266 = dma.hbm_to_vmem [thread:$0]  %s35, 16, %s264, [#allocation15]
    $region73: #{anymal_forward.1} parent=1 // pred_fallthru
      _
    // Predicated region
    $region74: #{anymal_forward.1} parent=1 // pred_check
      _
    $region75: #{anymal_forward.1} parent=1 // pred_check_branch
      %268 = sbr.rel (0) target = $region77
    $region76: #{anymal_forward.1} parent=1 // pred_region
      _
    $region77: #{anymal_forward.1} parent=1 // pred_fallthru
      _
    // Predicated region
    $region78: #{anymal_forward.1} parent=1 // pred_check
      _
    $region79: #{anymal_forward.1} parent=1 // pred_check_branch
      %270 = sbr.rel (0) target = $region81
    $region80: #{anymal_forward.1} parent=1 // pred_region
      %s272 = ssub.s32 16, 16
      %273 = vsyncadd [#allocation18], %s272
      %s275 = sshll.u32 [#allocation17], 4
      %s276 = int_to_ptr.vmem [resolvable:$true] %s275
      %278 = dma.hbm_to_vmem [thread:$0]  %s39, 16, %s276, [#allocation18]
    $region81: #{anymal_forward.1} parent=1 // pred_fallthru
      _
    // Predicated region
    $region82: #{anymal_forward.1} parent=1 // pred_check
      _
    $region83: #{anymal_forward.1} parent=1 // pred_check_branch
      %280 = sbr.rel (0) target = $region85
    $region84: #{anymal_forward.1} parent=1 // pred_region
      %s282 = ssub.s32 4352, 4352
      %283 = vsyncadd [#allocation18], %s282
      %s284 = sshll.u32 [#allocation19], 4
      %s285 = int_to_ptr.vmem [resolvable:$true] %s284
      %290 = dma.hbm_to_vmem [thread:$0]  %s41, 4352, %s285, [#allocation18], 256, 256, 16
    $region85: #{anymal_forward.1} parent=1 // pred_fallthru
      _
    // Predicated region
    $region86: #{anymal_forward.1} parent=1 // pred_check
      _
    $region87: #{anymal_forward.1} parent=1 // pred_check_branch
      %292 = sbr.rel (0) target = $region89
    $region88: #{anymal_forward.1} parent=1 // pred_region
      %s294 = ssub.s32 3072, 3072
      %295 = vsyncadd [#allocation21], %s294
      %s296 = sshll.u32 [#allocation20], 4
      %s297 = int_to_ptr.vmem [resolvable:$true] %s296
      %302 = dma.hbm_to_vmem [thread:$0]  %s43, 3072, %s297, [#allocation21], 256, 256, 16
    $region89: #{anymal_forward.1} parent=1 // pred_fallthru
      _
    // Predicated region
    $region90: #{anymal_forward.1} parent=1 // pred_check
      _
    $region91: #{anymal_forward.1} parent=1 // pred_check_branch
      %304 = sbr.rel (0) target = $region93
    $region92: #{anymal_forward.1} parent=1 // pred_region
      %s306 = ssub.s32 768, 768
      %307 = vsyncadd [#allocation21], %s306
      %s308 = sshll.u32 [#allocation22], 4
      %s309 = int_to_ptr.vmem [resolvable:$true] %s308
      %314 = dma.hbm_to_vmem [thread:$0]  %s45, 768, %s309, [#allocation21], 256, 256, 16
    $region93: #{anymal_forward.1} parent=1 // pred_fallthru
      _
    // Predicated region
    $region94: #{anymal_forward.1} parent=1 // pred_check
      _
    $region95: #{anymal_forward.1} parent=1 // pred_check_branch
      %316 = sbr.rel (0) target = $region97
    $region96: #{anymal_forward.1} parent=1 // pred_region
      %s318 = ssub.s32 32, 32
      %319 = vsyncadd [#allocation24], %s318
      %s321 = sshll.u32 [#allocation23], 4
      %s322 = int_to_ptr.vmem [resolvable:$true] %s321
      %324 = dma.hbm_to_vmem [thread:$0]  %s47, 32, %s322, [#allocation24]
    $region97: #{anymal_forward.1} parent=1 // pred_fallthru
      _
    // Predicated region
    $region98: #{anymal_forward.1} parent=1 // pred_check
      _
    $region99: #{anymal_forward.1} parent=1 // pred_check_branch
      %326 = sbr.rel (0) target = $region101
    $region100: #{anymal_forward.1} parent=1 // pred_region
      _
    $region101: #{anymal_forward.1} parent=1 // pred_fallthru
      _
    // Predicated region
    $region102: #{anymal_forward.1} parent=1 // pred_check
      _
    $region103: #{anymal_forward.1} parent=1 // pred_check_branch
      %328 = sbr.rel (0) target = $region105
    $region104: #{anymal_forward.1} parent=1 // pred_region
      %s330 = ssub.s32 32, 32
      %331 = vsyncadd [#allocation24], %s330
      %s333 = sshll.u32 [#allocation25], 4
      %s334 = int_to_ptr.vmem [resolvable:$true] %s333
      %336 = dma.hbm_to_vmem [thread:$0]  %s51, 32, %s334, [#allocation24]
    $region105: #{anymal_forward.1} parent=1 // pred_fallthru
      _
    // Predicated region
    $region106: #{anymal_forward.1} parent=1 // pred_check
      _
    $region107: #{anymal_forward.1} parent=1 // pred_check_branch
      %338 = sbr.rel (0) target = $region109
    $region108: #{anymal_forward.1} parent=1 // pred_region
      %s340 = ssub.s32 2560, 2560
      %341 = vsyncadd [#allocation27], %s340
      %s342 = sshll.u32 [#allocation26], 4
      %s343 = int_to_ptr.vmem [resolvable:$true] %s342
      %348 = dma.hbm_to_vmem [thread:$0]  %s53, 2560, %s343, [#allocation27], 128, 128, 8
    $region109: #{anymal_forward.1} parent=1 // pred_fallthru
      _
    // Predicated region
    $region110: #{anymal_forward.1} parent=1 // pred_check
      _
    $region111: #{anymal_forward.1} parent=1 // pred_check_branch
      %350 = sbr.rel (0) target = $region113
    $region112: #{anymal_forward.1} parent=1 // pred_region
      %s352 = ssub.s32 16, 16
      %353 = vsyncadd [#allocation27], %s352
      %s355 = sshll.u32 [#allocation28], 4
      %s356 = int_to_ptr.vmem [resolvable:$true] %s355
      %358 = dma.hbm_to_vmem [thread:$0]  %s55, 16, %s356, [#allocation27]
    $region113: #{anymal_forward.1} parent=1 // pred_fallthru
      _
    // Predicated region
    $region114: #{anymal_forward.1} parent=1 // pred_check
      _
    $region115: #{anymal_forward.1} parent=1 // pred_check_branch
      %360 = sbr.rel (0) target = $region117
    $region116: #{anymal_forward.1} parent=1 // pred_region
      _
    $region117: #{anymal_forward.1} parent=1 // pred_fallthru
      _
    // Predicated region
    $region118: #{anymal_forward.1} parent=1 // pred_check
      _
    $region119: #{anymal_forward.1} parent=1 // pred_check_branch
      %362 = sbr.rel (0) target = $region121
    $region120: #{anymal_forward.1} parent=1 // pred_region
      %s364 = ssub.s32 16, 16
      %365 = vsyncadd [#allocation30], %s364
      %s367 = sshll.u32 [#allocation29], 4
      %s368 = int_to_ptr.vmem [resolvable:$true] %s367
      %370 = dma.hbm_to_vmem [thread:$0]  %s59, 16, %s368, [#allocation30]
    $region121: #{anymal_forward.1} parent=1 // pred_fallthru
      _
    // Predicated region
    $region122: #{anymal_forward.1} parent=1 // pred_check
      _
    $region123: #{anymal_forward.1} parent=1 // pred_check_branch
      %372 = sbr.rel (0) target = $region125
    $region124: #{anymal_forward.1} parent=1 // pred_region
      %s374 = ssub.s32 896, 896
      %375 = vsyncadd [#allocation30], %s374
      %s376 = sshll.u32 [#allocation31], 4
      %s377 = int_to_ptr.vmem [resolvable:$true] %s376
      %382 = dma.hbm_to_vmem [thread:$0]  %s61, 896, %s377, [#allocation30], 128, 128, 8
    $region125: #{anymal_forward.1} parent=1 // pred_fallthru
      _
    // Predicated region
    $region126: #{anymal_forward.1} parent=1 // pred_check
      _
    $region127: #{anymal_forward.1} parent=1 // pred_check_branch
      %384 = sbr.rel (0) target = $region129
    $region128: #{anymal_forward.1} parent=1 // pred_region
      %s386 = ssub.s32 16, 16
      %387 = vsyncadd [#allocation33], %s386
      %s389 = sshll.u32 [#allocation32], 4
      %s390 = int_to_ptr.vmem [resolvable:$true] %s389
      %392 = dma.hbm_to_vmem [thread:$0]  %s63, 16, %s390, [#allocation33]
    $region129: #{anymal_forward.1} parent=1 // pred_fallthru
      _
    // Predicated region
    $region130: #{anymal_forward.1} parent=1 // pred_check
      _
    $region131: #{anymal_forward.1} parent=1 // pred_check_branch
      %394 = sbr.rel (0) target = $region133
    $region132: #{anymal_forward.1} parent=1 // pred_region
      _
    $region133: #{anymal_forward.1} parent=1 // pred_fallthru
      _
    // Predicated region
    $region134: #{anymal_forward.1} parent=1 // pred_check
      _
    $region135: #{anymal_forward.1} parent=1 // pred_check_branch
      %396 = sbr.rel (0) target = $region137
    $region136: #{anymal_forward.1} parent=1 // pred_region
      %s398 = ssub.s32 16, 16
      %399 = vsyncadd [#allocation33], %s398
      %s401 = sshll.u32 [#allocation34], 4
      %s402 = int_to_ptr.vmem [resolvable:$true] %s401
      %404 = dma.hbm_to_vmem [thread:$0]  %s67, 16, %s402, [#allocation33]
    $region137: #{anymal_forward.1} parent=1 // pred_fallthru
      _
    // Predicated region
    $region138: #{anymal_forward.1} parent=1 // pred_check
      _
    $region139: #{anymal_forward.1} parent=1 // pred_check_branch
      %406 = sbr.rel (0) target = $region141
    $region140: #{anymal_forward.1} parent=1 // pred_region
      _
    $region141: #{anymal_forward.1} parent=1 // pred_fallthru
      _
    // Predicated region
    $region142: #{anymal_forward.1} parent=1 // pred_check
      _
    $region143: #{anymal_forward.1} parent=1 // pred_check_branch
      %408 = sbr.rel (0) target = $region145
    $region144: #{anymal_forward.1} parent=1 // pred_region
      %s410 = ssub.s32 16, 16
      %411 = vsyncadd [#allocation36], %s410
      %s413 = sshll.u32 [#allocation35], 4
      %s414 = int_to_ptr.vmem [resolvable:$true] %s413
      %416 = dma.hbm_to_vmem [thread:$0]  %s71, 16, %s414, [#allocation36]
    $region145: #{anymal_forward.1} parent=1 // pred_fallthru
      _
    // Predicated region
    $region146: #{anymal_forward.1} parent=1 // pred_check
      _
    $region147: #{anymal_forward.1} parent=1 // pred_check_branch
      %418 = sbr.rel (0) target = $region149
    $region148: #{anymal_forward.1} parent=1 // pred_region
      %s420 = ssub.s32 6528, 6528
      %421 = vsyncadd [#allocation36], %s420
      %s422 = sshll.u32 [#allocation37], 4
      %s423 = int_to_ptr.vmem [resolvable:$true] %s422
      %428 = dma.hbm_to_vmem [thread:$0]  %s73, 6528, %s423, [#allocation36], 384, 384, 24
    $region149: #{anymal_forward.1} parent=1 // pred_fallthru
      _
    // Predicated region
    $region150: #{anymal_forward.1} parent=1 // pred_check
      _
    $region151: #{anymal_forward.1} parent=1 // pred_check_branch
      %430 = sbr.rel (0) target = $region153
    $region152: #{anymal_forward.1} parent=1 // pred_region
      %s432 = ssub.s32 4608, 4608
      %433 = vsyncadd [#allocation39], %s432
      %s434 = sshll.u32 [#allocation38], 4
      %s435 = int_to_ptr.vmem [resolvable:$true] %s434
      %440 = dma.hbm_to_vmem [thread:$0]  %s75, 4608, %s435, [#allocation39], 384, 384, 24
    $region153: #{anymal_forward.1} parent=1 // pred_fallthru
      _
    // Predicated region
    $region154: #{anymal_forward.1} parent=1 // pred_check
      _
    $region155: #{anymal_forward.1} parent=1 // pred_check_branch
      %442 = sbr.rel (0) target = $region157
    $region156: #{anymal_forward.1} parent=1 // pred_region
      %s444 = ssub.s32 48, 48
      %445 = vsyncadd [#allocation39], %s444
      %s447 = sshll.u32 [#allocation40], 4
      %s448 = int_to_ptr.vmem [resolvable:$true] %s447
      %450 = dma.hbm_to_vmem [thread:$0]  %s77, 48, %s448, [#allocation39]
    $region157: #{anymal_forward.1} parent=1 // pred_fallthru
      _
    // Predicated region
    $region158: #{anymal_forward.1} parent=1 // pred_check
      _
    $region159: #{anymal_forward.1} parent=1 // pred_check_branch
      %452 = sbr.rel (0) target = $region161
    $region160: #{anymal_forward.1} parent=1 // pred_region
      %s454 = ssub.s32 2688, 2688
      %455 = vsyncadd [#allocation42], %s454
      %s456 = sshll.u32 [#allocation41], 4
      %s457 = int_to_ptr.vmem [resolvable:$true] %s456
      %462 = dma.hbm_to_vmem [thread:$0]  %s79, 2688, %s457, [#allocation42], 384, 384, 24
    $region161: #{anymal_forward.1} parent=1 // pred_fallthru
      _
    // Predicated region
    $region162: #{anymal_forward.1} parent=1 // pred_check
      _
    $region163: #{anymal_forward.1} parent=1 // pred_check_branch
      %464 = sbr.rel (0) target = $region165
    $region164: #{anymal_forward.1} parent=1 // pred_region
      %s466 = ssub.s32 48, 48
      %467 = vsyncadd [#allocation42], %s466
      %s469 = sshll.u32 [#allocation43], 4
      %s470 = int_to_ptr.vmem [resolvable:$true] %s469
      %472 = dma.hbm_to_vmem [thread:$0]  %s81, 48, %s470, [#allocation42]
    $region165: #{anymal_forward.1} parent=1 // pred_fallthru
      _
    // Predicated region
    $region166: #{anymal_forward.1} parent=1 // pred_check
      _
    $region167: #{anymal_forward.1} parent=1 // pred_check_branch
      %474 = sbr.rel (0) target = $region169
    $region168: #{anymal_forward.1} parent=1 // pred_region
      %s476 = ssub.s32 2688, 2688
      %477 = vsyncadd [#allocation45], %s476
      %s478 = sshll.u32 [#allocation44], 4
      %s479 = int_to_ptr.vmem [resolvable:$true] %s478
      %484 = dma.hbm_to_vmem [thread:$0]  %s83, 2688, %s479, [#allocation45], 384, 384, 24
    $region169: #{anymal_forward.1} parent=1 // pred_fallthru
      _
    // Predicated region
    $region170: #{anymal_forward.1} parent=1 // pred_check
      _
    $region171: #{anymal_forward.1} parent=1 // pred_check_branch
      %486 = sbr.rel (0) target = $region173
    $region172: #{anymal_forward.1} parent=1 // pred_region
      %s488 = ssub.s32 48, 48
      %489 = vsyncadd [#allocation45], %s488
      %s491 = sshll.u32 [#allocation46], 4
      %s492 = int_to_ptr.vmem [resolvable:$true] %s491
      %494 = dma.hbm_to_vmem [thread:$0]  %s85, 48, %s492, [#allocation45]
    $region173: #{anymal_forward.1} parent=1 // pred_fallthru
      _
    // Predicated region
    $region174: #{anymal_forward.1} parent=1 // pred_check
      _
    $region175: #{anymal_forward.1} parent=1 // pred_check_branch
      %496 = sbr.rel (0) target = $region177
    $region176: #{anymal_forward.1} parent=1 // pred_region
      %s498 = ssub.s32 2688, 2688
      %499 = vsyncadd [#allocation48], %s498
      %s500 = sshll.u32 [#allocation47], 4
      %s501 = int_to_ptr.vmem [resolvable:$true] %s500
      %506 = dma.hbm_to_vmem [thread:$0]  %s87, 2688, %s501, [#allocation48], 384, 384, 24
    $region177: #{anymal_forward.1} parent=1 // pred_fallthru
      _
    // Predicated region
    $region178: #{anymal_forward.1} parent=1 // pred_check
      _
    $region179: #{anymal_forward.1} parent=1 // pred_check_branch
      %508 = sbr.rel (0) target = $region181
    $region180: #{anymal_forward.1} parent=1 // pred_region
      %s510 = ssub.s32 48, 48
      %511 = vsyncadd [#allocation48], %s510
      %s513 = sshll.u32 [#allocation49], 4
      %s514 = int_to_ptr.vmem [resolvable:$true] %s513
      %516 = dma.hbm_to_vmem [thread:$0]  %s89, 48, %s514, [#allocation48]
    $region181: #{anymal_forward.1} parent=1 // pred_fallthru
      _
    // Predicated region
    $region182: #{anymal_forward.1} parent=1 // pred_check
      _
    $region183: #{anymal_forward.1} parent=1 // pred_check_branch
      %518 = sbr.rel (0) target = $region185
    $region184: #{anymal_forward.1} parent=1 // pred_region
      %s520 = ssub.s32 2688, 2688
      %521 = vsyncadd [#allocation51], %s520
      %s522 = sshll.u32 [#allocation50], 4
      %s523 = int_to_ptr.vmem [resolvable:$true] %s522
      %528 = dma.hbm_to_vmem [thread:$0]  %s91, 2688, %s523, [#allocation51], 384, 384, 24
    $region185: #{anymal_forward.1} parent=1 // pred_fallthru
      _
    // Predicated region
    $region186: #{anymal_forward.1} parent=1 // pred_check
      _
    $region187: #{anymal_forward.1} parent=1 // pred_check_branch
      %530 = sbr.rel (0) target = $region189
    $region188: #{anymal_forward.1} parent=1 // pred_region
      %s532 = ssub.s32 48, 48
      %533 = vsyncadd [#allocation51], %s532
      %s535 = sshll.u32 [#allocation52], 4
      %s536 = int_to_ptr.vmem [resolvable:$true] %s535
      %538 = dma.hbm_to_vmem [thread:$0]  %s93, 48, %s536, [#allocation51]
    $region189: #{anymal_forward.1} parent=1 // pred_fallthru
      _
    // Predicated region
    $region190: #{anymal_forward.1} parent=1 // pred_check
      _
    $region191: #{anymal_forward.1} parent=1 // pred_check_branch
      %540 = sbr.rel (0) target = $region193
    $region192: #{anymal_forward.1} parent=1 // pred_region
      _
    $region193: #{anymal_forward.1} parent=1 // pred_fallthru
      _
    // Predicated region
    $region194: #{anymal_forward.1} parent=1 // pred_check
      _
    $region195: #{anymal_forward.1} parent=1 // pred_check_branch
      %542 = sbr.rel (0) target = $region197
    $region196: #{anymal_forward.1} parent=1 // pred_region
      %s544 = ssub.s32 48, 48
      %545 = vsyncadd [#allocation54], %s544
      %s547 = sshll.u32 [#allocation53], 4
      %s548 = int_to_ptr.vmem [resolvable:$true] %s547
      %550 = dma.hbm_to_vmem [thread:$0]  %s97, 48, %s548, [#allocation54]
    $region197: #{anymal_forward.1} parent=1 // pred_fallthru
      _
    // Predicated region
    $region198: #{anymal_forward.1} parent=1 // pred_check
      _
    $region199: #{anymal_forward.1} parent=1 // pred_check_branch
      %552 = sbr.rel (0) target = $region201
    $region200: #{anymal_forward.1} parent=1 // pred_region
      %s554 = ssub.s32 51200, 51200
      %555 = vsyncadd [#allocation54], %s554
      %s556 = sshll.u32 [#allocation55], 4
      %s557 = int_to_ptr.vmem [resolvable:$true] %s556
      %562 = dma.hbm_to_vmem [thread:$0]  %s99, 51200, %s557, [#allocation54], 1280, 1280, 80
    $region201: #{anymal_forward.1} parent=1 // pred_fallthru
      _
    // Predicated region
    $region202: #{anymal_forward.1} parent=1 // pred_check
      _
    $region203: #{anymal_forward.1} parent=1 // pred_check_branch
      %564 = sbr.rel (0) target = $region205
    $region204: #{anymal_forward.1} parent=1 // pred_region
      %s566 = ssub.s32 160, 160
      %567 = vsyncadd [#allocation57], %s566
      %s569 = sshll.u32 [#allocation56], 4
      %s570 = int_to_ptr.vmem [resolvable:$true] %s569
      %572 = dma.hbm_to_vmem [thread:$0]  %s101, 160, %s570, [#allocation57]
    $region205: #{anymal_forward.1} parent=1 // pred_fallthru
      _
    // Predicated region
    $region206: #{anymal_forward.1} parent=1 // pred_check
      _
    $region207: #{anymal_forward.1} parent=1 // pred_check_branch
      %574 = sbr.rel (0) target = $region209
    $region208: #{anymal_forward.1} parent=1 // pred_region
      %s576 = ssub.s32 4352, 4352
      %577 = vsyncadd [#allocation57], %s576
      %s578 = sshll.u32 [#allocation58], 4
      %s579 = int_to_ptr.vmem [resolvable:$true] %s578
      %584 = dma.hbm_to_vmem [thread:$0]  %s103, 4352, %s579, [#allocation57], 256, 256, 16
    $region209: #{anymal_forward.1} parent=1 // pred_fallthru
      _
    // Predicated region
    $region210: #{anymal_forward.1} parent=1 // pred_check
      _
    $region211: #{anymal_forward.1} parent=1 // pred_check_branch
      %586 = sbr.rel (0) target = $region213
    $region212: #{anymal_forward.1} parent=1 // pred_region
      %s588 = ssub.s32 3840, 3840
      %589 = vsyncadd [#allocation60], %s588
      %s590 = sshll.u32 [#allocation59], 4
      %s591 = int_to_ptr.vmem [resolvable:$true] %s590
      %596 = dma.hbm_to_vmem [thread:$0]  %s105, 3840, %s591, [#allocation60], 256, 256, 16
    $region213: #{anymal_forward.1} parent=1 // pred_fallthru
      _
    // Predicated region
    $region214: #{anymal_forward.1} parent=1 // pred_check
      _
    $region215: #{anymal_forward.1} parent=1 // pred_check_branch
      %598 = sbr.rel (0) target = $region217
    $region216: #{anymal_forward.1} parent=1 // pred_region
      %s600 = ssub.s32 3072, 3072
      %601 = vsyncadd [#allocation60], %s600
      %s602 = sshll.u32 [#allocation61], 4
      %s603 = int_to_ptr.vmem [resolvable:$true] %s602
      %608 = dma.hbm_to_vmem [thread:$0]  %s107, 3072, %s603, [#allocation60], 256, 256, 16
    $region217: #{anymal_forward.1} parent=1 // pred_fallthru
      _
    // Predicated region
    $region218: #{anymal_forward.1} parent=1 // pred_check
      _
    $region219: #{anymal_forward.1} parent=1 // pred_check_branch
      %610 = sbr.rel (0) target = $region221
    $region220: #{anymal_forward.1} parent=1 // pred_region
      %s612 = ssub.s32 32, 32
      %613 = vsyncadd [#allocation63], %s612
      %s615 = sshll.u32 [#allocation62], 4
      %s616 = int_to_ptr.vmem [resolvable:$true] %s615
      %618 = dma.hbm_to_vmem [thread:$0]  %s109, 32, %s616, [#allocation63]
    $region221: #{anymal_forward.1} parent=1 // pred_fallthru
      _
    // Predicated region
    $region222: #{anymal_forward.1} parent=1 // pred_check
      _
    $region223: #{anymal_forward.1} parent=1 // pred_check_branch
      %620 = sbr.rel (0) target = $region225
    $region224: #{anymal_forward.1} parent=1 // pred_region
      _
    $region225: #{anymal_forward.1} parent=1 // pred_fallthru
      _
    // Predicated region
    $region226: #{anymal_forward.1} parent=1 // pred_check
      _
    $region227: #{anymal_forward.1} parent=1 // pred_check_branch
      %622 = sbr.rel (0) target = $region229
    $region228: #{anymal_forward.1} parent=1 // pred_region
      %s624 = ssub.s32 32, 32
      %625 = vsyncadd [#allocation63], %s624
      %s627 = sshll.u32 [#allocation64], 4
      %s628 = int_to_ptr.vmem [resolvable:$true] %s627
      %630 = dma.hbm_to_vmem [thread:$0]  %s113, 32, %s628, [#allocation63]
    $region229: #{anymal_forward.1} parent=1 // pred_fallthru
      _
    // Predicated region
    $region230: #{anymal_forward.1} parent=1 // pred_check
      _
    $region231: #{anymal_forward.1} parent=1 // pred_check_branch
      %632 = sbr.rel (0) target = $region233
    $region232: #{anymal_forward.1} parent=1 // pred_region
      %s634 = ssub.s32 2560, 2560
      %635 = vsyncadd [#allocation66], %s634
      %s636 = sshll.u32 [#allocation65], 4
      %s637 = int_to_ptr.vmem [resolvable:$true] %s636
      %642 = dma.hbm_to_vmem [thread:$0]  %s115, 2560, %s637, [#allocation66], 128, 128, 8
    $region233: #{anymal_forward.1} parent=1 // pred_fallthru
      _
    // Predicated region
    $region234: #{anymal_forward.1} parent=1 // pred_check
      _
    $region235: #{anymal_forward.1} parent=1 // pred_check_branch
      %644 = sbr.rel (0) target = $region237
    $region236: #{anymal_forward.1} parent=1 // pred_region
      %s646 = ssub.s32 16, 16
      %647 = vsyncadd [#allocation66], %s646
      %s649 = sshll.u32 [#allocation67], 4
      %s650 = int_to_ptr.vmem [resolvable:$true] %s649
      %652 = dma.hbm_to_vmem [thread:$0]  %s117, 16, %s650, [#allocation66]
    $region237: #{anymal_forward.1} parent=1 // pred_fallthru
      _
    // Predicated region
    $region238: #{anymal_forward.1} parent=1 // pred_check
      _
    $region239: #{anymal_forward.1} parent=1 // pred_check_branch
      %654 = sbr.rel (0) target = $region241
    $region240: #{anymal_forward.1} parent=1 // pred_region
      _
    $region241: #{anymal_forward.1} parent=1 // pred_fallthru
      _
    // Predicated region
    $region242: #{anymal_forward.1} parent=1 // pred_check
      _
    $region243: #{anymal_forward.1} parent=1 // pred_check_branch
      %656 = sbr.rel (0) target = $region245
    $region244: #{anymal_forward.1} parent=1 // pred_region
      %s658 = ssub.s32 16, 16
      %659 = vsyncadd [#allocation69], %s658
      %s661 = sshll.u32 [#allocation68], 4
      %s662 = int_to_ptr.vmem [resolvable:$true] %s661
      %664 = dma.hbm_to_vmem [thread:$0]  %s121, 16, %s662, [#allocation69]
    $region245: #{anymal_forward.1} parent=1 // pred_fallthru
      _
    // Predicated region
    $region246: #{anymal_forward.1} parent=1 // pred_check
      _
    $region247: #{anymal_forward.1} parent=1 // pred_check_branch
      %666 = sbr.rel (0) target = $region249
    $region248: #{anymal_forward.1} parent=1 // pred_region
      %667 = dma.done [#allocation3], 64
    $region249: #{anymal_forward.1} parent=1 // pred_fallthru
      _
    // Predicated region
    $region250: #{anymal_forward.1} parent=1 // pred_check
      _
    $region251: #{anymal_forward.1} parent=1 // pred_check_branch
      %669 = sbr.rel (0) target = $region253
    $region252: #{anymal_forward.1} parent=1 // pred_region
      %670 = dma.done [#allocation6], 32
    $region253: #{anymal_forward.1} parent=1 // pred_fallthru
      _
    // Predicated region
    $region254: #{anymal_forward.1} parent=1 // pred_check
      _
    $region255: #{anymal_forward.1} parent=1 // pred_check_branch
      %672 = sbr.rel (0) target = $region257
    $region256: #{anymal_forward.1} parent=1 // pred_region
      %673 = dma.done [#allocation6], 896
    $region257: #{anymal_forward.1} parent=1 // pred_fallthru
      _
    // Predicated region
    $region258: #{anymal_forward.1} parent=1 // pred_check
      _
    $region259: #{anymal_forward.1} parent=1 // pred_check_branch
      %675 = sbr.rel (0) target = $region261
    $region260: #{anymal_forward.1} parent=1 // pred_region
      %676 = dma.done [#allocation9], 16
    $region261: #{anymal_forward.1} parent=1 // pred_fallthru
      _
    // Predicated region
    $region262: #{anymal_forward.1} parent=1 // pred_check
      _
    $region263: #{anymal_forward.1} parent=1 // pred_check_branch
      %678 = sbr.rel (0) target = $region265
    $region264: #{anymal_forward.1} parent=1 // pred_region
      %679 = dma.done [#allocation9], 16
    $region265: #{anymal_forward.1} parent=1 // pred_fallthru
      _
    // Predicated region
    $region266: #{anymal_forward.1} parent=1 // pred_check
      _
    $region267: #{anymal_forward.1} parent=1 // pred_check_branch
      %681 = sbr.rel (0) target = $region269
    $region268: #{anymal_forward.1} parent=1 // pred_region
      %682 = dma.done [#allocation12], 16
    $region269: #{anymal_forward.1} parent=1 // pred_fallthru
      _
    // Predicated region
    $region270: #{anymal_forward.1} parent=1 // pred_check
      _
    $region271: #{anymal_forward.1} parent=1 // pred_check_branch
      %684 = sbr.rel (0) target = $region273
    $region272: #{anymal_forward.1} parent=1 // pred_region
      %685 = dma.done [#allocation12], 896
    $region273: #{anymal_forward.1} parent=1 // pred_fallthru
      _
    // Predicated region
    $region274: #{anymal_forward.1} parent=1 // pred_check
      _
    $region275: #{anymal_forward.1} parent=1 // pred_check_branch
      %687 = sbr.rel (0) target = $region277
    $region276: #{anymal_forward.1} parent=1 // pred_region
      %688 = dma.done [#allocation15], 16
    $region277: #{anymal_forward.1} parent=1 // pred_fallthru
      _
    // Predicated region
    $region278: #{anymal_forward.1} parent=1 // pred_check
      _
    $region279: #{anymal_forward.1} parent=1 // pred_check_branch
      %690 = sbr.rel (0) target = $region281
    $region280: #{anymal_forward.1} parent=1 // pred_region
      %691 = dma.done [#allocation15], 16
    $region281: #{anymal_forward.1} parent=1 // pred_fallthru
      _
    // Predicated region
    $region282: #{anymal_forward.1} parent=1 // pred_check
      _
    $region283: #{anymal_forward.1} parent=1 // pred_check_branch
      %693 = sbr.rel (0) target = $region285
    $region284: #{anymal_forward.1} parent=1 // pred_region
      %694 = dma.done [#allocation18], 16
    $region285: #{anymal_forward.1} parent=1 // pred_fallthru
      _
    // Predicated region
    $region286: #{anymal_forward.1} parent=1 // pred_check
      _
    $region287: #{anymal_forward.1} parent=1 // pred_check_branch
      %696 = sbr.rel (0) target = $region289
    $region288: #{anymal_forward.1} parent=1 // pred_region
      %697 = dma.done [#allocation18], 4352
    $region289: #{anymal_forward.1} parent=1 // pred_fallthru
      _
    // Predicated region
    $region290: #{anymal_forward.1} parent=1 // pred_check
      _
    $region291: #{anymal_forward.1} parent=1 // pred_check_branch
      %699 = sbr.rel (0) target = $region293
    $region292: #{anymal_forward.1} parent=1 // pred_region
      %700 = dma.done [#allocation21], 3072
    $region293: #{anymal_forward.1} parent=1 // pred_fallthru
      _
    // Predicated region
    $region294: #{anymal_forward.1} parent=1 // pred_check
      _
    $region295: #{anymal_forward.1} parent=1 // pred_check_branch
      %702 = sbr.rel (0) target = $region297
    $region296: #{anymal_forward.1} parent=1 // pred_region
      %703 = dma.done [#allocation21], 768
    $region297: #{anymal_forward.1} parent=1 // pred_fallthru
      _
    // Predicated region
    $region298: #{anymal_forward.1} parent=1 // pred_check
      _
    $region299: #{anymal_forward.1} parent=1 // pred_check_branch
      %705 = sbr.rel (0) target = $region301
    $region300: #{anymal_forward.1} parent=1 // pred_region
      %706 = dma.done [#allocation24], 32
    $region301: #{anymal_forward.1} parent=1 // pred_fallthru
      _
    // Predicated region
    $region302: #{anymal_forward.1} parent=1 // pred_check
      _
    $region303: #{anymal_forward.1} parent=1 // pred_check_branch
      %708 = sbr.rel (0) target = $region305
    $region304: #{anymal_forward.1} parent=1 // pred_region
      %709 = dma.done [#allocation24], 32
    $region305: #{anymal_forward.1} parent=1 // pred_fallthru
      _
    // Predicated region
    $region306: #{anymal_forward.1} parent=1 // pred_check
      _
    $region307: #{anymal_forward.1} parent=1 // pred_check_branch
      %711 = sbr.rel (0) target = $region309
    $region308: #{anymal_forward.1} parent=1 // pred_region
      %712 = dma.done [#allocation27], 2560
    $region309: #{anymal_forward.1} parent=1 // pred_fallthru
      _
    // Predicated region
    $region310: #{anymal_forward.1} parent=1 // pred_check
      _
    $region311: #{anymal_forward.1} parent=1 // pred_check_branch
      %714 = sbr.rel (0) target = $region313
    $region312: #{anymal_forward.1} parent=1 // pred_region
      %715 = dma.done [#allocation27], 16
    $region313: #{anymal_forward.1} parent=1 // pred_fallthru
      _
    // Predicated region
    $region314: #{anymal_forward.1} parent=1 // pred_check
      _
    $region315: #{anymal_forward.1} parent=1 // pred_check_branch
      %717 = sbr.rel (0) target = $region317
    $region316: #{anymal_forward.1} parent=1 // pred_region
      %718 = dma.done [#allocation30], 16
    $region317: #{anymal_forward.1} parent=1 // pred_fallthru
      _
    // Predicated region
    $region318: #{anymal_forward.1} parent=1 // pred_check
      _
    $region319: #{anymal_forward.1} parent=1 // pred_check_branch
      %720 = sbr.rel (0) target = $region321
    $region320: #{anymal_forward.1} parent=1 // pred_region
      %721 = dma.done [#allocation30], 896
    $region321: #{anymal_forward.1} parent=1 // pred_fallthru
      _
    // Predicated region
    $region322: #{anymal_forward.1} parent=1 // pred_check
      _
    $region323: #{anymal_forward.1} parent=1 // pred_check_branch
      %723 = sbr.rel (0) target = $region325
    $region324: #{anymal_forward.1} parent=1 // pred_region
      %724 = dma.done [#allocation33], 16
    $region325: #{anymal_forward.1} parent=1 // pred_fallthru
      _
    // Predicated region
    $region326: #{anymal_forward.1} parent=1 // pred_check
      _
    $region327: #{anymal_forward.1} parent=1 // pred_check_branch
      %726 = sbr.rel (0) target = $region329
    $region328: #{anymal_forward.1} parent=1 // pred_region
      %727 = dma.done [#allocation33], 16
    $region329: #{anymal_forward.1} parent=1 // pred_fallthru
      _
    // Predicated region
    $region330: #{anymal_forward.1} parent=1 // pred_check
      _
    $region331: #{anymal_forward.1} parent=1 // pred_check_branch
      %729 = sbr.rel (0) target = $region333
    $region332: #{anymal_forward.1} parent=1 // pred_region
      %730 = dma.done [#allocation36], 16
    $region333: #{anymal_forward.1} parent=1 // pred_fallthru
      _
    // Predicated region
    $region334: #{anymal_forward.1} parent=1 // pred_check
      _
    $region335: #{anymal_forward.1} parent=1 // pred_check_branch
      %732 = sbr.rel (0) target = $region337
    $region336: #{anymal_forward.1} parent=1 // pred_region
      %733 = dma.done [#allocation36], 6528
    $region337: #{anymal_forward.1} parent=1 // pred_fallthru
      _
    // Predicated region
    $region338: #{anymal_forward.1} parent=1 // pred_check
      _
    $region339: #{anymal_forward.1} parent=1 // pred_check_branch
      %735 = sbr.rel (0) target = $region341
    $region340: #{anymal_forward.1} parent=1 // pred_region
      %736 = dma.done [#allocation39], 4608
    $region341: #{anymal_forward.1} parent=1 // pred_fallthru
      _
    // Predicated region
    $region342: #{anymal_forward.1} parent=1 // pred_check
      _
    $region343: #{anymal_forward.1} parent=1 // pred_check_branch
      %738 = sbr.rel (0) target = $region345
    $region344: #{anymal_forward.1} parent=1 // pred_region
      %739 = dma.done [#allocation39], 48
    $region345: #{anymal_forward.1} parent=1 // pred_fallthru
      _
    // Predicated region
    $region346: #{anymal_forward.1} parent=1 // pred_check
      _
    $region347: #{anymal_forward.1} parent=1 // pred_check_branch
      %741 = sbr.rel (0) target = $region349
    $region348: #{anymal_forward.1} parent=1 // pred_region
      %742 = dma.done [#allocation42], 2688
    $region349: #{anymal_forward.1} parent=1 // pred_fallthru
      _
    // Predicated region
    $region350: #{anymal_forward.1} parent=1 // pred_check
      _
    $region351: #{anymal_forward.1} parent=1 // pred_check_branch
      %744 = sbr.rel (0) target = $region353
    $region352: #{anymal_forward.1} parent=1 // pred_region
      %745 = dma.done [#allocation42], 48
    $region353: #{anymal_forward.1} parent=1 // pred_fallthru
      _
    // Predicated region
    $region354: #{anymal_forward.1} parent=1 // pred_check
      _
    $region355: #{anymal_forward.1} parent=1 // pred_check_branch
      %747 = sbr.rel (0) target = $region357
    $region356: #{anymal_forward.1} parent=1 // pred_region
      %748 = dma.done [#allocation45], 2688
    $region357: #{anymal_forward.1} parent=1 // pred_fallthru
      _
    // Predicated region
    $region358: #{anymal_forward.1} parent=1 // pred_check
      _
    $region359: #{anymal_forward.1} parent=1 // pred_check_branch
      %750 = sbr.rel (0) target = $region361
    $region360: #{anymal_forward.1} parent=1 // pred_region
      %751 = dma.done [#allocation45], 48
    $region361: #{anymal_forward.1} parent=1 // pred_fallthru
      _
    // Predicated region
    $region362: #{anymal_forward.1} parent=1 // pred_check
      _
    $region363: #{anymal_forward.1} parent=1 // pred_check_branch
      %753 = sbr.rel (0) target = $region365
    $region364: #{anymal_forward.1} parent=1 // pred_region
      %754 = dma.done [#allocation48], 2688
    $region365: #{anymal_forward.1} parent=1 // pred_fallthru
      _
    // Predicated region
    $region366: #{anymal_forward.1} parent=1 // pred_check
      _
    $region367: #{anymal_forward.1} parent=1 // pred_check_branch
      %756 = sbr.rel (0) target = $region369
    $region368: #{anymal_forward.1} parent=1 // pred_region
      %757 = dma.done [#allocation48], 48
    $region369: #{anymal_forward.1} parent=1 // pred_fallthru
      _
    // Predicated region
    $region370: #{anymal_forward.1} parent=1 // pred_check
      _
    $region371: #{anymal_forward.1} parent=1 // pred_check_branch
      %759 = sbr.rel (0) target = $region373
    $region372: #{anymal_forward.1} parent=1 // pred_region
      %760 = dma.done [#allocation51], 2688
    $region373: #{anymal_forward.1} parent=1 // pred_fallthru
      _
    // Predicated region
    $region374: #{anymal_forward.1} parent=1 // pred_check
      _
    $region375: #{anymal_forward.1} parent=1 // pred_check_branch
      %762 = sbr.rel (0) target = $region377
    $region376: #{anymal_forward.1} parent=1 // pred_region
      %763 = dma.done [#allocation51], 48
    $region377: #{anymal_forward.1} parent=1 // pred_fallthru
      _
    // Predicated region
    $region378: #{anymal_forward.1} parent=1 // pred_check
      _
    $region379: #{anymal_forward.1} parent=1 // pred_check_branch
      %765 = sbr.rel (0) target = $region381
    $region380: #{anymal_forward.1} parent=1 // pred_region
      %766 = dma.done [#allocation54], 48
    $region381: #{anymal_forward.1} parent=1 // pred_fallthru
      _
    // Predicated region
    $region382: #{anymal_forward.1} parent=1 // pred_check
      _
    $region383: #{anymal_forward.1} parent=1 // pred_check_branch
      %768 = sbr.rel (0) target = $region385
    $region384: #{anymal_forward.1} parent=1 // pred_region
      %769 = dma.done [#allocation54], 51200
    $region385: #{anymal_forward.1} parent=1 // pred_fallthru
      _
    // Predicated region
    $region386: #{anymal_forward.1} parent=1 // pred_check
      _
    $region387: #{anymal_forward.1} parent=1 // pred_check_branch
      %771 = sbr.rel (0) target = $region389
    $region388: #{anymal_forward.1} parent=1 // pred_region
      %772 = dma.done [#allocation57], 160
    $region389: #{anymal_forward.1} parent=1 // pred_fallthru
      _
    // Predicated region
    $region390: #{anymal_forward.1} parent=1 // pred_check
      _
    $region391: #{anymal_forward.1} parent=1 // pred_check_branch
      %774 = sbr.rel (0) target = $region393
    $region392: #{anymal_forward.1} parent=1 // pred_region
      %775 = dma.done [#allocation57], 4352
    $region393: #{anymal_forward.1} parent=1 // pred_fallthru
      _
    // Predicated region
    $region394: #{anymal_forward.1} parent=1 // pred_check
      _
    $region395: #{anymal_forward.1} parent=1 // pred_check_branch
      %777 = sbr.rel (0) target = $region397
    $region396: #{anymal_forward.1} parent=1 // pred_region
      %778 = dma.done [#allocation60], 3840
    $region397: #{anymal_forward.1} parent=1 // pred_fallthru
      _
    // Predicated region
    $region398: #{anymal_forward.1} parent=1 // pred_check
      _
    $region399: #{anymal_forward.1} parent=1 // pred_check_branch
      %780 = sbr.rel (0) target = $region401
    $region400: #{anymal_forward.1} parent=1 // pred_region
      %781 = dma.done [#allocation60], 3072
    $region401: #{anymal_forward.1} parent=1 // pred_fallthru
      _
    // Predicated region
    $region402: #{anymal_forward.1} parent=1 // pred_check
      _
    $region403: #{anymal_forward.1} parent=1 // pred_check_branch
      %783 = sbr.rel (0) target = $region405
    $region404: #{anymal_forward.1} parent=1 // pred_region
      %784 = dma.done [#allocation63], 32
    $region405: #{anymal_forward.1} parent=1 // pred_fallthru
      _
    // Predicated region
    $region406: #{anymal_forward.1} parent=1 // pred_check
      _
    $region407: #{anymal_forward.1} parent=1 // pred_check_branch
      %786 = sbr.rel (0) target = $region409
    $region408: #{anymal_forward.1} parent=1 // pred_region
      %787 = dma.done [#allocation63], 32
    $region409: #{anymal_forward.1} parent=1 // pred_fallthru
      _
    // Predicated region
    $region410: #{anymal_forward.1} parent=1 // pred_check
      _
    $region411: #{anymal_forward.1} parent=1 // pred_check_branch
      %789 = sbr.rel (0) target = $region413
    $region412: #{anymal_forward.1} parent=1 // pred_region
      %790 = dma.done [#allocation66], 2560
    $region413: #{anymal_forward.1} parent=1 // pred_fallthru
      _
    // Predicated region
    $region414: #{anymal_forward.1} parent=1 // pred_check
      _
    $region415: #{anymal_forward.1} parent=1 // pred_check_branch
      %792 = sbr.rel (0) target = $region417
    $region416: #{anymal_forward.1} parent=1 // pred_region
      %793 = dma.done [#allocation66], 16
    $region417: #{anymal_forward.1} parent=1 // pred_fallthru
      _
    // Predicated region
    $region418: #{anymal_forward.1} parent=1 // pred_check
      _
    $region419: #{anymal_forward.1} parent=1 // pred_check_branch
      %795 = sbr.rel (0) target = $region421
    $region420: #{anymal_forward.1} parent=1 // pred_region
      %796 = dma.done [#allocation69], 16
    $region421: #{anymal_forward.1} parent=1 // pred_fallthru
      _
    %v797 = vld [vmem:[#allocation2] sm:$0xf]
    %v798 = vld [vmem:[#allocation5] sm:$0x3]
    %v799 = vld [vmem:[%s3] sm:$0xff]
    %v800 = vld [vmem:[%s3 + $0x8] sm:$0xff]
    %v801 = vld [vmem:[%s3 + $0x10] sm:$0xff]
    %v802 = vld [vmem:[%s3 + $0x18] sm:$0xff]
    %v803 = vld [vmem:[%s5] sm:$0xff]
    %v804 = vld [vmem:[%s5 + $0x8] sm:$0xff]
    %v805 = vld [vmem:[%s5 + $0x10] sm:$0xff]
    %v806 = vld [vmem:[%s5 + $0x18] sm:$0xff]
    %v807 = vmul.f32 %v803, 0.1
    %v808 = vmul.f32 %v804, 0.1
    %v809 = vmul.f32 %v805, 0.1
    %v810 = vmul.f32 %v806, 0.1
    %v811 = vadd.f32 %v799, %v807
    %v812 = vadd.f32 %v800, %v808
    %v813 = vadd.f32 %v801, %v809
    %v814 = vadd.f32 %v802, %v810
    %v815 = vld [vmem:[%s7] sm:$0xf]
    %v816 = vld [vmem:[%s9] sm:$0xf]
    %v817 = vmul.f32 %v816, 0.1
    %v818 = vadd.f32 %v815, %v817
    %v819 = vld [vmem:[#allocation7] sm:$0xff]
    %v820 = vld [vmem:[#allocation7 + $0x8] sm:$0xff]
    %v821 = vld [vmem:[#allocation7 + $0x10] sm:$0xff]
    %v822 = vld [vmem:[#allocation7 + $0x18] sm:$0xff]
    %v823 = vld [vmem:[#allocation7 + $0x20] sm:$0xff]
    %v824 = vld [vmem:[#allocation7 + $0x28] sm:$0xff]
    %v825 = vld [vmem:[#allocation7 + $0x30] sm:$0xf]
    %v826 = vld [vmem:[#allocation8] sm:$0x1]
    %v828 = vlaneseq
    %v829 = vshrl.u32 %v828, 7
    %v830 = vsub.s32 0, %v829
    %v831 = vrot.slane %v826, %v830
    %vm833 = vcmask 424960
    %v835 = vsel %vm833, %v799, 0
    %v838 = vsel %vm833, %v800, 0
    %v841 = vsel %vm833, %v801, 0
    %v844 = vsel %vm833, %v802, 0
    %vm846 = vcmask 1043456
    %v848 = vsel %vm846, %v825, 0
    %850 = vmatprep.subr.mxu0 0.0
    %851 = vmatpush1.msra.mxu0 %v819
    %852 = vmatprep.subr.mxu0 0.0
    %853 = vmatpush1.msra.mxu0 %v820
    %854 = vmatprep.subr.mxu0 0.0
    %855 = vmatpush1.msra.mxu0 %v821
    %856 = vmatprep.subr.mxu0 0.0
    %857 = vmatpush1.msra.mxu0 %v822
    %858 = vmatprep.subr.mxu0 0.0
    %859 = vmatpush1.msra.mxu0 %v823
    %860 = vmatprep.subr.mxu0 0.0
    %861 = vmatpush1.msra.mxu0 %v824
    %862 = vmatprep.subr.mxu0 0.0
    %863 = vmatpush1.msra.mxu0 %v848
    %864 = vmatprep.subr.mxu0 0.0
    %865 = vmatpush1.msra.mxu0 0.0
    %866 = vmatprep.subr.mxu0 0.0
    %867 = vmatpush1.msra.mxu0 0.0
    %868 = vmatprep.subr.mxu0 0.0
    %869 = vmatpush1.msra.mxu0 0.0
    %870 = vmatprep.subr.mxu0 0.0
    %871 = vmatpush1.msra.mxu0 0.0
    %872 = vmatprep.subr.mxu0 0.0
    %873 = vmatpush1.msra.mxu0 0.0
    %874 = vmatprep.subr.mxu0 0.0
    %875 = vmatpush1.msra.mxu0 0.0
    %876 = vmatprep.subr.mxu0 0.0
    %877 = vmatpush1.msra.mxu0 0.0
    %878 = vmatprep.subr.mxu0 0.0
    %879 = vmatpush1.msra.mxu0 0.0
    %880 = vmatprep.subr.mxu0 0.0
    %881 = vmatpush1.msra.mxu0 0.0
    %882 = vmatprep.subr.mxu0 0.0
    %883 = vmatpush1.msra.mxu0 0.0
    %884 = vmatprep.subr.mxu0 0.0
    %885 = vmatpush1.msra.mxu0 0.0
    %886 = vmatprep.subr.mxu0 0.0
    %887 = vmatpush1.msra.mxu0 0.0
    %888 = vmatprep.subr.mxu0 0.0
    %889 = vmatpush1.msra.mxu0 0.0
    %890 = vmatprep.subr.mxu0 0.0
    %891 = vmatpush1.msra.mxu0 0.0
    %892 = vmatprep.subr.mxu0 0.0
    %893 = vmatpush1.msra.mxu0 0.0
    %894 = vmatprep.subr.mxu0 0.0
    %895 = vmatpush1.msra.mxu0 0.0
    %896 = vmatprep.subr.mxu0 0.0
    %897 = vmatpush1.msra.mxu0 0.0
    %898 = vmatprep.subr.mxu0 0.0
    %899 = vmatpush1.msra.mxu0 0.0
    %900 = vmatprep.subr.mxu0 0.0
    %901 = vmatpush1.msra.mxu0 0.0
    %902 = vmatprep.subr.mxu0 0.0
    %903 = vmatpush1.msra.mxu0 0.0
    %904 = vmatprep.subr.mxu0 0.0
    %905 = vmatpush1.msra.mxu0 0.0
    %906 = vmatprep.subr.mxu0 0.0
    %907 = vmatpush1.msra.mxu0 0.0
    %908 = vmatprep.subr.mxu0 0.0
    %909 = vmatpush1.msra.mxu0 0.0
    %910 = vmatprep.subr.mxu0 0.0
    %911 = vmatpush1.msra.mxu0 0.0
    %912 = vmatprep.subr.mxu0 0.0
    %913 = vmatpush1.msra.mxu0 0.0
    %914 = vmatprep.mubr.f32.mxu0 0.0
    %915 = vmatmul.mubr.f32.gmra.mrb[0].mxu0 %v835
    %v916 = vpop.f32.mrb[0].mxu0
    %v917 = vadd.f32 %v831, %v916
    %v918 = vpop.f32.mrb[0].mxu0
    %919 = vmatprep.mubr.f32.mxu0 0.0
    %920 = vmatmul.mubr.f32.gmra.mrb[0].mxu0 %v838
    %v921 = vpop.f32.mrb[0].mxu0
    %v922 = vadd.f32 %v831, %v921
    %v923 = vpop.f32.mrb[0].mxu0
    %924 = vmatprep.mubr.f32.mxu0 0.0
    %925 = vmatmul.mubr.f32.gmra.mrb[0].mxu0 %v841
    %v926 = vpop.f32.mrb[0].mxu0
    %v927 = vadd.f32 %v831, %v926
    %v928 = vpop.f32.mrb[0].mxu0
    %929 = vmatprep.mubr.f32.mxu0 0.0
    %930 = vmatmul.mubr.f32.gmra.mrb[0].mxu0 %v844
    %v931 = vpop.f32.mrb[0].mxu0
    %v932 = vadd.f32 %v831, %v931
    %v933 = vpop.f32.mrb[0].mxu0
    %934 = vdwg.mxu0
    %vm935 = vcmp.gt.f32.partialorder %v917, 0.0
    %vm936 = vcmp.gt.f32.partialorder %v922, 0.0
    %vm937 = vcmp.gt.f32.partialorder %v927, 0.0
    %vm938 = vcmp.gt.f32.partialorder %v932, 0.0
    %v939 = vmul.f32 %v917, 0.01
    %v940 = vmul.f32 %v922, 0.01
    %v941 = vmul.f32 %v927, 0.01
    %v942 = vmul.f32 %v932, 0.01
    %v943 = vsel %vm935, %v917, %v939
    %v944 = vsel %vm936, %v922, %v940
    %v945 = vsel %vm937, %v927, %v941
    %v946 = vsel %vm938, %v932, %v942
    %v947 = vld [vmem:[%s21] sm:$0xff]
    %v948 = vld [vmem:[%s21 + $0x8] sm:$0xff]
    %v949 = vld [vmem:[%s21 + $0x10] sm:$0xff]
    %v950 = vld [vmem:[%s21 + $0x18] sm:$0xff]
    %v951 = vld [vmem:[%s21 + $0x20] sm:$0xff]
    %v952 = vld [vmem:[%s21 + $0x28] sm:$0xff]
    %v953 = vld [vmem:[%s21 + $0x30] sm:$0xff]
    %v954 = vld [vmem:[%s21 + $0x38] sm:$0xff]
    %v955 = vld [vmem:[%s21 + $0x40] sm:$0xff]
    %v956 = vld [vmem:[%s21 + $0x48] sm:$0xff]
    %v957 = vld [vmem:[#allocation10] sm:$0x1]
    %v959 = vlaneseq
    %v960 = vshrl.u32 %v959, 7
    %v961 = vsub.s32 0, %v960
    %v962 = vrot.slane %v957, %v961
    %vm964 = vcmask 654336
    %v966 = vsel %vm964, %v943, 0
    %v969 = vsel %vm964, %v944, 0
    %v972 = vsel %vm964, %v945, 0
    %v975 = vsel %vm964, %v946, 0
    %977 = vmatprep.subr.mxu0 0.0
    %978 = vmatpush1.msra.mxu0 %v947
    %979 = vmatprep.subr.mxu0 0.0
    %980 = vmatpush1.msra.mxu0 %v948
    %981 = vmatprep.subr.mxu0 0.0
    %982 = vmatpush1.msra.mxu0 %v949
    %983 = vmatprep.subr.mxu0 0.0
    %984 = vmatpush1.msra.mxu0 %v950
    %985 = vmatprep.subr.mxu0 0.0
    %986 = vmatpush1.msra.mxu0 %v951
    %987 = vmatprep.subr.mxu0 0.0
    %988 = vmatpush1.msra.mxu0 %v952
    %989 = vmatprep.subr.mxu0 0.0
    %990 = vmatpush1.msra.mxu0 %v953
    %991 = vmatprep.subr.mxu0 0.0
    %992 = vmatpush1.msra.mxu0 %v954
    %993 = vmatprep.subr.mxu0 0.0
    %994 = vmatpush1.msra.mxu0 %v955
    %995 = vmatprep.subr.mxu0 0.0
    %996 = vmatpush1.msra.mxu0 %v956
    %997 = vmatprep.subr.mxu0 0.0
    %998 = vmatpush1.msra.mxu0 0.0
    %999 = vmatprep.subr.mxu0 0.0
    %1000 = vmatpush1.msra.mxu0 0.0
    %1001 = vmatprep.subr.mxu0 0.0
    %1002 = vmatpush1.msra.mxu0 0.0
    %1003 = vmatprep.subr.mxu0 0.0
    %1004 = vmatpush1.msra.mxu0 0.0
    %1005 = vmatprep.subr.mxu0 0.0
    %1006 = vmatpush1.msra.mxu0 0.0
    %1007 = vmatprep.subr.mxu0 0.0
    %1008 = vmatpush1.msra.mxu0 0.0
    %1009 = vmatprep.subr.mxu0 0.0
    %1010 = vmatpush1.msra.mxu0 0.0
    %1011 = vmatprep.subr.mxu0 0.0
    %1012 = vmatpush1.msra.mxu0 0.0
    %1013 = vmatprep.subr.mxu0 0.0
    %1014 = vmatpush1.msra.mxu0 0.0
    %1015 = vmatprep.subr.mxu0 0.0
    %1016 = vmatpush1.msra.mxu0 0.0
    %1017 = vmatprep.subr.mxu0 0.0
    %1018 = vmatpush1.msra.mxu0 0.0
    %1019 = vmatprep.subr.mxu0 0.0
    %1020 = vmatpush1.msra.mxu0 0.0
    %1021 = vmatprep.subr.mxu0 0.0
    %1022 = vmatpush1.msra.mxu0 0.0
    %1023 = vmatprep.subr.mxu0 0.0
    %1024 = vmatpush1.msra.mxu0 0.0
    %1025 = vmatprep.subr.mxu0 0.0
    %1026 = vmatpush1.msra.mxu0 0.0
    %1027 = vmatprep.subr.mxu0 0.0
    %1028 = vmatpush1.msra.mxu0 0.0
    %1029 = vmatprep.subr.mxu0 0.0
    %1030 = vmatpush1.msra.mxu0 0.0
    %1031 = vmatprep.subr.mxu0 0.0
    %1032 = vmatpush1.msra.mxu0 0.0
    %1033 = vmatprep.subr.mxu0 0.0
    %1034 = vmatpush1.msra.mxu0 0.0
    %1035 = vmatprep.subr.mxu0 0.0
    %1036 = vmatpush1.msra.mxu0 0.0
    %1037 = vmatprep.subr.mxu0 0.0
    %1038 = vmatpush1.msra.mxu0 0.0
    %1039 = vmatprep.subr.mxu0 0.0
    %1040 = vmatpush1.msra.mxu0 0.0
    %1041 = vmatprep.mubr.f32.mxu0 0.0
    %1042 = vmatmul.mubr.f32.gmra.mrb[0].mxu0 %v966
    %v1043 = vpop.f32.mrb[0].mxu0
    %v1044 = vadd.f32 %v962, %v1043
    %v1045 = vpop.f32.mrb[0].mxu0
    %1046 = vmatprep.mubr.f32.mxu0 0.0
    %1047 = vmatmul.mubr.f32.gmra.mrb[0].mxu0 %v969
    %v1048 = vpop.f32.mrb[0].mxu0
    %v1049 = vadd.f32 %v962, %v1048
    %v1050 = vpop.f32.mrb[0].mxu0
    %1051 = vmatprep.mubr.f32.mxu0 0.0
    %1052 = vmatmul.mubr.f32.gmra.mrb[0].mxu0 %v972
    %v1053 = vpop.f32.mrb[0].mxu0
    %v1054 = vadd.f32 %v962, %v1053
    %v1055 = vpop.f32.mrb[0].mxu0
    %1056 = vmatprep.mubr.f32.mxu0 0.0
    %1057 = vmatmul.mubr.f32.gmra.mrb[0].mxu0 %v975
    %v1058 = vpop.f32.mrb[0].mxu0
    %v1059 = vadd.f32 %v962, %v1058
    %v1060 = vpop.f32.mrb[0].mxu0
    %1061 = vdwg.mxu0
    %vm1062 = vcmp.gt.f32.partialorder %v1044, 0.0
    %vm1063 = vcmp.gt.f32.partialorder %v1049, 0.0
    %vm1064 = vcmp.gt.f32.partialorder %v1054, 0.0
    %vm1065 = vcmp.gt.f32.partialorder %v1059, 0.0
    %v1066 = vmul.f32 %v1044, 0.01
    %v1067 = vmul.f32 %v1049, 0.01
    %v1068 = vmul.f32 %v1054, 0.01
    %v1069 = vmul.f32 %v1059, 0.01
    %v1070 = vsel %vm1062, %v1044, %v1066
    %v1071 = vsel %vm1063, %v1049, %v1067
    %v1072 = vsel %vm1064, %v1054, %v1068
    %v1073 = vsel %vm1065, %v1059, %v1069
    %v1074 = vld [vmem:[%s25] sm:$0xff]
    %v1075 = vld [vmem:[%s25 + $0x8] sm:$0xff]
    %v1076 = vld [vmem:[%s25 + $0x10] sm:$0xff]
    %v1077 = vld [vmem:[%s25 + $0x18] sm:$0xff]
    %v1078 = vld [vmem:[%s25 + $0x20] sm:$0xff]
    %v1079 = vld [vmem:[%s25 + $0x28] sm:$0xff]
    %v1080 = vld [vmem:[%s25 + $0x30] sm:$0xff]
    %v1081 = vld [vmem:[%s25 + $0x38] sm:$0xf]
    %v1082 = vld [vmem:[#allocation11] sm:$0x1]
    %v1084 = vlaneseq
    %v1085 = vshrl.u32 %v1084, 7
    %v1086 = vsub.s32 0, %v1085
    %v1087 = vrot.slane %v1082, %v1086
    %vm1089 = vcmask 490496
    %v1091 = vsel %vm1089, %v1070, 0
    %v1094 = vsel %vm1089, %v1071, 0
    %v1097 = vsel %vm1089, %v1072, 0
    %v1100 = vsel %vm1089, %v1073, 0
    %v1103 = vsel %vm846, %v1081, 0
    %1105 = vmatprep.subr.mxu0 0.0
    %1106 = vmatpush1.msra.mxu0 %v1074
    %1107 = vmatprep.subr.mxu0 0.0
    %1108 = vmatpush1.msra.mxu0 %v1075
    %1109 = vmatprep.subr.mxu0 0.0
    %1110 = vmatpush1.msra.mxu0 %v1076
    %1111 = vmatprep.subr.mxu0 0.0
    %1112 = vmatpush1.msra.mxu0 %v1077
    %1113 = vmatprep.subr.mxu0 0.0
    %1114 = vmatpush1.msra.mxu0 %v1078
    %1115 = vmatprep.subr.mxu0 0.0
    %1116 = vmatpush1.msra.mxu0 %v1079
    %1117 = vmatprep.subr.mxu0 0.0
    %1118 = vmatpush1.msra.mxu0 %v1080
    %1119 = vmatprep.subr.mxu0 0.0
    %1120 = vmatpush1.msra.mxu0 %v1103
    %1121 = vmatprep.subr.mxu0 0.0
    %1122 = vmatpush1.msra.mxu0 0.0
    %1123 = vmatprep.subr.mxu0 0.0
    %1124 = vmatpush1.msra.mxu0 0.0
    %1125 = vmatprep.subr.mxu0 0.0
    %1126 = vmatpush1.msra.mxu0 0.0
    %1127 = vmatprep.subr.mxu0 0.0
    %1128 = vmatpush1.msra.mxu0 0.0
    %1129 = vmatprep.subr.mxu0 0.0
    %1130 = vmatpush1.msra.mxu0 0.0
    %1131 = vmatprep.subr.mxu0 0.0
    %1132 = vmatpush1.msra.mxu0 0.0
    %1133 = vmatprep.subr.mxu0 0.0
    %1134 = vmatpush1.msra.mxu0 0.0
    %1135 = vmatprep.subr.mxu0 0.0
    %1136 = vmatpush1.msra.mxu0 0.0
    %1137 = vmatprep.subr.mxu0 0.0
    %1138 = vmatpush1.msra.mxu0 0.0
    %1139 = vmatprep.subr.mxu0 0.0
    %1140 = vmatpush1.msra.mxu0 0.0
    %1141 = vmatprep.subr.mxu0 0.0
    %1142 = vmatpush1.msra.mxu0 0.0
    %1143 = vmatprep.subr.mxu0 0.0
    %1144 = vmatpush1.msra.mxu0 0.0
    %1145 = vmatprep.subr.mxu0 0.0
    %1146 = vmatpush1.msra.mxu0 0.0
    %1147 = vmatprep.subr.mxu0 0.0
    %1148 = vmatpush1.msra.mxu0 0.0
    %1149 = vmatprep.subr.mxu0 0.0
    %1150 = vmatpush1.msra.mxu0 0.0
    %1151 = vmatprep.subr.mxu0 0.0
    %1152 = vmatpush1.msra.mxu0 0.0
    %1153 = vmatprep.subr.mxu0 0.0
    %1154 = vmatpush1.msra.mxu0 0.0
    %1155 = vmatprep.subr.mxu0 0.0
    %1156 = vmatpush1.msra.mxu0 0.0
    %1157 = vmatprep.subr.mxu0 0.0
    %1158 = vmatpush1.msra.mxu0 0.0
    %1159 = vmatprep.subr.mxu0 0.0
    %1160 = vmatpush1.msra.mxu0 0.0
    %1161 = vmatprep.subr.mxu0 0.0
    %1162 = vmatpush1.msra.mxu0 0.0
    %1163 = vmatprep.subr.mxu0 0.0
    %1164 = vmatpush1.msra.mxu0 0.0
    %1165 = vmatprep.subr.mxu0 0.0
    %1166 = vmatpush1.msra.mxu0 0.0
    %1167 = vmatprep.subr.mxu0 0.0
    %1168 = vmatpush1.msra.mxu0 0.0
    %1169 = vmatprep.mubr.f32.mxu0 0.0
    %1170 = vmatmul.mubr.f32.gmra.mrb[0].mxu0 %v1091
    %v1171 = vpop.f32.mrb[0].mxu0
    %v1172 = vadd.f32 %v1087, %v1171
    %v1173 = vpop.f32.mrb[0].mxu0
    %1174 = vmatprep.mubr.f32.mxu0 0.0
    %1175 = vmatmul.mubr.f32.gmra.mrb[0].mxu0 %v1094
    %v1176 = vpop.f32.mrb[0].mxu0
    %v1177 = vadd.f32 %v1087, %v1176
    %v1178 = vpop.f32.mrb[0].mxu0
    %1179 = vmatprep.mubr.f32.mxu0 0.0
    %1180 = vmatmul.mubr.f32.gmra.mrb[0].mxu0 %v1097
    %v1181 = vpop.f32.mrb[0].mxu0
    %v1182 = vadd.f32 %v1087, %v1181
    %v1183 = vpop.f32.mrb[0].mxu0
    %1184 = vmatprep.mubr.f32.mxu0 0.0
    %1185 = vmatmul.mubr.f32.gmra.mrb[0].mxu0 %v1100
    %v1186 = vpop.f32.mrb[0].mxu0
    %v1187 = vadd.f32 %v1087, %v1186
    %v1188 = vpop.f32.mrb[0].mxu0
    %1189 = vdwg.mxu0
    %v1190 = vld [vmem:[#allocation13] sm:$0xff]
    %v1191 = vld [vmem:[#allocation13 + $0x8] sm:$0xff]
    %v1192 = vld [vmem:[#allocation13 + $0x10] sm:$0xff]
    %v1193 = vld [vmem:[#allocation13 + $0x18] sm:$0xff]
    %v1194 = vld [vmem:[#allocation13 + $0x20] sm:$0xff]
    %v1195 = vld [vmem:[#allocation13 + $0x28] sm:$0xff]
    %v1196 = vld [vmem:[#allocation13 + $0x30] sm:$0x3]
    %v1197 = vld [vmem:[#allocation14] sm:$0x1]
    %v1199 = vlaneseq
    %v1200 = vshrl.u32 %v1199, 7
    %v1201 = vsub.s32 0, %v1200
    %v1202 = vrot.slane %v1197, %v1201
    %vm1204 = vcmask 408576
    %v1206 = vsel %vm1204, %v798, 0
    %vm1208 = vcmask 1041408
    %v1210 = vsel %vm1208, %v1196, 0
    %1212 = vmatprep.subr.mxu0 0.0
    %1213 = vmatpush1.msra.mxu0 %v1190
    %1214 = vmatprep.subr.mxu0 0.0
    %1215 = vmatpush1.msra.mxu0 %v1191
    %1216 = vmatprep.subr.mxu0 0.0
    %1217 = vmatpush1.msra.mxu0 %v1192
    %1218 = vmatprep.subr.mxu0 0.0
    %1219 = vmatpush1.msra.mxu0 %v1193
    %1220 = vmatprep.subr.mxu0 0.0
    %1221 = vmatpush1.msra.mxu0 %v1194
    %1222 = vmatprep.subr.mxu0 0.0
    %1223 = vmatpush1.msra.mxu0 %v1195
    %1224 = vmatprep.subr.mxu0 0.0
    %1225 = vmatpush1.msra.mxu0 %v1210
    %1226 = vmatprep.subr.mxu0 0.0
    %1227 = vmatpush1.msra.mxu0 0.0
    %1228 = vmatprep.subr.mxu0 0.0
    %1229 = vmatpush1.msra.mxu0 0.0
    %1230 = vmatprep.subr.mxu0 0.0
    %1231 = vmatpush1.msra.mxu0 0.0
    %1232 = vmatprep.subr.mxu0 0.0
    %1233 = vmatpush1.msra.mxu0 0.0
    %1234 = vmatprep.subr.mxu0 0.0
    %1235 = vmatpush1.msra.mxu0 0.0
    %1236 = vmatprep.subr.mxu0 0.0
    %1237 = vmatpush1.msra.mxu0 0.0
    %1238 = vmatprep.subr.mxu0 0.0
    %1239 = vmatpush1.msra.mxu0 0.0
    %1240 = vmatprep.subr.mxu0 0.0
    %1241 = vmatpush1.msra.mxu0 0.0
    %1242 = vmatprep.subr.mxu0 0.0
    %1243 = vmatpush1.msra.mxu0 0.0
    %1244 = vmatprep.subr.mxu0 0.0
    %1245 = vmatpush1.msra.mxu0 0.0
    %1246 = vmatprep.subr.mxu0 0.0
    %1247 = vmatpush1.msra.mxu0 0.0
    %1248 = vmatprep.subr.mxu0 0.0
    %1249 = vmatpush1.msra.mxu0 0.0
    %1250 = vmatprep.subr.mxu0 0.0
    %1251 = vmatpush1.msra.mxu0 0.0
    %1252 = vmatprep.subr.mxu0 0.0
    %1253 = vmatpush1.msra.mxu0 0.0
    %1254 = vmatprep.subr.mxu0 0.0
    %1255 = vmatpush1.msra.mxu0 0.0
    %1256 = vmatprep.subr.mxu0 0.0
    %1257 = vmatpush1.msra.mxu0 0.0
    %1258 = vmatprep.subr.mxu0 0.0
    %1259 = vmatpush1.msra.mxu0 0.0
    %1260 = vmatprep.subr.mxu0 0.0
    %1261 = vmatpush1.msra.mxu0 0.0
    %1262 = vmatprep.subr.mxu0 0.0
    %1263 = vmatpush1.msra.mxu0 0.0
    %1264 = vmatprep.subr.mxu0 0.0
    %1265 = vmatpush1.msra.mxu0 0.0
    %1266 = vmatprep.subr.mxu0 0.0
    %1267 = vmatpush1.msra.mxu0 0.0
    %1268 = vmatprep.subr.mxu0 0.0
    %1269 = vmatpush1.msra.mxu0 0.0
    %1270 = vmatprep.subr.mxu0 0.0
    %1271 = vmatpush1.msra.mxu0 0.0
    %1272 = vmatprep.subr.mxu0 0.0
    %1273 = vmatpush1.msra.mxu0 0.0
    %1274 = vmatprep.subr.mxu0 0.0
    %1275 = vmatpush1.msra.mxu0 0.0
    %1276 = vmatprep.mubr.f32.mxu0 0.0
    %1277 = vmatmul.mubr.f32.gmra.mrb[0].mxu0 %v1206
    %v1278 = vpop.f32.mrb[0].mxu0
    %v1279 = vadd.f32 %v1202, %v1278
    %v1280 = vpop.f32.mrb[0].mxu0
    %1281 = vdwg.mxu0
    %vm1282 = vcmp.gt.f32.partialorder %v1279, 0.0
    %v1283 = vmul.f32 %v1279, 0.01
    %v1284 = vsel %vm1282, %v1279, %v1283
    %v1285 = vld [vmem:[%s33] sm:$0xff]
    %v1286 = vld [vmem:[%s33 + $0x8] sm:$0xff]
    %v1287 = vld [vmem:[%s33 + $0x10] sm:$0xff]
    %v1288 = vld [vmem:[%s33 + $0x18] sm:$0xff]
    %v1289 = vld [vmem:[%s33 + $0x20] sm:$0xff]
    %v1290 = vld [vmem:[%s33 + $0x28] sm:$0xff]
    %v1291 = vld [vmem:[%s33 + $0x30] sm:$0xff]
    %v1292 = vld [vmem:[%s33 + $0x38] sm:$0xff]
    %v1293 = vld [vmem:[#allocation16] sm:$0x1]
    %v1295 = vlaneseq
    %v1296 = vshrl.u32 %v1295, 7
    %v1297 = vsub.s32 0, %v1296
    %v1298 = vrot.slane %v1293, %v1297
    %vm1300 = vcmask 523264
    %v1302 = vsel %vm1300, %v1284, 0
    %1304 = vmatprep.subr.mxu0 0.0
    %1305 = vmatpush1.msra.mxu0 %v1285
    %1306 = vmatprep.subr.mxu0 0.0
    %1307 = vmatpush1.msra.mxu0 %v1286
    %1308 = vmatprep.subr.mxu0 0.0
    %1309 = vmatpush1.msra.mxu0 %v1287
    %1310 = vmatprep.subr.mxu0 0.0
    %1311 = vmatpush1.msra.mxu0 %v1288
    %1312 = vmatprep.subr.mxu0 0.0
    %1313 = vmatpush1.msra.mxu0 %v1289
    %1314 = vmatprep.subr.mxu0 0.0
    %1315 = vmatpush1.msra.mxu0 %v1290
    %1316 = vmatprep.subr.mxu0 0.0
    %1317 = vmatpush1.msra.mxu0 %v1291
    %1318 = vmatprep.subr.mxu0 0.0
    %1319 = vmatpush1.msra.mxu0 %v1292
    %1320 = vmatprep.subr.mxu0 0.0
    %1321 = vmatpush1.msra.mxu0 0.0
    %1322 = vmatprep.subr.mxu0 0.0
    %1323 = vmatpush1.msra.mxu0 0.0
    %1324 = vmatprep.subr.mxu0 0.0
    %1325 = vmatpush1.msra.mxu0 0.0
    %1326 = vmatprep.subr.mxu0 0.0
    %1327 = vmatpush1.msra.mxu0 0.0
    %1328 = vmatprep.subr.mxu0 0.0
    %1329 = vmatpush1.msra.mxu0 0.0
    %1330 = vmatprep.subr.mxu0 0.0
    %1331 = vmatpush1.msra.mxu0 0.0
    %1332 = vmatprep.subr.mxu0 0.0
    %1333 = vmatpush1.msra.mxu0 0.0
    %1334 = vmatprep.subr.mxu0 0.0
    %1335 = vmatpush1.msra.mxu0 0.0
    %1336 = vmatprep.subr.mxu0 0.0
    %1337 = vmatpush1.msra.mxu0 0.0
    %1338 = vmatprep.subr.mxu0 0.0
    %1339 = vmatpush1.msra.mxu0 0.0
    %1340 = vmatprep.subr.mxu0 0.0
    %1341 = vmatpush1.msra.mxu0 0.0
    %1342 = vmatprep.subr.mxu0 0.0
    %1343 = vmatpush1.msra.mxu0 0.0
    %1344 = vmatprep.subr.mxu0 0.0
    %1345 = vmatpush1.msra.mxu0 0.0
    %1346 = vmatprep.subr.mxu0 0.0
    %1347 = vmatpush1.msra.mxu0 0.0
    %1348 = vmatprep.subr.mxu0 0.0
    %1349 = vmatpush1.msra.mxu0 0.0
    %1350 = vmatprep.subr.mxu0 0.0
    %1351 = vmatpush1.msra.mxu0 0.0
    %1352 = vmatprep.subr.mxu0 0.0
    %1353 = vmatpush1.msra.mxu0 0.0
    %1354 = vmatprep.subr.mxu0 0.0
    %1355 = vmatpush1.msra.mxu0 0.0
    %1356 = vmatprep.subr.mxu0 0.0
    %1357 = vmatpush1.msra.mxu0 0.0
    %1358 = vmatprep.subr.mxu0 0.0
    %1359 = vmatpush1.msra.mxu0 0.0
    %1360 = vmatprep.subr.mxu0 0.0
    %1361 = vmatpush1.msra.mxu0 0.0
    %1362 = vmatprep.subr.mxu0 0.0
    %1363 = vmatpush1.msra.mxu0 0.0
    %1364 = vmatprep.subr.mxu0 0.0
    %1365 = vmatpush1.msra.mxu0 0.0
    %1366 = vmatprep.subr.mxu0 0.0
    %1367 = vmatpush1.msra.mxu0 0.0
    %1368 = vmatprep.mubr.f32.mxu0 0.0
    %1369 = vmatmul.mubr.f32.gmra.mrb[0].mxu0 %v1302
    %v1370 = vpop.f32.mrb[0].mxu0
    %v1371 = vadd.f32 %v1298, %v1370
    %v1372 = vpop.f32.mrb[0].mxu0
    %1373 = vdwg.mxu0
    %vm1374 = vcmp.gt.f32.partialorder %v1371, 0.0
    %v1375 = vmul.f32 %v1371, 0.01
    %v1376 = vsel %vm1374, %v1371, %v1375
    %v1377 = vld [vmem:[%s37] sm:$0xff]
    %v1378 = vld [vmem:[%s37 + $0x8] sm:$0xff]
    %v1379 = vld [vmem:[%s37 + $0x10] sm:$0xff]
    %v1380 = vld [vmem:[%s37 + $0x18] sm:$0xff]
    %v1381 = vld [vmem:[#allocation17] sm:$0x1]
    %v1383 = vlaneseq
    %v1384 = vshrl.u32 %v1383, 7
    %v1385 = vsub.s32 0, %v1384
    %v1386 = vrot.slane %v1381, %v1385
    %vm1388 = vcmask 261120
    %v1390 = vsel %vm1388, %v1376, 0
    %1392 = vmatprep.subr.mxu0 0.0
    %1393 = vmatpush1.msra.mxu0 %v1377
    %1394 = vmatprep.subr.mxu0 0.0
    %1395 = vmatpush1.msra.mxu0 %v1378
    %1396 = vmatprep.subr.mxu0 0.0
    %1397 = vmatpush1.msra.mxu0 %v1379
    %1398 = vmatprep.subr.mxu0 0.0
    %1399 = vmatpush1.msra.mxu0 %v1380
    %1400 = vmatprep.subr.mxu0 0.0
    %1401 = vmatpush1.msra.mxu0 0.0
    %1402 = vmatprep.subr.mxu0 0.0
    %1403 = vmatpush1.msra.mxu0 0.0
    %1404 = vmatprep.subr.mxu0 0.0
    %1405 = vmatpush1.msra.mxu0 0.0
    %1406 = vmatprep.subr.mxu0 0.0
    %1407 = vmatpush1.msra.mxu0 0.0
    %1408 = vmatprep.subr.mxu0 0.0
    %1409 = vmatpush1.msra.mxu0 0.0
    %1410 = vmatprep.subr.mxu0 0.0
    %1411 = vmatpush1.msra.mxu0 0.0
    %1412 = vmatprep.subr.mxu0 0.0
    %1413 = vmatpush1.msra.mxu0 0.0
    %1414 = vmatprep.subr.mxu0 0.0
    %1415 = vmatpush1.msra.mxu0 0.0
    %1416 = vmatprep.subr.mxu0 0.0
    %1417 = vmatpush1.msra.mxu0 0.0
    %1418 = vmatprep.subr.mxu0 0.0
    %1419 = vmatpush1.msra.mxu0 0.0
    %1420 = vmatprep.subr.mxu0 0.0
    %1421 = vmatpush1.msra.mxu0 0.0
    %1422 = vmatprep.subr.mxu0 0.0
    %1423 = vmatpush1.msra.mxu0 0.0
    %1424 = vmatprep.subr.mxu0 0.0
    %1425 = vmatpush1.msra.mxu0 0.0
    %1426 = vmatprep.subr.mxu0 0.0
    %1427 = vmatpush1.msra.mxu0 0.0
    %1428 = vmatprep.subr.mxu0 0.0
    %1429 = vmatpush1.msra.mxu0 0.0
    %1430 = vmatprep.subr.mxu0 0.0
    %1431 = vmatpush1.msra.mxu0 0.0
    %1432 = vmatprep.subr.mxu0 0.0
    %1433 = vmatpush1.msra.mxu0 0.0
    %1434 = vmatprep.subr.mxu0 0.0
    %1435 = vmatpush1.msra.mxu0 0.0
    %1436 = vmatprep.subr.mxu0 0.0
    %1437 = vmatpush1.msra.mxu0 0.0
    %1438 = vmatprep.subr.mxu0 0.0
    %1439 = vmatpush1.msra.mxu0 0.0
    %1440 = vmatprep.subr.mxu0 0.0
    %1441 = vmatpush1.msra.mxu0 0.0
    %1442 = vmatprep.subr.mxu0 0.0
    %1443 = vmatpush1.msra.mxu0 0.0
    %1444 = vmatprep.subr.mxu0 0.0
    %1445 = vmatpush1.msra.mxu0 0.0
    %1446 = vmatprep.subr.mxu0 0.0
    %1447 = vmatpush1.msra.mxu0 0.0
    %1448 = vmatprep.subr.mxu0 0.0
    %1449 = vmatpush1.msra.mxu0 0.0
    %1450 = vmatprep.subr.mxu0 0.0
    %1451 = vmatpush1.msra.mxu0 0.0
    %1452 = vmatprep.subr.mxu0 0.0
    %1453 = vmatpush1.msra.mxu0 0.0
    %1454 = vmatprep.subr.mxu0 0.0
    %1455 = vmatpush1.msra.mxu0 0.0
    %1456 = vmatprep.mubr.f32.mxu0 0.0
    %1457 = vmatmul.mubr.f32.gmra.mrb[0].mxu0 %v1390
    %v1458 = vpop.f32.mrb[0].mxu0
    %v1459 = vadd.f32 %v1386, %v1458
    %v1460 = vpop.f32.mrb[0].mxu0
    %1461 = vdwg.mxu0
    %v1462 = vld [vmem:[#allocation19] sm:$0xff]
    %v1463 = vld [vmem:[#allocation19 + $0x8] sm:$0xff]
    %v1464 = vld [vmem:[#allocation19 + $0x10] sm:$0xff]
    %v1465 = vld [vmem:[#allocation19 + $0x18] sm:$0xff]
    %v1466 = vld [vmem:[#allocation19 + $0x20] sm:$0xff]
    %v1467 = vld [vmem:[#allocation19 + $0x28] sm:$0xff]
    %v1468 = vld [vmem:[#allocation19 + $0x30] sm:$0xff]
    %v1469 = vld [vmem:[#allocation19 + $0x38] sm:$0xff]
    %v1470 = vld [vmem:[#allocation19 + $0x40] sm:$0xff]
    %v1471 = vld [vmem:[#allocation19 + $0x48] sm:$0xff]
    %v1472 = vld [vmem:[#allocation19 + $0x50] sm:$0xff]
    %v1473 = vld [vmem:[#allocation19 + $0x58] sm:$0xff]
    %v1474 = vld [vmem:[#allocation19 + $0x60] sm:$0xff]
    %v1475 = vld [vmem:[#allocation19 + $0x68] sm:$0xff]
    %v1476 = vld [vmem:[#allocation19 + $0x70] sm:$0xff]
    %v1477 = vld [vmem:[#allocation19 + $0x78] sm:$0xff]
    %v1478 = vld [vmem:[#allocation19 + $0x80] sm:$0xff]
    %v1479 = vld [vmem:[#allocation19 + $0x88] sm:$0xff]
    %v1480 = vld [vmem:[#allocation19 + $0x90] sm:$0xff]
    %v1481 = vld [vmem:[#allocation19 + $0x98] sm:$0xff]
    %v1482 = vld [vmem:[#allocation19 + $0xa0] sm:$0xff]
    %v1483 = vld [vmem:[#allocation19 + $0xa8] sm:$0xff]
    %v1484 = vld [vmem:[#allocation19 + $0xb0] sm:$0xff]
    %v1485 = vld [vmem:[#allocation19 + $0xb8] sm:$0xff]
    %v1486 = vld [vmem:[#allocation19 + $0xc0] sm:$0xff]
    %v1487 = vld [vmem:[#allocation19 + $0xc8] sm:$0xff]
    %v1488 = vld [vmem:[#allocation19 + $0xd0] sm:$0xff]
    %v1489 = vld [vmem:[#allocation19 + $0xd8] sm:$0xff]
    %v1490 = vld [vmem:[#allocation19 + $0xe0] sm:$0xff]
    %v1491 = vld [vmem:[#allocation19 + $0xe8] sm:$0xff]
    %v1492 = vld [vmem:[#allocation19 + $0xf0] sm:$0xff]
    %v1493 = vld [vmem:[#allocation19 + $0xf8] sm:$0xff]
    %v1494 = vld [vmem:[#allocation19 + $0x100] sm:$0x1f]
    %v1495 = vld [vmem:[#allocation19 + $0x108] sm:$0x1f]
    %v1496 = vld [vmem:[#allocation22] sm:$0xff]
    %v1497 = vld [vmem:[#allocation22 + $0x8] sm:$0xff]
    %v1498 = vld [vmem:[#allocation22 + $0x10] sm:$0xff]
    %v1499 = vld [vmem:[#allocation22 + $0x18] sm:$0xff]
    %v1500 = vld [vmem:[#allocation22 + $0x20] sm:$0xff]
    %v1501 = vld [vmem:[#allocation22 + $0x28] sm:$0xff]
    %vm1502 = vcmask 195584
    %v1504 = vsel %vm1502, %v1459, 0
    %1506 = vmatprep.subr.mxu0 %v1497
    %1507 = vmatpush1.msra.mxu0 %v1496
    %1508 = vmatprep.subr.mxu0 %v1499
    %1509 = vmatpush1.msra.mxu0 %v1498
    %1510 = vmatprep.subr.mxu0 %v1501
    %1511 = vmatpush1.msra.mxu0 %v1500
    %1512 = vmatprep.subr.mxu0 0.0
    %1513 = vmatpush1.msra.mxu0 0.0
    %1514 = vmatprep.subr.mxu0 0.0
    %1515 = vmatpush1.msra.mxu0 0.0
    %1516 = vmatprep.subr.mxu0 0.0
    %1517 = vmatpush1.msra.mxu0 0.0
    %1518 = vmatprep.subr.mxu0 0.0
    %1519 = vmatpush1.msra.mxu0 0.0
    %1520 = vmatprep.subr.mxu0 0.0
    %1521 = vmatpush1.msra.mxu0 0.0
    %1522 = vmatprep.subr.mxu0 0.0
    %1523 = vmatpush1.msra.mxu0 0.0
    %1524 = vmatprep.subr.mxu0 0.0
    %1525 = vmatpush1.msra.mxu0 0.0
    %1526 = vmatprep.subr.mxu0 0.0
    %1527 = vmatpush1.msra.mxu0 0.0
    %1528 = vmatprep.subr.mxu0 0.0
    %1529 = vmatpush1.msra.mxu0 0.0
    %1530 = vmatprep.subr.mxu0 0.0
    %1531 = vmatpush1.msra.mxu0 0.0
    %1532 = vmatprep.subr.mxu0 0.0
    %1533 = vmatpush1.msra.mxu0 0.0
    %1534 = vmatprep.subr.mxu0 0.0
    %1535 = vmatpush1.msra.mxu0 0.0
    %1536 = vmatprep.subr.mxu0 0.0
    %1537 = vmatpush1.msra.mxu0 0.0
    %1538 = vmatprep.subr.mxu0 0.0
    %1539 = vmatpush1.msra.mxu0 0.0
    %1540 = vmatprep.subr.mxu0 0.0
    %1541 = vmatpush1.msra.mxu0 0.0
    %1542 = vmatprep.subr.mxu0 0.0
    %1543 = vmatpush1.msra.mxu0 0.0
    %1544 = vmatprep.subr.mxu0 0.0
    %1545 = vmatpush1.msra.mxu0 0.0
    %1546 = vmatprep.subr.mxu0 0.0
    %1547 = vmatpush1.msra.mxu0 0.0
    %1548 = vmatprep.subr.mxu0 0.0
    %1549 = vmatpush1.msra.mxu0 0.0
    %1550 = vmatprep.subr.mxu0 0.0
    %1551 = vmatpush1.msra.mxu0 0.0
    %1552 = vmatprep.subr.mxu0 0.0
    %1553 = vmatpush1.msra.mxu0 0.0
    %1554 = vmatprep.subr.mxu0 0.0
    %1555 = vmatpush1.msra.mxu0 0.0
    %1556 = vmatprep.subr.mxu0 0.0
    %1557 = vmatpush1.msra.mxu0 0.0
    %1558 = vmatprep.subr.mxu0 0.0
    %1559 = vmatpush1.msra.mxu0 0.0
    %1560 = vmatprep.subr.mxu0 0.0
    %1561 = vmatpush1.msra.mxu0 0.0
    %1562 = vmatprep.subr.mxu0 0.0
    %1563 = vmatpush1.msra.mxu0 0.0
    %1564 = vmatprep.subr.mxu0 0.0
    %1565 = vmatpush1.msra.mxu0 0.0
    %1566 = vmatprep.subr.mxu0 0.0
    %1567 = vmatpush1.msra.mxu0 0.0
    %1568 = vmatprep.subr.mxu0 0.0
    %1569 = vmatpush1.msra.mxu0 0.0
    %1570 = vmatprep.mubr.f32.mxu0 0.0
    %1571 = vmatmul.mubr.f32.gmra.mrb[0].mxu0 %v1504
    %v1572 = vpop.f32.mrb[0].mxu0
    %v1573 = vadd.f32 0.0, %v1572
    %v1574 = vpop.f32.mrb[0].mxu0
    %v1575 = vadd.f32 0.0, %v1574
    %1576 = vdwg.mxu0
    %v1579 = vunpack.c.l.s4 1983009808
    %v1580 = vunpack.c.0.s8 %v1579
    %v1581 = vlaneseq
    %v1582 = vshrl.u32 %v1581, 7
    %v1583 = vsub.s32 %v1580, %v1582
    %v1584 = vrot.slane %v797, %v1583
    %v1585 = vcombine.high %v1584, %v1584
    %vm1587 = vcmask 39936
    %v1588 = vsel %vm1587, %v1585, 0
    %vm1590 = vcmask 1044480
    %v1592 = vsel %vm1590, %v1494, 0
    %v1595 = vsel %vm1590, %v1495, 0
    %1597 = vmatprep.subr.mxu0 %v1463
    %1598 = vmatpush1.msra.mxu0 %v1462
    %1599 = vmatprep.subr.mxu0 %v1465
    %1600 = vmatpush1.msra.mxu0 %v1464
    %1601 = vmatprep.subr.mxu0 %v1467
    %1602 = vmatpush1.msra.mxu0 %v1466
    %1603 = vmatprep.subr.mxu0 %v1469
    %1604 = vmatpush1.msra.mxu0 %v1468
    %1605 = vmatprep.subr.mxu0 %v1471
    %1606 = vmatpush1.msra.mxu0 %v1470
    %1607 = vmatprep.subr.mxu0 %v1473
    %1608 = vmatpush1.msra.mxu0 %v1472
    %1609 = vmatprep.subr.mxu0 %v1475
    %1610 = vmatpush1.msra.mxu0 %v1474
    %1611 = vmatprep.subr.mxu0 %v1477
    %1612 = vmatpush1.msra.mxu0 %v1476
    %1613 = vmatprep.subr.mxu0 %v1479
    %1614 = vmatpush1.msra.mxu0 %v1478
    %1615 = vmatprep.subr.mxu0 %v1481
    %1616 = vmatpush1.msra.mxu0 %v1480
    %1617 = vmatprep.subr.mxu0 %v1483
    %1618 = vmatpush1.msra.mxu0 %v1482
    %1619 = vmatprep.subr.mxu0 %v1485
    %1620 = vmatpush1.msra.mxu0 %v1484
    %1621 = vmatprep.subr.mxu0 %v1487
    %1622 = vmatpush1.msra.mxu0 %v1486
    %1623 = vmatprep.subr.mxu0 %v1489
    %1624 = vmatpush1.msra.mxu0 %v1488
    %1625 = vmatprep.subr.mxu0 %v1491
    %1626 = vmatpush1.msra.mxu0 %v1490
    %1627 = vmatprep.subr.mxu0 %v1493
    %1628 = vmatpush1.msra.mxu0 %v1492
    %1629 = vmatprep.subr.mxu0 %v1595
    %1630 = vmatpush1.msra.mxu0 %v1592
    %1631 = vmatprep.subr.mxu0 0.0
    %1632 = vmatpush1.msra.mxu0 0.0
    %1633 = vmatprep.subr.mxu0 0.0
    %1634 = vmatpush1.msra.mxu0 0.0
    %1635 = vmatprep.subr.mxu0 0.0
    %1636 = vmatpush1.msra.mxu0 0.0
    %1637 = vmatprep.subr.mxu0 0.0
    %1638 = vmatpush1.msra.mxu0 0.0
    %1639 = vmatprep.subr.mxu0 0.0
    %1640 = vmatpush1.msra.mxu0 0.0
    %1641 = vmatprep.subr.mxu0 0.0
    %1642 = vmatpush1.msra.mxu0 0.0
    %1643 = vmatprep.subr.mxu0 0.0
    %1644 = vmatpush1.msra.mxu0 0.0
    %1645 = vmatprep.subr.mxu0 0.0
    %1646 = vmatpush1.msra.mxu0 0.0
    %1647 = vmatprep.subr.mxu0 0.0
    %1648 = vmatpush1.msra.mxu0 0.0
    %1649 = vmatprep.subr.mxu0 0.0
    %1650 = vmatpush1.msra.mxu0 0.0
    %1651 = vmatprep.subr.mxu0 0.0
    %1652 = vmatpush1.msra.mxu0 0.0
    %1653 = vmatprep.subr.mxu0 0.0
    %1654 = vmatpush1.msra.mxu0 0.0
    %1655 = vmatprep.subr.mxu0 0.0
    %1656 = vmatpush1.msra.mxu0 0.0
    %1657 = vmatprep.subr.mxu0 0.0
    %1658 = vmatpush1.msra.mxu0 0.0
    %1659 = vmatprep.subr.mxu0 0.0
    %1660 = vmatpush1.msra.mxu0 0.0
    %1661 = vmatprep.mubr.f32.mxu0 %v1588
    %1662 = vmatmul.mubr.f32.gmra.mrb[0].mxu0 %v1584
    %v1663 = vpop.f32.mrb[0].mxu0
    %v1664 = vadd.f32 %v1573, %v1663
    %v1665 = vpop.f32.mrb[0].mxu0
    %v1666 = vadd.f32 %v1575, %v1665
    %1667 = vdwg.mxu0
    %v1668 = vld [vmem:[#allocation23] sm:$0x3]
    %v1670 = vlaneseq
    %v1671 = vshrl.u32 %v1670, 7
    %v1672 = vsub.s32 0, %v1671
    %v1673 = vrot.slane %v1668, %v1672
    %v1674 = vlaneseq
    %v1675 = vshrl.u32 %v1674, 7
    %v1676 = vsub.s32 1, %v1675
    %v1677 = vrot.slane %v1668, %v1676
    %v1680 = vadd.f32 %v1664, %v1673
    %v1681 = vadd.f32 %v1666, %v1677
    %v1682 = vld [vmem:[#allocation20] sm:$0xff]
    %v1683 = vld [vmem:[#allocation20 + $0x8] sm:$0xff]
    %v1684 = vld [vmem:[#allocation20 + $0x10] sm:$0xff]
    %v1685 = vld [vmem:[#allocation20 + $0x18] sm:$0xff]
    %v1686 = vld [vmem:[#allocation20 + $0x20] sm:$0xff]
    %v1687 = vld [vmem:[#allocation20 + $0x28] sm:$0xff]
    %v1689 = vsel %vm1502, %v1172, 0
    %1691 = vmatprep.subr.mxu0 %v1683
    %1692 = vmatpush1.msra.mxu0 %v1682
    %1693 = vmatprep.subr.mxu0 %v1685
    %1694 = vmatpush1.msra.mxu0 %v1684
    %1695 = vmatprep.subr.mxu0 %v1687
    %1696 = vmatpush1.msra.mxu0 %v1686
    %1697 = vmatprep.subr.mxu0 0.0
    %1698 = vmatpush1.msra.mxu0 0.0
    %1699 = vmatprep.subr.mxu0 0.0
    %1700 = vmatpush1.msra.mxu0 0.0
    %1701 = vmatprep.subr.mxu0 0.0
    %1702 = vmatpush1.msra.mxu0 0.0
    %1703 = vmatprep.subr.mxu0 0.0
    %1704 = vmatpush1.msra.mxu0 0.0
    %1705 = vmatprep.subr.mxu0 0.0
    %1706 = vmatpush1.msra.mxu0 0.0
    %1707 = vmatprep.subr.mxu0 0.0
    %1708 = vmatpush1.msra.mxu0 0.0
    %1709 = vmatprep.subr.mxu0 0.0
    %1710 = vmatpush1.msra.mxu0 0.0
    %1711 = vmatprep.subr.mxu0 0.0
    %1712 = vmatpush1.msra.mxu0 0.0
    %1713 = vmatprep.subr.mxu0 0.0
    %1714 = vmatpush1.msra.mxu0 0.0
    %1715 = vmatprep.subr.mxu0 0.0
    %1716 = vmatpush1.msra.mxu0 0.0
    %1717 = vmatprep.subr.mxu0 0.0
    %1718 = vmatpush1.msra.mxu0 0.0
    %1719 = vmatprep.subr.mxu0 0.0
    %1720 = vmatpush1.msra.mxu0 0.0
    %1721 = vmatprep.subr.mxu0 0.0
    %1722 = vmatpush1.msra.mxu0 0.0
    %1723 = vmatprep.subr.mxu0 0.0
    %1724 = vmatpush1.msra.mxu0 0.0
    %1725 = vmatprep.subr.mxu0 0.0
    %1726 = vmatpush1.msra.mxu0 0.0
    %1727 = vmatprep.subr.mxu0 0.0
    %1728 = vmatpush1.msra.mxu0 0.0
    %1729 = vmatprep.subr.mxu0 0.0
    %1730 = vmatpush1.msra.mxu0 0.0
    %1731 = vmatprep.subr.mxu0 0.0
    %1732 = vmatpush1.msra.mxu0 0.0
    %1733 = vmatprep.subr.mxu0 0.0
    %1734 = vmatpush1.msra.mxu0 0.0
    %1735 = vmatprep.subr.mxu0 0.0
    %1736 = vmatpush1.msra.mxu0 0.0
    %1737 = vmatprep.subr.mxu0 0.0
    %1738 = vmatpush1.msra.mxu0 0.0
    %1739 = vmatprep.subr.mxu0 0.0
    %1740 = vmatpush1.msra.mxu0 0.0
    %1741 = vmatprep.subr.mxu0 0.0
    %1742 = vmatpush1.msra.mxu0 0.0
    %1743 = vmatprep.subr.mxu0 0.0
    %1744 = vmatpush1.msra.mxu0 0.0
    %1745 = vmatprep.subr.mxu0 0.0
    %1746 = vmatpush1.msra.mxu0 0.0
    %1747 = vmatprep.subr.mxu0 0.0
    %1748 = vmatpush1.msra.mxu0 0.0
    %1749 = vmatprep.subr.mxu0 0.0
    %1750 = vmatpush1.msra.mxu0 0.0
    %1751 = vmatprep.subr.mxu0 0.0
    %1752 = vmatpush1.msra.mxu0 0.0
    %1753 = vmatprep.subr.mxu0 0.0
    %1754 = vmatpush1.msra.mxu0 0.0
    %1755 = vmatprep.mubr.f32.mxu0 0.0
    %1756 = vmatmul.mubr.f32.gmra.mrb[0].mxu0 %v1689
    %v1757 = vpop.f32.mrb[0].mxu0
    %v1758 = vadd.f32 0.0, %v1757
    %v1759 = vpop.f32.mrb[0].mxu0
    %v1760 = vadd.f32 0.0, %v1759
    %1761 = vdwg.mxu0
    %v1762 = vadd.f32 %v1680, %v1758
    %v1763 = vadd.f32 %v1681, %v1760
    %s1764 = scalar_lea.vmem [#allocation20], 48
    %v1765 = vld [vmem:[%s1764] sm:$0xff]
    %v1766 = vld [vmem:[%s1764 + $0x8] sm:$0xff]
    %v1767 = vld [vmem:[%s1764 + $0x10] sm:$0xff]
    %v1768 = vld [vmem:[%s1764 + $0x18] sm:$0xff]
    %v1769 = vld [vmem:[%s1764 + $0x20] sm:$0xff]
    %v1770 = vld [vmem:[%s1764 + $0x28] sm:$0xff]
    %v1772 = vsel %vm1502, %v1177, 0
    %1774 = vmatprep.subr.mxu0 %v1766
    %1775 = vmatpush1.msra.mxu0 %v1765
    %1776 = vmatprep.subr.mxu0 %v1768
    %1777 = vmatpush1.msra.mxu0 %v1767
    %1778 = vmatprep.subr.mxu0 %v1770
    %1779 = vmatpush1.msra.mxu0 %v1769
    %1780 = vmatprep.subr.mxu0 0.0
    %1781 = vmatpush1.msra.mxu0 0.0
    %1782 = vmatprep.subr.mxu0 0.0
    %1783 = vmatpush1.msra.mxu0 0.0
    %1784 = vmatprep.subr.mxu0 0.0
    %1785 = vmatpush1.msra.mxu0 0.0
    %1786 = vmatprep.subr.mxu0 0.0
    %1787 = vmatpush1.msra.mxu0 0.0
    %1788 = vmatprep.subr.mxu0 0.0
    %1789 = vmatpush1.msra.mxu0 0.0
    %1790 = vmatprep.subr.mxu0 0.0
    %1791 = vmatpush1.msra.mxu0 0.0
    %1792 = vmatprep.subr.mxu0 0.0
    %1793 = vmatpush1.msra.mxu0 0.0
    %1794 = vmatprep.subr.mxu0 0.0
    %1795 = vmatpush1.msra.mxu0 0.0
    %1796 = vmatprep.subr.mxu0 0.0
    %1797 = vmatpush1.msra.mxu0 0.0
    %1798 = vmatprep.subr.mxu0 0.0
    %1799 = vmatpush1.msra.mxu0 0.0
    %1800 = vmatprep.subr.mxu0 0.0
    %1801 = vmatpush1.msra.mxu0 0.0
    %1802 = vmatprep.subr.mxu0 0.0
    %1803 = vmatpush1.msra.mxu0 0.0
    %1804 = vmatprep.subr.mxu0 0.0
    %1805 = vmatpush1.msra.mxu0 0.0
    %1806 = vmatprep.subr.mxu0 0.0
    %1807 = vmatpush1.msra.mxu0 0.0
    %1808 = vmatprep.subr.mxu0 0.0
    %1809 = vmatpush1.msra.mxu0 0.0
    %1810 = vmatprep.subr.mxu0 0.0
    %1811 = vmatpush1.msra.mxu0 0.0
    %1812 = vmatprep.subr.mxu0 0.0
    %1813 = vmatpush1.msra.mxu0 0.0
    %1814 = vmatprep.subr.mxu0 0.0
    %1815 = vmatpush1.msra.mxu0 0.0
    %1816 = vmatprep.subr.mxu0 0.0
    %1817 = vmatpush1.msra.mxu0 0.0
    %1818 = vmatprep.subr.mxu0 0.0
    %1819 = vmatpush1.msra.mxu0 0.0
    %1820 = vmatprep.subr.mxu0 0.0
    %1821 = vmatpush1.msra.mxu0 0.0
    %1822 = vmatprep.subr.mxu0 0.0
    %1823 = vmatpush1.msra.mxu0 0.0
    %1824 = vmatprep.subr.mxu0 0.0
    %1825 = vmatpush1.msra.mxu0 0.0
    %1826 = vmatprep.subr.mxu0 0.0
    %1827 = vmatpush1.msra.mxu0 0.0
    %1828 = vmatprep.subr.mxu0 0.0
    %1829 = vmatpush1.msra.mxu0 0.0
    %1830 = vmatprep.subr.mxu0 0.0
    %1831 = vmatpush1.msra.mxu0 0.0
    %1832 = vmatprep.subr.mxu0 0.0
    %1833 = vmatpush1.msra.mxu0 0.0
    %1834 = vmatprep.subr.mxu0 0.0
    %1835 = vmatpush1.msra.mxu0 0.0
    %1836 = vmatprep.subr.mxu0 0.0
    %1837 = vmatpush1.msra.mxu0 0.0
    %1838 = vmatprep.mubr.f32.mxu0 0.0
    %1839 = vmatmul.mubr.f32.gmra.mrb[0].mxu0 %v1772
    %v1840 = vpop.f32.mrb[0].mxu0
    %v1841 = vadd.f32 0.0, %v1840
    %v1842 = vpop.f32.mrb[0].mxu0
    %v1843 = vadd.f32 0.0, %v1842
    %1844 = vdwg.mxu0
    %v1845 = vadd.f32 %v1762, %v1841
    %v1846 = vadd.f32 %v1763, %v1843
    %s1847 = scalar_lea.vmem [#allocation20], 96
    %v1848 = vld [vmem:[%s1847] sm:$0xff]
    %v1849 = vld [vmem:[%s1847 + $0x8] sm:$0xff]
    %v1850 = vld [vmem:[%s1847 + $0x10] sm:$0xff]
    %v1851 = vld [vmem:[%s1847 + $0x18] sm:$0xff]
    %v1852 = vld [vmem:[%s1847 + $0x20] sm:$0xff]
    %v1853 = vld [vmem:[%s1847 + $0x28] sm:$0xff]
    %v1855 = vsel %vm1502, %v1182, 0
    %1857 = vmatprep.subr.mxu0 %v1849
    %1858 = vmatpush1.msra.mxu0 %v1848
    %1859 = vmatprep.subr.mxu0 %v1851
    %1860 = vmatpush1.msra.mxu0 %v1850
    %1861 = vmatprep.subr.mxu0 %v1853
    %1862 = vmatpush1.msra.mxu0 %v1852
    %1863 = vmatprep.subr.mxu0 0.0
    %1864 = vmatpush1.msra.mxu0 0.0
    %1865 = vmatprep.subr.mxu0 0.0
    %1866 = vmatpush1.msra.mxu0 0.0
    %1867 = vmatprep.subr.mxu0 0.0
    %1868 = vmatpush1.msra.mxu0 0.0
    %1869 = vmatprep.subr.mxu0 0.0
    %1870 = vmatpush1.msra.mxu0 0.0
    %1871 = vmatprep.subr.mxu0 0.0
    %1872 = vmatpush1.msra.mxu0 0.0
    %1873 = vmatprep.subr.mxu0 0.0
    %1874 = vmatpush1.msra.mxu0 0.0
    %1875 = vmatprep.subr.mxu0 0.0
    %1876 = vmatpush1.msra.mxu0 0.0
    %1877 = vmatprep.subr.mxu0 0.0
    %1878 = vmatpush1.msra.mxu0 0.0
    %1879 = vmatprep.subr.mxu0 0.0
    %1880 = vmatpush1.msra.mxu0 0.0
    %1881 = vmatprep.subr.mxu0 0.0
    %1882 = vmatpush1.msra.mxu0 0.0
    %1883 = vmatprep.subr.mxu0 0.0
    %1884 = vmatpush1.msra.mxu0 0.0
    %1885 = vmatprep.subr.mxu0 0.0
    %1886 = vmatpush1.msra.mxu0 0.0
    %1887 = vmatprep.subr.mxu0 0.0
    %1888 = vmatpush1.msra.mxu0 0.0
    %1889 = vmatprep.subr.mxu0 0.0
    %1890 = vmatpush1.msra.mxu0 0.0
    %1891 = vmatprep.subr.mxu0 0.0
    %1892 = vmatpush1.msra.mxu0 0.0
    %1893 = vmatprep.subr.mxu0 0.0
    %1894 = vmatpush1.msra.mxu0 0.0
    %1895 = vmatprep.subr.mxu0 0.0
    %1896 = vmatpush1.msra.mxu0 0.0
    %1897 = vmatprep.subr.mxu0 0.0
    %1898 = vmatpush1.msra.mxu0 0.0
    %1899 = vmatprep.subr.mxu0 0.0
    %1900 = vmatpush1.msra.mxu0 0.0
    %1901 = vmatprep.subr.mxu0 0.0
    %1902 = vmatpush1.msra.mxu0 0.0
    %1903 = vmatprep.subr.mxu0 0.0
    %1904 = vmatpush1.msra.mxu0 0.0
    %1905 = vmatprep.subr.mxu0 0.0
    %1906 = vmatpush1.msra.mxu0 0.0
    %1907 = vmatprep.subr.mxu0 0.0
    %1908 = vmatpush1.msra.mxu0 0.0
    %1909 = vmatprep.subr.mxu0 0.0
    %1910 = vmatpush1.msra.mxu0 0.0
    %1911 = vmatprep.subr.mxu0 0.0
    %1912 = vmatpush1.msra.mxu0 0.0
    %1913 = vmatprep.subr.mxu0 0.0
    %1914 = vmatpush1.msra.mxu0 0.0
    %1915 = vmatprep.subr.mxu0 0.0
    %1916 = vmatpush1.msra.mxu0 0.0
    %1917 = vmatprep.subr.mxu0 0.0
    %1918 = vmatpush1.msra.mxu0 0.0
    %1919 = vmatprep.subr.mxu0 0.0
    %1920 = vmatpush1.msra.mxu0 0.0
    %1921 = vmatprep.mubr.f32.mxu0 0.0
    %1922 = vmatmul.mubr.f32.gmra.mrb[0].mxu0 %v1855
    %v1923 = vpop.f32.mrb[0].mxu0
    %v1924 = vadd.f32 0.0, %v1923
    %v1925 = vpop.f32.mrb[0].mxu0
    %v1926 = vadd.f32 0.0, %v1925
    %1927 = vdwg.mxu0
    %v1928 = vadd.f32 %v1845, %v1924
    %v1929 = vadd.f32 %v1846, %v1926
    %s1930 = scalar_lea.vmem [#allocation20], 144
    %v1931 = vld [vmem:[%s1930] sm:$0xff]
    %v1932 = vld [vmem:[%s1930 + $0x8] sm:$0xff]
    %v1933 = vld [vmem:[%s1930 + $0x10] sm:$0xff]
    %v1934 = vld [vmem:[%s1930 + $0x18] sm:$0xff]
    %v1935 = vld [vmem:[%s1930 + $0x20] sm:$0xff]
    %v1936 = vld [vmem:[%s1930 + $0x28] sm:$0xff]
    %v1938 = vsel %vm1502, %v1187, 0
    %1940 = vmatprep.subr.mxu0 %v1932
    %1941 = vmatpush1.msra.mxu0 %v1931
    %1942 = vmatprep.subr.mxu0 %v1934
    %1943 = vmatpush1.msra.mxu0 %v1933
    %1944 = vmatprep.subr.mxu0 %v1936
    %1945 = vmatpush1.msra.mxu0 %v1935
    %1946 = vmatprep.subr.mxu0 0.0
    %1947 = vmatpush1.msra.mxu0 0.0
    %1948 = vmatprep.subr.mxu0 0.0
    %1949 = vmatpush1.msra.mxu0 0.0
    %1950 = vmatprep.subr.mxu0 0.0
    %1951 = vmatpush1.msra.mxu0 0.0
    %1952 = vmatprep.subr.mxu0 0.0
    %1953 = vmatpush1.msra.mxu0 0.0
    %1954 = vmatprep.subr.mxu0 0.0
    %1955 = vmatpush1.msra.mxu0 0.0
    %1956 = vmatprep.subr.mxu0 0.0
    %1957 = vmatpush1.msra.mxu0 0.0
    %1958 = vmatprep.subr.mxu0 0.0
    %1959 = vmatpush1.msra.mxu0 0.0
    %1960 = vmatprep.subr.mxu0 0.0
    %1961 = vmatpush1.msra.mxu0 0.0
    %1962 = vmatprep.subr.mxu0 0.0
    %1963 = vmatpush1.msra.mxu0 0.0
    %1964 = vmatprep.subr.mxu0 0.0
    %1965 = vmatpush1.msra.mxu0 0.0
    %1966 = vmatprep.subr.mxu0 0.0
    %1967 = vmatpush1.msra.mxu0 0.0
    %1968 = vmatprep.subr.mxu0 0.0
    %1969 = vmatpush1.msra.mxu0 0.0
    %1970 = vmatprep.subr.mxu0 0.0
    %1971 = vmatpush1.msra.mxu0 0.0
    %1972 = vmatprep.subr.mxu0 0.0
    %1973 = vmatpush1.msra.mxu0 0.0
    %1974 = vmatprep.subr.mxu0 0.0
    %1975 = vmatpush1.msra.mxu0 0.0
    %1976 = vmatprep.subr.mxu0 0.0
    %1977 = vmatpush1.msra.mxu0 0.0
    %1978 = vmatprep.subr.mxu0 0.0
    %1979 = vmatpush1.msra.mxu0 0.0
    %1980 = vmatprep.subr.mxu0 0.0
    %1981 = vmatpush1.msra.mxu0 0.0
    %1982 = vmatprep.subr.mxu0 0.0
    %1983 = vmatpush1.msra.mxu0 0.0
    %1984 = vmatprep.subr.mxu0 0.0
    %1985 = vmatpush1.msra.mxu0 0.0
    %1986 = vmatprep.subr.mxu0 0.0
    %1987 = vmatpush1.msra.mxu0 0.0
    %1988 = vmatprep.subr.mxu0 0.0
    %1989 = vmatpush1.msra.mxu0 0.0
    %1990 = vmatprep.subr.mxu0 0.0
    %1991 = vmatpush1.msra.mxu0 0.0
    %1992 = vmatprep.subr.mxu0 0.0
    %1993 = vmatpush1.msra.mxu0 0.0
    %1994 = vmatprep.subr.mxu0 0.0
    %1995 = vmatpush1.msra.mxu0 0.0
    %1996 = vmatprep.subr.mxu0 0.0
    %1997 = vmatpush1.msra.mxu0 0.0
    %1998 = vmatprep.subr.mxu0 0.0
    %1999 = vmatpush1.msra.mxu0 0.0
    %2000 = vmatprep.subr.mxu0 0.0
    %2001 = vmatpush1.msra.mxu0 0.0
    %2002 = vmatprep.subr.mxu0 0.0
    %2003 = vmatpush1.msra.mxu0 0.0
    %2004 = vmatprep.mubr.f32.mxu0 0.0
    %2005 = vmatmul.mubr.f32.gmra.mrb[0].mxu0 %v1938
    %v2006 = vpop.f32.mrb[0].mxu0
    %v2007 = vadd.f32 0.0, %v2006
    %v2008 = vpop.f32.mrb[0].mxu0
    %v2009 = vadd.f32 0.0, %v2008
    %2010 = vdwg.mxu0
    %v2011 = vadd.f32 %v1928, %v2007
    %v2012 = vadd.f32 %v1929, %v2009
    %vm2013 = vcmp.gt.f32.partialorder %v2011, 0.0
    %vm2014 = vcmp.gt.f32.partialorder %v2012, 0.0
    %v2015 = vmul.f32 %v2011, 0.01
    %v2016 = vmul.f32 %v2012, 0.01
    %v2017 = vsel %vm2013, %v2011, %v2015
    %v2018 = vsel %vm2014, %v2012, %v2016
    %v2019 = vld [vmem:[%s49] sm:$0xff]
    %v2020 = vld [vmem:[%s49 + $0x8] sm:$0xff]
    %v2021 = vld [vmem:[%s49 + $0x10] sm:$0xff]
    %v2022 = vld [vmem:[%s49 + $0x18] sm:$0xff]
    %v2023 = vld [vmem:[%s49 + $0x20] sm:$0xff]
    %v2024 = vld [vmem:[%s49 + $0x28] sm:$0xff]
    %v2025 = vld [vmem:[%s49 + $0x30] sm:$0xff]
    %v2026 = vld [vmem:[%s49 + $0x38] sm:$0xff]
    %v2027 = vld [vmem:[%s49 + $0x40] sm:$0xff]
    %v2028 = vld [vmem:[%s49 + $0x48] sm:$0xff]
    %v2029 = vld [vmem:[%s49 + $0x50] sm:$0xff]
    %v2030 = vld [vmem:[%s49 + $0x58] sm:$0xff]
    %v2031 = vld [vmem:[%s49 + $0x60] sm:$0xff]
    %v2032 = vld [vmem:[%s49 + $0x68] sm:$0xff]
    %v2033 = vld [vmem:[%s49 + $0x70] sm:$0xff]
    %v2034 = vld [vmem:[%s49 + $0x78] sm:$0xff]
    %v2035 = vld [vmem:[%s49 + $0x80] sm:$0xff]
    %v2036 = vld [vmem:[%s49 + $0x88] sm:$0xff]
    %v2037 = vld [vmem:[%s49 + $0x90] sm:$0xff]
    %v2038 = vld [vmem:[%s49 + $0x98] sm:$0xff]
    %v2039 = vld [vmem:[%s49 + $0xa0] sm:$0xff]
    %v2040 = vld [vmem:[%s49 + $0xa8] sm:$0xff]
    %v2041 = vld [vmem:[%s49 + $0xb0] sm:$0xff]
    %v2042 = vld [vmem:[%s49 + $0xb8] sm:$0xff]
    %v2043 = vld [vmem:[%s49 + $0xc0] sm:$0xff]
    %v2044 = vld [vmem:[%s49 + $0xc8] sm:$0xff]
    %v2045 = vld [vmem:[%s49 + $0xd0] sm:$0xff]
    %v2046 = vld [vmem:[%s49 + $0xd8] sm:$0xff]
    %v2047 = vld [vmem:[%s49 + $0xe0] sm:$0xff]
    %v2048 = vld [vmem:[%s49 + $0xe8] sm:$0xff]
    %v2049 = vld [vmem:[%s49 + $0xf0] sm:$0xff]
    %v2050 = vld [vmem:[%s49 + $0xf8] sm:$0xff]
    %v2051 = vld [vmem:[%s49 + $0x100] sm:$0xff]
    %v2052 = vld [vmem:[%s49 + $0x108] sm:$0xff]
    %v2053 = vld [vmem:[%s49 + $0x110] sm:$0xff]
    %v2054 = vld [vmem:[%s49 + $0x118] sm:$0xff]
    %v2055 = vld [vmem:[%s49 + $0x120] sm:$0xff]
    %v2056 = vld [vmem:[%s49 + $0x128] sm:$0xff]
    %v2057 = vld [vmem:[%s49 + $0x130] sm:$0xff]
    %v2058 = vld [vmem:[%s49 + $0x138] sm:$0xff]
    %v2059 = vld [vmem:[%s49 + $0x140] sm:$0xff]
    %v2060 = vld [vmem:[%s49 + $0x148] sm:$0xff]
    %v2061 = vld [vmem:[%s49 + $0x150] sm:$0xff]
    %v2062 = vld [vmem:[%s49 + $0x158] sm:$0xff]
    %v2063 = vld [vmem:[%s49 + $0x160] sm:$0xff]
    %v2064 = vld [vmem:[%s49 + $0x168] sm:$0xff]
    %v2065 = vld [vmem:[%s49 + $0x170] sm:$0xff]
    %v2066 = vld [vmem:[%s49 + $0x178] sm:$0xff]
    %v2067 = vld [vmem:[%s49 + $0x180] sm:$0xff]
    %v2068 = vld [vmem:[%s49 + $0x188] sm:$0xff]
    %v2069 = vld [vmem:[%s49 + $0x190] sm:$0xff]
    %v2070 = vld [vmem:[%s49 + $0x198] sm:$0xff]
    %v2071 = vld [vmem:[%s49 + $0x1a0] sm:$0xff]
    %v2072 = vld [vmem:[%s49 + $0x1a8] sm:$0xff]
    %v2073 = vld [vmem:[%s49 + $0x1b0] sm:$0xff]
    %v2074 = vld [vmem:[%s49 + $0x1b8] sm:$0xff]
    %v2075 = vld [vmem:[%s49 + $0x1c0] sm:$0xff]
    %v2076 = vld [vmem:[%s49 + $0x1c8] sm:$0xff]
    %v2077 = vld [vmem:[%s49 + $0x1d0] sm:$0xff]
    %v2078 = vld [vmem:[%s49 + $0x1d8] sm:$0xff]
    %v2079 = vld [vmem:[%s49 + $0x1e0] sm:$0xff]
    %v2080 = vld [vmem:[%s49 + $0x1e8] sm:$0xff]
    %v2081 = vld [vmem:[%s49 + $0x1f0] sm:$0xff]
    %v2082 = vld [vmem:[%s49 + $0x1f8] sm:$0xff]
    %v2083 = vld [vmem:[#allocation25] sm:$0x3]
    %v2085 = vlaneseq
    %v2086 = vshrl.u32 %v2085, 7
    %v2087 = vsub.s32 0, %v2086
    %v2088 = vrot.slane %v2083, %v2087
    %v2089 = vlaneseq
    %v2090 = vshrl.u32 %v2089, 7
    %v2091 = vsub.s32 1, %v2090
    %v2092 = vrot.slane %v2083, %v2091
    %2095 = vmatprep.subr.mxu0 %v2020
    %2096 = vmatpush1.msra.mxu0 %v2019
    %2097 = vmatprep.subr.mxu0 %v2022
    %2098 = vmatpush1.msra.mxu0 %v2021
    %2099 = vmatprep.subr.mxu0 %v2024
    %2100 = vmatpush1.msra.mxu0 %v2023
    %2101 = vmatprep.subr.mxu0 %v2026
    %2102 = vmatpush1.msra.mxu0 %v2025
    %2103 = vmatprep.subr.mxu0 %v2028
    %2104 = vmatpush1.msra.mxu0 %v2027
    %2105 = vmatprep.subr.mxu0 %v2030
    %2106 = vmatpush1.msra.mxu0 %v2029
    %2107 = vmatprep.subr.mxu0 %v2032
    %2108 = vmatpush1.msra.mxu0 %v2031
    %2109 = vmatprep.subr.mxu0 %v2034
    %2110 = vmatpush1.msra.mxu0 %v2033
    %2111 = vmatprep.subr.mxu0 %v2036
    %2112 = vmatpush1.msra.mxu0 %v2035
    %2113 = vmatprep.subr.mxu0 %v2038
    %2114 = vmatpush1.msra.mxu0 %v2037
    %2115 = vmatprep.subr.mxu0 %v2040
    %2116 = vmatpush1.msra.mxu0 %v2039
    %2117 = vmatprep.subr.mxu0 %v2042
    %2118 = vmatpush1.msra.mxu0 %v2041
    %2119 = vmatprep.subr.mxu0 %v2044
    %2120 = vmatpush1.msra.mxu0 %v2043
    %2121 = vmatprep.subr.mxu0 %v2046
    %2122 = vmatpush1.msra.mxu0 %v2045
    %2123 = vmatprep.subr.mxu0 %v2048
    %2124 = vmatpush1.msra.mxu0 %v2047
    %2125 = vmatprep.subr.mxu0 %v2050
    %2126 = vmatpush1.msra.mxu0 %v2049
    %2127 = vmatprep.subr.mxu0 %v2052
    %2128 = vmatpush1.msra.mxu0 %v2051
    %2129 = vmatprep.subr.mxu0 %v2054
    %2130 = vmatpush1.msra.mxu0 %v2053
    %2131 = vmatprep.subr.mxu0 %v2056
    %2132 = vmatpush1.msra.mxu0 %v2055
    %2133 = vmatprep.subr.mxu0 %v2058
    %2134 = vmatpush1.msra.mxu0 %v2057
    %2135 = vmatprep.subr.mxu0 %v2060
    %2136 = vmatpush1.msra.mxu0 %v2059
    %2137 = vmatprep.subr.mxu0 %v2062
    %2138 = vmatpush1.msra.mxu0 %v2061
    %2139 = vmatprep.subr.mxu0 %v2064
    %2140 = vmatpush1.msra.mxu0 %v2063
    %2141 = vmatprep.subr.mxu0 %v2066
    %2142 = vmatpush1.msra.mxu0 %v2065
    %2143 = vmatprep.subr.mxu0 %v2068
    %2144 = vmatpush1.msra.mxu0 %v2067
    %2145 = vmatprep.subr.mxu0 %v2070
    %2146 = vmatpush1.msra.mxu0 %v2069
    %2147 = vmatprep.subr.mxu0 %v2072
    %2148 = vmatpush1.msra.mxu0 %v2071
    %2149 = vmatprep.subr.mxu0 %v2074
    %2150 = vmatpush1.msra.mxu0 %v2073
    %2151 = vmatprep.subr.mxu0 %v2076
    %2152 = vmatpush1.msra.mxu0 %v2075
    %2153 = vmatprep.subr.mxu0 %v2078
    %2154 = vmatpush1.msra.mxu0 %v2077
    %2155 = vmatprep.subr.mxu0 %v2080
    %2156 = vmatpush1.msra.mxu0 %v2079
    %2157 = vmatprep.subr.mxu0 %v2082
    %2158 = vmatpush1.msra.mxu0 %v2081
    %2159 = vmatprep.mubr.f32.mxu0 %v2018
    %2160 = vmatmul.mubr.f32.gmra.mrb[0].mxu0 %v2017
    %v2161 = vpop.f32.mrb[0].mxu0
    %v2162 = vadd.f32 %v2088, %v2161
    %v2163 = vpop.f32.mrb[0].mxu0
    %v2164 = vadd.f32 %v2092, %v2163
    %2165 = vdwg.mxu0
    %vm2166 = vcmp.gt.f32.partialorder %v2162, 0.0
    %vm2167 = vcmp.gt.f32.partialorder %v2164, 0.0
    %v2168 = vmul.f32 %v2162, 0.01
    %v2169 = vmul.f32 %v2164, 0.01
    %v2170 = vsel %vm2166, %v2162, %v2168
    %v2171 = vsel %vm2167, %v2164, %v2169
    %v2172 = vld [vmem:[#allocation26] sm:$0xff]
    %v2173 = vld [vmem:[#allocation26 + $0x8] sm:$0xff]
    %v2174 = vld [vmem:[#allocation26 + $0x10] sm:$0xff]
    %v2175 = vld [vmem:[#allocation26 + $0x18] sm:$0xff]
    %v2176 = vld [vmem:[#allocation26 + $0x20] sm:$0xff]
    %v2177 = vld [vmem:[#allocation26 + $0x28] sm:$0xff]
    %v2178 = vld [vmem:[#allocation26 + $0x30] sm:$0xff]
    %v2179 = vld [vmem:[#allocation26 + $0x38] sm:$0xff]
    %v2180 = vld [vmem:[#allocation26 + $0x40] sm:$0xff]
    %v2181 = vld [vmem:[#allocation26 + $0x48] sm:$0xff]
    %v2182 = vld [vmem:[#allocation26 + $0x50] sm:$0xff]
    %v2183 = vld [vmem:[#allocation26 + $0x58] sm:$0xff]
    %v2184 = vld [vmem:[#allocation26 + $0x60] sm:$0xff]
    %v2185 = vld [vmem:[#allocation26 + $0x68] sm:$0xff]
    %v2186 = vld [vmem:[#allocation26 + $0x70] sm:$0xff]
    %v2187 = vld [vmem:[#allocation26 + $0x78] sm:$0xff]
    %v2188 = vld [vmem:[#allocation26 + $0x80] sm:$0xff]
    %v2189 = vld [vmem:[#allocation26 + $0x88] sm:$0xff]
    %v2190 = vld [vmem:[#allocation26 + $0x90] sm:$0xff]
    %v2191 = vld [vmem:[#allocation26 + $0x98] sm:$0xff]
    %v2192 = vld [vmem:[#allocation28] sm:$0x1]
    %v2194 = vlaneseq
    %v2195 = vshrl.u32 %v2194, 7
    %v2196 = vsub.s32 0, %v2195
    %v2197 = vrot.slane %v2192, %v2196
    %v2200 = vsel %vm1388, %v2171, 0
    %2202 = vmatprep.subr.mxu0 0.0
    %2203 = vmatpush1.msra.mxu0 %v2172
    %2204 = vmatprep.subr.mxu0 0.0
    %2205 = vmatpush1.msra.mxu0 %v2173
    %2206 = vmatprep.subr.mxu0 0.0
    %2207 = vmatpush1.msra.mxu0 %v2174
    %2208 = vmatprep.subr.mxu0 0.0
    %2209 = vmatpush1.msra.mxu0 %v2175
    %2210 = vmatprep.subr.mxu0 0.0
    %2211 = vmatpush1.msra.mxu0 %v2176
    %2212 = vmatprep.subr.mxu0 0.0
    %2213 = vmatpush1.msra.mxu0 %v2177
    %2214 = vmatprep.subr.mxu0 0.0
    %2215 = vmatpush1.msra.mxu0 %v2178
    %2216 = vmatprep.subr.mxu0 0.0
    %2217 = vmatpush1.msra.mxu0 %v2179
    %2218 = vmatprep.subr.mxu0 0.0
    %2219 = vmatpush1.msra.mxu0 %v2180
    %2220 = vmatprep.subr.mxu0 0.0
    %2221 = vmatpush1.msra.mxu0 %v2181
    %2222 = vmatprep.subr.mxu0 0.0
    %2223 = vmatpush1.msra.mxu0 %v2182
    %2224 = vmatprep.subr.mxu0 0.0
    %2225 = vmatpush1.msra.mxu0 %v2183
    %2226 = vmatprep.subr.mxu0 0.0
    %2227 = vmatpush1.msra.mxu0 %v2184
    %2228 = vmatprep.subr.mxu0 0.0
    %2229 = vmatpush1.msra.mxu0 %v2185
    %2230 = vmatprep.subr.mxu0 0.0
    %2231 = vmatpush1.msra.mxu0 %v2186
    %2232 = vmatprep.subr.mxu0 0.0
    %2233 = vmatpush1.msra.mxu0 %v2187
    %2234 = vmatprep.subr.mxu0 0.0
    %2235 = vmatpush1.msra.mxu0 %v2188
    %2236 = vmatprep.subr.mxu0 0.0
    %2237 = vmatpush1.msra.mxu0 %v2189
    %2238 = vmatprep.subr.mxu0 0.0
    %2239 = vmatpush1.msra.mxu0 %v2190
    %2240 = vmatprep.subr.mxu0 0.0
    %2241 = vmatpush1.msra.mxu0 %v2191
    %2242 = vmatprep.subr.mxu0 0.0
    %2243 = vmatpush1.msra.mxu0 0.0
    %2244 = vmatprep.subr.mxu0 0.0
    %2245 = vmatpush1.msra.mxu0 0.0
    %2246 = vmatprep.subr.mxu0 0.0
    %2247 = vmatpush1.msra.mxu0 0.0
    %2248 = vmatprep.subr.mxu0 0.0
    %2249 = vmatpush1.msra.mxu0 0.0
    %2250 = vmatprep.subr.mxu0 0.0
    %2251 = vmatpush1.msra.mxu0 0.0
    %2252 = vmatprep.subr.mxu0 0.0
    %2253 = vmatpush1.msra.mxu0 0.0
    %2254 = vmatprep.subr.mxu0 0.0
    %2255 = vmatpush1.msra.mxu0 0.0
    %2256 = vmatprep.subr.mxu0 0.0
    %2257 = vmatpush1.msra.mxu0 0.0
    %2258 = vmatprep.subr.mxu0 0.0
    %2259 = vmatpush1.msra.mxu0 0.0
    %2260 = vmatprep.subr.mxu0 0.0
    %2261 = vmatpush1.msra.mxu0 0.0
    %2262 = vmatprep.subr.mxu0 0.0
    %2263 = vmatpush1.msra.mxu0 0.0
    %2264 = vmatprep.subr.mxu0 0.0
    %2265 = vmatpush1.msra.mxu0 0.0
    %2266 = vmatprep.mubr.f32.mxu0 %v2200
    %2267 = vmatmul.mubr.f32.gmra.mrb[0].mxu0 %v2170
    %v2268 = vpop.f32.mrb[0].mxu0
    %v2269 = vadd.f32 %v2197, %v2268
    %v2270 = vpop.f32.mrb[0].mxu0
    %2271 = vdwg.mxu0
    %vm2272 = vcmp.gt.f32.partialorder %v2269, 0.0
    %v2273 = vmul.f32 %v2269, 0.01
    %v2274 = vsel %vm2272, %v2269, %v2273
    %v2275 = vld [vmem:[%s57] sm:$0xff]
    %v2276 = vld [vmem:[%s57 + $0x8] sm:$0xff]
    %v2277 = vld [vmem:[%s57 + $0x10] sm:$0xff]
    %v2278 = vld [vmem:[%s57 + $0x18] sm:$0xff]
    %v2279 = vld [vmem:[%s57 + $0x20] sm:$0xff]
    %v2280 = vld [vmem:[%s57 + $0x28] sm:$0xff]
    %v2281 = vld [vmem:[%s57 + $0x30] sm:$0xff]
    %v2282 = vld [vmem:[%s57 + $0x38] sm:$0xff]
    %v2283 = vld [vmem:[%s57 + $0x40] sm:$0xff]
    %v2284 = vld [vmem:[%s57 + $0x48] sm:$0xff]
    %v2285 = vld [vmem:[%s57 + $0x50] sm:$0xff]
    %v2286 = vld [vmem:[%s57 + $0x58] sm:$0xff]
    %v2287 = vld [vmem:[%s57 + $0x60] sm:$0xff]
    %v2288 = vld [vmem:[%s57 + $0x68] sm:$0xff]
    %v2289 = vld [vmem:[%s57 + $0x70] sm:$0xff]
    %v2290 = vld [vmem:[%s57 + $0x78] sm:$0xff]
    %v2291 = vld [vmem:[#allocation29] sm:$0x1]
    %v2293 = vlaneseq
    %v2294 = vshrl.u32 %v2293, 7
    %v2295 = vsub.s32 0, %v2294
    %v2296 = vrot.slane %v2291, %v2295
    %2298 = vmatprep.subr.mxu0 0.0
    %2299 = vmatpush1.msra.mxu0 %v2275
    %2300 = vmatprep.subr.mxu0 0.0
    %2301 = vmatpush1.msra.mxu0 %v2276
    %2302 = vmatprep.subr.mxu0 0.0
    %2303 = vmatpush1.msra.mxu0 %v2277
    %2304 = vmatprep.subr.mxu0 0.0
    %2305 = vmatpush1.msra.mxu0 %v2278
    %2306 = vmatprep.subr.mxu0 0.0
    %2307 = vmatpush1.msra.mxu0 %v2279
    %2308 = vmatprep.subr.mxu0 0.0
    %2309 = vmatpush1.msra.mxu0 %v2280
    %2310 = vmatprep.subr.mxu0 0.0
    %2311 = vmatpush1.msra.mxu0 %v2281
    %2312 = vmatprep.subr.mxu0 0.0
    %2313 = vmatpush1.msra.mxu0 %v2282
    %2314 = vmatprep.subr.mxu0 0.0
    %2315 = vmatpush1.msra.mxu0 %v2283
    %2316 = vmatprep.subr.mxu0 0.0
    %2317 = vmatpush1.msra.mxu0 %v2284
    %2318 = vmatprep.subr.mxu0 0.0
    %2319 = vmatpush1.msra.mxu0 %v2285
    %2320 = vmatprep.subr.mxu0 0.0
    %2321 = vmatpush1.msra.mxu0 %v2286
    %2322 = vmatprep.subr.mxu0 0.0
    %2323 = vmatpush1.msra.mxu0 %v2287
    %2324 = vmatprep.subr.mxu0 0.0
    %2325 = vmatpush1.msra.mxu0 %v2288
    %2326 = vmatprep.subr.mxu0 0.0
    %2327 = vmatpush1.msra.mxu0 %v2289
    %2328 = vmatprep.subr.mxu0 0.0
    %2329 = vmatpush1.msra.mxu0 %v2290
    %2330 = vmatprep.subr.mxu0 0.0
    %2331 = vmatpush1.msra.mxu0 0.0
    %2332 = vmatprep.subr.mxu0 0.0
    %2333 = vmatpush1.msra.mxu0 0.0
    %2334 = vmatprep.subr.mxu0 0.0
    %2335 = vmatpush1.msra.mxu0 0.0
    %2336 = vmatprep.subr.mxu0 0.0
    %2337 = vmatpush1.msra.mxu0 0.0
    %2338 = vmatprep.subr.mxu0 0.0
    %2339 = vmatpush1.msra.mxu0 0.0
    %2340 = vmatprep.subr.mxu0 0.0
    %2341 = vmatpush1.msra.mxu0 0.0
    %2342 = vmatprep.subr.mxu0 0.0
    %2343 = vmatpush1.msra.mxu0 0.0
    %2344 = vmatprep.subr.mxu0 0.0
    %2345 = vmatpush1.msra.mxu0 0.0
    %2346 = vmatprep.subr.mxu0 0.0
    %2347 = vmatpush1.msra.mxu0 0.0
    %2348 = vmatprep.subr.mxu0 0.0
    %2349 = vmatpush1.msra.mxu0 0.0
    %2350 = vmatprep.subr.mxu0 0.0
    %2351 = vmatpush1.msra.mxu0 0.0
    %2352 = vmatprep.subr.mxu0 0.0
    %2353 = vmatpush1.msra.mxu0 0.0
    %2354 = vmatprep.subr.mxu0 0.0
    %2355 = vmatpush1.msra.mxu0 0.0
    %2356 = vmatprep.subr.mxu0 0.0
    %2357 = vmatpush1.msra.mxu0 0.0
    %2358 = vmatprep.subr.mxu0 0.0
    %2359 = vmatpush1.msra.mxu0 0.0
    %2360 = vmatprep.subr.mxu0 0.0
    %2361 = vmatpush1.msra.mxu0 0.0
    %2362 = vmatprep.mubr.f32.mxu0 0.0
    %2363 = vmatmul.mubr.f32.gmra.mrb[0].mxu0 %v2274
    %v2364 = vpop.f32.mrb[0].mxu0
    %v2365 = vadd.f32 %v2296, %v2364
    %v2366 = vpop.f32.mrb[0].mxu0
    %2367 = vdwg.mxu0
    %v2368 = vld [vmem:[#allocation31] sm:$0xff]
    %v2369 = vld [vmem:[#allocation31 + $0x8] sm:$0xff]
    %v2370 = vld [vmem:[#allocation31 + $0x10] sm:$0xff]
    %v2371 = vld [vmem:[#allocation31 + $0x18] sm:$0xff]
    %v2372 = vld [vmem:[#allocation31 + $0x20] sm:$0xff]
    %v2373 = vld [vmem:[#allocation31 + $0x28] sm:$0xff]
    %v2374 = vld [vmem:[#allocation31 + $0x30] sm:$0xf]
    %v2375 = vld [vmem:[#allocation32] sm:$0x1]
    %v2377 = vlaneseq
    %v2378 = vshrl.u32 %v2377, 7
    %v2379 = vsub.s32 0, %v2378
    %v2380 = vrot.slane %v2375, %v2379
    %v2383 = vsel %vm833, %v811, 0
    %v2386 = vsel %vm833, %v812, 0
    %v2389 = vsel %vm833, %v813, 0
    %v2392 = vsel %vm833, %v814, 0
    %v2395 = vsel %vm846, %v2374, 0
    %2397 = vmatprep.subr.mxu0 0.0
    %2398 = vmatpush1.msra.mxu0 %v2368
    %2399 = vmatprep.subr.mxu0 0.0
    %2400 = vmatpush1.msra.mxu0 %v2369
    %2401 = vmatprep.subr.mxu0 0.0
    %2402 = vmatpush1.msra.mxu0 %v2370
    %2403 = vmatprep.subr.mxu0 0.0
    %2404 = vmatpush1.msra.mxu0 %v2371
    %2405 = vmatprep.subr.mxu0 0.0
    %2406 = vmatpush1.msra.mxu0 %v2372
    %2407 = vmatprep.subr.mxu0 0.0
    %2408 = vmatpush1.msra.mxu0 %v2373
    %2409 = vmatprep.subr.mxu0 0.0
    %2410 = vmatpush1.msra.mxu0 %v2395
    %2411 = vmatprep.subr.mxu0 0.0
    %2412 = vmatpush1.msra.mxu0 0.0
    %2413 = vmatprep.subr.mxu0 0.0
    %2414 = vmatpush1.msra.mxu0 0.0
    %2415 = vmatprep.subr.mxu0 0.0
    %2416 = vmatpush1.msra.mxu0 0.0
    %2417 = vmatprep.subr.mxu0 0.0
    %2418 = vmatpush1.msra.mxu0 0.0
    %2419 = vmatprep.subr.mxu0 0.0
    %2420 = vmatpush1.msra.mxu0 0.0
    %2421 = vmatprep.subr.mxu0 0.0
    %2422 = vmatpush1.msra.mxu0 0.0
    %2423 = vmatprep.subr.mxu0 0.0
    %2424 = vmatpush1.msra.mxu0 0.0
    %2425 = vmatprep.subr.mxu0 0.0
    %2426 = vmatpush1.msra.mxu0 0.0
    %2427 = vmatprep.subr.mxu0 0.0
    %2428 = vmatpush1.msra.mxu0 0.0
    %2429 = vmatprep.subr.mxu0 0.0
    %2430 = vmatpush1.msra.mxu0 0.0
    %2431 = vmatprep.subr.mxu0 0.0
    %2432 = vmatpush1.msra.mxu0 0.0
    %2433 = vmatprep.subr.mxu0 0.0
    %2434 = vmatpush1.msra.mxu0 0.0
    %2435 = vmatprep.subr.mxu0 0.0
    %2436 = vmatpush1.msra.mxu0 0.0
    %2437 = vmatprep.subr.mxu0 0.0
    %2438 = vmatpush1.msra.mxu0 0.0
    %2439 = vmatprep.subr.mxu0 0.0
    %2440 = vmatpush1.msra.mxu0 0.0
    %2441 = vmatprep.subr.mxu0 0.0
    %2442 = vmatpush1.msra.mxu0 0.0
    %2443 = vmatprep.subr.mxu0 0.0
    %2444 = vmatpush1.msra.mxu0 0.0
    %2445 = vmatprep.subr.mxu0 0.0
    %2446 = vmatpush1.msra.mxu0 0.0
    %2447 = vmatprep.subr.mxu0 0.0
    %2448 = vmatpush1.msra.mxu0 0.0
    %2449 = vmatprep.subr.mxu0 0.0
    %2450 = vmatpush1.msra.mxu0 0.0
    %2451 = vmatprep.subr.mxu0 0.0
    %2452 = vmatpush1.msra.mxu0 0.0
    %2453 = vmatprep.subr.mxu0 0.0
    %2454 = vmatpush1.msra.mxu0 0.0
    %2455 = vmatprep.subr.mxu0 0.0
    %2456 = vmatpush1.msra.mxu0 0.0
    %2457 = vmatprep.subr.mxu0 0.0
    %2458 = vmatpush1.msra.mxu0 0.0
    %2459 = vmatprep.subr.mxu0 0.0
    %2460 = vmatpush1.msra.mxu0 0.0
    %2461 = vmatprep.mubr.f32.mxu0 0.0
    %2462 = vmatmul.mubr.f32.gmra.mrb[0].mxu0 %v2383
    %v2463 = vpop.f32.mrb[0].mxu0
    %v2464 = vadd.f32 %v2380, %v2463
    %v2465 = vpop.f32.mrb[0].mxu0
    %2466 = vmatprep.mubr.f32.mxu0 0.0
    %2467 = vmatmul.mubr.f32.gmra.mrb[0].mxu0 %v2386
    %v2468 = vpop.f32.mrb[0].mxu0
    %v2469 = vadd.f32 %v2380, %v2468
    %v2470 = vpop.f32.mrb[0].mxu0
    %2471 = vmatprep.mubr.f32.mxu0 0.0
    %2472 = vmatmul.mubr.f32.gmra.mrb[0].mxu0 %v2389
    %v2473 = vpop.f32.mrb[0].mxu0
    %v2474 = vadd.f32 %v2380, %v2473
    %v2475 = vpop.f32.mrb[0].mxu0
    %2476 = vmatprep.mubr.f32.mxu0 0.0
    %2477 = vmatmul.mubr.f32.gmra.mrb[0].mxu0 %v2392
    %v2478 = vpop.f32.mrb[0].mxu0
    %v2479 = vadd.f32 %v2380, %v2478
    %v2480 = vpop.f32.mrb[0].mxu0
    %2481 = vdwg.mxu0
    %vm2482 = vcmp.gt.f32.partialorder %v2464, 0.0
    %vm2483 = vcmp.gt.f32.partialorder %v2469, 0.0
    %vm2484 = vcmp.gt.f32.partialorder %v2474, 0.0
    %vm2485 = vcmp.gt.f32.partialorder %v2479, 0.0
    %v2486 = vmul.f32 %v2464, 0.01
    %v2487 = vmul.f32 %v2469, 0.01
    %v2488 = vmul.f32 %v2474, 0.01
    %v2489 = vmul.f32 %v2479, 0.01
    %v2490 = vsel %vm2482, %v2464, %v2486
    %v2491 = vsel %vm2483, %v2469, %v2487
    %v2492 = vsel %vm2484, %v2474, %v2488
    %v2493 = vsel %vm2485, %v2479, %v2489
    %v2494 = vld [vmem:[%s65] sm:$0xff]
    %v2495 = vld [vmem:[%s65 + $0x8] sm:$0xff]
    %v2496 = vld [vmem:[%s65 + $0x10] sm:$0xff]
    %v2497 = vld [vmem:[%s65 + $0x18] sm:$0xff]
    %v2498 = vld [vmem:[%s65 + $0x20] sm:$0xff]
    %v2499 = vld [vmem:[%s65 + $0x28] sm:$0xff]
    %v2500 = vld [vmem:[%s65 + $0x30] sm:$0xff]
    %v2501 = vld [vmem:[%s65 + $0x38] sm:$0xff]
    %v2502 = vld [vmem:[%s65 + $0x40] sm:$0xff]
    %v2503 = vld [vmem:[%s65 + $0x48] sm:$0xff]
    %v2504 = vld [vmem:[#allocation34] sm:$0x1]
    %v2506 = vlaneseq
    %v2507 = vshrl.u32 %v2506, 7
    %v2508 = vsub.s32 0, %v2507
    %v2509 = vrot.slane %v2504, %v2508
    %v2512 = vsel %vm964, %v2490, 0
    %v2515 = vsel %vm964, %v2491, 0
    %v2518 = vsel %vm964, %v2492, 0
    %v2521 = vsel %vm964, %v2493, 0
    %2523 = vmatprep.subr.mxu0 0.0
    %2524 = vmatpush1.msra.mxu0 %v2494
    %2525 = vmatprep.subr.mxu0 0.0
    %2526 = vmatpush1.msra.mxu0 %v2495
    %2527 = vmatprep.subr.mxu0 0.0
    %2528 = vmatpush1.msra.mxu0 %v2496
    %2529 = vmatprep.subr.mxu0 0.0
    %2530 = vmatpush1.msra.mxu0 %v2497
    %2531 = vmatprep.subr.mxu0 0.0
    %2532 = vmatpush1.msra.mxu0 %v2498
    %2533 = vmatprep.subr.mxu0 0.0
    %2534 = vmatpush1.msra.mxu0 %v2499
    %2535 = vmatprep.subr.mxu0 0.0
    %2536 = vmatpush1.msra.mxu0 %v2500
    %2537 = vmatprep.subr.mxu0 0.0
    %2538 = vmatpush1.msra.mxu0 %v2501
    %2539 = vmatprep.subr.mxu0 0.0
    %2540 = vmatpush1.msra.mxu0 %v2502
    %2541 = vmatprep.subr.mxu0 0.0
    %2542 = vmatpush1.msra.mxu0 %v2503
    %2543 = vmatprep.subr.mxu0 0.0
    %2544 = vmatpush1.msra.mxu0 0.0
    %2545 = vmatprep.subr.mxu0 0.0
    %2546 = vmatpush1.msra.mxu0 0.0
    %2547 = vmatprep.subr.mxu0 0.0
    %2548 = vmatpush1.msra.mxu0 0.0
    %2549 = vmatprep.subr.mxu0 0.0
    %2550 = vmatpush1.msra.mxu0 0.0
    %2551 = vmatprep.subr.mxu0 0.0
    %2552 = vmatpush1.msra.mxu0 0.0
    %2553 = vmatprep.subr.mxu0 0.0
    %2554 = vmatpush1.msra.mxu0 0.0
    %2555 = vmatprep.subr.mxu0 0.0
    %2556 = vmatpush1.msra.mxu0 0.0
    %2557 = vmatprep.subr.mxu0 0.0
    %2558 = vmatpush1.msra.mxu0 0.0
    %2559 = vmatprep.subr.mxu0 0.0
    %2560 = vmatpush1.msra.mxu0 0.0
    %2561 = vmatprep.subr.mxu0 0.0
    %2562 = vmatpush1.msra.mxu0 0.0
    %2563 = vmatprep.subr.mxu0 0.0
    %2564 = vmatpush1.msra.mxu0 0.0
    %2565 = vmatprep.subr.mxu0 0.0
    %2566 = vmatpush1.msra.mxu0 0.0
    %2567 = vmatprep.subr.mxu0 0.0
    %2568 = vmatpush1.msra.mxu0 0.0
    %2569 = vmatprep.subr.mxu0 0.0
    %2570 = vmatpush1.msra.mxu0 0.0
    %2571 = vmatprep.subr.mxu0 0.0
    %2572 = vmatpush1.msra.mxu0 0.0
    %2573 = vmatprep.subr.mxu0 0.0
    %2574 = vmatpush1.msra.mxu0 0.0
    %2575 = vmatprep.subr.mxu0 0.0
    %2576 = vmatpush1.msra.mxu0 0.0
    %2577 = vmatprep.subr.mxu0 0.0
    %2578 = vmatpush1.msra.mxu0 0.0
    %2579 = vmatprep.subr.mxu0 0.0
    %2580 = vmatpush1.msra.mxu0 0.0
    %2581 = vmatprep.subr.mxu0 0.0
    %2582 = vmatpush1.msra.mxu0 0.0
    %2583 = vmatprep.subr.mxu0 0.0
    %2584 = vmatpush1.msra.mxu0 0.0
    %2585 = vmatprep.subr.mxu0 0.0
    %2586 = vmatpush1.msra.mxu0 0.0
    %2587 = vmatprep.mubr.f32.mxu0 0.0
    %2588 = vmatmul.mubr.f32.gmra.mrb[0].mxu0 %v2512
    %v2589 = vpop.f32.mrb[0].mxu0
    %v2590 = vadd.f32 %v2509, %v2589
    %v2591 = vpop.f32.mrb[0].mxu0
    %2592 = vmatprep.mubr.f32.mxu0 0.0
    %2593 = vmatmul.mubr.f32.gmra.mrb[0].mxu0 %v2515
    %v2594 = vpop.f32.mrb[0].mxu0
    %v2595 = vadd.f32 %v2509, %v2594
    %v2596 = vpop.f32.mrb[0].mxu0
    %2597 = vmatprep.mubr.f32.mxu0 0.0
    %2598 = vmatmul.mubr.f32.gmra.mrb[0].mxu0 %v2518
    %v2599 = vpop.f32.mrb[0].mxu0
    %v2600 = vadd.f32 %v2509, %v2599
    %v2601 = vpop.f32.mrb[0].mxu0
    %2602 = vmatprep.mubr.f32.mxu0 0.0
    %2603 = vmatmul.mubr.f32.gmra.mrb[0].mxu0 %v2521
    %v2604 = vpop.f32.mrb[0].mxu0
    %v2605 = vadd.f32 %v2509, %v2604
    %v2606 = vpop.f32.mrb[0].mxu0
    %2607 = vdwg.mxu0
    %vm2608 = vcmp.gt.f32.partialorder %v2590, 0.0
    %vm2609 = vcmp.gt.f32.partialorder %v2595, 0.0
    %vm2610 = vcmp.gt.f32.partialorder %v2600, 0.0
    %vm2611 = vcmp.gt.f32.partialorder %v2605, 0.0
    %v2612 = vmul.f32 %v2590, 0.01
    %v2613 = vmul.f32 %v2595, 0.01
    %v2614 = vmul.f32 %v2600, 0.01
    %v2615 = vmul.f32 %v2605, 0.01
    %v2616 = vsel %vm2608, %v2590, %v2612
    %v2617 = vsel %vm2609, %v2595, %v2613
    %v2618 = vsel %vm2610, %v2600, %v2614
    %v2619 = vsel %vm2611, %v2605, %v2615
    %v2620 = vld [vmem:[%s69] sm:$0xff]
    %v2621 = vld [vmem:[%s69 + $0x8] sm:$0xff]
    %v2622 = vld [vmem:[%s69 + $0x10] sm:$0xff]
    %v2623 = vld [vmem:[%s69 + $0x18] sm:$0xff]
    %v2624 = vld [vmem:[%s69 + $0x20] sm:$0xff]
    %v2625 = vld [vmem:[%s69 + $0x28] sm:$0xff]
    %v2626 = vld [vmem:[%s69 + $0x30] sm:$0xff]
    %v2627 = vld [vmem:[%s69 + $0x38] sm:$0xf]
    %v2628 = vld [vmem:[#allocation35] sm:$0x1]
    %v2630 = vlaneseq
    %v2631 = vshrl.u32 %v2630, 7
    %v2632 = vsub.s32 0, %v2631
    %v2633 = vrot.slane %v2628, %v2632
    %v2636 = vsel %vm1089, %v2616, 0
    %v2639 = vsel %vm1089, %v2617, 0
    %v2642 = vsel %vm1089, %v2618, 0
    %v2645 = vsel %vm1089, %v2619, 0
    %v2648 = vsel %vm846, %v2627, 0
    %2650 = vmatprep.subr.mxu0 0.0
    %2651 = vmatpush1.msra.mxu0 %v2620
    %2652 = vmatprep.subr.mxu0 0.0
    %2653 = vmatpush1.msra.mxu0 %v2621
    %2654 = vmatprep.subr.mxu0 0.0
    %2655 = vmatpush1.msra.mxu0 %v2622
    %2656 = vmatprep.subr.mxu0 0.0
    %2657 = vmatpush1.msra.mxu0 %v2623
    %2658 = vmatprep.subr.mxu0 0.0
    %2659 = vmatpush1.msra.mxu0 %v2624
    %2660 = vmatprep.subr.mxu0 0.0
    %2661 = vmatpush1.msra.mxu0 %v2625
    %2662 = vmatprep.subr.mxu0 0.0
    %2663 = vmatpush1.msra.mxu0 %v2626
    %2664 = vmatprep.subr.mxu0 0.0
    %2665 = vmatpush1.msra.mxu0 %v2648
    %2666 = vmatprep.subr.mxu0 0.0
    %2667 = vmatpush1.msra.mxu0 0.0
    %2668 = vmatprep.subr.mxu0 0.0
    %2669 = vmatpush1.msra.mxu0 0.0
    %2670 = vmatprep.subr.mxu0 0.0
    %2671 = vmatpush1.msra.mxu0 0.0
    %2672 = vmatprep.subr.mxu0 0.0
    %2673 = vmatpush1.msra.mxu0 0.0
    %2674 = vmatprep.subr.mxu0 0.0
    %2675 = vmatpush1.msra.mxu0 0.0
    %2676 = vmatprep.subr.mxu0 0.0
    %2677 = vmatpush1.msra.mxu0 0.0
    %2678 = vmatprep.subr.mxu0 0.0
    %2679 = vmatpush1.msra.mxu0 0.0
    %2680 = vmatprep.subr.mxu0 0.0
    %2681 = vmatpush1.msra.mxu0 0.0
    %2682 = vmatprep.subr.mxu0 0.0
    %2683 = vmatpush1.msra.mxu0 0.0
    %2684 = vmatprep.subr.mxu0 0.0
    %2685 = vmatpush1.msra.mxu0 0.0
    %2686 = vmatprep.subr.mxu0 0.0
    %2687 = vmatpush1.msra.mxu0 0.0
    %2688 = vmatprep.subr.mxu0 0.0
    %2689 = vmatpush1.msra.mxu0 0.0
    %2690 = vmatprep.subr.mxu0 0.0
    %2691 = vmatpush1.msra.mxu0 0.0
    %2692 = vmatprep.subr.mxu0 0.0
    %2693 = vmatpush1.msra.mxu0 0.0
    %2694 = vmatprep.subr.mxu0 0.0
    %2695 = vmatpush1.msra.mxu0 0.0
    %2696 = vmatprep.subr.mxu0 0.0
    %2697 = vmatpush1.msra.mxu0 0.0
    %2698 = vmatprep.subr.mxu0 0.0
    %2699 = vmatpush1.msra.mxu0 0.0
    %2700 = vmatprep.subr.mxu0 0.0
    %2701 = vmatpush1.msra.mxu0 0.0
    %2702 = vmatprep.subr.mxu0 0.0
    %2703 = vmatpush1.msra.mxu0 0.0
    %2704 = vmatprep.subr.mxu0 0.0
    %2705 = vmatpush1.msra.mxu0 0.0
    %2706 = vmatprep.subr.mxu0 0.0
    %2707 = vmatpush1.msra.mxu0 0.0
    %2708 = vmatprep.subr.mxu0 0.0
    %2709 = vmatpush1.msra.mxu0 0.0
    %2710 = vmatprep.subr.mxu0 0.0
    %2711 = vmatpush1.msra.mxu0 0.0
    %2712 = vmatprep.subr.mxu0 0.0
    %2713 = vmatpush1.msra.mxu0 0.0
    %2714 = vmatprep.mubr.f32.mxu0 0.0
    %2715 = vmatmul.mubr.f32.gmra.mrb[0].mxu0 %v2636
    %v2716 = vpop.f32.mrb[0].mxu0
    %v2717 = vadd.f32 %v2633, %v2716
    %v2718 = vpop.f32.mrb[0].mxu0
    %2719 = vmatprep.mubr.f32.mxu0 0.0
    %2720 = vmatmul.mubr.f32.gmra.mrb[0].mxu0 %v2639
    %v2721 = vpop.f32.mrb[0].mxu0
    %v2722 = vadd.f32 %v2633, %v2721
    %v2723 = vpop.f32.mrb[0].mxu0
    %2724 = vmatprep.mubr.f32.mxu0 0.0
    %2725 = vmatmul.mubr.f32.gmra.mrb[0].mxu0 %v2642
    %v2726 = vpop.f32.mrb[0].mxu0
    %v2727 = vadd.f32 %v2633, %v2726
    %v2728 = vpop.f32.mrb[0].mxu0
    %2729 = vmatprep.mubr.f32.mxu0 0.0
    %2730 = vmatmul.mubr.f32.gmra.mrb[0].mxu0 %v2645
    %v2731 = vpop.f32.mrb[0].mxu0
    %v2732 = vadd.f32 %v2633, %v2731
    %v2733 = vpop.f32.mrb[0].mxu0
    %2734 = vdwg.mxu0
    %v2735 = vld [vmem:[%s13] sm:$0x3]
    %v2736 = vld [vmem:[#allocation37] sm:$0xff]
    %v2737 = vld [vmem:[#allocation37 + $0x8] sm:$0xff]
    %v2738 = vld [vmem:[#allocation37 + $0x10] sm:$0xff]
    %v2739 = vld [vmem:[#allocation37 + $0x18] sm:$0xff]
    %v2740 = vld [vmem:[#allocation37 + $0x20] sm:$0xff]
    %v2741 = vld [vmem:[#allocation37 + $0x28] sm:$0xff]
    %v2742 = vld [vmem:[#allocation37 + $0x30] sm:$0xff]
    %v2743 = vld [vmem:[#allocation37 + $0x38] sm:$0xff]
    %v2744 = vld [vmem:[#allocation37 + $0x40] sm:$0xff]
    %v2745 = vld [vmem:[#allocation37 + $0x48] sm:$0xff]
    %v2746 = vld [vmem:[#allocation37 + $0x50] sm:$0xff]
    %v2747 = vld [vmem:[#allocation37 + $0x58] sm:$0xff]
    %v2748 = vld [vmem:[#allocation37 + $0x60] sm:$0xff]
    %v2749 = vld [vmem:[#allocation37 + $0x68] sm:$0xff]
    %v2750 = vld [vmem:[#allocation37 + $0x70] sm:$0xff]
    %v2751 = vld [vmem:[#allocation37 + $0x78] sm:$0xff]
    %v2752 = vld [vmem:[#allocation37 + $0x80] sm:$0xff]
    %v2753 = vld [vmem:[#allocation37 + $0x88] sm:$0xff]
    %v2754 = vld [vmem:[#allocation37 + $0x90] sm:$0xff]
    %v2755 = vld [vmem:[#allocation37 + $0x98] sm:$0xff]
    %v2756 = vld [vmem:[#allocation37 + $0xa0] sm:$0xff]
    %v2757 = vld [vmem:[#allocation37 + $0xa8] sm:$0xff]
    %v2758 = vld [vmem:[#allocation37 + $0xb0] sm:$0xff]
    %v2759 = vld [vmem:[#allocation37 + $0xb8] sm:$0xff]
    %v2760 = vld [vmem:[#allocation37 + $0xc0] sm:$0xff]
    %v2761 = vld [vmem:[#allocation37 + $0xc8] sm:$0xff]
    %v2762 = vld [vmem:[#allocation37 + $0xd0] sm:$0xff]
    %v2763 = vld [vmem:[#allocation37 + $0xd8] sm:$0xff]
    %v2764 = vld [vmem:[#allocation37 + $0xe0] sm:$0xff]
    %v2765 = vld [vmem:[#allocation37 + $0xe8] sm:$0xff]
    %v2766 = vld [vmem:[#allocation37 + $0xf0] sm:$0xff]
    %v2767 = vld [vmem:[#allocation37 + $0xf8] sm:$0xff]
    %v2768 = vld [vmem:[#allocation37 + $0x100] sm:$0xff]
    %v2769 = vld [vmem:[#allocation37 + $0x108] sm:$0xff]
    %v2770 = vld [vmem:[#allocation37 + $0x110] sm:$0xff]
    %v2771 = vld [vmem:[#allocation37 + $0x118] sm:$0xff]
    %v2772 = vld [vmem:[#allocation37 + $0x120] sm:$0xff]
    %v2773 = vld [vmem:[#allocation37 + $0x128] sm:$0xff]
    %v2774 = vld [vmem:[#allocation37 + $0x130] sm:$0xff]
    %v2775 = vld [vmem:[#allocation37 + $0x138] sm:$0xff]
    %v2776 = vld [vmem:[#allocation37 + $0x140] sm:$0xff]
    %v2777 = vld [vmem:[#allocation37 + $0x148] sm:$0xff]
    %v2778 = vld [vmem:[#allocation37 + $0x150] sm:$0xff]
    %v2779 = vld [vmem:[#allocation37 + $0x158] sm:$0xff]
    %v2780 = vld [vmem:[#allocation37 + $0x160] sm:$0xff]
    %v2781 = vld [vmem:[#allocation37 + $0x168] sm:$0xff]
    %v2782 = vld [vmem:[#allocation37 + $0x170] sm:$0xff]
    %v2783 = vld [vmem:[#allocation37 + $0x178] sm:$0xff]
    %v2784 = vld [vmem:[#allocation37 + $0x180] sm:$0x1f]
    %v2785 = vld [vmem:[#allocation37 + $0x188] sm:$0x1f]
    %v2786 = vld [vmem:[#allocation37 + $0x190] sm:$0x1f]
    %v2787 = vld [vmem:[#allocation40] sm:$0x7]
    %v2789 = vlaneseq
    %v2790 = vshrl.u32 %v2789, 7
    %v2791 = vsub.s32 0, %v2790
    %v2792 = vrot.slane %v2787, %v2791
    %v2793 = vlaneseq
    %v2794 = vshrl.u32 %v2793, 7
    %v2795 = vsub.s32 1, %v2794
    %v2796 = vrot.slane %v2787, %v2795
    %v2797 = vlaneseq
    %v2798 = vshrl.u32 %v2797, 7
    %v2799 = vsub.s32 2, %v2798
    %v2800 = vrot.slane %v2787, %v2799
    %v2805 = vsel %vm1590, %v2784, 0
    %v2808 = vsel %vm1590, %v2785, 0
    %v2811 = vsel %vm1590, %v2786, 0
    %2813 = vmatprep.subr.mxu0 %v2737
    %2814 = vmatpush1.msra.mxu0 %v2736
    %2815 = vmatprep.subr.mxu0 %v2740
    %2816 = vmatpush1.msra.mxu0 %v2739
    %2817 = vmatprep.subr.mxu0 %v2743
    %2818 = vmatpush1.msra.mxu0 %v2742
    %2819 = vmatprep.subr.mxu0 %v2746
    %2820 = vmatpush1.msra.mxu0 %v2745
    %2821 = vmatprep.subr.mxu0 %v2749
    %2822 = vmatpush1.msra.mxu0 %v2748
    %2823 = vmatprep.subr.mxu0 %v2752
    %2824 = vmatpush1.msra.mxu0 %v2751
    %2825 = vmatprep.subr.mxu0 %v2755
    %2826 = vmatpush1.msra.mxu0 %v2754
    %2827 = vmatprep.subr.mxu0 %v2758
    %2828 = vmatpush1.msra.mxu0 %v2757
    %2829 = vmatprep.subr.mxu0 %v2761
    %2830 = vmatpush1.msra.mxu0 %v2760
    %2831 = vmatprep.subr.mxu0 %v2764
    %2832 = vmatpush1.msra.mxu0 %v2763
    %2833 = vmatprep.subr.mxu0 %v2767
    %2834 = vmatpush1.msra.mxu0 %v2766
    %2835 = vmatprep.subr.mxu0 %v2770
    %2836 = vmatpush1.msra.mxu0 %v2769
    %2837 = vmatprep.subr.mxu0 %v2773
    %2838 = vmatpush1.msra.mxu0 %v2772
    %2839 = vmatprep.subr.mxu0 %v2776
    %2840 = vmatpush1.msra.mxu0 %v2775
    %2841 = vmatprep.subr.mxu0 %v2779
    %2842 = vmatpush1.msra.mxu0 %v2778
    %2843 = vmatprep.subr.mxu0 %v2782
    %2844 = vmatpush1.msra.mxu0 %v2781
    %2845 = vmatprep.subr.mxu0 %v2808
    %2846 = vmatpush1.msra.mxu0 %v2805
    %2847 = vmatprep.subr.mxu0 0.0
    %2848 = vmatpush1.msra.mxu0 0.0
    %2849 = vmatprep.subr.mxu0 0.0
    %2850 = vmatpush1.msra.mxu0 0.0
    %2851 = vmatprep.subr.mxu0 0.0
    %2852 = vmatpush1.msra.mxu0 0.0
    %2853 = vmatprep.subr.mxu0 0.0
    %2854 = vmatpush1.msra.mxu0 0.0
    %2855 = vmatprep.subr.mxu0 0.0
    %2856 = vmatpush1.msra.mxu0 0.0
    %2857 = vmatprep.subr.mxu0 0.0
    %2858 = vmatpush1.msra.mxu0 0.0
    %2859 = vmatprep.subr.mxu0 0.0
    %2860 = vmatpush1.msra.mxu0 0.0
    %2861 = vmatprep.subr.mxu0 0.0
    %2862 = vmatpush1.msra.mxu0 0.0
    %2863 = vmatprep.subr.mxu0 0.0
    %2864 = vmatpush1.msra.mxu0 0.0
    %2865 = vmatprep.subr.mxu0 0.0
    %2866 = vmatpush1.msra.mxu0 0.0
    %2867 = vmatprep.subr.mxu0 0.0
    %2868 = vmatpush1.msra.mxu0 0.0
    %2869 = vmatprep.subr.mxu0 0.0
    %2870 = vmatpush1.msra.mxu0 0.0
    %2871 = vmatprep.subr.mxu0 0.0
    %2872 = vmatpush1.msra.mxu0 0.0
    %2873 = vmatprep.subr.mxu0 0.0
    %2874 = vmatpush1.msra.mxu0 0.0
    %2875 = vmatprep.subr.mxu0 0.0
    %2876 = vmatpush1.msra.mxu0 0.0
    %2877 = vmatprep.mubr.f32.mxu0 %v1588
    %2878 = vmatmul.mubr.f32.gmra.mrb[0].mxu0 %v1584
    %v2879 = vpop.f32.mrb[0].mxu0
    %v2880 = vadd.f32 %v2792, %v2879
    %v2881 = vpop.f32.mrb[0].mxu0
    %v2882 = vadd.f32 %v2796, %v2881
    %2883 = vdwg.mxu0
    %2884 = vmatprep.subr.mxu0 0.0
    %2885 = vmatpush1.msra.mxu0 %v2738
    %2886 = vmatprep.subr.mxu0 0.0
    %2887 = vmatpush1.msra.mxu0 %v2741
    %2888 = vmatprep.subr.mxu0 0.0
    %2889 = vmatpush1.msra.mxu0 %v2744
    %2890 = vmatprep.subr.mxu0 0.0
    %2891 = vmatpush1.msra.mxu0 %v2747
    %2892 = vmatprep.subr.mxu0 0.0
    %2893 = vmatpush1.msra.mxu0 %v2750
    %2894 = vmatprep.subr.mxu0 0.0
    %2895 = vmatpush1.msra.mxu0 %v2753
    %2896 = vmatprep.subr.mxu0 0.0
    %2897 = vmatpush1.msra.mxu0 %v2756
    %2898 = vmatprep.subr.mxu0 0.0
    %2899 = vmatpush1.msra.mxu0 %v2759
    %2900 = vmatprep.subr.mxu0 0.0
    %2901 = vmatpush1.msra.mxu0 %v2762
    %2902 = vmatprep.subr.mxu0 0.0
    %2903 = vmatpush1.msra.mxu0 %v2765
    %2904 = vmatprep.subr.mxu0 0.0
    %2905 = vmatpush1.msra.mxu0 %v2768
    %2906 = vmatprep.subr.mxu0 0.0
    %2907 = vmatpush1.msra.mxu0 %v2771
    %2908 = vmatprep.subr.mxu0 0.0
    %2909 = vmatpush1.msra.mxu0 %v2774
    %2910 = vmatprep.subr.mxu0 0.0
    %2911 = vmatpush1.msra.mxu0 %v2777
    %2912 = vmatprep.subr.mxu0 0.0
    %2913 = vmatpush1.msra.mxu0 %v2780
    %2914 = vmatprep.subr.mxu0 0.0
    %2915 = vmatpush1.msra.mxu0 %v2783
    %2916 = vmatprep.subr.mxu0 0.0
    %2917 = vmatpush1.msra.mxu0 %v2811
    %2918 = vmatprep.subr.mxu0 0.0
    %2919 = vmatpush1.msra.mxu0 0.0
    %2920 = vmatprep.subr.mxu0 0.0
    %2921 = vmatpush1.msra.mxu0 0.0
    %2922 = vmatprep.subr.mxu0 0.0
    %2923 = vmatpush1.msra.mxu0 0.0
    %2924 = vmatprep.subr.mxu0 0.0
    %2925 = vmatpush1.msra.mxu0 0.0
    %2926 = vmatprep.subr.mxu0 0.0
    %2927 = vmatpush1.msra.mxu0 0.0
    %2928 = vmatprep.subr.mxu0 0.0
    %2929 = vmatpush1.msra.mxu0 0.0
    %2930 = vmatprep.subr.mxu0 0.0
    %2931 = vmatpush1.msra.mxu0 0.0
    %2932 = vmatprep.subr.mxu0 0.0
    %2933 = vmatpush1.msra.mxu0 0.0
    %2934 = vmatprep.subr.mxu0 0.0
    %2935 = vmatpush1.msra.mxu0 0.0
    %2936 = vmatprep.subr.mxu0 0.0
    %2937 = vmatpush1.msra.mxu0 0.0
    %2938 = vmatprep.subr.mxu0 0.0
    %2939 = vmatpush1.msra.mxu0 0.0
    %2940 = vmatprep.subr.mxu0 0.0
    %2941 = vmatpush1.msra.mxu0 0.0
    %2942 = vmatprep.subr.mxu0 0.0
    %2943 = vmatpush1.msra.mxu0 0.0
    %2944 = vmatprep.subr.mxu0 0.0
    %2945 = vmatpush1.msra.mxu0 0.0
    %2946 = vmatprep.subr.mxu0 0.0
    %2947 = vmatpush1.msra.mxu0 0.0
    %2948 = vmatprep.mubr.f32.mxu0 %v1588
    %2949 = vmatmul.mubr.f32.gmra.mrb[0].mxu0 %v1584
    %v2950 = vpop.f32.mrb[0].mxu0
    %v2951 = vadd.f32 %v2800, %v2950
    %v2952 = vpop.f32.mrb[0].mxu0
    %2953 = vdwg.mxu0
    %v2954 = vld [vmem:[#allocation38] sm:$0xff]
    %v2955 = vld [vmem:[#allocation38 + $0x8] sm:$0xff]
    %v2956 = vld [vmem:[#allocation38 + $0x10] sm:$0xff]
    %v2957 = vld [vmem:[#allocation38 + $0x18] sm:$0xff]
    %v2958 = vld [vmem:[#allocation38 + $0x20] sm:$0xff]
    %v2959 = vld [vmem:[#allocation38 + $0x28] sm:$0xff]
    %v2960 = vld [vmem:[#allocation38 + $0x30] sm:$0xff]
    %v2961 = vld [vmem:[#allocation38 + $0x38] sm:$0xff]
    %v2962 = vld [vmem:[#allocation38 + $0x40] sm:$0xff]
    %v2964 = vsel %vm1502, %v2717, 0
    %2966 = vmatprep.subr.mxu0 %v2955
    %2967 = vmatpush1.msra.mxu0 %v2954
    %2968 = vmatprep.subr.mxu0 %v2958
    %2969 = vmatpush1.msra.mxu0 %v2957
    %2970 = vmatprep.subr.mxu0 %v2961
    %2971 = vmatpush1.msra.mxu0 %v2960
    %2972 = vmatprep.subr.mxu0 0.0
    %2973 = vmatpush1.msra.mxu0 0.0
    %2974 = vmatprep.subr.mxu0 0.0
    %2975 = vmatpush1.msra.mxu0 0.0
    %2976 = vmatprep.subr.mxu0 0.0
    %2977 = vmatpush1.msra.mxu0 0.0
    %2978 = vmatprep.subr.mxu0 0.0
    %2979 = vmatpush1.msra.mxu0 0.0
    %2980 = vmatprep.subr.mxu0 0.0
    %2981 = vmatpush1.msra.mxu0 0.0
    %2982 = vmatprep.subr.mxu0 0.0
    %2983 = vmatpush1.msra.mxu0 0.0
    %2984 = vmatprep.subr.mxu0 0.0
    %2985 = vmatpush1.msra.mxu0 0.0
    %2986 = vmatprep.subr.mxu0 0.0
    %2987 = vmatpush1.msra.mxu0 0.0
    %2988 = vmatprep.subr.mxu0 0.0
    %2989 = vmatpush1.msra.mxu0 0.0
    %2990 = vmatprep.subr.mxu0 0.0
    %2991 = vmatpush1.msra.mxu0 0.0
    %2992 = vmatprep.subr.mxu0 0.0
    %2993 = vmatpush1.msra.mxu0 0.0
    %2994 = vmatprep.subr.mxu0 0.0
    %2995 = vmatpush1.msra.mxu0 0.0
    %2996 = vmatprep.subr.mxu0 0.0
    %2997 = vmatpush1.msra.mxu0 0.0
    %2998 = vmatprep.subr.mxu0 0.0
    %2999 = vmatpush1.msra.mxu0 0.0
    %3000 = vmatprep.subr.mxu0 0.0
    %3001 = vmatpush1.msra.mxu0 0.0
    %3002 = vmatprep.subr.mxu0 0.0
    %3003 = vmatpush1.msra.mxu0 0.0
    %3004 = vmatprep.subr.mxu0 0.0
    %3005 = vmatpush1.msra.mxu0 0.0
    %3006 = vmatprep.subr.mxu0 0.0
    %3007 = vmatpush1.msra.mxu0 0.0
    %3008 = vmatprep.subr.mxu0 0.0
    %3009 = vmatpush1.msra.mxu0 0.0
    %3010 = vmatprep.subr.mxu0 0.0
    %3011 = vmatpush1.msra.mxu0 0.0
    %3012 = vmatprep.subr.mxu0 0.0
    %3013 = vmatpush1.msra.mxu0 0.0
    %3014 = vmatprep.subr.mxu0 0.0
    %3015 = vmatpush1.msra.mxu0 0.0
    %3016 = vmatprep.subr.mxu0 0.0
    %3017 = vmatpush1.msra.mxu0 0.0
    %3018 = vmatprep.subr.mxu0 0.0
    %3019 = vmatpush1.msra.mxu0 0.0
    %3020 = vmatprep.subr.mxu0 0.0
    %3021 = vmatpush1.msra.mxu0 0.0
    %3022 = vmatprep.subr.mxu0 0.0
    %3023 = vmatpush1.msra.mxu0 0.0
    %3024 = vmatprep.subr.mxu0 0.0
    %3025 = vmatpush1.msra.mxu0 0.0
    %3026 = vmatprep.subr.mxu0 0.0
    %3027 = vmatpush1.msra.mxu0 0.0
    %3028 = vmatprep.subr.mxu0 0.0
    %3029 = vmatpush1.msra.mxu0 0.0
    %3030 = vmatprep.mubr.f32.mxu0 0.0
    %3031 = vmatmul.mubr.f32.gmra.mrb[0].mxu0 %v2964
    %v3032 = vpop.f32.mrb[0].mxu0
    %v3033 = vadd.f32 0.0, %v3032
    %v3034 = vpop.f32.mrb[0].mxu0
    %v3035 = vadd.f32 0.0, %v3034
    %3036 = vdwg.mxu0
    %3037 = vmatprep.subr.mxu0 0.0
    %3038 = vmatpush1.msra.mxu0 %v2956
    %3039 = vmatprep.subr.mxu0 0.0
    %3040 = vmatpush1.msra.mxu0 %v2959
    %3041 = vmatprep.subr.mxu0 0.0
    %3042 = vmatpush1.msra.mxu0 %v2962
    %3043 = vmatprep.subr.mxu0 0.0
    %3044 = vmatpush1.msra.mxu0 0.0
    %3045 = vmatprep.subr.mxu0 0.0
    %3046 = vmatpush1.msra.mxu0 0.0
    %3047 = vmatprep.subr.mxu0 0.0
    %3048 = vmatpush1.msra.mxu0 0.0
    %3049 = vmatprep.subr.mxu0 0.0
    %3050 = vmatpush1.msra.mxu0 0.0
    %3051 = vmatprep.subr.mxu0 0.0
    %3052 = vmatpush1.msra.mxu0 0.0
    %3053 = vmatprep.subr.mxu0 0.0
    %3054 = vmatpush1.msra.mxu0 0.0
    %3055 = vmatprep.subr.mxu0 0.0
    %3056 = vmatpush1.msra.mxu0 0.0
    %3057 = vmatprep.subr.mxu0 0.0
    %3058 = vmatpush1.msra.mxu0 0.0
    %3059 = vmatprep.subr.mxu0 0.0
    %3060 = vmatpush1.msra.mxu0 0.0
    %3061 = vmatprep.subr.mxu0 0.0
    %3062 = vmatpush1.msra.mxu0 0.0
    %3063 = vmatprep.subr.mxu0 0.0
    %3064 = vmatpush1.msra.mxu0 0.0
    %3065 = vmatprep.subr.mxu0 0.0
    %3066 = vmatpush1.msra.mxu0 0.0
    %3067 = vmatprep.subr.mxu0 0.0
    %3068 = vmatpush1.msra.mxu0 0.0
    %3069 = vmatprep.subr.mxu0 0.0
    %3070 = vmatpush1.msra.mxu0 0.0
    %3071 = vmatprep.subr.mxu0 0.0
    %3072 = vmatpush1.msra.mxu0 0.0
    %3073 = vmatprep.subr.mxu0 0.0
    %3074 = vmatpush1.msra.mxu0 0.0
    %3075 = vmatprep.subr.mxu0 0.0
    %3076 = vmatpush1.msra.mxu0 0.0
    %3077 = vmatprep.subr.mxu0 0.0
    %3078 = vmatpush1.msra.mxu0 0.0
    %3079 = vmatprep.subr.mxu0 0.0
    %3080 = vmatpush1.msra.mxu0 0.0
    %3081 = vmatprep.subr.mxu0 0.0
    %3082 = vmatpush1.msra.mxu0 0.0
    %3083 = vmatprep.subr.mxu0 0.0
    %3084 = vmatpush1.msra.mxu0 0.0
    %3085 = vmatprep.subr.mxu0 0.0
    %3086 = vmatpush1.msra.mxu0 0.0
    %3087 = vmatprep.subr.mxu0 0.0
    %3088 = vmatpush1.msra.mxu0 0.0
    %3089 = vmatprep.subr.mxu0 0.0
    %3090 = vmatpush1.msra.mxu0 0.0
    %3091 = vmatprep.subr.mxu0 0.0
    %3092 = vmatpush1.msra.mxu0 0.0
    %3093 = vmatprep.subr.mxu0 0.0
    %3094 = vmatpush1.msra.mxu0 0.0
    %3095 = vmatprep.subr.mxu0 0.0
    %3096 = vmatpush1.msra.mxu0 0.0
    %3097 = vmatprep.subr.mxu0 0.0
    %3098 = vmatpush1.msra.mxu0 0.0
    %3099 = vmatprep.subr.mxu0 0.0
    %3100 = vmatpush1.msra.mxu0 0.0
    %3101 = vmatprep.mubr.f32.mxu0 0.0
    %3102 = vmatmul.mubr.f32.gmra.mrb[0].mxu0 %v2964
    %v3103 = vpop.f32.mrb[0].mxu0
    %v3104 = vadd.f32 0.0, %v3103
    %v3105 = vpop.f32.mrb[0].mxu0
    %3106 = vdwg.mxu0
    %v3107 = vadd.f32 %v2880, %v3033
    %v3108 = vadd.f32 %v2882, %v3035
    %v3109 = vadd.f32 %v2951, %v3104
    %s3110 = scalar_lea.vmem [#allocation38], 72
    %v3111 = vld [vmem:[%s3110] sm:$0xff]
    %v3112 = vld [vmem:[%s3110 + $0x8] sm:$0xff]
    %v3113 = vld [vmem:[%s3110 + $0x10] sm:$0xff]
    %v3114 = vld [vmem:[%s3110 + $0x18] sm:$0xff]
    %v3115 = vld [vmem:[%s3110 + $0x20] sm:$0xff]
    %v3116 = vld [vmem:[%s3110 + $0x28] sm:$0xff]
    %v3117 = vld [vmem:[%s3110 + $0x30] sm:$0xff]
    %v3118 = vld [vmem:[%s3110 + $0x38] sm:$0xff]
    %v3119 = vld [vmem:[%s3110 + $0x40] sm:$0xff]
    %v3121 = vsel %vm1502, %v2722, 0
    %3123 = vmatprep.subr.mxu0 %v3112
    %3124 = vmatpush1.msra.mxu0 %v3111
    %3125 = vmatprep.subr.mxu0 %v3115
    %3126 = vmatpush1.msra.mxu0 %v3114
    %3127 = vmatprep.subr.mxu0 %v3118
    %3128 = vmatpush1.msra.mxu0 %v3117
    %3129 = vmatprep.subr.mxu0 0.0
    %3130 = vmatpush1.msra.mxu0 0.0
    %3131 = vmatprep.subr.mxu0 0.0
    %3132 = vmatpush1.msra.mxu0 0.0
    %3133 = vmatprep.subr.mxu0 0.0
    %3134 = vmatpush1.msra.mxu0 0.0
    %3135 = vmatprep.subr.mxu0 0.0
    %3136 = vmatpush1.msra.mxu0 0.0
    %3137 = vmatprep.subr.mxu0 0.0
    %3138 = vmatpush1.msra.mxu0 0.0
    %3139 = vmatprep.subr.mxu0 0.0
    %3140 = vmatpush1.msra.mxu0 0.0
    %3141 = vmatprep.subr.mxu0 0.0
    %3142 = vmatpush1.msra.mxu0 0.0
    %3143 = vmatprep.subr.mxu0 0.0
    %3144 = vmatpush1.msra.mxu0 0.0
    %3145 = vmatprep.subr.mxu0 0.0
    %3146 = vmatpush1.msra.mxu0 0.0
    %3147 = vmatprep.subr.mxu0 0.0
    %3148 = vmatpush1.msra.mxu0 0.0
    %3149 = vmatprep.subr.mxu0 0.0
    %3150 = vmatpush1.msra.mxu0 0.0
    %3151 = vmatprep.subr.mxu0 0.0
    %3152 = vmatpush1.msra.mxu0 0.0
    %3153 = vmatprep.subr.mxu0 0.0
    %3154 = vmatpush1.msra.mxu0 0.0
    %3155 = vmatprep.subr.mxu0 0.0
    %3156 = vmatpush1.msra.mxu0 0.0
    %3157 = vmatprep.subr.mxu0 0.0
    %3158 = vmatpush1.msra.mxu0 0.0
    %3159 = vmatprep.subr.mxu0 0.0
    %3160 = vmatpush1.msra.mxu0 0.0
    %3161 = vmatprep.subr.mxu0 0.0
    %3162 = vmatpush1.msra.mxu0 0.0
    %3163 = vmatprep.subr.mxu0 0.0
    %3164 = vmatpush1.msra.mxu0 0.0
    %3165 = vmatprep.subr.mxu0 0.0
    %3166 = vmatpush1.msra.mxu0 0.0
    %3167 = vmatprep.subr.mxu0 0.0
    %3168 = vmatpush1.msra.mxu0 0.0
    %3169 = vmatprep.subr.mxu0 0.0
    %3170 = vmatpush1.msra.mxu0 0.0
    %3171 = vmatprep.subr.mxu0 0.0
    %3172 = vmatpush1.msra.mxu0 0.0
    %3173 = vmatprep.subr.mxu0 0.0
    %3174 = vmatpush1.msra.mxu0 0.0
    %3175 = vmatprep.subr.mxu0 0.0
    %3176 = vmatpush1.msra.mxu0 0.0
    %3177 = vmatprep.subr.mxu0 0.0
    %3178 = vmatpush1.msra.mxu0 0.0
    %3179 = vmatprep.subr.mxu0 0.0
    %3180 = vmatpush1.msra.mxu0 0.0
    %3181 = vmatprep.subr.mxu0 0.0
    %3182 = vmatpush1.msra.mxu0 0.0
    %3183 = vmatprep.subr.mxu0 0.0
    %3184 = vmatpush1.msra.mxu0 0.0
    %3185 = vmatprep.subr.mxu0 0.0
    %3186 = vmatpush1.msra.mxu0 0.0
    %3187 = vmatprep.mubr.f32.mxu0 0.0
    %3188 = vmatmul.mubr.f32.gmra.mrb[0].mxu0 %v3121
    %v3189 = vpop.f32.mrb[0].mxu0
    %v3190 = vadd.f32 0.0, %v3189
    %v3191 = vpop.f32.mrb[0].mxu0
    %v3192 = vadd.f32 0.0, %v3191
    %3193 = vdwg.mxu0
    %3194 = vmatprep.subr.mxu0 0.0
    %3195 = vmatpush1.msra.mxu0 %v3113
    %3196 = vmatprep.subr.mxu0 0.0
    %3197 = vmatpush1.msra.mxu0 %v3116
    %3198 = vmatprep.subr.mxu0 0.0
    %3199 = vmatpush1.msra.mxu0 %v3119
    %3200 = vmatprep.subr.mxu0 0.0
    %3201 = vmatpush1.msra.mxu0 0.0
    %3202 = vmatprep.subr.mxu0 0.0
    %3203 = vmatpush1.msra.mxu0 0.0
    %3204 = vmatprep.subr.mxu0 0.0
    %3205 = vmatpush1.msra.mxu0 0.0
    %3206 = vmatprep.subr.mxu0 0.0
    %3207 = vmatpush1.msra.mxu0 0.0
    %3208 = vmatprep.subr.mxu0 0.0
    %3209 = vmatpush1.msra.mxu0 0.0
    %3210 = vmatprep.subr.mxu0 0.0
    %3211 = vmatpush1.msra.mxu0 0.0
    %3212 = vmatprep.subr.mxu0 0.0
    %3213 = vmatpush1.msra.mxu0 0.0
    %3214 = vmatprep.subr.mxu0 0.0
    %3215 = vmatpush1.msra.mxu0 0.0
    %3216 = vmatprep.subr.mxu0 0.0
    %3217 = vmatpush1.msra.mxu0 0.0
    %3218 = vmatprep.subr.mxu0 0.0
    %3219 = vmatpush1.msra.mxu0 0.0
    %3220 = vmatprep.subr.mxu0 0.0
    %3221 = vmatpush1.msra.mxu0 0.0
    %3222 = vmatprep.subr.mxu0 0.0
    %3223 = vmatpush1.msra.mxu0 0.0
    %3224 = vmatprep.subr.mxu0 0.0
    %3225 = vmatpush1.msra.mxu0 0.0
    %3226 = vmatprep.subr.mxu0 0.0
    %3227 = vmatpush1.msra.mxu0 0.0
    %3228 = vmatprep.subr.mxu0 0.0
    %3229 = vmatpush1.msra.mxu0 0.0
    %3230 = vmatprep.subr.mxu0 0.0
    %3231 = vmatpush1.msra.mxu0 0.0
    %3232 = vmatprep.subr.mxu0 0.0
    %3233 = vmatpush1.msra.mxu0 0.0
    %3234 = vmatprep.subr.mxu0 0.0
    %3235 = vmatpush1.msra.mxu0 0.0
    %3236 = vmatprep.subr.mxu0 0.0
    %3237 = vmatpush1.msra.mxu0 0.0
    %3238 = vmatprep.subr.mxu0 0.0
    %3239 = vmatpush1.msra.mxu0 0.0
    %3240 = vmatprep.subr.mxu0 0.0
    %3241 = vmatpush1.msra.mxu0 0.0
    %3242 = vmatprep.subr.mxu0 0.0
    %3243 = vmatpush1.msra.mxu0 0.0
    %3244 = vmatprep.subr.mxu0 0.0
    %3245 = vmatpush1.msra.mxu0 0.0
    %3246 = vmatprep.subr.mxu0 0.0
    %3247 = vmatpush1.msra.mxu0 0.0
    %3248 = vmatprep.subr.mxu0 0.0
    %3249 = vmatpush1.msra.mxu0 0.0
    %3250 = vmatprep.subr.mxu0 0.0
    %3251 = vmatpush1.msra.mxu0 0.0
    %3252 = vmatprep.subr.mxu0 0.0
    %3253 = vmatpush1.msra.mxu0 0.0
    %3254 = vmatprep.subr.mxu0 0.0
    %3255 = vmatpush1.msra.mxu0 0.0
    %3256 = vmatprep.subr.mxu0 0.0
    %3257 = vmatpush1.msra.mxu0 0.0
    %3258 = vmatprep.mubr.f32.mxu0 0.0
    %3259 = vmatmul.mubr.f32.gmra.mrb[0].mxu0 %v3121
    %v3260 = vpop.f32.mrb[0].mxu0
    %v3261 = vadd.f32 0.0, %v3260
    %v3262 = vpop.f32.mrb[0].mxu0
    %3263 = vdwg.mxu0
    %v3264 = vadd.f32 %v3107, %v3190
    %v3265 = vadd.f32 %v3108, %v3192
    %v3266 = vadd.f32 %v3109, %v3261
    %s3267 = scalar_lea.vmem [#allocation38], 144
    %v3268 = vld [vmem:[%s3267] sm:$0xff]
    %v3269 = vld [vmem:[%s3267 + $0x8] sm:$0xff]
    %v3270 = vld [vmem:[%s3267 + $0x10] sm:$0xff]
    %v3271 = vld [vmem:[%s3267 + $0x18] sm:$0xff]
    %v3272 = vld [vmem:[%s3267 + $0x20] sm:$0xff]
    %v3273 = vld [vmem:[%s3267 + $0x28] sm:$0xff]
    %v3274 = vld [vmem:[%s3267 + $0x30] sm:$0xff]
    %v3275 = vld [vmem:[%s3267 + $0x38] sm:$0xff]
    %v3276 = vld [vmem:[%s3267 + $0x40] sm:$0xff]
    %v3278 = vsel %vm1502, %v2727, 0
    %3280 = vmatprep.subr.mxu0 %v3269
    %3281 = vmatpush1.msra.mxu0 %v3268
    %3282 = vmatprep.subr.mxu0 %v3272
    %3283 = vmatpush1.msra.mxu0 %v3271
    %3284 = vmatprep.subr.mxu0 %v3275
    %3285 = vmatpush1.msra.mxu0 %v3274
    %3286 = vmatprep.subr.mxu0 0.0
    %3287 = vmatpush1.msra.mxu0 0.0
    %3288 = vmatprep.subr.mxu0 0.0
    %3289 = vmatpush1.msra.mxu0 0.0
    %3290 = vmatprep.subr.mxu0 0.0
    %3291 = vmatpush1.msra.mxu0 0.0
    %3292 = vmatprep.subr.mxu0 0.0
    %3293 = vmatpush1.msra.mxu0 0.0
    %3294 = vmatprep.subr.mxu0 0.0
    %3295 = vmatpush1.msra.mxu0 0.0
    %3296 = vmatprep.subr.mxu0 0.0
    %3297 = vmatpush1.msra.mxu0 0.0
    %3298 = vmatprep.subr.mxu0 0.0
    %3299 = vmatpush1.msra.mxu0 0.0
    %3300 = vmatprep.subr.mxu0 0.0
    %3301 = vmatpush1.msra.mxu0 0.0
    %3302 = vmatprep.subr.mxu0 0.0
    %3303 = vmatpush1.msra.mxu0 0.0
    %3304 = vmatprep.subr.mxu0 0.0
    %3305 = vmatpush1.msra.mxu0 0.0
    %3306 = vmatprep.subr.mxu0 0.0
    %3307 = vmatpush1.msra.mxu0 0.0
    %3308 = vmatprep.subr.mxu0 0.0
    %3309 = vmatpush1.msra.mxu0 0.0
    %3310 = vmatprep.subr.mxu0 0.0
    %3311 = vmatpush1.msra.mxu0 0.0
    %3312 = vmatprep.subr.mxu0 0.0
    %3313 = vmatpush1.msra.mxu0 0.0
    %3314 = vmatprep.subr.mxu0 0.0
    %3315 = vmatpush1.msra.mxu0 0.0
    %3316 = vmatprep.subr.mxu0 0.0
    %3317 = vmatpush1.msra.mxu0 0.0
    %3318 = vmatprep.subr.mxu0 0.0
    %3319 = vmatpush1.msra.mxu0 0.0
    %3320 = vmatprep.subr.mxu0 0.0
    %3321 = vmatpush1.msra.mxu0 0.0
    %3322 = vmatprep.subr.mxu0 0.0
    %3323 = vmatpush1.msra.mxu0 0.0
    %3324 = vmatprep.subr.mxu0 0.0
    %3325 = vmatpush1.msra.mxu0 0.0
    %3326 = vmatprep.subr.mxu0 0.0
    %3327 = vmatpush1.msra.mxu0 0.0
    %3328 = vmatprep.subr.mxu0 0.0
    %3329 = vmatpush1.msra.mxu0 0.0
    %3330 = vmatprep.subr.mxu0 0.0
    %3331 = vmatpush1.msra.mxu0 0.0
    %3332 = vmatprep.subr.mxu0 0.0
    %3333 = vmatpush1.msra.mxu0 0.0
    %3334 = vmatprep.subr.mxu0 0.0
    %3335 = vmatpush1.msra.mxu0 0.0
    %3336 = vmatprep.subr.mxu0 0.0
    %3337 = vmatpush1.msra.mxu0 0.0
    %3338 = vmatprep.subr.mxu0 0.0
    %3339 = vmatpush1.msra.mxu0 0.0
    %3340 = vmatprep.subr.mxu0 0.0
    %3341 = vmatpush1.msra.mxu0 0.0
    %3342 = vmatprep.subr.mxu0 0.0
    %3343 = vmatpush1.msra.mxu0 0.0
    %3344 = vmatprep.mubr.f32.mxu0 0.0
    %3345 = vmatmul.mubr.f32.gmra.mrb[0].mxu0 %v3278
    %v3346 = vpop.f32.mrb[0].mxu0
    %v3347 = vadd.f32 0.0, %v3346
    %v3348 = vpop.f32.mrb[0].mxu0
    %v3349 = vadd.f32 0.0, %v3348
    %3350 = vdwg.mxu0
    %3351 = vmatprep.subr.mxu0 0.0
    %3352 = vmatpush1.msra.mxu0 %v3270
    %3353 = vmatprep.subr.mxu0 0.0
    %3354 = vmatpush1.msra.mxu0 %v3273
    %3355 = vmatprep.subr.mxu0 0.0
    %3356 = vmatpush1.msra.mxu0 %v3276
    %3357 = vmatprep.subr.mxu0 0.0
    %3358 = vmatpush1.msra.mxu0 0.0
    %3359 = vmatprep.subr.mxu0 0.0
    %3360 = vmatpush1.msra.mxu0 0.0
    %3361 = vmatprep.subr.mxu0 0.0
    %3362 = vmatpush1.msra.mxu0 0.0
    %3363 = vmatprep.subr.mxu0 0.0
    %3364 = vmatpush1.msra.mxu0 0.0
    %3365 = vmatprep.subr.mxu0 0.0
    %3366 = vmatpush1.msra.mxu0 0.0
    %3367 = vmatprep.subr.mxu0 0.0
    %3368 = vmatpush1.msra.mxu0 0.0
    %3369 = vmatprep.subr.mxu0 0.0
    %3370 = vmatpush1.msra.mxu0 0.0
    %3371 = vmatprep.subr.mxu0 0.0
    %3372 = vmatpush1.msra.mxu0 0.0
    %3373 = vmatprep.subr.mxu0 0.0
    %3374 = vmatpush1.msra.mxu0 0.0
    %3375 = vmatprep.subr.mxu0 0.0
    %3376 = vmatpush1.msra.mxu0 0.0
    %3377 = vmatprep.subr.mxu0 0.0
    %3378 = vmatpush1.msra.mxu0 0.0
    %3379 = vmatprep.subr.mxu0 0.0
    %3380 = vmatpush1.msra.mxu0 0.0
    %3381 = vmatprep.subr.mxu0 0.0
    %3382 = vmatpush1.msra.mxu0 0.0
    %3383 = vmatprep.subr.mxu0 0.0
    %3384 = vmatpush1.msra.mxu0 0.0
    %3385 = vmatprep.subr.mxu0 0.0
    %3386 = vmatpush1.msra.mxu0 0.0
    %3387 = vmatprep.subr.mxu0 0.0
    %3388 = vmatpush1.msra.mxu0 0.0
    %3389 = vmatprep.subr.mxu0 0.0
    %3390 = vmatpush1.msra.mxu0 0.0
    %3391 = vmatprep.subr.mxu0 0.0
    %3392 = vmatpush1.msra.mxu0 0.0
    %3393 = vmatprep.subr.mxu0 0.0
    %3394 = vmatpush1.msra.mxu0 0.0
    %3395 = vmatprep.subr.mxu0 0.0
    %3396 = vmatpush1.msra.mxu0 0.0
    %3397 = vmatprep.subr.mxu0 0.0
    %3398 = vmatpush1.msra.mxu0 0.0
    %3399 = vmatprep.subr.mxu0 0.0
    %3400 = vmatpush1.msra.mxu0 0.0
    %3401 = vmatprep.subr.mxu0 0.0
    %3402 = vmatpush1.msra.mxu0 0.0
    %3403 = vmatprep.subr.mxu0 0.0
    %3404 = vmatpush1.msra.mxu0 0.0
    %3405 = vmatprep.subr.mxu0 0.0
    %3406 = vmatpush1.msra.mxu0 0.0
    %3407 = vmatprep.subr.mxu0 0.0
    %3408 = vmatpush1.msra.mxu0 0.0
    %3409 = vmatprep.subr.mxu0 0.0
    %3410 = vmatpush1.msra.mxu0 0.0
    %3411 = vmatprep.subr.mxu0 0.0
    %3412 = vmatpush1.msra.mxu0 0.0
    %3413 = vmatprep.subr.mxu0 0.0
    %3414 = vmatpush1.msra.mxu0 0.0
    %3415 = vmatprep.mubr.f32.mxu0 0.0
    %3416 = vmatmul.mubr.f32.gmra.mrb[0].mxu0 %v3278
    %v3417 = vpop.f32.mrb[0].mxu0
    %v3418 = vadd.f32 0.0, %v3417
    %v3419 = vpop.f32.mrb[0].mxu0
    %3420 = vdwg.mxu0
    %v3421 = vadd.f32 %v3264, %v3347
    %v3422 = vadd.f32 %v3265, %v3349
    %v3423 = vadd.f32 %v3266, %v3418
    %s3424 = scalar_lea.vmem [#allocation38], 216
    %v3425 = vld [vmem:[%s3424] sm:$0xff]
    %v3426 = vld [vmem:[%s3424 + $0x8] sm:$0xff]
    %v3427 = vld [vmem:[%s3424 + $0x10] sm:$0xff]
    %v3428 = vld [vmem:[%s3424 + $0x18] sm:$0xff]
    %v3429 = vld [vmem:[%s3424 + $0x20] sm:$0xff]
    %v3430 = vld [vmem:[%s3424 + $0x28] sm:$0xff]
    %v3431 = vld [vmem:[%s3424 + $0x30] sm:$0xff]
    %v3432 = vld [vmem:[%s3424 + $0x38] sm:$0xff]
    %v3433 = vld [vmem:[%s3424 + $0x40] sm:$0xff]
    %v3435 = vsel %vm1502, %v2732, 0
    %3437 = vmatprep.subr.mxu0 %v3426
    %3438 = vmatpush1.msra.mxu0 %v3425
    %3439 = vmatprep.subr.mxu0 %v3429
    %3440 = vmatpush1.msra.mxu0 %v3428
    %3441 = vmatprep.subr.mxu0 %v3432
    %3442 = vmatpush1.msra.mxu0 %v3431
    %3443 = vmatprep.subr.mxu0 0.0
    %3444 = vmatpush1.msra.mxu0 0.0
    %3445 = vmatprep.subr.mxu0 0.0
    %3446 = vmatpush1.msra.mxu0 0.0
    %3447 = vmatprep.subr.mxu0 0.0
    %3448 = vmatpush1.msra.mxu0 0.0
    %3449 = vmatprep.subr.mxu0 0.0
    %3450 = vmatpush1.msra.mxu0 0.0
    %3451 = vmatprep.subr.mxu0 0.0
    %3452 = vmatpush1.msra.mxu0 0.0
    %3453 = vmatprep.subr.mxu0 0.0
    %3454 = vmatpush1.msra.mxu0 0.0
    %3455 = vmatprep.subr.mxu0 0.0
    %3456 = vmatpush1.msra.mxu0 0.0
    %3457 = vmatprep.subr.mxu0 0.0
    %3458 = vmatpush1.msra.mxu0 0.0
    %3459 = vmatprep.subr.mxu0 0.0
    %3460 = vmatpush1.msra.mxu0 0.0
    %3461 = vmatprep.subr.mxu0 0.0
    %3462 = vmatpush1.msra.mxu0 0.0
    %3463 = vmatprep.subr.mxu0 0.0
    %3464 = vmatpush1.msra.mxu0 0.0
    %3465 = vmatprep.subr.mxu0 0.0
    %3466 = vmatpush1.msra.mxu0 0.0
    %3467 = vmatprep.subr.mxu0 0.0
    %3468 = vmatpush1.msra.mxu0 0.0
    %3469 = vmatprep.subr.mxu0 0.0
    %3470 = vmatpush1.msra.mxu0 0.0
    %3471 = vmatprep.subr.mxu0 0.0
    %3472 = vmatpush1.msra.mxu0 0.0
    %3473 = vmatprep.subr.mxu0 0.0
    %3474 = vmatpush1.msra.mxu0 0.0
    %3475 = vmatprep.subr.mxu0 0.0
    %3476 = vmatpush1.msra.mxu0 0.0
    %3477 = vmatprep.subr.mxu0 0.0
    %3478 = vmatpush1.msra.mxu0 0.0
    %3479 = vmatprep.subr.mxu0 0.0
    %3480 = vmatpush1.msra.mxu0 0.0
    %3481 = vmatprep.subr.mxu0 0.0
    %3482 = vmatpush1.msra.mxu0 0.0
    %3483 = vmatprep.subr.mxu0 0.0
    %3484 = vmatpush1.msra.mxu0 0.0
    %3485 = vmatprep.subr.mxu0 0.0
    %3486 = vmatpush1.msra.mxu0 0.0
    %3487 = vmatprep.subr.mxu0 0.0
    %3488 = vmatpush1.msra.mxu0 0.0
    %3489 = vmatprep.subr.mxu0 0.0
    %3490 = vmatpush1.msra.mxu0 0.0
    %3491 = vmatprep.subr.mxu0 0.0
    %3492 = vmatpush1.msra.mxu0 0.0
    %3493 = vmatprep.subr.mxu0 0.0
    %3494 = vmatpush1.msra.mxu0 0.0
    %3495 = vmatprep.subr.mxu0 0.0
    %3496 = vmatpush1.msra.mxu0 0.0
    %3497 = vmatprep.subr.mxu0 0.0
    %3498 = vmatpush1.msra.mxu0 0.0
    %3499 = vmatprep.subr.mxu0 0.0
    %3500 = vmatpush1.msra.mxu0 0.0
    %3501 = vmatprep.mubr.f32.mxu0 0.0
    %3502 = vmatmul.mubr.f32.gmra.mrb[0].mxu0 %v3435
    %v3503 = vpop.f32.mrb[0].mxu0
    %v3504 = vadd.f32 0.0, %v3503
    %v3505 = vpop.f32.mrb[0].mxu0
    %v3506 = vadd.f32 0.0, %v3505
    %3507 = vdwg.mxu0
    %3508 = vmatprep.subr.mxu0 0.0
    %3509 = vmatpush1.msra.mxu0 %v3427
    %3510 = vmatprep.subr.mxu0 0.0
    %3511 = vmatpush1.msra.mxu0 %v3430
    %3512 = vmatprep.subr.mxu0 0.0
    %3513 = vmatpush1.msra.mxu0 %v3433
    %3514 = vmatprep.subr.mxu0 0.0
    %3515 = vmatpush1.msra.mxu0 0.0
    %3516 = vmatprep.subr.mxu0 0.0
    %3517 = vmatpush1.msra.mxu0 0.0
    %3518 = vmatprep.subr.mxu0 0.0
    %3519 = vmatpush1.msra.mxu0 0.0
    %3520 = vmatprep.subr.mxu0 0.0
    %3521 = vmatpush1.msra.mxu0 0.0
    %3522 = vmatprep.subr.mxu0 0.0
    %3523 = vmatpush1.msra.mxu0 0.0
    %3524 = vmatprep.subr.mxu0 0.0
    %3525 = vmatpush1.msra.mxu0 0.0
    %3526 = vmatprep.subr.mxu0 0.0
    %3527 = vmatpush1.msra.mxu0 0.0
    %3528 = vmatprep.subr.mxu0 0.0
    %3529 = vmatpush1.msra.mxu0 0.0
    %3530 = vmatprep.subr.mxu0 0.0
    %3531 = vmatpush1.msra.mxu0 0.0
    %3532 = vmatprep.subr.mxu0 0.0
    %3533 = vmatpush1.msra.mxu0 0.0
    %3534 = vmatprep.subr.mxu0 0.0
    %3535 = vmatpush1.msra.mxu0 0.0
    %3536 = vmatprep.subr.mxu0 0.0
    %3537 = vmatpush1.msra.mxu0 0.0
    %3538 = vmatprep.subr.mxu0 0.0
    %3539 = vmatpush1.msra.mxu0 0.0
    %3540 = vmatprep.subr.mxu0 0.0
    %3541 = vmatpush1.msra.mxu0 0.0
    %3542 = vmatprep.subr.mxu0 0.0
    %3543 = vmatpush1.msra.mxu0 0.0
    %3544 = vmatprep.subr.mxu0 0.0
    %3545 = vmatpush1.msra.mxu0 0.0
    %3546 = vmatprep.subr.mxu0 0.0
    %3547 = vmatpush1.msra.mxu0 0.0
    %3548 = vmatprep.subr.mxu0 0.0
    %3549 = vmatpush1.msra.mxu0 0.0
    %3550 = vmatprep.subr.mxu0 0.0
    %3551 = vmatpush1.msra.mxu0 0.0
    %3552 = vmatprep.subr.mxu0 0.0
    %3553 = vmatpush1.msra.mxu0 0.0
    %3554 = vmatprep.subr.mxu0 0.0
    %3555 = vmatpush1.msra.mxu0 0.0
    %3556 = vmatprep.subr.mxu0 0.0
    %3557 = vmatpush1.msra.mxu0 0.0
    %3558 = vmatprep.subr.mxu0 0.0
    %3559 = vmatpush1.msra.mxu0 0.0
    %3560 = vmatprep.subr.mxu0 0.0
    %3561 = vmatpush1.msra.mxu0 0.0
    %3562 = vmatprep.subr.mxu0 0.0
    %3563 = vmatpush1.msra.mxu0 0.0
    %3564 = vmatprep.subr.mxu0 0.0
    %3565 = vmatpush1.msra.mxu0 0.0
    %3566 = vmatprep.subr.mxu0 0.0
    %3567 = vmatpush1.msra.mxu0 0.0
    %3568 = vmatprep.subr.mxu0 0.0
    %3569 = vmatpush1.msra.mxu0 0.0
    %3570 = vmatprep.subr.mxu0 0.0
    %3571 = vmatpush1.msra.mxu0 0.0
    %3572 = vmatprep.mubr.f32.mxu0 0.0
    %3573 = vmatmul.mubr.f32.gmra.mrb[0].mxu0 %v3435
    %v3574 = vpop.f32.mrb[0].mxu0
    %v3575 = vadd.f32 0.0, %v3574
    %v3576 = vpop.f32.mrb[0].mxu0
    %3577 = vdwg.mxu0
    %v3578 = vadd.f32 %v3421, %v3504
    %v3579 = vadd.f32 %v3422, %v3506
    %v3580 = vadd.f32 %v3423, %v3575
    %v3581 = vld [vmem:[#allocation41] sm:$0xff]
    %v3582 = vld [vmem:[#allocation41 + $0x8] sm:$0xff]
    %v3583 = vld [vmem:[#allocation41 + $0x10] sm:$0xff]
    %v3584 = vld [vmem:[#allocation41 + $0x18] sm:$0xff]
    %v3585 = vld [vmem:[#allocation41 + $0x20] sm:$0xff]
    %v3586 = vld [vmem:[#allocation41 + $0x28] sm:$0xff]
    %v3587 = vld [vmem:[#allocation41 + $0x30] sm:$0xff]
    %v3588 = vld [vmem:[#allocation41 + $0x38] sm:$0xff]
    %v3589 = vld [vmem:[#allocation41 + $0x40] sm:$0xff]
    %v3590 = vld [vmem:[#allocation41 + $0x48] sm:$0xff]
    %v3591 = vld [vmem:[#allocation41 + $0x50] sm:$0xff]
    %v3592 = vld [vmem:[#allocation41 + $0x58] sm:$0xff]
    %v3593 = vld [vmem:[#allocation41 + $0x60] sm:$0xff]
    %v3594 = vld [vmem:[#allocation41 + $0x68] sm:$0xff]
    %v3595 = vld [vmem:[#allocation41 + $0x70] sm:$0xff]
    %v3596 = vld [vmem:[#allocation41 + $0x78] sm:$0xff]
    %v3597 = vld [vmem:[#allocation41 + $0x80] sm:$0xff]
    %v3598 = vld [vmem:[#allocation41 + $0x88] sm:$0xff]
    %v3599 = vld [vmem:[#allocation41 + $0x90] sm:$0x3]
    %v3600 = vld [vmem:[#allocation41 + $0x98] sm:$0x3]
    %v3601 = vld [vmem:[#allocation41 + $0xa0] sm:$0x3]
    %v3602 = vld [vmem:[#allocation43] sm:$0x7]
    %v3604 = vlaneseq
    %v3605 = vshrl.u32 %v3604, 7
    %v3606 = vsub.s32 0, %v3605
    %v3607 = vrot.slane %v3602, %v3606
    %v3608 = vlaneseq
    %v3609 = vshrl.u32 %v3608, 7
    %v3610 = vsub.s32 1, %v3609
    %v3611 = vrot.slane %v3602, %v3610
    %v3612 = vlaneseq
    %v3613 = vshrl.u32 %v3612, 7
    %v3614 = vsub.s32 2, %v3613
    %v3615 = vrot.slane %v3602, %v3614
    %v3620 = vsel %vm1204, %v2735, 0
    %v3623 = vsel %vm1208, %v3599, 0
    %v3626 = vsel %vm1208, %v3600, 0
    %v3629 = vsel %vm1208, %v3601, 0
    %3631 = vmatprep.subr.mxu0 %v3582
    %3632 = vmatpush1.msra.mxu0 %v3581
    %3633 = vmatprep.subr.mxu0 %v3585
    %3634 = vmatpush1.msra.mxu0 %v3584
    %3635 = vmatprep.subr.mxu0 %v3588
    %3636 = vmatpush1.msra.mxu0 %v3587
    %3637 = vmatprep.subr.mxu0 %v3591
    %3638 = vmatpush1.msra.mxu0 %v3590
    %3639 = vmatprep.subr.mxu0 %v3594
    %3640 = vmatpush1.msra.mxu0 %v3593
    %3641 = vmatprep.subr.mxu0 %v3597
    %3642 = vmatpush1.msra.mxu0 %v3596
    %3643 = vmatprep.subr.mxu0 %v3626
    %3644 = vmatpush1.msra.mxu0 %v3623
    %3645 = vmatprep.subr.mxu0 0.0
    %3646 = vmatpush1.msra.mxu0 0.0
    %3647 = vmatprep.subr.mxu0 0.0
    %3648 = vmatpush1.msra.mxu0 0.0
    %3649 = vmatprep.subr.mxu0 0.0
    %3650 = vmatpush1.msra.mxu0 0.0
    %3651 = vmatprep.subr.mxu0 0.0
    %3652 = vmatpush1.msra.mxu0 0.0
    %3653 = vmatprep.subr.mxu0 0.0
    %3654 = vmatpush1.msra.mxu0 0.0
    %3655 = vmatprep.subr.mxu0 0.0
    %3656 = vmatpush1.msra.mxu0 0.0
    %3657 = vmatprep.subr.mxu0 0.0
    %3658 = vmatpush1.msra.mxu0 0.0
    %3659 = vmatprep.subr.mxu0 0.0
    %3660 = vmatpush1.msra.mxu0 0.0
    %3661 = vmatprep.subr.mxu0 0.0
    %3662 = vmatpush1.msra.mxu0 0.0
    %3663 = vmatprep.subr.mxu0 0.0
    %3664 = vmatpush1.msra.mxu0 0.0
    %3665 = vmatprep.subr.mxu0 0.0
    %3666 = vmatpush1.msra.mxu0 0.0
    %3667 = vmatprep.subr.mxu0 0.0
    %3668 = vmatpush1.msra.mxu0 0.0
    %3669 = vmatprep.subr.mxu0 0.0
    %3670 = vmatpush1.msra.mxu0 0.0
    %3671 = vmatprep.subr.mxu0 0.0
    %3672 = vmatpush1.msra.mxu0 0.0
    %3673 = vmatprep.subr.mxu0 0.0
    %3674 = vmatpush1.msra.mxu0 0.0
    %3675 = vmatprep.subr.mxu0 0.0
    %3676 = vmatpush1.msra.mxu0 0.0
    %3677 = vmatprep.subr.mxu0 0.0
    %3678 = vmatpush1.msra.mxu0 0.0
    %3679 = vmatprep.subr.mxu0 0.0
    %3680 = vmatpush1.msra.mxu0 0.0
    %3681 = vmatprep.subr.mxu0 0.0
    %3682 = vmatpush1.msra.mxu0 0.0
    %3683 = vmatprep.subr.mxu0 0.0
    %3684 = vmatpush1.msra.mxu0 0.0
    %3685 = vmatprep.subr.mxu0 0.0
    %3686 = vmatpush1.msra.mxu0 0.0
    %3687 = vmatprep.subr.mxu0 0.0
    %3688 = vmatpush1.msra.mxu0 0.0
    %3689 = vmatprep.subr.mxu0 0.0
    %3690 = vmatpush1.msra.mxu0 0.0
    %3691 = vmatprep.subr.mxu0 0.0
    %3692 = vmatpush1.msra.mxu0 0.0
    %3693 = vmatprep.subr.mxu0 0.0
    %3694 = vmatpush1.msra.mxu0 0.0
    %3695 = vmatprep.mubr.f32.mxu0 0.0
    %3696 = vmatmul.mubr.f32.gmra.mrb[0].mxu0 %v3620
    %v3697 = vpop.f32.mrb[0].mxu0
    %v3698 = vadd.f32 %v3607, %v3697
    %v3699 = vpop.f32.mrb[0].mxu0
    %v3700 = vadd.f32 %v3611, %v3699
    %3701 = vdwg.mxu0
    %3702 = vmatprep.subr.mxu0 0.0
    %3703 = vmatpush1.msra.mxu0 %v3583
    %3704 = vmatprep.subr.mxu0 0.0
    %3705 = vmatpush1.msra.mxu0 %v3586
    %3706 = vmatprep.subr.mxu0 0.0
    %3707 = vmatpush1.msra.mxu0 %v3589
    %3708 = vmatprep.subr.mxu0 0.0
    %3709 = vmatpush1.msra.mxu0 %v3592
    %3710 = vmatprep.subr.mxu0 0.0
    %3711 = vmatpush1.msra.mxu0 %v3595
    %3712 = vmatprep.subr.mxu0 0.0
    %3713 = vmatpush1.msra.mxu0 %v3598
    %3714 = vmatprep.subr.mxu0 0.0
    %3715 = vmatpush1.msra.mxu0 %v3629
    %3716 = vmatprep.subr.mxu0 0.0
    %3717 = vmatpush1.msra.mxu0 0.0
    %3718 = vmatprep.subr.mxu0 0.0
    %3719 = vmatpush1.msra.mxu0 0.0
    %3720 = vmatprep.subr.mxu0 0.0
    %3721 = vmatpush1.msra.mxu0 0.0
    %3722 = vmatprep.subr.mxu0 0.0
    %3723 = vmatpush1.msra.mxu0 0.0
    %3724 = vmatprep.subr.mxu0 0.0
    %3725 = vmatpush1.msra.mxu0 0.0
    %3726 = vmatprep.subr.mxu0 0.0
    %3727 = vmatpush1.msra.mxu0 0.0
    %3728 = vmatprep.subr.mxu0 0.0
    %3729 = vmatpush1.msra.mxu0 0.0
    %3730 = vmatprep.subr.mxu0 0.0
    %3731 = vmatpush1.msra.mxu0 0.0
    %3732 = vmatprep.subr.mxu0 0.0
    %3733 = vmatpush1.msra.mxu0 0.0
    %3734 = vmatprep.subr.mxu0 0.0
    %3735 = vmatpush1.msra.mxu0 0.0
    %3736 = vmatprep.subr.mxu0 0.0
    %3737 = vmatpush1.msra.mxu0 0.0
    %3738 = vmatprep.subr.mxu0 0.0
    %3739 = vmatpush1.msra.mxu0 0.0
    %3740 = vmatprep.subr.mxu0 0.0
    %3741 = vmatpush1.msra.mxu0 0.0
    %3742 = vmatprep.subr.mxu0 0.0
    %3743 = vmatpush1.msra.mxu0 0.0
    %3744 = vmatprep.subr.mxu0 0.0
    %3745 = vmatpush1.msra.mxu0 0.0
    %3746 = vmatprep.subr.mxu0 0.0
    %3747 = vmatpush1.msra.mxu0 0.0
    %3748 = vmatprep.subr.mxu0 0.0
    %3749 = vmatpush1.msra.mxu0 0.0
    %3750 = vmatprep.subr.mxu0 0.0
    %3751 = vmatpush1.msra.mxu0 0.0
    %3752 = vmatprep.subr.mxu0 0.0
    %3753 = vmatpush1.msra.mxu0 0.0
    %3754 = vmatprep.subr.mxu0 0.0
    %3755 = vmatpush1.msra.mxu0 0.0
    %3756 = vmatprep.subr.mxu0 0.0
    %3757 = vmatpush1.msra.mxu0 0.0
    %3758 = vmatprep.subr.mxu0 0.0
    %3759 = vmatpush1.msra.mxu0 0.0
    %3760 = vmatprep.subr.mxu0 0.0
    %3761 = vmatpush1.msra.mxu0 0.0
    %3762 = vmatprep.subr.mxu0 0.0
    %3763 = vmatpush1.msra.mxu0 0.0
    %3764 = vmatprep.subr.mxu0 0.0
    %3765 = vmatpush1.msra.mxu0 0.0
    %3766 = vmatprep.mubr.f32.mxu0 0.0
    %3767 = vmatmul.mubr.f32.gmra.mrb[0].mxu0 %v3620
    %v3768 = vpop.f32.mrb[0].mxu0
    %v3769 = vadd.f32 %v3615, %v3768
    %v3770 = vpop.f32.mrb[0].mxu0
    %3771 = vdwg.mxu0
    %v3772 = vadd.f32 %v3578, %v3698
    %v3773 = vxor.u32 %v3772, 2147483648
    %v3774 = vmul.f32 %v3773, 1.442695
    %v3775 = vpow.pop %v3774
    %v3776 = vadd.f32 %v3775, 1.0
    %v3777 = vrcp.pop %v3776
    %v3778 = vmul.f32 1.0, %v3777
    %v3779 = vadd.f32 %v3579, %v3700
    %v3780 = vxor.u32 %v3779, 2147483648
    %v3781 = vmul.f32 %v3780, 1.442695
    %v3782 = vpow.pop %v3781
    %v3783 = vadd.f32 %v3782, 1.0
    %v3784 = vrcp.pop %v3783
    %v3785 = vmul.f32 1.0, %v3784
    %v3786 = vmul.f32 %v3778, %v3769
    %v3787 = vadd.f32 %v3580, %v3786
    %v3788 = vtanh.pop %v3787
    %v3789 = vsub.f32 1.0, %v3785
    %v3790 = vmul.f32 %v3789, %v3788
    %v3791 = vmul.f32 %v3785, %v2735
    %v3792 = vadd.f32 %v3790, %v3791
    %v3793 = vld [vmem:[%s15] sm:$0x3]
    %v3794 = vld [vmem:[#allocation44] sm:$0xff]
    %v3795 = vld [vmem:[#allocation44 + $0x8] sm:$0xff]
    %v3796 = vld [vmem:[#allocation44 + $0x10] sm:$0xff]
    %v3797 = vld [vmem:[#allocation44 + $0x18] sm:$0xff]
    %v3798 = vld [vmem:[#allocation44 + $0x20] sm:$0xff]
    %v3799 = vld [vmem:[#allocation44 + $0x28] sm:$0xff]
    %v3800 = vld [vmem:[#allocation44 + $0x30] sm:$0xff]
    %v3801 = vld [vmem:[#allocation44 + $0x38] sm:$0xff]
    %v3802 = vld [vmem:[#allocation44 + $0x40] sm:$0xff]
    %v3803 = vld [vmem:[#allocation44 + $0x48] sm:$0xff]
    %v3804 = vld [vmem:[#allocation44 + $0x50] sm:$0xff]
    %v3805 = vld [vmem:[#allocation44 + $0x58] sm:$0xff]
    %v3806 = vld [vmem:[#allocation44 + $0x60] sm:$0xff]
    %v3807 = vld [vmem:[#allocation44 + $0x68] sm:$0xff]
    %v3808 = vld [vmem:[#allocation44 + $0x70] sm:$0xff]
    %v3809 = vld [vmem:[#allocation44 + $0x78] sm:$0xff]
    %v3810 = vld [vmem:[#allocation44 + $0x80] sm:$0xff]
    %v3811 = vld [vmem:[#allocation44 + $0x88] sm:$0xff]
    %v3812 = vld [vmem:[#allocation44 + $0x90] sm:$0x3]
    %v3813 = vld [vmem:[#allocation44 + $0x98] sm:$0x3]
    %v3814 = vld [vmem:[#allocation44 + $0xa0] sm:$0x3]
    %v3815 = vld [vmem:[#allocation46] sm:$0x7]
    %v3817 = vlaneseq
    %v3818 = vshrl.u32 %v3817, 7
    %v3819 = vsub.s32 0, %v3818
    %v3820 = vrot.slane %v3815, %v3819
    %v3821 = vlaneseq
    %v3822 = vshrl.u32 %v3821, 7
    %v3823 = vsub.s32 1, %v3822
    %v3824 = vrot.slane %v3815, %v3823
    %v3825 = vlaneseq
    %v3826 = vshrl.u32 %v3825, 7
    %v3827 = vsub.s32 2, %v3826
    %v3828 = vrot.slane %v3815, %v3827
    %v3833 = vsel %vm1204, %v3792, 0
    %v3836 = vsel %vm1208, %v3812, 0
    %v3839 = vsel %vm1208, %v3813, 0
    %v3842 = vsel %vm1208, %v3814, 0
    %3844 = vmatprep.subr.mxu0 %v3795
    %3845 = vmatpush1.msra.mxu0 %v3794
    %3846 = vmatprep.subr.mxu0 %v3798
    %3847 = vmatpush1.msra.mxu0 %v3797
    %3848 = vmatprep.subr.mxu0 %v3801
    %3849 = vmatpush1.msra.mxu0 %v3800
    %3850 = vmatprep.subr.mxu0 %v3804
    %3851 = vmatpush1.msra.mxu0 %v3803
    %3852 = vmatprep.subr.mxu0 %v3807
    %3853 = vmatpush1.msra.mxu0 %v3806
    %3854 = vmatprep.subr.mxu0 %v3810
    %3855 = vmatpush1.msra.mxu0 %v3809
    %3856 = vmatprep.subr.mxu0 %v3839
    %3857 = vmatpush1.msra.mxu0 %v3836
    %3858 = vmatprep.subr.mxu0 0.0
    %3859 = vmatpush1.msra.mxu0 0.0
    %3860 = vmatprep.subr.mxu0 0.0
    %3861 = vmatpush1.msra.mxu0 0.0
    %3862 = vmatprep.subr.mxu0 0.0
    %3863 = vmatpush1.msra.mxu0 0.0
    %3864 = vmatprep.subr.mxu0 0.0
    %3865 = vmatpush1.msra.mxu0 0.0
    %3866 = vmatprep.subr.mxu0 0.0
    %3867 = vmatpush1.msra.mxu0 0.0
    %3868 = vmatprep.subr.mxu0 0.0
    %3869 = vmatpush1.msra.mxu0 0.0
    %3870 = vmatprep.subr.mxu0 0.0
    %3871 = vmatpush1.msra.mxu0 0.0
    %3872 = vmatprep.subr.mxu0 0.0
    %3873 = vmatpush1.msra.mxu0 0.0
    %3874 = vmatprep.subr.mxu0 0.0
    %3875 = vmatpush1.msra.mxu0 0.0
    %3876 = vmatprep.subr.mxu0 0.0
    %3877 = vmatpush1.msra.mxu0 0.0
    %3878 = vmatprep.subr.mxu0 0.0
    %3879 = vmatpush1.msra.mxu0 0.0
    %3880 = vmatprep.subr.mxu0 0.0
    %3881 = vmatpush1.msra.mxu0 0.0
    %3882 = vmatprep.subr.mxu0 0.0
    %3883 = vmatpush1.msra.mxu0 0.0
    %3884 = vmatprep.subr.mxu0 0.0
    %3885 = vmatpush1.msra.mxu0 0.0
    %3886 = vmatprep.subr.mxu0 0.0
    %3887 = vmatpush1.msra.mxu0 0.0
    %3888 = vmatprep.subr.mxu0 0.0
    %3889 = vmatpush1.msra.mxu0 0.0
    %3890 = vmatprep.subr.mxu0 0.0
    %3891 = vmatpush1.msra.mxu0 0.0
    %3892 = vmatprep.subr.mxu0 0.0
    %3893 = vmatpush1.msra.mxu0 0.0
    %3894 = vmatprep.subr.mxu0 0.0
    %3895 = vmatpush1.msra.mxu0 0.0
    %3896 = vmatprep.subr.mxu0 0.0
    %3897 = vmatpush1.msra.mxu0 0.0
    %3898 = vmatprep.subr.mxu0 0.0
    %3899 = vmatpush1.msra.mxu0 0.0
    %3900 = vmatprep.subr.mxu0 0.0
    %3901 = vmatpush1.msra.mxu0 0.0
    %3902 = vmatprep.subr.mxu0 0.0
    %3903 = vmatpush1.msra.mxu0 0.0
    %3904 = vmatprep.subr.mxu0 0.0
    %3905 = vmatpush1.msra.mxu0 0.0
    %3906 = vmatprep.subr.mxu0 0.0
    %3907 = vmatpush1.msra.mxu0 0.0
    %3908 = vmatprep.mubr.f32.mxu0 0.0
    %3909 = vmatmul.mubr.f32.gmra.mrb[0].mxu0 %v3833
    %v3910 = vpop.f32.mrb[0].mxu0
    %v3911 = vadd.f32 %v3820, %v3910
    %v3912 = vpop.f32.mrb[0].mxu0
    %v3913 = vadd.f32 %v3824, %v3912
    %3914 = vdwg.mxu0
    %3915 = vmatprep.subr.mxu0 0.0
    %3916 = vmatpush1.msra.mxu0 %v3796
    %3917 = vmatprep.subr.mxu0 0.0
    %3918 = vmatpush1.msra.mxu0 %v3799
    %3919 = vmatprep.subr.mxu0 0.0
    %3920 = vmatpush1.msra.mxu0 %v3802
    %3921 = vmatprep.subr.mxu0 0.0
    %3922 = vmatpush1.msra.mxu0 %v3805
    %3923 = vmatprep.subr.mxu0 0.0
    %3924 = vmatpush1.msra.mxu0 %v3808
    %3925 = vmatprep.subr.mxu0 0.0
    %3926 = vmatpush1.msra.mxu0 %v3811
    %3927 = vmatprep.subr.mxu0 0.0
    %3928 = vmatpush1.msra.mxu0 %v3842
    %3929 = vmatprep.subr.mxu0 0.0
    %3930 = vmatpush1.msra.mxu0 0.0
    %3931 = vmatprep.subr.mxu0 0.0
    %3932 = vmatpush1.msra.mxu0 0.0
    %3933 = vmatprep.subr.mxu0 0.0
    %3934 = vmatpush1.msra.mxu0 0.0
    %3935 = vmatprep.subr.mxu0 0.0
    %3936 = vmatpush1.msra.mxu0 0.0
    %3937 = vmatprep.subr.mxu0 0.0
    %3938 = vmatpush1.msra.mxu0 0.0
    %3939 = vmatprep.subr.mxu0 0.0
    %3940 = vmatpush1.msra.mxu0 0.0
    %3941 = vmatprep.subr.mxu0 0.0
    %3942 = vmatpush1.msra.mxu0 0.0
    %3943 = vmatprep.subr.mxu0 0.0
    %3944 = vmatpush1.msra.mxu0 0.0
    %3945 = vmatprep.subr.mxu0 0.0
    %3946 = vmatpush1.msra.mxu0 0.0
    %3947 = vmatprep.subr.mxu0 0.0
    %3948 = vmatpush1.msra.mxu0 0.0
    %3949 = vmatprep.subr.mxu0 0.0
    %3950 = vmatpush1.msra.mxu0 0.0
    %3951 = vmatprep.subr.mxu0 0.0
    %3952 = vmatpush1.msra.mxu0 0.0
    %3953 = vmatprep.subr.mxu0 0.0
    %3954 = vmatpush1.msra.mxu0 0.0
    %3955 = vmatprep.subr.mxu0 0.0
    %3956 = vmatpush1.msra.mxu0 0.0
    %3957 = vmatprep.subr.mxu0 0.0
    %3958 = vmatpush1.msra.mxu0 0.0
    %3959 = vmatprep.subr.mxu0 0.0
    %3960 = vmatpush1.msra.mxu0 0.0
    %3961 = vmatprep.subr.mxu0 0.0
    %3962 = vmatpush1.msra.mxu0 0.0
    %3963 = vmatprep.subr.mxu0 0.0
    %3964 = vmatpush1.msra.mxu0 0.0
    %3965 = vmatprep.subr.mxu0 0.0
    %3966 = vmatpush1.msra.mxu0 0.0
    %3967 = vmatprep.subr.mxu0 0.0
    %3968 = vmatpush1.msra.mxu0 0.0
    %3969 = vmatprep.subr.mxu0 0.0
    %3970 = vmatpush1.msra.mxu0 0.0
    %3971 = vmatprep.subr.mxu0 0.0
    %3972 = vmatpush1.msra.mxu0 0.0
    %3973 = vmatprep.subr.mxu0 0.0
    %3974 = vmatpush1.msra.mxu0 0.0
    %3975 = vmatprep.subr.mxu0 0.0
    %3976 = vmatpush1.msra.mxu0 0.0
    %3977 = vmatprep.subr.mxu0 0.0
    %3978 = vmatpush1.msra.mxu0 0.0
    %3979 = vmatprep.mubr.f32.mxu0 0.0
    %3980 = vmatmul.mubr.f32.gmra.mrb[0].mxu0 %v3833
    %v3981 = vpop.f32.mrb[0].mxu0
    %v3982 = vadd.f32 %v3828, %v3981
    %v3983 = vpop.f32.mrb[0].mxu0
    %3984 = vdwg.mxu0
    %v3985 = vld [vmem:[#allocation47] sm:$0xff]
    %v3986 = vld [vmem:[#allocation47 + $0x8] sm:$0xff]
    %v3987 = vld [vmem:[#allocation47 + $0x10] sm:$0xff]
    %v3988 = vld [vmem:[#allocation47 + $0x18] sm:$0xff]
    %v3989 = vld [vmem:[#allocation47 + $0x20] sm:$0xff]
    %v3990 = vld [vmem:[#allocation47 + $0x28] sm:$0xff]
    %v3991 = vld [vmem:[#allocation47 + $0x30] sm:$0xff]
    %v3992 = vld [vmem:[#allocation47 + $0x38] sm:$0xff]
    %v3993 = vld [vmem:[#allocation47 + $0x40] sm:$0xff]
    %v3994 = vld [vmem:[#allocation47 + $0x48] sm:$0xff]
    %v3995 = vld [vmem:[#allocation47 + $0x50] sm:$0xff]
    %v3996 = vld [vmem:[#allocation47 + $0x58] sm:$0xff]
    %v3997 = vld [vmem:[#allocation47 + $0x60] sm:$0xff]
    %v3998 = vld [vmem:[#allocation47 + $0x68] sm:$0xff]
    %v3999 = vld [vmem:[#allocation47 + $0x70] sm:$0xff]
    %v4000 = vld [vmem:[#allocation47 + $0x78] sm:$0xff]
    %v4001 = vld [vmem:[#allocation47 + $0x80] sm:$0xff]
    %v4002 = vld [vmem:[#allocation47 + $0x88] sm:$0xff]
    %v4003 = vld [vmem:[#allocation47 + $0x90] sm:$0x3]
    %v4004 = vld [vmem:[#allocation47 + $0x98] sm:$0x3]
    %v4005 = vld [vmem:[#allocation47 + $0xa0] sm:$0x3]
    %v4006 = vld [vmem:[#allocation49] sm:$0x7]
    %v4008 = vlaneseq
    %v4009 = vshrl.u32 %v4008, 7
    %v4010 = vsub.s32 0, %v4009
    %v4011 = vrot.slane %v4006, %v4010
    %v4012 = vlaneseq
    %v4013 = vshrl.u32 %v4012, 7
    %v4014 = vsub.s32 1, %v4013
    %v4015 = vrot.slane %v4006, %v4014
    %v4016 = vlaneseq
    %v4017 = vshrl.u32 %v4016, 7
    %v4018 = vsub.s32 2, %v4017
    %v4019 = vrot.slane %v4006, %v4018
    %v4024 = vsel %vm1204, %v3793, 0
    %v4027 = vsel %vm1208, %v4003, 0
    %v4030 = vsel %vm1208, %v4004, 0
    %v4033 = vsel %vm1208, %v4005, 0
    %4035 = vmatprep.subr.mxu0 %v3986
    %4036 = vmatpush1.msra.mxu0 %v3985
    %4037 = vmatprep.subr.mxu0 %v3989
    %4038 = vmatpush1.msra.mxu0 %v3988
    %4039 = vmatprep.subr.mxu0 %v3992
    %4040 = vmatpush1.msra.mxu0 %v3991
    %4041 = vmatprep.subr.mxu0 %v3995
    %4042 = vmatpush1.msra.mxu0 %v3994
    %4043 = vmatprep.subr.mxu0 %v3998
    %4044 = vmatpush1.msra.mxu0 %v3997
    %4045 = vmatprep.subr.mxu0 %v4001
    %4046 = vmatpush1.msra.mxu0 %v4000
    %4047 = vmatprep.subr.mxu0 %v4030
    %4048 = vmatpush1.msra.mxu0 %v4027
    %4049 = vmatprep.subr.mxu0 0.0
    %4050 = vmatpush1.msra.mxu0 0.0
    %4051 = vmatprep.subr.mxu0 0.0
    %4052 = vmatpush1.msra.mxu0 0.0
    %4053 = vmatprep.subr.mxu0 0.0
    %4054 = vmatpush1.msra.mxu0 0.0
    %4055 = vmatprep.subr.mxu0 0.0
    %4056 = vmatpush1.msra.mxu0 0.0
    %4057 = vmatprep.subr.mxu0 0.0
    %4058 = vmatpush1.msra.mxu0 0.0
    %4059 = vmatprep.subr.mxu0 0.0
    %4060 = vmatpush1.msra.mxu0 0.0
    %4061 = vmatprep.subr.mxu0 0.0
    %4062 = vmatpush1.msra.mxu0 0.0
    %4063 = vmatprep.subr.mxu0 0.0
    %4064 = vmatpush1.msra.mxu0 0.0
    %4065 = vmatprep.subr.mxu0 0.0
    %4066 = vmatpush1.msra.mxu0 0.0
    %4067 = vmatprep.subr.mxu0 0.0
    %4068 = vmatpush1.msra.mxu0 0.0
    %4069 = vmatprep.subr.mxu0 0.0
    %4070 = vmatpush1.msra.mxu0 0.0
    %4071 = vmatprep.subr.mxu0 0.0
    %4072 = vmatpush1.msra.mxu0 0.0
    %4073 = vmatprep.subr.mxu0 0.0
    %4074 = vmatpush1.msra.mxu0 0.0
    %4075 = vmatprep.subr.mxu0 0.0
    %4076 = vmatpush1.msra.mxu0 0.0
    %4077 = vmatprep.subr.mxu0 0.0
    %4078 = vmatpush1.msra.mxu0 0.0
    %4079 = vmatprep.subr.mxu0 0.0
    %4080 = vmatpush1.msra.mxu0 0.0
    %4081 = vmatprep.subr.mxu0 0.0
    %4082 = vmatpush1.msra.mxu0 0.0
    %4083 = vmatprep.subr.mxu0 0.0
    %4084 = vmatpush1.msra.mxu0 0.0
    %4085 = vmatprep.subr.mxu0 0.0
    %4086 = vmatpush1.msra.mxu0 0.0
    %4087 = vmatprep.subr.mxu0 0.0
    %4088 = vmatpush1.msra.mxu0 0.0
    %4089 = vmatprep.subr.mxu0 0.0
    %4090 = vmatpush1.msra.mxu0 0.0
    %4091 = vmatprep.subr.mxu0 0.0
    %4092 = vmatpush1.msra.mxu0 0.0
    %4093 = vmatprep.subr.mxu0 0.0
    %4094 = vmatpush1.msra.mxu0 0.0
    %4095 = vmatprep.subr.mxu0 0.0
    %4096 = vmatpush1.msra.mxu0 0.0
    %4097 = vmatprep.subr.mxu0 0.0
    %4098 = vmatpush1.msra.mxu0 0.0
    %4099 = vmatprep.mubr.f32.mxu0 0.0
    %4100 = vmatmul.mubr.f32.gmra.mrb[0].mxu0 %v4024
    %v4101 = vpop.f32.mrb[0].mxu0
    %v4102 = vadd.f32 %v4011, %v4101
    %v4103 = vpop.f32.mrb[0].mxu0
    %v4104 = vadd.f32 %v4015, %v4103
    %4105 = vdwg.mxu0
    %4106 = vmatprep.subr.mxu0 0.0
    %4107 = vmatpush1.msra.mxu0 %v3987
    %4108 = vmatprep.subr.mxu0 0.0
    %4109 = vmatpush1.msra.mxu0 %v3990
    %4110 = vmatprep.subr.mxu0 0.0
    %4111 = vmatpush1.msra.mxu0 %v3993
    %4112 = vmatprep.subr.mxu0 0.0
    %4113 = vmatpush1.msra.mxu0 %v3996
    %4114 = vmatprep.subr.mxu0 0.0
    %4115 = vmatpush1.msra.mxu0 %v3999
    %4116 = vmatprep.subr.mxu0 0.0
    %4117 = vmatpush1.msra.mxu0 %v4002
    %4118 = vmatprep.subr.mxu0 0.0
    %4119 = vmatpush1.msra.mxu0 %v4033
    %4120 = vmatprep.subr.mxu0 0.0
    %4121 = vmatpush1.msra.mxu0 0.0
    %4122 = vmatprep.subr.mxu0 0.0
    %4123 = vmatpush1.msra.mxu0 0.0
    %4124 = vmatprep.subr.mxu0 0.0
    %4125 = vmatpush1.msra.mxu0 0.0
    %4126 = vmatprep.subr.mxu0 0.0
    %4127 = vmatpush1.msra.mxu0 0.0
    %4128 = vmatprep.subr.mxu0 0.0
    %4129 = vmatpush1.msra.mxu0 0.0
    %4130 = vmatprep.subr.mxu0 0.0
    %4131 = vmatpush1.msra.mxu0 0.0
    %4132 = vmatprep.subr.mxu0 0.0
    %4133 = vmatpush1.msra.mxu0 0.0
    %4134 = vmatprep.subr.mxu0 0.0
    %4135 = vmatpush1.msra.mxu0 0.0
    %4136 = vmatprep.subr.mxu0 0.0
    %4137 = vmatpush1.msra.mxu0 0.0
    %4138 = vmatprep.subr.mxu0 0.0
    %4139 = vmatpush1.msra.mxu0 0.0
    %4140 = vmatprep.subr.mxu0 0.0
    %4141 = vmatpush1.msra.mxu0 0.0
    %4142 = vmatprep.subr.mxu0 0.0
    %4143 = vmatpush1.msra.mxu0 0.0
    %4144 = vmatprep.subr.mxu0 0.0
    %4145 = vmatpush1.msra.mxu0 0.0
    %4146 = vmatprep.subr.mxu0 0.0
    %4147 = vmatpush1.msra.mxu0 0.0
    %4148 = vmatprep.subr.mxu0 0.0
    %4149 = vmatpush1.msra.mxu0 0.0
    %4150 = vmatprep.subr.mxu0 0.0
    %4151 = vmatpush1.msra.mxu0 0.0
    %4152 = vmatprep.subr.mxu0 0.0
    %4153 = vmatpush1.msra.mxu0 0.0
    %4154 = vmatprep.subr.mxu0 0.0
    %4155 = vmatpush1.msra.mxu0 0.0
    %4156 = vmatprep.subr.mxu0 0.0
    %4157 = vmatpush1.msra.mxu0 0.0
    %4158 = vmatprep.subr.mxu0 0.0
    %4159 = vmatpush1.msra.mxu0 0.0
    %4160 = vmatprep.subr.mxu0 0.0
    %4161 = vmatpush1.msra.mxu0 0.0
    %4162 = vmatprep.subr.mxu0 0.0
    %4163 = vmatpush1.msra.mxu0 0.0
    %4164 = vmatprep.subr.mxu0 0.0
    %4165 = vmatpush1.msra.mxu0 0.0
    %4166 = vmatprep.subr.mxu0 0.0
    %4167 = vmatpush1.msra.mxu0 0.0
    %4168 = vmatprep.subr.mxu0 0.0
    %4169 = vmatpush1.msra.mxu0 0.0
    %4170 = vmatprep.mubr.f32.mxu0 0.0
    %4171 = vmatmul.mubr.f32.gmra.mrb[0].mxu0 %v4024
    %v4172 = vpop.f32.mrb[0].mxu0
    %v4173 = vadd.f32 %v4019, %v4172
    %v4174 = vpop.f32.mrb[0].mxu0
    %4175 = vdwg.mxu0
    %v4176 = vadd.f32 %v3911, %v4102
    %v4177 = vxor.u32 %v4176, 2147483648
    %v4178 = vmul.f32 %v4177, 1.442695
    %v4179 = vpow.pop %v4178
    %v4180 = vadd.f32 %v4179, 1.0
    %v4181 = vrcp.pop %v4180
    %v4182 = vmul.f32 1.0, %v4181
    %v4183 = vadd.f32 %v3913, %v4104
    %v4184 = vxor.u32 %v4183, 2147483648
    %v4185 = vmul.f32 %v4184, 1.442695
    %v4186 = vpow.pop %v4185
    %v4187 = vadd.f32 %v4186, 1.0
    %v4188 = vrcp.pop %v4187
    %v4189 = vmul.f32 1.0, %v4188
    %v4190 = vmul.f32 %v4182, %v4173
    %v4191 = vadd.f32 %v3982, %v4190
    %v4192 = vtanh.pop %v4191
    %v4193 = vsub.f32 1.0, %v4189
    %v4194 = vmul.f32 %v4193, %v4192
    %v4195 = vmul.f32 %v4189, %v3793
    %v4196 = vadd.f32 %v4194, %v4195
    %vm4197 = vcmask 402432
    %4198 = vst.msk [vmem:[%s125] sm:$0x3] %vm4197, %v3792
    %4200 = vrot.lane.b32.xlu0 %v4196, 50
    %v4201 = vpop.permute.xlu0 %4200
    %vm4203 = vcmask 812432
    %4204 = vst.msk [vmem:[%s125] sm:$0x3] %vm4203, %v4201
    %v4205 = vld [vmem:[#allocation50] sm:$0xff]
    %v4206 = vld [vmem:[#allocation50 + $0x8] sm:$0xff]
    %v4207 = vld [vmem:[#allocation50 + $0x10] sm:$0xff]
    %v4208 = vld [vmem:[#allocation50 + $0x18] sm:$0xff]
    %v4209 = vld [vmem:[#allocation50 + $0x20] sm:$0xff]
    %v4210 = vld [vmem:[#allocation50 + $0x28] sm:$0xff]
    %v4211 = vld [vmem:[#allocation50 + $0x30] sm:$0xff]
    %v4212 = vld [vmem:[#allocation50 + $0x38] sm:$0xff]
    %v4213 = vld [vmem:[#allocation50 + $0x40] sm:$0xff]
    %v4214 = vld [vmem:[#allocation50 + $0x48] sm:$0xff]
    %v4215 = vld [vmem:[#allocation50 + $0x50] sm:$0xff]
    %v4216 = vld [vmem:[#allocation50 + $0x58] sm:$0xff]
    %v4217 = vld [vmem:[#allocation50 + $0x60] sm:$0xff]
    %v4218 = vld [vmem:[#allocation50 + $0x68] sm:$0xff]
    %v4219 = vld [vmem:[#allocation50 + $0x70] sm:$0xff]
    %v4220 = vld [vmem:[#allocation50 + $0x78] sm:$0xff]
    %v4221 = vld [vmem:[#allocation50 + $0x80] sm:$0xff]
    %v4222 = vld [vmem:[#allocation50 + $0x88] sm:$0xff]
    %v4223 = vld [vmem:[#allocation50 + $0x90] sm:$0x3]
    %v4224 = vld [vmem:[#allocation50 + $0x98] sm:$0x3]
    %v4225 = vld [vmem:[#allocation50 + $0xa0] sm:$0x3]
    %v4226 = vld [vmem:[#allocation52] sm:$0x7]
    %v4228 = vlaneseq
    %v4229 = vshrl.u32 %v4228, 7
    %v4230 = vsub.s32 0, %v4229
    %v4231 = vrot.slane %v4226, %v4230
    %v4232 = vlaneseq
    %v4233 = vshrl.u32 %v4232, 7
    %v4234 = vsub.s32 1, %v4233
    %v4235 = vrot.slane %v4226, %v4234
    %v4236 = vlaneseq
    %v4237 = vshrl.u32 %v4236, 7
    %v4238 = vsub.s32 2, %v4237
    %v4239 = vrot.slane %v4226, %v4238
    %v4243 = vsel %vm1204, %v4196, 0
    %v4246 = vsel %vm1208, %v4223, 0
    %v4249 = vsel %vm1208, %v4224, 0
    %v4252 = vsel %vm1208, %v4225, 0
    %4254 = vmatprep.subr.mxu0 %v4206
    %4255 = vmatpush1.msra.mxu0 %v4205
    %4256 = vmatprep.subr.mxu0 %v4209
    %4257 = vmatpush1.msra.mxu0 %v4208
    %4258 = vmatprep.subr.mxu0 %v4212
    %4259 = vmatpush1.msra.mxu0 %v4211
    %4260 = vmatprep.subr.mxu0 %v4215
    %4261 = vmatpush1.msra.mxu0 %v4214
    %4262 = vmatprep.subr.mxu0 %v4218
    %4263 = vmatpush1.msra.mxu0 %v4217
    %4264 = vmatprep.subr.mxu0 %v4221
    %4265 = vmatpush1.msra.mxu0 %v4220
    %4266 = vmatprep.subr.mxu0 %v4249
    %4267 = vmatpush1.msra.mxu0 %v4246
    %4268 = vmatprep.subr.mxu0 0.0
    %4269 = vmatpush1.msra.mxu0 0.0
    %4270 = vmatprep.subr.mxu0 0.0
    %4271 = vmatpush1.msra.mxu0 0.0
    %4272 = vmatprep.subr.mxu0 0.0
    %4273 = vmatpush1.msra.mxu0 0.0
    %4274 = vmatprep.subr.mxu0 0.0
    %4275 = vmatpush1.msra.mxu0 0.0
    %4276 = vmatprep.subr.mxu0 0.0
    %4277 = vmatpush1.msra.mxu0 0.0
    %4278 = vmatprep.subr.mxu0 0.0
    %4279 = vmatpush1.msra.mxu0 0.0
    %4280 = vmatprep.subr.mxu0 0.0
    %4281 = vmatpush1.msra.mxu0 0.0
    %4282 = vmatprep.subr.mxu0 0.0
    %4283 = vmatpush1.msra.mxu0 0.0
    %4284 = vmatprep.subr.mxu0 0.0
    %4285 = vmatpush1.msra.mxu0 0.0
    %4286 = vmatprep.subr.mxu0 0.0
    %4287 = vmatpush1.msra.mxu0 0.0
    %4288 = vmatprep.subr.mxu0 0.0
    %4289 = vmatpush1.msra.mxu0 0.0
    %4290 = vmatprep.subr.mxu0 0.0
    %4291 = vmatpush1.msra.mxu0 0.0
    %4292 = vmatprep.subr.mxu0 0.0
    %4293 = vmatpush1.msra.mxu0 0.0
    %4294 = vmatprep.subr.mxu0 0.0
    %4295 = vmatpush1.msra.mxu0 0.0
    %4296 = vmatprep.subr.mxu0 0.0
    %4297 = vmatpush1.msra.mxu0 0.0
    %4298 = vmatprep.subr.mxu0 0.0
    %4299 = vmatpush1.msra.mxu0 0.0
    %4300 = vmatprep.subr.mxu0 0.0
    %4301 = vmatpush1.msra.mxu0 0.0
    %4302 = vmatprep.subr.mxu0 0.0
    %4303 = vmatpush1.msra.mxu0 0.0
    %4304 = vmatprep.subr.mxu0 0.0
    %4305 = vmatpush1.msra.mxu0 0.0
    %4306 = vmatprep.subr.mxu0 0.0
    %4307 = vmatpush1.msra.mxu0 0.0
    %4308 = vmatprep.subr.mxu0 0.0
    %4309 = vmatpush1.msra.mxu0 0.0
    %4310 = vmatprep.subr.mxu0 0.0
    %4311 = vmatpush1.msra.mxu0 0.0
    %4312 = vmatprep.subr.mxu0 0.0
    %4313 = vmatpush1.msra.mxu0 0.0
    %4314 = vmatprep.subr.mxu0 0.0
    %4315 = vmatpush1.msra.mxu0 0.0
    %4316 = vmatprep.subr.mxu0 0.0
    %4317 = vmatpush1.msra.mxu0 0.0
    %4318 = vmatprep.mubr.f32.mxu0 0.0
    %4319 = vmatmul.mubr.f32.gmra.mrb[0].mxu0 %v4243
    %v4320 = vpop.f32.mrb[0].mxu0
    %v4321 = vadd.f32 %v4231, %v4320
    %v4322 = vpop.f32.mrb[0].mxu0
    %v4323 = vadd.f32 %v4235, %v4322
    %4324 = vdwg.mxu0
    %4325 = vmatprep.subr.mxu0 0.0
    %4326 = vmatpush1.msra.mxu0 %v4207
    %4327 = vmatprep.subr.mxu0 0.0
    %4328 = vmatpush1.msra.mxu0 %v4210
    %4329 = vmatprep.subr.mxu0 0.0
    %4330 = vmatpush1.msra.mxu0 %v4213
    %4331 = vmatprep.subr.mxu0 0.0
    %4332 = vmatpush1.msra.mxu0 %v4216
    %4333 = vmatprep.subr.mxu0 0.0
    %4334 = vmatpush1.msra.mxu0 %v4219
    %4335 = vmatprep.subr.mxu0 0.0
    %4336 = vmatpush1.msra.mxu0 %v4222
    %4337 = vmatprep.subr.mxu0 0.0
    %4338 = vmatpush1.msra.mxu0 %v4252
    %4339 = vmatprep.subr.mxu0 0.0
    %4340 = vmatpush1.msra.mxu0 0.0
    %4341 = vmatprep.subr.mxu0 0.0
    %4342 = vmatpush1.msra.mxu0 0.0
    %4343 = vmatprep.subr.mxu0 0.0
    %4344 = vmatpush1.msra.mxu0 0.0
    %4345 = vmatprep.subr.mxu0 0.0
    %4346 = vmatpush1.msra.mxu0 0.0
    %4347 = vmatprep.subr.mxu0 0.0
    %4348 = vmatpush1.msra.mxu0 0.0
    %4349 = vmatprep.subr.mxu0 0.0
    %4350 = vmatpush1.msra.mxu0 0.0
    %4351 = vmatprep.subr.mxu0 0.0
    %4352 = vmatpush1.msra.mxu0 0.0
    %4353 = vmatprep.subr.mxu0 0.0
    %4354 = vmatpush1.msra.mxu0 0.0
    %4355 = vmatprep.subr.mxu0 0.0
    %4356 = vmatpush1.msra.mxu0 0.0
    %4357 = vmatprep.subr.mxu0 0.0
    %4358 = vmatpush1.msra.mxu0 0.0
    %4359 = vmatprep.subr.mxu0 0.0
    %4360 = vmatpush1.msra.mxu0 0.0
    %4361 = vmatprep.subr.mxu0 0.0
    %4362 = vmatpush1.msra.mxu0 0.0
    %4363 = vmatprep.subr.mxu0 0.0
    %4364 = vmatpush1.msra.mxu0 0.0
    %4365 = vmatprep.subr.mxu0 0.0
    %4366 = vmatpush1.msra.mxu0 0.0
    %4367 = vmatprep.subr.mxu0 0.0
    %4368 = vmatpush1.msra.mxu0 0.0
    %4369 = vmatprep.subr.mxu0 0.0
    %4370 = vmatpush1.msra.mxu0 0.0
    %4371 = vmatprep.subr.mxu0 0.0
    %4372 = vmatpush1.msra.mxu0 0.0
    %4373 = vmatprep.subr.mxu0 0.0
    %4374 = vmatpush1.msra.mxu0 0.0
    %4375 = vmatprep.subr.mxu0 0.0
    %4376 = vmatpush1.msra.mxu0 0.0
    %4377 = vmatprep.subr.mxu0 0.0
    %4378 = vmatpush1.msra.mxu0 0.0
    %4379 = vmatprep.subr.mxu0 0.0
    %4380 = vmatpush1.msra.mxu0 0.0
    %4381 = vmatprep.subr.mxu0 0.0
    %4382 = vmatpush1.msra.mxu0 0.0
    %4383 = vmatprep.subr.mxu0 0.0
    %4384 = vmatpush1.msra.mxu0 0.0
    %4385 = vmatprep.subr.mxu0 0.0
    %4386 = vmatpush1.msra.mxu0 0.0
    %4387 = vmatprep.subr.mxu0 0.0
    %4388 = vmatpush1.msra.mxu0 0.0
    %4389 = vmatprep.mubr.f32.mxu0 0.0
    %4390 = vmatmul.mubr.f32.gmra.mrb[0].mxu0 %v4243
    %v4391 = vpop.f32.mrb[0].mxu0
    %v4392 = vadd.f32 %v4239, %v4391
    %v4393 = vpop.f32.mrb[0].mxu0
    %4394 = vdwg.mxu0
    %vm4395 = vcmp.gt.f32.partialorder %v4321, 0.0
    %vm4396 = vcmp.gt.f32.partialorder %v4323, 0.0
    %vm4397 = vcmp.gt.f32.partialorder %v4392, 0.0
    %v4398 = vmul.f32 %v4321, 0.01
    %v4399 = vmul.f32 %v4323, 0.01
    %v4400 = vmul.f32 %v4392, 0.01
    %v4401 = vsel %vm4395, %v4321, %v4398
    %v4402 = vsel %vm4396, %v4323, %v4399
    %v4403 = vsel %vm4397, %v4392, %v4400
    %v4404 = vld [vmem:[%s95] sm:$0xff]
    %v4405 = vld [vmem:[%s95 + $0x8] sm:$0xff]
    %v4406 = vld [vmem:[%s95 + $0x10] sm:$0xff]
    %v4407 = vld [vmem:[%s95 + $0x18] sm:$0xff]
    %v4408 = vld [vmem:[%s95 + $0x20] sm:$0xff]
    %v4409 = vld [vmem:[%s95 + $0x28] sm:$0xff]
    %v4410 = vld [vmem:[%s95 + $0x30] sm:$0xff]
    %v4411 = vld [vmem:[%s95 + $0x38] sm:$0xff]
    %v4412 = vld [vmem:[%s95 + $0x40] sm:$0xff]
    %v4413 = vld [vmem:[%s95 + $0x48] sm:$0xff]
    %v4414 = vld [vmem:[%s95 + $0x50] sm:$0xff]
    %v4415 = vld [vmem:[%s95 + $0x58] sm:$0xff]
    %v4416 = vld [vmem:[%s95 + $0x60] sm:$0xff]
    %v4417 = vld [vmem:[%s95 + $0x68] sm:$0xff]
    %v4418 = vld [vmem:[%s95 + $0x70] sm:$0xff]
    %v4419 = vld [vmem:[%s95 + $0x78] sm:$0xff]
    %v4420 = vld [vmem:[%s95 + $0x80] sm:$0xff]
    %v4421 = vld [vmem:[%s95 + $0x88] sm:$0xff]
    %v4422 = vld [vmem:[%s95 + $0x90] sm:$0xff]
    %v4423 = vld [vmem:[%s95 + $0x98] sm:$0xff]
    %v4424 = vld [vmem:[%s95 + $0xa0] sm:$0xff]
    %v4425 = vld [vmem:[%s95 + $0xa8] sm:$0xff]
    %v4426 = vld [vmem:[%s95 + $0xb0] sm:$0xff]
    %v4427 = vld [vmem:[%s95 + $0xb8] sm:$0xff]
    %v4428 = vld [vmem:[%s95 + $0xc0] sm:$0xff]
    %v4429 = vld [vmem:[%s95 + $0xc8] sm:$0xff]
    %v4430 = vld [vmem:[%s95 + $0xd0] sm:$0xff]
    %v4431 = vld [vmem:[%s95 + $0xd8] sm:$0xff]
    %v4432 = vld [vmem:[%s95 + $0xe0] sm:$0xff]
    %v4433 = vld [vmem:[%s95 + $0xe8] sm:$0xff]
    %v4434 = vld [vmem:[%s95 + $0xf0] sm:$0xff]
    %v4435 = vld [vmem:[%s95 + $0xf8] sm:$0xff]
    %v4436 = vld [vmem:[%s95 + $0x100] sm:$0xff]
    %v4437 = vld [vmem:[%s95 + $0x108] sm:$0xff]
    %v4438 = vld [vmem:[%s95 + $0x110] sm:$0xff]
    %v4439 = vld [vmem:[%s95 + $0x118] sm:$0xff]
    %v4440 = vld [vmem:[%s95 + $0x120] sm:$0xff]
    %v4441 = vld [vmem:[%s95 + $0x128] sm:$0xff]
    %v4442 = vld [vmem:[%s95 + $0x130] sm:$0xff]
    %v4443 = vld [vmem:[%s95 + $0x138] sm:$0xff]
    %v4444 = vld [vmem:[%s95 + $0x140] sm:$0xff]
    %v4445 = vld [vmem:[%s95 + $0x148] sm:$0xff]
    %v4446 = vld [vmem:[%s95 + $0x150] sm:$0xff]
    %v4447 = vld [vmem:[%s95 + $0x158] sm:$0xff]
    %v4448 = vld [vmem:[%s95 + $0x160] sm:$0xff]
    %v4449 = vld [vmem:[%s95 + $0x168] sm:$0xff]
    %v4450 = vld [vmem:[%s95 + $0x170] sm:$0xff]
    %v4451 = vld [vmem:[%s95 + $0x178] sm:$0xff]
    %v4452 = vld [vmem:[%s95 + $0x180] sm:$0xff]
    %v4453 = vld [vmem:[%s95 + $0x188] sm:$0xff]
    %v4454 = vld [vmem:[%s95 + $0x190] sm:$0xff]
    %v4455 = vld [vmem:[%s95 + $0x198] sm:$0xff]
    %v4456 = vld [vmem:[%s95 + $0x1a0] sm:$0xff]
    %v4457 = vld [vmem:[%s95 + $0x1a8] sm:$0xff]
    %v4458 = vld [vmem:[%s95 + $0x1b0] sm:$0xff]
    %v4459 = vld [vmem:[%s95 + $0x1b8] sm:$0xff]
    %v4460 = vld [vmem:[%s95 + $0x1c0] sm:$0xff]
    %v4461 = vld [vmem:[%s95 + $0x1c8] sm:$0xff]
    %v4462 = vld [vmem:[%s95 + $0x1d0] sm:$0xff]
    %v4463 = vld [vmem:[%s95 + $0x1d8] sm:$0xff]
    %v4464 = vld [vmem:[%s95 + $0x1e0] sm:$0xff]
    %v4465 = vld [vmem:[%s95 + $0x1e8] sm:$0xff]
    %v4466 = vld [vmem:[%s95 + $0x1f0] sm:$0xff]
    %v4467 = vld [vmem:[%s95 + $0x1f8] sm:$0xff]
    %v4468 = vld [vmem:[%s95 + $0x200] sm:$0xff]
    %v4469 = vld [vmem:[%s95 + $0x208] sm:$0xff]
    %v4470 = vld [vmem:[%s95 + $0x210] sm:$0xff]
    %v4471 = vld [vmem:[%s95 + $0x218] sm:$0xff]
    %v4472 = vld [vmem:[%s95 + $0x220] sm:$0xff]
    %v4473 = vld [vmem:[%s95 + $0x228] sm:$0xff]
    %v4474 = vld [vmem:[%s95 + $0x230] sm:$0xff]
    %v4475 = vld [vmem:[%s95 + $0x238] sm:$0xff]
    %v4476 = vld [vmem:[%s95 + $0x240] sm:$0xff]
    %v4477 = vld [vmem:[%s95 + $0x248] sm:$0xff]
    %v4478 = vld [vmem:[%s95 + $0x250] sm:$0xff]
    %v4479 = vld [vmem:[%s95 + $0x258] sm:$0xff]
    %v4480 = vld [vmem:[%s95 + $0x260] sm:$0xff]
    %v4481 = vld [vmem:[%s95 + $0x268] sm:$0xff]
    %v4482 = vld [vmem:[%s95 + $0x270] sm:$0xff]
    %v4483 = vld [vmem:[%s95 + $0x278] sm:$0xff]
    %v4484 = vld [vmem:[%s95 + $0x280] sm:$0xff]
    %v4485 = vld [vmem:[%s95 + $0x288] sm:$0xff]
    %v4486 = vld [vmem:[%s95 + $0x290] sm:$0xff]
    %v4487 = vld [vmem:[%s95 + $0x298] sm:$0xff]
    %v4488 = vld [vmem:[%s95 + $0x2a0] sm:$0xff]
    %v4489 = vld [vmem:[%s95 + $0x2a8] sm:$0xff]
    %v4490 = vld [vmem:[%s95 + $0x2b0] sm:$0xff]
    %v4491 = vld [vmem:[%s95 + $0x2b8] sm:$0xff]
    %v4492 = vld [vmem:[%s95 + $0x2c0] sm:$0xff]
    %v4493 = vld [vmem:[%s95 + $0x2c8] sm:$0xff]
    %v4494 = vld [vmem:[%s95 + $0x2d0] sm:$0xff]
    %v4495 = vld [vmem:[%s95 + $0x2d8] sm:$0xff]
    %v4496 = vld [vmem:[%s95 + $0x2e0] sm:$0xff]
    %v4497 = vld [vmem:[%s95 + $0x2e8] sm:$0xff]
    %v4498 = vld [vmem:[%s95 + $0x2f0] sm:$0xff]
    %v4499 = vld [vmem:[%s95 + $0x2f8] sm:$0xff]
    %v4500 = vld [vmem:[%s95 + $0x300] sm:$0xff]
    %v4501 = vld [vmem:[%s95 + $0x308] sm:$0xff]
    %v4502 = vld [vmem:[%s95 + $0x310] sm:$0xff]
    %v4503 = vld [vmem:[%s95 + $0x318] sm:$0xff]
    %v4504 = vld [vmem:[%s95 + $0x320] sm:$0xff]
    %v4505 = vld [vmem:[%s95 + $0x328] sm:$0xff]
    %v4506 = vld [vmem:[%s95 + $0x330] sm:$0xff]
    %v4507 = vld [vmem:[%s95 + $0x338] sm:$0xff]
    %v4508 = vld [vmem:[%s95 + $0x340] sm:$0xff]
    %v4509 = vld [vmem:[%s95 + $0x348] sm:$0xff]
    %v4510 = vld [vmem:[%s95 + $0x350] sm:$0xff]
    %v4511 = vld [vmem:[%s95 + $0x358] sm:$0xff]
    %v4512 = vld [vmem:[%s95 + $0x360] sm:$0xff]
    %v4513 = vld [vmem:[%s95 + $0x368] sm:$0xff]
    %v4514 = vld [vmem:[%s95 + $0x370] sm:$0xff]
    %v4515 = vld [vmem:[%s95 + $0x378] sm:$0xff]
    %v4516 = vld [vmem:[%s95 + $0x380] sm:$0xff]
    %v4517 = vld [vmem:[%s95 + $0x388] sm:$0xff]
    %v4518 = vld [vmem:[%s95 + $0x390] sm:$0xff]
    %v4519 = vld [vmem:[%s95 + $0x398] sm:$0xff]
    %v4520 = vld [vmem:[%s95 + $0x3a0] sm:$0xff]
    %v4521 = vld [vmem:[%s95 + $0x3a8] sm:$0xff]
    %v4522 = vld [vmem:[%s95 + $0x3b0] sm:$0xff]
    %v4523 = vld [vmem:[%s95 + $0x3b8] sm:$0xff]
    %v4524 = vld [vmem:[#allocation53] sm:$0x7]
    %v4526 = vlaneseq
    %v4527 = vshrl.u32 %v4526, 7
    %v4528 = vsub.s32 0, %v4527
    %v4529 = vrot.slane %v4524, %v4528
    %v4530 = vlaneseq
    %v4531 = vshrl.u32 %v4530, 7
    %v4532 = vsub.s32 1, %v4531
    %v4533 = vrot.slane %v4524, %v4532
    %v4534 = vlaneseq
    %v4535 = vshrl.u32 %v4534, 7
    %v4536 = vsub.s32 2, %v4535
    %v4537 = vrot.slane %v4524, %v4536
    %v4542 = vsel %vm1300, %v4403, 0
    %4544 = vmatprep.subr.mxu0 %v4405
    %4545 = vmatpush1.msra.mxu0 %v4404
    %4546 = vmatprep.subr.mxu0 %v4408
    %4547 = vmatpush1.msra.mxu0 %v4407
    %4548 = vmatprep.subr.mxu0 %v4411
    %4549 = vmatpush1.msra.mxu0 %v4410
    %4550 = vmatprep.subr.mxu0 %v4414
    %4551 = vmatpush1.msra.mxu0 %v4413
    %4552 = vmatprep.subr.mxu0 %v4417
    %4553 = vmatpush1.msra.mxu0 %v4416
    %4554 = vmatprep.subr.mxu0 %v4420
    %4555 = vmatpush1.msra.mxu0 %v4419
    %4556 = vmatprep.subr.mxu0 %v4423
    %4557 = vmatpush1.msra.mxu0 %v4422
    %4558 = vmatprep.subr.mxu0 %v4426
    %4559 = vmatpush1.msra.mxu0 %v4425
    %4560 = vmatprep.subr.mxu0 %v4429
    %4561 = vmatpush1.msra.mxu0 %v4428
    %4562 = vmatprep.subr.mxu0 %v4432
    %4563 = vmatpush1.msra.mxu0 %v4431
    %4564 = vmatprep.subr.mxu0 %v4435
    %4565 = vmatpush1.msra.mxu0 %v4434
    %4566 = vmatprep.subr.mxu0 %v4438
    %4567 = vmatpush1.msra.mxu0 %v4437
    %4568 = vmatprep.subr.mxu0 %v4441
    %4569 = vmatpush1.msra.mxu0 %v4440
    %4570 = vmatprep.subr.mxu0 %v4444
    %4571 = vmatpush1.msra.mxu0 %v4443
    %4572 = vmatprep.subr.mxu0 %v4447
    %4573 = vmatpush1.msra.mxu0 %v4446
    %4574 = vmatprep.subr.mxu0 %v4450
    %4575 = vmatpush1.msra.mxu0 %v4449
    %4576 = vmatprep.subr.mxu0 %v4453
    %4577 = vmatpush1.msra.mxu0 %v4452
    %4578 = vmatprep.subr.mxu0 %v4456
    %4579 = vmatpush1.msra.mxu0 %v4455
    %4580 = vmatprep.subr.mxu0 %v4459
    %4581 = vmatpush1.msra.mxu0 %v4458
    %4582 = vmatprep.subr.mxu0 %v4462
    %4583 = vmatpush1.msra.mxu0 %v4461
    %4584 = vmatprep.subr.mxu0 %v4465
    %4585 = vmatpush1.msra.mxu0 %v4464
    %4586 = vmatprep.subr.mxu0 %v4468
    %4587 = vmatpush1.msra.mxu0 %v4467
    %4588 = vmatprep.subr.mxu0 %v4471
    %4589 = vmatpush1.msra.mxu0 %v4470
    %4590 = vmatprep.subr.mxu0 %v4474
    %4591 = vmatpush1.msra.mxu0 %v4473
    %4592 = vmatprep.subr.mxu0 %v4477
    %4593 = vmatpush1.msra.mxu0 %v4476
    %4594 = vmatprep.subr.mxu0 %v4480
    %4595 = vmatpush1.msra.mxu0 %v4479
    %4596 = vmatprep.subr.mxu0 %v4483
    %4597 = vmatpush1.msra.mxu0 %v4482
    %4598 = vmatprep.subr.mxu0 %v4486
    %4599 = vmatpush1.msra.mxu0 %v4485
    %4600 = vmatprep.subr.mxu0 %v4489
    %4601 = vmatpush1.msra.mxu0 %v4488
    %4602 = vmatprep.subr.mxu0 %v4492
    %4603 = vmatpush1.msra.mxu0 %v4491
    %4604 = vmatprep.subr.mxu0 %v4495
    %4605 = vmatpush1.msra.mxu0 %v4494
    %4606 = vmatprep.subr.mxu0 %v4498
    %4607 = vmatpush1.msra.mxu0 %v4497
    %4608 = vmatprep.mubr.f32.mxu0 %v4402
    %4609 = vmatmul.mubr.f32.gmra.mrb[0].mxu0 %v4401
    %v4610 = vpop.f32.mrb[0].mxu0
    %v4611 = vadd.f32 %v4529, %v4610
    %v4612 = vpop.f32.mrb[0].mxu0
    %v4613 = vadd.f32 %v4533, %v4612
    %4614 = vdwg.mxu0
    %4615 = vmatprep.subr.mxu0 %v4501
    %4616 = vmatpush1.msra.mxu0 %v4500
    %4617 = vmatprep.subr.mxu0 %v4504
    %4618 = vmatpush1.msra.mxu0 %v4503
    %4619 = vmatprep.subr.mxu0 %v4507
    %4620 = vmatpush1.msra.mxu0 %v4506
    %4621 = vmatprep.subr.mxu0 %v4510
    %4622 = vmatpush1.msra.mxu0 %v4509
    %4623 = vmatprep.subr.mxu0 %v4513
    %4624 = vmatpush1.msra.mxu0 %v4512
    %4625 = vmatprep.subr.mxu0 %v4516
    %4626 = vmatpush1.msra.mxu0 %v4515
    %4627 = vmatprep.subr.mxu0 %v4519
    %4628 = vmatpush1.msra.mxu0 %v4518
    %4629 = vmatprep.subr.mxu0 %v4522
    %4630 = vmatpush1.msra.mxu0 %v4521
    %4631 = vmatprep.subr.mxu0 0.0
    %4632 = vmatpush1.msra.mxu0 0.0
    %4633 = vmatprep.subr.mxu0 0.0
    %4634 = vmatpush1.msra.mxu0 0.0
    %4635 = vmatprep.subr.mxu0 0.0
    %4636 = vmatpush1.msra.mxu0 0.0
    %4637 = vmatprep.subr.mxu0 0.0
    %4638 = vmatpush1.msra.mxu0 0.0
    %4639 = vmatprep.subr.mxu0 0.0
    %4640 = vmatpush1.msra.mxu0 0.0
    %4641 = vmatprep.subr.mxu0 0.0
    %4642 = vmatpush1.msra.mxu0 0.0
    %4643 = vmatprep.subr.mxu0 0.0
    %4644 = vmatpush1.msra.mxu0 0.0
    %4645 = vmatprep.subr.mxu0 0.0
    %4646 = vmatpush1.msra.mxu0 0.0
    %4647 = vmatprep.subr.mxu0 0.0
    %4648 = vmatpush1.msra.mxu0 0.0
    %4649 = vmatprep.subr.mxu0 0.0
    %4650 = vmatpush1.msra.mxu0 0.0
    %4651 = vmatprep.subr.mxu0 0.0
    %4652 = vmatpush1.msra.mxu0 0.0
    %4653 = vmatprep.subr.mxu0 0.0
    %4654 = vmatpush1.msra.mxu0 0.0
    %4655 = vmatprep.subr.mxu0 0.0
    %4656 = vmatpush1.msra.mxu0 0.0
    %4657 = vmatprep.subr.mxu0 0.0
    %4658 = vmatpush1.msra.mxu0 0.0
    %4659 = vmatprep.subr.mxu0 0.0
    %4660 = vmatpush1.msra.mxu0 0.0
    %4661 = vmatprep.subr.mxu0 0.0
    %4662 = vmatpush1.msra.mxu0 0.0
    %4663 = vmatprep.subr.mxu0 0.0
    %4664 = vmatpush1.msra.mxu0 0.0
    %4665 = vmatprep.subr.mxu0 0.0
    %4666 = vmatpush1.msra.mxu0 0.0
    %4667 = vmatprep.subr.mxu0 0.0
    %4668 = vmatpush1.msra.mxu0 0.0
    %4669 = vmatprep.subr.mxu0 0.0
    %4670 = vmatpush1.msra.mxu0 0.0
    %4671 = vmatprep.subr.mxu0 0.0
    %4672 = vmatpush1.msra.mxu0 0.0
    %4673 = vmatprep.subr.mxu0 0.0
    %4674 = vmatpush1.msra.mxu0 0.0
    %4675 = vmatprep.subr.mxu0 0.0
    %4676 = vmatpush1.msra.mxu0 0.0
    %4677 = vmatprep.subr.mxu0 0.0
    %4678 = vmatpush1.msra.mxu0 0.0
    %4679 = vmatprep.mubr.f32.mxu0 0.0
    %4680 = vmatmul.mubr.f32.gmra.mrb[0].mxu0 %v4542
    %v4681 = vpop.f32.mrb[0].mxu0
    %v4682 = vadd.f32 %v4611, %v4681
    %v4683 = vpop.f32.mrb[0].mxu0
    %v4684 = vadd.f32 %v4613, %v4683
    %4685 = vdwg.mxu0
    %4686 = vmatprep.subr.mxu0 0.0
    %4687 = vmatpush1.msra.mxu0 %v4406
    %4688 = vmatprep.subr.mxu0 0.0
    %4689 = vmatpush1.msra.mxu0 %v4409
    %4690 = vmatprep.subr.mxu0 0.0
    %4691 = vmatpush1.msra.mxu0 %v4412
    %4692 = vmatprep.subr.mxu0 0.0
    %4693 = vmatpush1.msra.mxu0 %v4415
    %4694 = vmatprep.subr.mxu0 0.0
    %4695 = vmatpush1.msra.mxu0 %v4418
    %4696 = vmatprep.subr.mxu0 0.0
    %4697 = vmatpush1.msra.mxu0 %v4421
    %4698 = vmatprep.subr.mxu0 0.0
    %4699 = vmatpush1.msra.mxu0 %v4424
    %4700 = vmatprep.subr.mxu0 0.0
    %4701 = vmatpush1.msra.mxu0 %v4427
    %4702 = vmatprep.subr.mxu0 0.0
    %4703 = vmatpush1.msra.mxu0 %v4430
    %4704 = vmatprep.subr.mxu0 0.0
    %4705 = vmatpush1.msra.mxu0 %v4433
    %4706 = vmatprep.subr.mxu0 0.0
    %4707 = vmatpush1.msra.mxu0 %v4436
    %4708 = vmatprep.subr.mxu0 0.0
    %4709 = vmatpush1.msra.mxu0 %v4439
    %4710 = vmatprep.subr.mxu0 0.0
    %4711 = vmatpush1.msra.mxu0 %v4442
    %4712 = vmatprep.subr.mxu0 0.0
    %4713 = vmatpush1.msra.mxu0 %v4445
    %4714 = vmatprep.subr.mxu0 0.0
    %4715 = vmatpush1.msra.mxu0 %v4448
    %4716 = vmatprep.subr.mxu0 0.0
    %4717 = vmatpush1.msra.mxu0 %v4451
    %4718 = vmatprep.subr.mxu0 0.0
    %4719 = vmatpush1.msra.mxu0 %v4454
    %4720 = vmatprep.subr.mxu0 0.0
    %4721 = vmatpush1.msra.mxu0 %v4457
    %4722 = vmatprep.subr.mxu0 0.0
    %4723 = vmatpush1.msra.mxu0 %v4460
    %4724 = vmatprep.subr.mxu0 0.0
    %4725 = vmatpush1.msra.mxu0 %v4463
    %4726 = vmatprep.subr.mxu0 0.0
    %4727 = vmatpush1.msra.mxu0 %v4466
    %4728 = vmatprep.subr.mxu0 0.0
    %4729 = vmatpush1.msra.mxu0 %v4469
    %4730 = vmatprep.subr.mxu0 0.0
    %4731 = vmatpush1.msra.mxu0 %v4472
    %4732 = vmatprep.subr.mxu0 0.0
    %4733 = vmatpush1.msra.mxu0 %v4475
    %4734 = vmatprep.subr.mxu0 0.0
    %4735 = vmatpush1.msra.mxu0 %v4478
    %4736 = vmatprep.subr.mxu0 0.0
    %4737 = vmatpush1.msra.mxu0 %v4481
    %4738 = vmatprep.subr.mxu0 0.0
    %4739 = vmatpush1.msra.mxu0 %v4484
    %4740 = vmatprep.subr.mxu0 0.0
    %4741 = vmatpush1.msra.mxu0 %v4487
    %4742 = vmatprep.subr.mxu0 0.0
    %4743 = vmatpush1.msra.mxu0 %v4490
    %4744 = vmatprep.subr.mxu0 0.0
    %4745 = vmatpush1.msra.mxu0 %v4493
    %4746 = vmatprep.subr.mxu0 0.0
    %4747 = vmatpush1.msra.mxu0 %v4496
    %4748 = vmatprep.subr.mxu0 0.0
    %4749 = vmatpush1.msra.mxu0 %v4499
    %4750 = vmatprep.mubr.f32.mxu0 %v4402
    %4751 = vmatmul.mubr.f32.gmra.mrb[0].mxu0 %v4401
    %v4752 = vpop.f32.mrb[0].mxu0
    %v4753 = vadd.f32 %v4537, %v4752
    %v4754 = vpop.f32.mrb[0].mxu0
    %4755 = vdwg.mxu0
    %4756 = vmatprep.subr.mxu0 0.0
    %4757 = vmatpush1.msra.mxu0 %v4502
    %4758 = vmatprep.subr.mxu0 0.0
    %4759 = vmatpush1.msra.mxu0 %v4505
    %4760 = vmatprep.subr.mxu0 0.0
    %4761 = vmatpush1.msra.mxu0 %v4508
    %4762 = vmatprep.subr.mxu0 0.0
    %4763 = vmatpush1.msra.mxu0 %v4511
    %4764 = vmatprep.subr.mxu0 0.0
    %4765 = vmatpush1.msra.mxu0 %v4514
    %4766 = vmatprep.subr.mxu0 0.0
    %4767 = vmatpush1.msra.mxu0 %v4517
    %4768 = vmatprep.subr.mxu0 0.0
    %4769 = vmatpush1.msra.mxu0 %v4520
    %4770 = vmatprep.subr.mxu0 0.0
    %4771 = vmatpush1.msra.mxu0 %v4523
    %4772 = vmatprep.subr.mxu0 0.0
    %4773 = vmatpush1.msra.mxu0 0.0
    %4774 = vmatprep.subr.mxu0 0.0
    %4775 = vmatpush1.msra.mxu0 0.0
    %4776 = vmatprep.subr.mxu0 0.0
    %4777 = vmatpush1.msra.mxu0 0.0
    %4778 = vmatprep.subr.mxu0 0.0
    %4779 = vmatpush1.msra.mxu0 0.0
    %4780 = vmatprep.subr.mxu0 0.0
    %4781 = vmatpush1.msra.mxu0 0.0
    %4782 = vmatprep.subr.mxu0 0.0
    %4783 = vmatpush1.msra.mxu0 0.0
    %4784 = vmatprep.subr.mxu0 0.0
    %4785 = vmatpush1.msra.mxu0 0.0
    %4786 = vmatprep.subr.mxu0 0.0
    %4787 = vmatpush1.msra.mxu0 0.0
    %4788 = vmatprep.subr.mxu0 0.0
    %4789 = vmatpush1.msra.mxu0 0.0
    %4790 = vmatprep.subr.mxu0 0.0
    %4791 = vmatpush1.msra.mxu0 0.0
    %4792 = vmatprep.subr.mxu0 0.0
    %4793 = vmatpush1.msra.mxu0 0.0
    %4794 = vmatprep.subr.mxu0 0.0
    %4795 = vmatpush1.msra.mxu0 0.0
    %4796 = vmatprep.subr.mxu0 0.0
    %4797 = vmatpush1.msra.mxu0 0.0
    %4798 = vmatprep.subr.mxu0 0.0
    %4799 = vmatpush1.msra.mxu0 0.0
    %4800 = vmatprep.subr.mxu0 0.0
    %4801 = vmatpush1.msra.mxu0 0.0
    %4802 = vmatprep.subr.mxu0 0.0
    %4803 = vmatpush1.msra.mxu0 0.0
    %4804 = vmatprep.subr.mxu0 0.0
    %4805 = vmatpush1.msra.mxu0 0.0
    %4806 = vmatprep.subr.mxu0 0.0
    %4807 = vmatpush1.msra.mxu0 0.0
    %4808 = vmatprep.subr.mxu0 0.0
    %4809 = vmatpush1.msra.mxu0 0.0
    %4810 = vmatprep.subr.mxu0 0.0
    %4811 = vmatpush1.msra.mxu0 0.0
    %4812 = vmatprep.subr.mxu0 0.0
    %4813 = vmatpush1.msra.mxu0 0.0
    %4814 = vmatprep.subr.mxu0 0.0
    %4815 = vmatpush1.msra.mxu0 0.0
    %4816 = vmatprep.subr.mxu0 0.0
    %4817 = vmatpush1.msra.mxu0 0.0
    %4818 = vmatprep.subr.mxu0 0.0
    %4819 = vmatpush1.msra.mxu0 0.0
    %4820 = vmatprep.mubr.f32.mxu0 0.0
    %4821 = vmatmul.mubr.f32.gmra.mrb[0].mxu0 %v4542
    %v4822 = vpop.f32.mrb[0].mxu0
    %v4823 = vadd.f32 %v4753, %v4822
    %v4824 = vpop.f32.mrb[0].mxu0
    %4825 = vdwg.mxu0
    %vm4826 = vcmp.gt.f32.partialorder %v4682, 0.0
    %vm4827 = vcmp.gt.f32.partialorder %v4684, 0.0
    %vm4828 = vcmp.gt.f32.partialorder %v4823, 0.0
    %v4829 = vmul.f32 %v4682, 0.01
    %v4830 = vmul.f32 %v4684, 0.01
    %v4831 = vmul.f32 %v4823, 0.01
    %v4832 = vsel %vm4826, %v4682, %v4829
    %v4833 = vsel %vm4827, %v4684, %v4830
    %v4834 = vsel %vm4828, %v4823, %v4831
    %v4835 = vld [vmem:[#allocation55] sm:$0xff]
    %v4836 = vld [vmem:[#allocation55 + $0x8] sm:$0xff]
    %v4837 = vld [vmem:[#allocation55 + $0x10] sm:$0xff]
    %v4838 = vld [vmem:[#allocation55 + $0x18] sm:$0xff]
    %v4839 = vld [vmem:[#allocation55 + $0x20] sm:$0xff]
    %v4840 = vld [vmem:[#allocation55 + $0x28] sm:$0xff]
    %v4841 = vld [vmem:[#allocation55 + $0x30] sm:$0xff]
    %v4842 = vld [vmem:[#allocation55 + $0x38] sm:$0xff]
    %v4843 = vld [vmem:[#allocation55 + $0x40] sm:$0xff]
    %v4844 = vld [vmem:[#allocation55 + $0x48] sm:$0xff]
    %v4845 = vld [vmem:[#allocation55 + $0x50] sm:$0xff]
    %v4846 = vld [vmem:[#allocation55 + $0x58] sm:$0xff]
    %v4847 = vld [vmem:[#allocation55 + $0x60] sm:$0xff]
    %v4848 = vld [vmem:[#allocation55 + $0x68] sm:$0xff]
    %v4849 = vld [vmem:[#allocation55 + $0x70] sm:$0xff]
    %v4850 = vld [vmem:[#allocation55 + $0x78] sm:$0xff]
    %v4851 = vld [vmem:[#allocation55 + $0x80] sm:$0xff]
    %v4852 = vld [vmem:[#allocation55 + $0x88] sm:$0xff]
    %v4853 = vld [vmem:[#allocation55 + $0x90] sm:$0xff]
    %v4854 = vld [vmem:[#allocation55 + $0x98] sm:$0xff]
    %v4855 = vld [vmem:[#allocation55 + $0xa0] sm:$0xff]
    %v4856 = vld [vmem:[#allocation55 + $0xa8] sm:$0xff]
    %v4857 = vld [vmem:[#allocation55 + $0xb0] sm:$0xff]
    %v4858 = vld [vmem:[#allocation55 + $0xb8] sm:$0xff]
    %v4859 = vld [vmem:[#allocation55 + $0xc0] sm:$0xff]
    %v4860 = vld [vmem:[#allocation55 + $0xc8] sm:$0xff]
    %v4861 = vld [vmem:[#allocation55 + $0xd0] sm:$0xff]
    %v4862 = vld [vmem:[#allocation55 + $0xd8] sm:$0xff]
    %v4863 = vld [vmem:[#allocation55 + $0xe0] sm:$0xff]
    %v4864 = vld [vmem:[#allocation55 + $0xe8] sm:$0xff]
    %v4865 = vld [vmem:[#allocation55 + $0xf0] sm:$0xff]
    %v4866 = vld [vmem:[#allocation55 + $0xf8] sm:$0xff]
    %v4867 = vld [vmem:[#allocation55 + $0x100] sm:$0xff]
    %v4868 = vld [vmem:[#allocation55 + $0x108] sm:$0xff]
    %v4869 = vld [vmem:[#allocation55 + $0x110] sm:$0xff]
    %v4870 = vld [vmem:[#allocation55 + $0x118] sm:$0xff]
    %v4871 = vld [vmem:[#allocation55 + $0x120] sm:$0xff]
    %v4872 = vld [vmem:[#allocation55 + $0x128] sm:$0xff]
    %v4873 = vld [vmem:[#allocation55 + $0x130] sm:$0xff]
    %v4874 = vld [vmem:[#allocation55 + $0x138] sm:$0xff]
    %v4875 = vld [vmem:[#allocation55 + $0x140] sm:$0xff]
    %v4876 = vld [vmem:[#allocation55 + $0x148] sm:$0xff]
    %v4877 = vld [vmem:[#allocation55 + $0x150] sm:$0xff]
    %v4878 = vld [vmem:[#allocation55 + $0x158] sm:$0xff]
    %v4879 = vld [vmem:[#allocation55 + $0x160] sm:$0xff]
    %v4880 = vld [vmem:[#allocation55 + $0x168] sm:$0xff]
    %v4881 = vld [vmem:[#allocation55 + $0x170] sm:$0xff]
    %v4882 = vld [vmem:[#allocation55 + $0x178] sm:$0xff]
    %v4883 = vld [vmem:[#allocation55 + $0x180] sm:$0xff]
    %v4884 = vld [vmem:[#allocation55 + $0x188] sm:$0xff]
    %v4885 = vld [vmem:[#allocation55 + $0x190] sm:$0xff]
    %v4886 = vld [vmem:[#allocation55 + $0x198] sm:$0xff]
    %v4887 = vld [vmem:[#allocation55 + $0x1a0] sm:$0xff]
    %v4888 = vld [vmem:[#allocation55 + $0x1a8] sm:$0xff]
    %v4889 = vld [vmem:[#allocation55 + $0x1b0] sm:$0xff]
    %v4890 = vld [vmem:[#allocation55 + $0x1b8] sm:$0xff]
    %v4891 = vld [vmem:[#allocation55 + $0x1c0] sm:$0xff]
    %v4892 = vld [vmem:[#allocation55 + $0x1c8] sm:$0xff]
    %v4893 = vld [vmem:[#allocation55 + $0x1d0] sm:$0xff]
    %v4894 = vld [vmem:[#allocation55 + $0x1d8] sm:$0xff]
    %v4895 = vld [vmem:[#allocation55 + $0x1e0] sm:$0xff]
    %v4896 = vld [vmem:[#allocation55 + $0x1e8] sm:$0xff]
    %v4897 = vld [vmem:[#allocation55 + $0x1f0] sm:$0xff]
    %v4898 = vld [vmem:[#allocation55 + $0x1f8] sm:$0xff]
    %v4899 = vld [vmem:[#allocation55 + $0x200] sm:$0xff]
    %v4900 = vld [vmem:[#allocation55 + $0x208] sm:$0xff]
    %v4901 = vld [vmem:[#allocation55 + $0x210] sm:$0xff]
    %v4902 = vld [vmem:[#allocation55 + $0x218] sm:$0xff]
    %v4903 = vld [vmem:[#allocation55 + $0x220] sm:$0xff]
    %v4904 = vld [vmem:[#allocation55 + $0x228] sm:$0xff]
    %v4905 = vld [vmem:[#allocation55 + $0x230] sm:$0xff]
    %v4906 = vld [vmem:[#allocation55 + $0x238] sm:$0xff]
    %v4907 = vld [vmem:[#allocation55 + $0x240] sm:$0xff]
    %v4908 = vld [vmem:[#allocation55 + $0x248] sm:$0xff]
    %v4909 = vld [vmem:[#allocation55 + $0x250] sm:$0xff]
    %v4910 = vld [vmem:[#allocation55 + $0x258] sm:$0xff]
    %v4911 = vld [vmem:[#allocation55 + $0x260] sm:$0xff]
    %v4912 = vld [vmem:[#allocation55 + $0x268] sm:$0xff]
    %v4913 = vld [vmem:[#allocation55 + $0x270] sm:$0xff]
    %v4914 = vld [vmem:[#allocation55 + $0x278] sm:$0xff]
    %v4915 = vld [vmem:[#allocation55 + $0x280] sm:$0xff]
    %v4916 = vld [vmem:[#allocation55 + $0x288] sm:$0xff]
    %v4917 = vld [vmem:[#allocation55 + $0x290] sm:$0xff]
    %v4918 = vld [vmem:[#allocation55 + $0x298] sm:$0xff]
    %v4919 = vld [vmem:[#allocation55 + $0x2a0] sm:$0xff]
    %v4920 = vld [vmem:[#allocation55 + $0x2a8] sm:$0xff]
    %v4921 = vld [vmem:[#allocation55 + $0x2b0] sm:$0xff]
    %v4922 = vld [vmem:[#allocation55 + $0x2b8] sm:$0xff]
    %v4923 = vld [vmem:[#allocation55 + $0x2c0] sm:$0xff]
    %v4924 = vld [vmem:[#allocation55 + $0x2c8] sm:$0xff]
    %v4925 = vld [vmem:[#allocation55 + $0x2d0] sm:$0xff]
    %v4926 = vld [vmem:[#allocation55 + $0x2d8] sm:$0xff]
    %v4927 = vld [vmem:[#allocation55 + $0x2e0] sm:$0xff]
    %v4928 = vld [vmem:[#allocation55 + $0x2e8] sm:$0xff]
    %v4929 = vld [vmem:[#allocation55 + $0x2f0] sm:$0xff]
    %v4930 = vld [vmem:[#allocation55 + $0x2f8] sm:$0xff]
    %v4931 = vld [vmem:[#allocation55 + $0x300] sm:$0xff]
    %v4932 = vld [vmem:[#allocation55 + $0x308] sm:$0xff]
    %v4933 = vld [vmem:[#allocation55 + $0x310] sm:$0xff]
    %v4934 = vld [vmem:[#allocation55 + $0x318] sm:$0xff]
    %v4935 = vld [vmem:[#allocation55 + $0x320] sm:$0xff]
    %v4936 = vld [vmem:[#allocation55 + $0x328] sm:$0xff]
    %v4937 = vld [vmem:[#allocation55 + $0x330] sm:$0xff]
    %v4938 = vld [vmem:[#allocation55 + $0x338] sm:$0xff]
    %v4939 = vld [vmem:[#allocation55 + $0x340] sm:$0xff]
    %v4940 = vld [vmem:[#allocation55 + $0x348] sm:$0xff]
    %v4941 = vld [vmem:[#allocation55 + $0x350] sm:$0xff]
    %v4942 = vld [vmem:[#allocation55 + $0x358] sm:$0xff]
    %v4943 = vld [vmem:[#allocation55 + $0x360] sm:$0xff]
    %v4944 = vld [vmem:[#allocation55 + $0x368] sm:$0xff]
    %v4945 = vld [vmem:[#allocation55 + $0x370] sm:$0xff]
    %v4946 = vld [vmem:[#allocation55 + $0x378] sm:$0xff]
    %v4947 = vld [vmem:[#allocation55 + $0x380] sm:$0xff]
    %v4948 = vld [vmem:[#allocation55 + $0x388] sm:$0xff]
    %v4949 = vld [vmem:[#allocation55 + $0x390] sm:$0xff]
    %v4950 = vld [vmem:[#allocation55 + $0x398] sm:$0xff]
    %v4951 = vld [vmem:[#allocation55 + $0x3a0] sm:$0xff]
    %v4952 = vld [vmem:[#allocation55 + $0x3a8] sm:$0xff]
    %v4953 = vld [vmem:[#allocation55 + $0x3b0] sm:$0xff]
    %v4954 = vld [vmem:[#allocation55 + $0x3b8] sm:$0xff]
    %v4955 = vld [vmem:[#allocation55 + $0x3c0] sm:$0xff]
    %v4956 = vld [vmem:[#allocation55 + $0x3c8] sm:$0xff]
    %v4957 = vld [vmem:[#allocation55 + $0x3d0] sm:$0xff]
    %v4958 = vld [vmem:[#allocation55 + $0x3d8] sm:$0xff]
    %v4959 = vld [vmem:[#allocation55 + $0x3e0] sm:$0xff]
    %v4960 = vld [vmem:[#allocation55 + $0x3e8] sm:$0xff]
    %v4961 = vld [vmem:[#allocation55 + $0x3f0] sm:$0xff]
    %v4962 = vld [vmem:[#allocation55 + $0x3f8] sm:$0xff]
    %v4963 = vld [vmem:[#allocation55 + $0x400] sm:$0xff]
    %v4964 = vld [vmem:[#allocation55 + $0x408] sm:$0xff]
    %v4965 = vld [vmem:[#allocation55 + $0x410] sm:$0xff]
    %v4966 = vld [vmem:[#allocation55 + $0x418] sm:$0xff]
    %v4967 = vld [vmem:[#allocation55 + $0x420] sm:$0xff]
    %v4968 = vld [vmem:[#allocation55 + $0x428] sm:$0xff]
    %v4969 = vld [vmem:[#allocation55 + $0x430] sm:$0xff]
    %v4970 = vld [vmem:[#allocation55 + $0x438] sm:$0xff]
    %v4971 = vld [vmem:[#allocation55 + $0x440] sm:$0xff]
    %v4972 = vld [vmem:[#allocation55 + $0x448] sm:$0xff]
    %v4973 = vld [vmem:[#allocation55 + $0x450] sm:$0xff]
    %v4974 = vld [vmem:[#allocation55 + $0x458] sm:$0xff]
    %v4975 = vld [vmem:[#allocation55 + $0x460] sm:$0xff]
    %v4976 = vld [vmem:[#allocation55 + $0x468] sm:$0xff]
    %v4977 = vld [vmem:[#allocation55 + $0x470] sm:$0xff]
    %v4978 = vld [vmem:[#allocation55 + $0x478] sm:$0xff]
    %v4979 = vld [vmem:[#allocation55 + $0x480] sm:$0xff]
    %v4980 = vld [vmem:[#allocation55 + $0x488] sm:$0xff]
    %v4981 = vld [vmem:[#allocation55 + $0x490] sm:$0xff]
    %v4982 = vld [vmem:[#allocation55 + $0x498] sm:$0xff]
    %v4983 = vld [vmem:[#allocation55 + $0x4a0] sm:$0xff]
    %v4984 = vld [vmem:[#allocation55 + $0x4a8] sm:$0xff]
    %v4985 = vld [vmem:[#allocation55 + $0x4b0] sm:$0xff]
    %v4986 = vld [vmem:[#allocation55 + $0x4b8] sm:$0xff]
    %v4987 = vld [vmem:[#allocation55 + $0x4c0] sm:$0xff]
    %v4988 = vld [vmem:[#allocation55 + $0x4c8] sm:$0xff]
    %v4989 = vld [vmem:[#allocation55 + $0x4d0] sm:$0xff]
    %v4990 = vld [vmem:[#allocation55 + $0x4d8] sm:$0xff]
    %v4991 = vld [vmem:[#allocation55 + $0x4e0] sm:$0xff]
    %v4992 = vld [vmem:[#allocation55 + $0x4e8] sm:$0xff]
    %v4993 = vld [vmem:[#allocation55 + $0x4f0] sm:$0xff]
    %v4994 = vld [vmem:[#allocation55 + $0x4f8] sm:$0xff]
    %v4995 = vld [vmem:[#allocation55 + $0x500] sm:$0xff]
    %v4996 = vld [vmem:[#allocation55 + $0x508] sm:$0xff]
    %v4997 = vld [vmem:[#allocation55 + $0x510] sm:$0xff]
    %v4998 = vld [vmem:[#allocation55 + $0x518] sm:$0xff]
    %v4999 = vld [vmem:[#allocation55 + $0x520] sm:$0xff]
    %v5000 = vld [vmem:[#allocation55 + $0x528] sm:$0xff]
    %v5001 = vld [vmem:[#allocation55 + $0x530] sm:$0xff]
    %v5002 = vld [vmem:[#allocation55 + $0x538] sm:$0xff]
    %v5003 = vld [vmem:[#allocation55 + $0x540] sm:$0xff]
    %v5004 = vld [vmem:[#allocation55 + $0x548] sm:$0xff]
    %v5005 = vld [vmem:[#allocation55 + $0x550] sm:$0xff]
    %v5006 = vld [vmem:[#allocation55 + $0x558] sm:$0xff]
    %v5007 = vld [vmem:[#allocation55 + $0x560] sm:$0xff]
    %v5008 = vld [vmem:[#allocation55 + $0x568] sm:$0xff]
    %v5009 = vld [vmem:[#allocation55 + $0x570] sm:$0xff]
    %v5010 = vld [vmem:[#allocation55 + $0x578] sm:$0xff]
    %v5011 = vld [vmem:[#allocation55 + $0x580] sm:$0xff]
    %v5012 = vld [vmem:[#allocation55 + $0x588] sm:$0xff]
    %v5013 = vld [vmem:[#allocation55 + $0x590] sm:$0xff]
    %v5014 = vld [vmem:[#allocation55 + $0x598] sm:$0xff]
    %v5015 = vld [vmem:[#allocation55 + $0x5a0] sm:$0xff]
    %v5016 = vld [vmem:[#allocation55 + $0x5a8] sm:$0xff]
    %v5017 = vld [vmem:[#allocation55 + $0x5b0] sm:$0xff]
    %v5018 = vld [vmem:[#allocation55 + $0x5b8] sm:$0xff]
    %v5019 = vld [vmem:[#allocation55 + $0x5c0] sm:$0xff]
    %v5020 = vld [vmem:[#allocation55 + $0x5c8] sm:$0xff]
    %v5021 = vld [vmem:[#allocation55 + $0x5d0] sm:$0xff]
    %v5022 = vld [vmem:[#allocation55 + $0x5d8] sm:$0xff]
    %v5023 = vld [vmem:[#allocation55 + $0x5e0] sm:$0xff]
    %v5024 = vld [vmem:[#allocation55 + $0x5e8] sm:$0xff]
    %v5025 = vld [vmem:[#allocation55 + $0x5f0] sm:$0xff]
    %v5026 = vld [vmem:[#allocation55 + $0x5f8] sm:$0xff]
    %v5027 = vld [vmem:[#allocation55 + $0x600] sm:$0xff]
    %v5028 = vld [vmem:[#allocation55 + $0x608] sm:$0xff]
    %v5029 = vld [vmem:[#allocation55 + $0x610] sm:$0xff]
    %v5030 = vld [vmem:[#allocation55 + $0x618] sm:$0xff]
    %v5031 = vld [vmem:[#allocation55 + $0x620] sm:$0xff]
    %v5032 = vld [vmem:[#allocation55 + $0x628] sm:$0xff]
    %v5033 = vld [vmem:[#allocation55 + $0x630] sm:$0xff]
    %v5034 = vld [vmem:[#allocation55 + $0x638] sm:$0xff]
    %v5035 = vld [vmem:[#allocation55 + $0x640] sm:$0xff]
    %v5036 = vld [vmem:[#allocation55 + $0x648] sm:$0xff]
    %v5037 = vld [vmem:[#allocation55 + $0x650] sm:$0xff]
    %v5038 = vld [vmem:[#allocation55 + $0x658] sm:$0xff]
    %v5039 = vld [vmem:[#allocation55 + $0x660] sm:$0xff]
    %v5040 = vld [vmem:[#allocation55 + $0x668] sm:$0xff]
    %v5041 = vld [vmem:[#allocation55 + $0x670] sm:$0xff]
    %v5042 = vld [vmem:[#allocation55 + $0x678] sm:$0xff]
    %v5043 = vld [vmem:[#allocation55 + $0x680] sm:$0xff]
    %v5044 = vld [vmem:[#allocation55 + $0x688] sm:$0xff]
    %v5045 = vld [vmem:[#allocation55 + $0x690] sm:$0xff]
    %v5046 = vld [vmem:[#allocation55 + $0x698] sm:$0xff]
    %v5047 = vld [vmem:[#allocation55 + $0x6a0] sm:$0xff]
    %v5048 = vld [vmem:[#allocation55 + $0x6a8] sm:$0xff]
    %v5049 = vld [vmem:[#allocation55 + $0x6b0] sm:$0xff]
    %v5050 = vld [vmem:[#allocation55 + $0x6b8] sm:$0xff]
    %v5051 = vld [vmem:[#allocation55 + $0x6c0] sm:$0xff]
    %v5052 = vld [vmem:[#allocation55 + $0x6c8] sm:$0xff]
    %v5053 = vld [vmem:[#allocation55 + $0x6d0] sm:$0xff]
    %v5054 = vld [vmem:[#allocation55 + $0x6d8] sm:$0xff]
    %v5055 = vld [vmem:[#allocation55 + $0x6e0] sm:$0xff]
    %v5056 = vld [vmem:[#allocation55 + $0x6e8] sm:$0xff]
    %v5057 = vld [vmem:[#allocation55 + $0x6f0] sm:$0xff]
    %v5058 = vld [vmem:[#allocation55 + $0x6f8] sm:$0xff]
    %v5059 = vld [vmem:[#allocation55 + $0x700] sm:$0xff]
    %v5060 = vld [vmem:[#allocation55 + $0x708] sm:$0xff]
    %v5061 = vld [vmem:[#allocation55 + $0x710] sm:$0xff]
    %v5062 = vld [vmem:[#allocation55 + $0x718] sm:$0xff]
    %v5063 = vld [vmem:[#allocation55 + $0x720] sm:$0xff]
    %v5064 = vld [vmem:[#allocation55 + $0x728] sm:$0xff]
    %v5065 = vld [vmem:[#allocation55 + $0x730] sm:$0xff]
    %v5066 = vld [vmem:[#allocation55 + $0x738] sm:$0xff]
    %v5067 = vld [vmem:[#allocation55 + $0x740] sm:$0xff]
    %v5068 = vld [vmem:[#allocation55 + $0x748] sm:$0xff]
    %v5069 = vld [vmem:[#allocation55 + $0x750] sm:$0xff]
    %v5070 = vld [vmem:[#allocation55 + $0x758] sm:$0xff]
    %v5071 = vld [vmem:[#allocation55 + $0x760] sm:$0xff]
    %v5072 = vld [vmem:[#allocation55 + $0x768] sm:$0xff]
    %v5073 = vld [vmem:[#allocation55 + $0x770] sm:$0xff]
    %v5074 = vld [vmem:[#allocation55 + $0x778] sm:$0xff]
    %v5075 = vld [vmem:[#allocation55 + $0x780] sm:$0xff]
    %v5076 = vld [vmem:[#allocation55 + $0x788] sm:$0xff]
    %v5077 = vld [vmem:[#allocation55 + $0x790] sm:$0xff]
    %v5078 = vld [vmem:[#allocation55 + $0x798] sm:$0xff]
    %v5079 = vld [vmem:[#allocation55 + $0x7a0] sm:$0xff]
    %v5080 = vld [vmem:[#allocation55 + $0x7a8] sm:$0xff]
    %v5081 = vld [vmem:[#allocation55 + $0x7b0] sm:$0xff]
    %v5082 = vld [vmem:[#allocation55 + $0x7b8] sm:$0xff]
    %v5083 = vld [vmem:[#allocation55 + $0x7c0] sm:$0xff]
    %v5084 = vld [vmem:[#allocation55 + $0x7c8] sm:$0xff]
    %v5085 = vld [vmem:[#allocation55 + $0x7d0] sm:$0xff]
    %v5086 = vld [vmem:[#allocation55 + $0x7d8] sm:$0xff]
    %v5087 = vld [vmem:[#allocation55 + $0x7e0] sm:$0xff]
    %v5088 = vld [vmem:[#allocation55 + $0x7e8] sm:$0xff]
    %v5089 = vld [vmem:[#allocation55 + $0x7f0] sm:$0xff]
    %v5090 = vld [vmem:[#allocation55 + $0x7f8] sm:$0xff]
    %v5091 = vld [vmem:[#allocation55 + $0x800] sm:$0xff]
    %v5092 = vld [vmem:[#allocation55 + $0x808] sm:$0xff]
    %v5093 = vld [vmem:[#allocation55 + $0x810] sm:$0xff]
    %v5094 = vld [vmem:[#allocation55 + $0x818] sm:$0xff]
    %v5095 = vld [vmem:[#allocation55 + $0x820] sm:$0xff]
    %v5096 = vld [vmem:[#allocation55 + $0x828] sm:$0xff]
    %v5097 = vld [vmem:[#allocation55 + $0x830] sm:$0xff]
    %v5098 = vld [vmem:[#allocation55 + $0x838] sm:$0xff]
    %v5099 = vld [vmem:[#allocation55 + $0x840] sm:$0xff]
    %v5100 = vld [vmem:[#allocation55 + $0x848] sm:$0xff]
    %v5101 = vld [vmem:[#allocation55 + $0x850] sm:$0xff]
    %v5102 = vld [vmem:[#allocation55 + $0x858] sm:$0xff]
    %v5103 = vld [vmem:[#allocation55 + $0x860] sm:$0xff]
    %v5104 = vld [vmem:[#allocation55 + $0x868] sm:$0xff]
    %v5105 = vld [vmem:[#allocation55 + $0x870] sm:$0xff]
    %v5106 = vld [vmem:[#allocation55 + $0x878] sm:$0xff]
    %v5107 = vld [vmem:[#allocation55 + $0x880] sm:$0xff]
    %v5108 = vld [vmem:[#allocation55 + $0x888] sm:$0xff]
    %v5109 = vld [vmem:[#allocation55 + $0x890] sm:$0xff]
    %v5110 = vld [vmem:[#allocation55 + $0x898] sm:$0xff]
    %v5111 = vld [vmem:[#allocation55 + $0x8a0] sm:$0xff]
    %v5112 = vld [vmem:[#allocation55 + $0x8a8] sm:$0xff]
    %v5113 = vld [vmem:[#allocation55 + $0x8b0] sm:$0xff]
    %v5114 = vld [vmem:[#allocation55 + $0x8b8] sm:$0xff]
    %v5115 = vld [vmem:[#allocation55 + $0x8c0] sm:$0xff]
    %v5116 = vld [vmem:[#allocation55 + $0x8c8] sm:$0xff]
    %v5117 = vld [vmem:[#allocation55 + $0x8d0] sm:$0xff]
    %v5118 = vld [vmem:[#allocation55 + $0x8d8] sm:$0xff]
    %v5119 = vld [vmem:[#allocation55 + $0x8e0] sm:$0xff]
    %v5120 = vld [vmem:[#allocation55 + $0x8e8] sm:$0xff]
    %v5121 = vld [vmem:[#allocation55 + $0x8f0] sm:$0xff]
    %v5122 = vld [vmem:[#allocation55 + $0x8f8] sm:$0xff]
    %v5123 = vld [vmem:[#allocation55 + $0x900] sm:$0xff]
    %v5124 = vld [vmem:[#allocation55 + $0x908] sm:$0xff]
    %v5125 = vld [vmem:[#allocation55 + $0x910] sm:$0xff]
    %v5126 = vld [vmem:[#allocation55 + $0x918] sm:$0xff]
    %v5127 = vld [vmem:[#allocation55 + $0x920] sm:$0xff]
    %v5128 = vld [vmem:[#allocation55 + $0x928] sm:$0xff]
    %v5129 = vld [vmem:[#allocation55 + $0x930] sm:$0xff]
    %v5130 = vld [vmem:[#allocation55 + $0x938] sm:$0xff]
    %v5131 = vld [vmem:[#allocation55 + $0x940] sm:$0xff]
    %v5132 = vld [vmem:[#allocation55 + $0x948] sm:$0xff]
    %v5133 = vld [vmem:[#allocation55 + $0x950] sm:$0xff]
    %v5134 = vld [vmem:[#allocation55 + $0x958] sm:$0xff]
    %v5135 = vld [vmem:[#allocation55 + $0x960] sm:$0xff]
    %v5136 = vld [vmem:[#allocation55 + $0x968] sm:$0xff]
    %v5137 = vld [vmem:[#allocation55 + $0x970] sm:$0xff]
    %v5138 = vld [vmem:[#allocation55 + $0x978] sm:$0xff]
    %v5139 = vld [vmem:[#allocation55 + $0x980] sm:$0xff]
    %v5140 = vld [vmem:[#allocation55 + $0x988] sm:$0xff]
    %v5141 = vld [vmem:[#allocation55 + $0x990] sm:$0xff]
    %v5142 = vld [vmem:[#allocation55 + $0x998] sm:$0xff]
    %v5143 = vld [vmem:[#allocation55 + $0x9a0] sm:$0xff]
    %v5144 = vld [vmem:[#allocation55 + $0x9a8] sm:$0xff]
    %v5145 = vld [vmem:[#allocation55 + $0x9b0] sm:$0xff]
    %v5146 = vld [vmem:[#allocation55 + $0x9b8] sm:$0xff]
    %v5147 = vld [vmem:[#allocation55 + $0x9c0] sm:$0xff]
    %v5148 = vld [vmem:[#allocation55 + $0x9c8] sm:$0xff]
    %v5149 = vld [vmem:[#allocation55 + $0x9d0] sm:$0xff]
    %v5150 = vld [vmem:[#allocation55 + $0x9d8] sm:$0xff]
    %v5151 = vld [vmem:[#allocation55 + $0x9e0] sm:$0xff]
    %v5152 = vld [vmem:[#allocation55 + $0x9e8] sm:$0xff]
    %v5153 = vld [vmem:[#allocation55 + $0x9f0] sm:$0xff]
    %v5154 = vld [vmem:[#allocation55 + $0x9f8] sm:$0xff]
    %v5155 = vld [vmem:[#allocation55 + $0xa00] sm:$0xff]
    %v5156 = vld [vmem:[#allocation55 + $0xa08] sm:$0xff]
    %v5157 = vld [vmem:[#allocation55 + $0xa10] sm:$0xff]
    %v5158 = vld [vmem:[#allocation55 + $0xa18] sm:$0xff]
    %v5159 = vld [vmem:[#allocation55 + $0xa20] sm:$0xff]
    %v5160 = vld [vmem:[#allocation55 + $0xa28] sm:$0xff]
    %v5161 = vld [vmem:[#allocation55 + $0xa30] sm:$0xff]
    %v5162 = vld [vmem:[#allocation55 + $0xa38] sm:$0xff]
    %v5163 = vld [vmem:[#allocation55 + $0xa40] sm:$0xff]
    %v5164 = vld [vmem:[#allocation55 + $0xa48] sm:$0xff]
    %v5165 = vld [vmem:[#allocation55 + $0xa50] sm:$0xff]
    %v5166 = vld [vmem:[#allocation55 + $0xa58] sm:$0xff]
    %v5167 = vld [vmem:[#allocation55 + $0xa60] sm:$0xff]
    %v5168 = vld [vmem:[#allocation55 + $0xa68] sm:$0xff]
    %v5169 = vld [vmem:[#allocation55 + $0xa70] sm:$0xff]
    %v5170 = vld [vmem:[#allocation55 + $0xa78] sm:$0xff]
    %v5171 = vld [vmem:[#allocation55 + $0xa80] sm:$0xff]
    %v5172 = vld [vmem:[#allocation55 + $0xa88] sm:$0xff]
    %v5173 = vld [vmem:[#allocation55 + $0xa90] sm:$0xff]
    %v5174 = vld [vmem:[#allocation55 + $0xa98] sm:$0xff]
    %v5175 = vld [vmem:[#allocation55 + $0xaa0] sm:$0xff]
    %v5176 = vld [vmem:[#allocation55 + $0xaa8] sm:$0xff]
    %v5177 = vld [vmem:[#allocation55 + $0xab0] sm:$0xff]
    %v5178 = vld [vmem:[#allocation55 + $0xab8] sm:$0xff]
    %v5179 = vld [vmem:[#allocation55 + $0xac0] sm:$0xff]
    %v5180 = vld [vmem:[#allocation55 + $0xac8] sm:$0xff]
    %v5181 = vld [vmem:[#allocation55 + $0xad0] sm:$0xff]
    %v5182 = vld [vmem:[#allocation55 + $0xad8] sm:$0xff]
    %v5183 = vld [vmem:[#allocation55 + $0xae0] sm:$0xff]
    %v5184 = vld [vmem:[#allocation55 + $0xae8] sm:$0xff]
    %v5185 = vld [vmem:[#allocation55 + $0xaf0] sm:$0xff]
    %v5186 = vld [vmem:[#allocation55 + $0xaf8] sm:$0xff]
    %v5187 = vld [vmem:[#allocation55 + $0xb00] sm:$0xff]
    %v5188 = vld [vmem:[#allocation55 + $0xb08] sm:$0xff]
    %v5189 = vld [vmem:[#allocation55 + $0xb10] sm:$0xff]
    %v5190 = vld [vmem:[#allocation55 + $0xb18] sm:$0xff]
    %v5191 = vld [vmem:[#allocation55 + $0xb20] sm:$0xff]
    %v5192 = vld [vmem:[#allocation55 + $0xb28] sm:$0xff]
    %v5193 = vld [vmem:[#allocation55 + $0xb30] sm:$0xff]
    %v5194 = vld [vmem:[#allocation55 + $0xb38] sm:$0xff]
    %v5195 = vld [vmem:[#allocation55 + $0xb40] sm:$0xff]
    %v5196 = vld [vmem:[#allocation55 + $0xb48] sm:$0xff]
    %v5197 = vld [vmem:[#allocation55 + $0xb50] sm:$0xff]
    %v5198 = vld [vmem:[#allocation55 + $0xb58] sm:$0xff]
    %v5199 = vld [vmem:[#allocation55 + $0xb60] sm:$0xff]
    %v5200 = vld [vmem:[#allocation55 + $0xb68] sm:$0xff]
    %v5201 = vld [vmem:[#allocation55 + $0xb70] sm:$0xff]
    %v5202 = vld [vmem:[#allocation55 + $0xb78] sm:$0xff]
    %v5203 = vld [vmem:[#allocation55 + $0xb80] sm:$0xff]
    %v5204 = vld [vmem:[#allocation55 + $0xb88] sm:$0xff]
    %v5205 = vld [vmem:[#allocation55 + $0xb90] sm:$0xff]
    %v5206 = vld [vmem:[#allocation55 + $0xb98] sm:$0xff]
    %v5207 = vld [vmem:[#allocation55 + $0xba0] sm:$0xff]
    %v5208 = vld [vmem:[#allocation55 + $0xba8] sm:$0xff]
    %v5209 = vld [vmem:[#allocation55 + $0xbb0] sm:$0xff]
    %v5210 = vld [vmem:[#allocation55 + $0xbb8] sm:$0xff]
    %v5211 = vld [vmem:[#allocation55 + $0xbc0] sm:$0xff]
    %v5212 = vld [vmem:[#allocation55 + $0xbc8] sm:$0xff]
    %v5213 = vld [vmem:[#allocation55 + $0xbd0] sm:$0xff]
    %v5214 = vld [vmem:[#allocation55 + $0xbd8] sm:$0xff]
    %v5215 = vld [vmem:[#allocation55 + $0xbe0] sm:$0xff]
    %v5216 = vld [vmem:[#allocation55 + $0xbe8] sm:$0xff]
    %v5217 = vld [vmem:[#allocation55 + $0xbf0] sm:$0xff]
    %v5218 = vld [vmem:[#allocation55 + $0xbf8] sm:$0xff]
    %v5219 = vld [vmem:[#allocation55 + $0xc00] sm:$0xff]
    %v5220 = vld [vmem:[#allocation55 + $0xc08] sm:$0xff]
    %v5221 = vld [vmem:[#allocation55 + $0xc10] sm:$0xff]
    %v5222 = vld [vmem:[#allocation55 + $0xc18] sm:$0xff]
    %v5223 = vld [vmem:[#allocation55 + $0xc20] sm:$0xff]
    %v5224 = vld [vmem:[#allocation55 + $0xc28] sm:$0xff]
    %v5225 = vld [vmem:[#allocation55 + $0xc30] sm:$0xff]
    %v5226 = vld [vmem:[#allocation55 + $0xc38] sm:$0xff]
    %v5227 = vld [vmem:[#allocation55 + $0xc40] sm:$0xff]
    %v5228 = vld [vmem:[#allocation55 + $0xc48] sm:$0xff]
    %v5229 = vld [vmem:[#allocation55 + $0xc50] sm:$0xff]
    %v5230 = vld [vmem:[#allocation55 + $0xc58] sm:$0xff]
    %v5231 = vld [vmem:[#allocation55 + $0xc60] sm:$0xff]
    %v5232 = vld [vmem:[#allocation55 + $0xc68] sm:$0xff]
    %v5233 = vld [vmem:[#allocation55 + $0xc70] sm:$0xff]
    %v5234 = vld [vmem:[#allocation55 + $0xc78] sm:$0xff]
    %v5235 = vld [vmem:[#allocation56] sm:$0xff]
    %v5236 = vld [vmem:[#allocation56 + $0x8] sm:$0x3]
    %v5239 = vlaneseq
    %v5240 = vshrl.u32 %v5239, 7
    %v5241 = vsub.s32 0, %v5240
    %v5242 = vrot.slane %v5235, %v5241
    %v5243 = vlaneseq
    %v5244 = vshrl.u32 %v5243, 7
    %v5245 = vsub.s32 1, %v5244
    %v5246 = vrot.slane %v5235, %v5245
    %v5247 = vlaneseq
    %v5248 = vshrl.u32 %v5247, 7
    %v5249 = vsub.s32 2, %v5248
    %v5250 = vrot.slane %v5235, %v5249
    %v5251 = vlaneseq
    %v5252 = vshrl.u32 %v5251, 7
    %v5253 = vsub.s32 3, %v5252
    %v5254 = vrot.slane %v5235, %v5253
    %v5255 = vlaneseq
    %v5256 = vshrl.u32 %v5255, 7
    %v5257 = vsub.s32 4, %v5256
    %v5258 = vrot.slane %v5235, %v5257
    %v5259 = vlaneseq
    %v5260 = vshrl.u32 %v5259, 7
    %v5261 = vsub.s32 5, %v5260
    %v5262 = vrot.slane %v5235, %v5261
    %v5263 = vlaneseq
    %v5264 = vshrl.u32 %v5263, 7
    %v5265 = vsub.s32 6, %v5264
    %v5266 = vrot.slane %v5235, %v5265
    %v5267 = vlaneseq
    %v5268 = vshrl.u32 %v5267, 7
    %v5269 = vsub.s32 7, %v5268
    %v5270 = vrot.slane %v5235, %v5269
    %v5271 = vlaneseq
    %v5272 = vshrl.u32 %v5271, 7
    %v5273 = vsub.s32 0, %v5272
    %v5274 = vrot.slane %v5236, %v5273
    %v5275 = vlaneseq
    %v5276 = vshrl.u32 %v5275, 7
    %v5277 = vsub.s32 1, %v5276
    %v5278 = vrot.slane %v5236, %v5277
    %v5290 = vsel %vm1300, %v4834, 0
    %5292 = vmatprep.subr.mxu0 %v4836
    %5293 = vmatpush1.msra.mxu0 %v4835
    %5294 = vmatprep.subr.mxu0 %v4846
    %5295 = vmatpush1.msra.mxu0 %v4845
    %5296 = vmatprep.subr.mxu0 %v4856
    %5297 = vmatpush1.msra.mxu0 %v4855
    %5298 = vmatprep.subr.mxu0 %v4866
    %5299 = vmatpush1.msra.mxu0 %v4865
    %5300 = vmatprep.subr.mxu0 %v4876
    %5301 = vmatpush1.msra.mxu0 %v4875
    %5302 = vmatprep.subr.mxu0 %v4886
    %5303 = vmatpush1.msra.mxu0 %v4885
    %5304 = vmatprep.subr.mxu0 %v4896
    %5305 = vmatpush1.msra.mxu0 %v4895
    %5306 = vmatprep.subr.mxu0 %v4906
    %5307 = vmatpush1.msra.mxu0 %v4905
    %5308 = vmatprep.subr.mxu0 %v4916
    %5309 = vmatpush1.msra.mxu0 %v4915
    %5310 = vmatprep.subr.mxu0 %v4926
    %5311 = vmatpush1.msra.mxu0 %v4925
    %5312 = vmatprep.subr.mxu0 %v4936
    %5313 = vmatpush1.msra.mxu0 %v4935
    %5314 = vmatprep.subr.mxu0 %v4946
    %5315 = vmatpush1.msra.mxu0 %v4945
    %5316 = vmatprep.subr.mxu0 %v4956
    %5317 = vmatpush1.msra.mxu0 %v4955
    %5318 = vmatprep.subr.mxu0 %v4966
    %5319 = vmatpush1.msra.mxu0 %v4965
    %5320 = vmatprep.subr.mxu0 %v4976
    %5321 = vmatpush1.msra.mxu0 %v4975
    %5322 = vmatprep.subr.mxu0 %v4986
    %5323 = vmatpush1.msra.mxu0 %v4985
    %5324 = vmatprep.subr.mxu0 %v4996
    %5325 = vmatpush1.msra.mxu0 %v4995
    %5326 = vmatprep.subr.mxu0 %v5006
    %5327 = vmatpush1.msra.mxu0 %v5005
    %5328 = vmatprep.subr.mxu0 %v5016
    %5329 = vmatpush1.msra.mxu0 %v5015
    %5330 = vmatprep.subr.mxu0 %v5026
    %5331 = vmatpush1.msra.mxu0 %v5025
    %5332 = vmatprep.subr.mxu0 %v5036
    %5333 = vmatpush1.msra.mxu0 %v5035
    %5334 = vmatprep.subr.mxu0 %v5046
    %5335 = vmatpush1.msra.mxu0 %v5045
    %5336 = vmatprep.subr.mxu0 %v5056
    %5337 = vmatpush1.msra.mxu0 %v5055
    %5338 = vmatprep.subr.mxu0 %v5066
    %5339 = vmatpush1.msra.mxu0 %v5065
    %5340 = vmatprep.subr.mxu0 %v5076
    %5341 = vmatpush1.msra.mxu0 %v5075
    %5342 = vmatprep.subr.mxu0 %v5086
    %5343 = vmatpush1.msra.mxu0 %v5085
    %5344 = vmatprep.subr.mxu0 %v5096
    %5345 = vmatpush1.msra.mxu0 %v5095
    %5346 = vmatprep.subr.mxu0 %v5106
    %5347 = vmatpush1.msra.mxu0 %v5105
    %5348 = vmatprep.subr.mxu0 %v5116
    %5349 = vmatpush1.msra.mxu0 %v5115
    %5350 = vmatprep.subr.mxu0 %v5126
    %5351 = vmatpush1.msra.mxu0 %v5125
    %5352 = vmatprep.subr.mxu0 %v5136
    %5353 = vmatpush1.msra.mxu0 %v5135
    %5354 = vmatprep.subr.mxu0 %v5146
    %5355 = vmatpush1.msra.mxu0 %v5145
    %5356 = vmatprep.mubr.f32.mxu0 %v4833
    %5357 = vmatmul.mubr.f32.gmra.mrb[0].mxu0 %v4832
    %v5358 = vpop.f32.mrb[0].mxu0
    %v5359 = vadd.f32 %v5242, %v5358
    %v5360 = vpop.f32.mrb[0].mxu0
    %v5361 = vadd.f32 %v5246, %v5360
    %5362 = vdwg.mxu0
    %5363 = vmatprep.subr.mxu0 %v5156
    %5364 = vmatpush1.msra.mxu0 %v5155
    %5365 = vmatprep.subr.mxu0 %v5166
    %5366 = vmatpush1.msra.mxu0 %v5165
    %5367 = vmatprep.subr.mxu0 %v5176
    %5368 = vmatpush1.msra.mxu0 %v5175
    %5369 = vmatprep.subr.mxu0 %v5186
    %5370 = vmatpush1.msra.mxu0 %v5185
    %5371 = vmatprep.subr.mxu0 %v5196
    %5372 = vmatpush1.msra.mxu0 %v5195
    %5373 = vmatprep.subr.mxu0 %v5206
    %5374 = vmatpush1.msra.mxu0 %v5205
    %5375 = vmatprep.subr.mxu0 %v5216
    %5376 = vmatpush1.msra.mxu0 %v5215
    %5377 = vmatprep.subr.mxu0 %v5226
    %5378 = vmatpush1.msra.mxu0 %v5225
    %5379 = vmatprep.subr.mxu0 0.0
    %5380 = vmatpush1.msra.mxu0 0.0
    %5381 = vmatprep.subr.mxu0 0.0
    %5382 = vmatpush1.msra.mxu0 0.0
    %5383 = vmatprep.subr.mxu0 0.0
    %5384 = vmatpush1.msra.mxu0 0.0
    %5385 = vmatprep.subr.mxu0 0.0
    %5386 = vmatpush1.msra.mxu0 0.0
    %5387 = vmatprep.subr.mxu0 0.0
    %5388 = vmatpush1.msra.mxu0 0.0
    %5389 = vmatprep.subr.mxu0 0.0
    %5390 = vmatpush1.msra.mxu0 0.0
    %5391 = vmatprep.subr.mxu0 0.0
    %5392 = vmatpush1.msra.mxu0 0.0
    %5393 = vmatprep.subr.mxu0 0.0
    %5394 = vmatpush1.msra.mxu0 0.0
    %5395 = vmatprep.subr.mxu0 0.0
    %5396 = vmatpush1.msra.mxu0 0.0
    %5397 = vmatprep.subr.mxu0 0.0
    %5398 = vmatpush1.msra.mxu0 0.0
    %5399 = vmatprep.subr.mxu0 0.0
    %5400 = vmatpush1.msra.mxu0 0.0
    %5401 = vmatprep.subr.mxu0 0.0
    %5402 = vmatpush1.msra.mxu0 0.0
    %5403 = vmatprep.subr.mxu0 0.0
    %5404 = vmatpush1.msra.mxu0 0.0
    %5405 = vmatprep.subr.mxu0 0.0
    %5406 = vmatpush1.msra.mxu0 0.0
    %5407 = vmatprep.subr.mxu0 0.0
    %5408 = vmatpush1.msra.mxu0 0.0
    %5409 = vmatprep.subr.mxu0 0.0
    %5410 = vmatpush1.msra.mxu0 0.0
    %5411 = vmatprep.subr.mxu0 0.0
    %5412 = vmatpush1.msra.mxu0 0.0
    %5413 = vmatprep.subr.mxu0 0.0
    %5414 = vmatpush1.msra.mxu0 0.0
    %5415 = vmatprep.subr.mxu0 0.0
    %5416 = vmatpush1.msra.mxu0 0.0
    %5417 = vmatprep.subr.mxu0 0.0
    %5418 = vmatpush1.msra.mxu0 0.0
    %5419 = vmatprep.subr.mxu0 0.0
    %5420 = vmatpush1.msra.mxu0 0.0
    %5421 = vmatprep.subr.mxu0 0.0
    %5422 = vmatpush1.msra.mxu0 0.0
    %5423 = vmatprep.subr.mxu0 0.0
    %5424 = vmatpush1.msra.mxu0 0.0
    %5425 = vmatprep.subr.mxu0 0.0
    %5426 = vmatpush1.msra.mxu0 0.0
    %5427 = vmatprep.mubr.f32.mxu0 0.0
    %5428 = vmatmul.mubr.f32.gmra.mrb[0].mxu0 %v5290
    %v5429 = vpop.f32.mrb[0].mxu0
    %v5430 = vadd.f32 %v5359, %v5429
    %v5431 = vpop.f32.mrb[0].mxu0
    %v5432 = vadd.f32 %v5361, %v5431
    %5433 = vdwg.mxu0
    %5434 = vmatprep.subr.mxu0 %v4838
    %5435 = vmatpush1.msra.mxu0 %v4837
    %5436 = vmatprep.subr.mxu0 %v4848
    %5437 = vmatpush1.msra.mxu0 %v4847
    %5438 = vmatprep.subr.mxu0 %v4858
    %5439 = vmatpush1.msra.mxu0 %v4857
    %5440 = vmatprep.subr.mxu0 %v4868
    %5441 = vmatpush1.msra.mxu0 %v4867
    %5442 = vmatprep.subr.mxu0 %v4878
    %5443 = vmatpush1.msra.mxu0 %v4877
    %5444 = vmatprep.subr.mxu0 %v4888
    %5445 = vmatpush1.msra.mxu0 %v4887
    %5446 = vmatprep.subr.mxu0 %v4898
    %5447 = vmatpush1.msra.mxu0 %v4897
    %5448 = vmatprep.subr.mxu0 %v4908
    %5449 = vmatpush1.msra.mxu0 %v4907
    %5450 = vmatprep.subr.mxu0 %v4918
    %5451 = vmatpush1.msra.mxu0 %v4917
    %5452 = vmatprep.subr.mxu0 %v4928
    %5453 = vmatpush1.msra.mxu0 %v4927
    %5454 = vmatprep.subr.mxu0 %v4938
    %5455 = vmatpush1.msra.mxu0 %v4937
    %5456 = vmatprep.subr.mxu0 %v4948
    %5457 = vmatpush1.msra.mxu0 %v4947
    %5458 = vmatprep.subr.mxu0 %v4958
    %5459 = vmatpush1.msra.mxu0 %v4957
    %5460 = vmatprep.subr.mxu0 %v4968
    %5461 = vmatpush1.msra.mxu0 %v4967
    %5462 = vmatprep.subr.mxu0 %v4978
    %5463 = vmatpush1.msra.mxu0 %v4977
    %5464 = vmatprep.subr.mxu0 %v4988
    %5465 = vmatpush1.msra.mxu0 %v4987
    %5466 = vmatprep.subr.mxu0 %v4998
    %5467 = vmatpush1.msra.mxu0 %v4997
    %5468 = vmatprep.subr.mxu0 %v5008
    %5469 = vmatpush1.msra.mxu0 %v5007
    %5470 = vmatprep.subr.mxu0 %v5018
    %5471 = vmatpush1.msra.mxu0 %v5017
    %5472 = vmatprep.subr.mxu0 %v5028
    %5473 = vmatpush1.msra.mxu0 %v5027
    %5474 = vmatprep.subr.mxu0 %v5038
    %5475 = vmatpush1.msra.mxu0 %v5037
    %5476 = vmatprep.subr.mxu0 %v5048
    %5477 = vmatpush1.msra.mxu0 %v5047
    %5478 = vmatprep.subr.mxu0 %v5058
    %5479 = vmatpush1.msra.mxu0 %v5057
    %5480 = vmatprep.subr.mxu0 %v5068
    %5481 = vmatpush1.msra.mxu0 %v5067
    %5482 = vmatprep.subr.mxu0 %v5078
    %5483 = vmatpush1.msra.mxu0 %v5077
    %5484 = vmatprep.subr.mxu0 %v5088
    %5485 = vmatpush1.msra.mxu0 %v5087
    %5486 = vmatprep.subr.mxu0 %v5098
    %5487 = vmatpush1.msra.mxu0 %v5097
    %5488 = vmatprep.subr.mxu0 %v5108
    %5489 = vmatpush1.msra.mxu0 %v5107
    %5490 = vmatprep.subr.mxu0 %v5118
    %5491 = vmatpush1.msra.mxu0 %v5117
    %5492 = vmatprep.subr.mxu0 %v5128
    %5493 = vmatpush1.msra.mxu0 %v5127
    %5494 = vmatprep.subr.mxu0 %v5138
    %5495 = vmatpush1.msra.mxu0 %v5137
    %5496 = vmatprep.subr.mxu0 %v5148
    %5497 = vmatpush1.msra.mxu0 %v5147
    %5498 = vmatprep.mubr.f32.mxu0 %v4833
    %5499 = vmatmul.mubr.f32.gmra.mrb[0].mxu0 %v4832
    %v5500 = vpop.f32.mrb[0].mxu0
    %v5501 = vadd.f32 %v5250, %v5500
    %v5502 = vpop.f32.mrb[0].mxu0
    %v5503 = vadd.f32 %v5254, %v5502
    %5504 = vdwg.mxu0
    %5505 = vmatprep.subr.mxu0 %v5158
    %5506 = vmatpush1.msra.mxu0 %v5157
    %5507 = vmatprep.subr.mxu0 %v5168
    %5508 = vmatpush1.msra.mxu0 %v5167
    %5509 = vmatprep.subr.mxu0 %v5178
    %5510 = vmatpush1.msra.mxu0 %v5177
    %5511 = vmatprep.subr.mxu0 %v5188
    %5512 = vmatpush1.msra.mxu0 %v5187
    %5513 = vmatprep.subr.mxu0 %v5198
    %5514 = vmatpush1.msra.mxu0 %v5197
    %5515 = vmatprep.subr.mxu0 %v5208
    %5516 = vmatpush1.msra.mxu0 %v5207
    %5517 = vmatprep.subr.mxu0 %v5218
    %5518 = vmatpush1.msra.mxu0 %v5217
    %5519 = vmatprep.subr.mxu0 %v5228
    %5520 = vmatpush1.msra.mxu0 %v5227
    %5521 = vmatprep.subr.mxu0 0.0
    %5522 = vmatpush1.msra.mxu0 0.0
    %5523 = vmatprep.subr.mxu0 0.0
    %5524 = vmatpush1.msra.mxu0 0.0
    %5525 = vmatprep.subr.mxu0 0.0
    %5526 = vmatpush1.msra.mxu0 0.0
    %5527 = vmatprep.subr.mxu0 0.0
    %5528 = vmatpush1.msra.mxu0 0.0
    %5529 = vmatprep.subr.mxu0 0.0
    %5530 = vmatpush1.msra.mxu0 0.0
    %5531 = vmatprep.subr.mxu0 0.0
    %5532 = vmatpush1.msra.mxu0 0.0
    %5533 = vmatprep.subr.mxu0 0.0
    %5534 = vmatpush1.msra.mxu0 0.0
    %5535 = vmatprep.subr.mxu0 0.0
    %5536 = vmatpush1.msra.mxu0 0.0
    %5537 = vmatprep.subr.mxu0 0.0
    %5538 = vmatpush1.msra.mxu0 0.0
    %5539 = vmatprep.subr.mxu0 0.0
    %5540 = vmatpush1.msra.mxu0 0.0
    %5541 = vmatprep.subr.mxu0 0.0
    %5542 = vmatpush1.msra.mxu0 0.0
    %5543 = vmatprep.subr.mxu0 0.0
    %5544 = vmatpush1.msra.mxu0 0.0
    %5545 = vmatprep.subr.mxu0 0.0
    %5546 = vmatpush1.msra.mxu0 0.0
    %5547 = vmatprep.subr.mxu0 0.0
    %5548 = vmatpush1.msra.mxu0 0.0
    %5549 = vmatprep.subr.mxu0 0.0
    %5550 = vmatpush1.msra.mxu0 0.0
    %5551 = vmatprep.subr.mxu0 0.0
    %5552 = vmatpush1.msra.mxu0 0.0
    %5553 = vmatprep.subr.mxu0 0.0
    %5554 = vmatpush1.msra.mxu0 0.0
    %5555 = vmatprep.subr.mxu0 0.0
    %5556 = vmatpush1.msra.mxu0 0.0
    %5557 = vmatprep.subr.mxu0 0.0
    %5558 = vmatpush1.msra.mxu0 0.0
    %5559 = vmatprep.subr.mxu0 0.0
    %5560 = vmatpush1.msra.mxu0 0.0
    %5561 = vmatprep.subr.mxu0 0.0
    %5562 = vmatpush1.msra.mxu0 0.0
    %5563 = vmatprep.subr.mxu0 0.0
    %5564 = vmatpush1.msra.mxu0 0.0
    %5565 = vmatprep.subr.mxu0 0.0
    %5566 = vmatpush1.msra.mxu0 0.0
    %5567 = vmatprep.subr.mxu0 0.0
    %5568 = vmatpush1.msra.mxu0 0.0
    %5569 = vmatprep.mubr.f32.mxu0 0.0
    %5570 = vmatmul.mubr.f32.gmra.mrb[0].mxu0 %v5290
    %v5571 = vpop.f32.mrb[0].mxu0
    %v5572 = vadd.f32 %v5501, %v5571
    %v5573 = vpop.f32.mrb[0].mxu0
    %v5574 = vadd.f32 %v5503, %v5573
    %5575 = vdwg.mxu0
    %5576 = vmatprep.subr.mxu0 %v4840
    %5577 = vmatpush1.msra.mxu0 %v4839
    %5578 = vmatprep.subr.mxu0 %v4850
    %5579 = vmatpush1.msra.mxu0 %v4849
    %5580 = vmatprep.subr.mxu0 %v4860
    %5581 = vmatpush1.msra.mxu0 %v4859
    %5582 = vmatprep.subr.mxu0 %v4870
    %5583 = vmatpush1.msra.mxu0 %v4869
    %5584 = vmatprep.subr.mxu0 %v4880
    %5585 = vmatpush1.msra.mxu0 %v4879
    %5586 = vmatprep.subr.mxu0 %v4890
    %5587 = vmatpush1.msra.mxu0 %v4889
    %5588 = vmatprep.subr.mxu0 %v4900
    %5589 = vmatpush1.msra.mxu0 %v4899
    %5590 = vmatprep.subr.mxu0 %v4910
    %5591 = vmatpush1.msra.mxu0 %v4909
    %5592 = vmatprep.subr.mxu0 %v4920
    %5593 = vmatpush1.msra.mxu0 %v4919
    %5594 = vmatprep.subr.mxu0 %v4930
    %5595 = vmatpush1.msra.mxu0 %v4929
    %5596 = vmatprep.subr.mxu0 %v4940
    %5597 = vmatpush1.msra.mxu0 %v4939
    %5598 = vmatprep.subr.mxu0 %v4950
    %5599 = vmatpush1.msra.mxu0 %v4949
    %5600 = vmatprep.subr.mxu0 %v4960
    %5601 = vmatpush1.msra.mxu0 %v4959
    %5602 = vmatprep.subr.mxu0 %v4970
    %5603 = vmatpush1.msra.mxu0 %v4969
    %5604 = vmatprep.subr.mxu0 %v4980
    %5605 = vmatpush1.msra.mxu0 %v4979
    %5606 = vmatprep.subr.mxu0 %v4990
    %5607 = vmatpush1.msra.mxu0 %v4989
    %5608 = vmatprep.subr.mxu0 %v5000
    %5609 = vmatpush1.msra.mxu0 %v4999
    %5610 = vmatprep.subr.mxu0 %v5010
    %5611 = vmatpush1.msra.mxu0 %v5009
    %5612 = vmatprep.subr.mxu0 %v5020
    %5613 = vmatpush1.msra.mxu0 %v5019
    %5614 = vmatprep.subr.mxu0 %v5030
    %5615 = vmatpush1.msra.mxu0 %v5029
    %5616 = vmatprep.subr.mxu0 %v5040
    %5617 = vmatpush1.msra.mxu0 %v5039
    %5618 = vmatprep.subr.mxu0 %v5050
    %5619 = vmatpush1.msra.mxu0 %v5049
    %5620 = vmatprep.subr.mxu0 %v5060
    %5621 = vmatpush1.msra.mxu0 %v5059
    %5622 = vmatprep.subr.mxu0 %v5070
    %5623 = vmatpush1.msra.mxu0 %v5069
    %5624 = vmatprep.subr.mxu0 %v5080
    %5625 = vmatpush1.msra.mxu0 %v5079
    %5626 = vmatprep.subr.mxu0 %v5090
    %5627 = vmatpush1.msra.mxu0 %v5089
    %5628 = vmatprep.subr.mxu0 %v5100
    %5629 = vmatpush1.msra.mxu0 %v5099
    %5630 = vmatprep.subr.mxu0 %v5110
    %5631 = vmatpush1.msra.mxu0 %v5109
    %5632 = vmatprep.subr.mxu0 %v5120
    %5633 = vmatpush1.msra.mxu0 %v5119
    %5634 = vmatprep.subr.mxu0 %v5130
    %5635 = vmatpush1.msra.mxu0 %v5129
    %5636 = vmatprep.subr.mxu0 %v5140
    %5637 = vmatpush1.msra.mxu0 %v5139
    %5638 = vmatprep.subr.mxu0 %v5150
    %5639 = vmatpush1.msra.mxu0 %v5149
    %5640 = vmatprep.mubr.f32.mxu0 %v4833
    %5641 = vmatmul.mubr.f32.gmra.mrb[0].mxu0 %v4832
    %v5642 = vpop.f32.mrb[0].mxu0
    %v5643 = vadd.f32 %v5258, %v5642
    %v5644 = vpop.f32.mrb[0].mxu0
    %v5645 = vadd.f32 %v5262, %v5644
    %5646 = vdwg.mxu0
    %5647 = vmatprep.subr.mxu0 %v5160
    %5648 = vmatpush1.msra.mxu0 %v5159
    %5649 = vmatprep.subr.mxu0 %v5170
    %5650 = vmatpush1.msra.mxu0 %v5169
    %5651 = vmatprep.subr.mxu0 %v5180
    %5652 = vmatpush1.msra.mxu0 %v5179
    %5653 = vmatprep.subr.mxu0 %v5190
    %5654 = vmatpush1.msra.mxu0 %v5189
    %5655 = vmatprep.subr.mxu0 %v5200
    %5656 = vmatpush1.msra.mxu0 %v5199
    %5657 = vmatprep.subr.mxu0 %v5210
    %5658 = vmatpush1.msra.mxu0 %v5209
    %5659 = vmatprep.subr.mxu0 %v5220
    %5660 = vmatpush1.msra.mxu0 %v5219
    %5661 = vmatprep.subr.mxu0 %v5230
    %5662 = vmatpush1.msra.mxu0 %v5229
    %5663 = vmatprep.subr.mxu0 0.0
    %5664 = vmatpush1.msra.mxu0 0.0
    %5665 = vmatprep.subr.mxu0 0.0
    %5666 = vmatpush1.msra.mxu0 0.0
    %5667 = vmatprep.subr.mxu0 0.0
    %5668 = vmatpush1.msra.mxu0 0.0
    %5669 = vmatprep.subr.mxu0 0.0
    %5670 = vmatpush1.msra.mxu0 0.0
    %5671 = vmatprep.subr.mxu0 0.0
    %5672 = vmatpush1.msra.mxu0 0.0
    %5673 = vmatprep.subr.mxu0 0.0
    %5674 = vmatpush1.msra.mxu0 0.0
    %5675 = vmatprep.subr.mxu0 0.0
    %5676 = vmatpush1.msra.mxu0 0.0
    %5677 = vmatprep.subr.mxu0 0.0
    %5678 = vmatpush1.msra.mxu0 0.0
    %5679 = vmatprep.subr.mxu0 0.0
    %5680 = vmatpush1.msra.mxu0 0.0
    %5681 = vmatprep.subr.mxu0 0.0
    %5682 = vmatpush1.msra.mxu0 0.0
    %5683 = vmatprep.subr.mxu0 0.0
    %5684 = vmatpush1.msra.mxu0 0.0
    %5685 = vmatprep.subr.mxu0 0.0
    %5686 = vmatpush1.msra.mxu0 0.0
    %5687 = vmatprep.subr.mxu0 0.0
    %5688 = vmatpush1.msra.mxu0 0.0
    %5689 = vmatprep.subr.mxu0 0.0
    %5690 = vmatpush1.msra.mxu0 0.0
    %5691 = vmatprep.subr.mxu0 0.0
    %5692 = vmatpush1.msra.mxu0 0.0
    %5693 = vmatprep.subr.mxu0 0.0
    %5694 = vmatpush1.msra.mxu0 0.0
    %5695 = vmatprep.subr.mxu0 0.0
    %5696 = vmatpush1.msra.mxu0 0.0
    %5697 = vmatprep.subr.mxu0 0.0
    %5698 = vmatpush1.msra.mxu0 0.0
    %5699 = vmatprep.subr.mxu0 0.0
    %5700 = vmatpush1.msra.mxu0 0.0
    %5701 = vmatprep.subr.mxu0 0.0
    %5702 = vmatpush1.msra.mxu0 0.0
    %5703 = vmatprep.subr.mxu0 0.0
    %5704 = vmatpush1.msra.mxu0 0.0
    %5705 = vmatprep.subr.mxu0 0.0
    %5706 = vmatpush1.msra.mxu0 0.0
    %5707 = vmatprep.subr.mxu0 0.0
    %5708 = vmatpush1.msra.mxu0 0.0
    %5709 = vmatprep.subr.mxu0 0.0
    %5710 = vmatpush1.msra.mxu0 0.0
    %5711 = vmatprep.mubr.f32.mxu0 0.0
    %5712 = vmatmul.mubr.f32.gmra.mrb[0].mxu0 %v5290
    %v5713 = vpop.f32.mrb[0].mxu0
    %v5714 = vadd.f32 %v5643, %v5713
    %v5715 = vpop.f32.mrb[0].mxu0
    %v5716 = vadd.f32 %v5645, %v5715
    %5717 = vdwg.mxu0
    %5718 = vmatprep.subr.mxu0 %v4842
    %5719 = vmatpush1.msra.mxu0 %v4841
    %5720 = vmatprep.subr.mxu0 %v4852
    %5721 = vmatpush1.msra.mxu0 %v4851
    %5722 = vmatprep.subr.mxu0 %v4862
    %5723 = vmatpush1.msra.mxu0 %v4861
    %5724 = vmatprep.subr.mxu0 %v4872
    %5725 = vmatpush1.msra.mxu0 %v4871
    %5726 = vmatprep.subr.mxu0 %v4882
    %5727 = vmatpush1.msra.mxu0 %v4881
    %5728 = vmatprep.subr.mxu0 %v4892
    %5729 = vmatpush1.msra.mxu0 %v4891
    %5730 = vmatprep.subr.mxu0 %v4902
    %5731 = vmatpush1.msra.mxu0 %v4901
    %5732 = vmatprep.subr.mxu0 %v4912
    %5733 = vmatpush1.msra.mxu0 %v4911
    %5734 = vmatprep.subr.mxu0 %v4922
    %5735 = vmatpush1.msra.mxu0 %v4921
    %5736 = vmatprep.subr.mxu0 %v4932
    %5737 = vmatpush1.msra.mxu0 %v4931
    %5738 = vmatprep.subr.mxu0 %v4942
    %5739 = vmatpush1.msra.mxu0 %v4941
    %5740 = vmatprep.subr.mxu0 %v4952
    %5741 = vmatpush1.msra.mxu0 %v4951
    %5742 = vmatprep.subr.mxu0 %v4962
    %5743 = vmatpush1.msra.mxu0 %v4961
    %5744 = vmatprep.subr.mxu0 %v4972
    %5745 = vmatpush1.msra.mxu0 %v4971
    %5746 = vmatprep.subr.mxu0 %v4982
    %5747 = vmatpush1.msra.mxu0 %v4981
    %5748 = vmatprep.subr.mxu0 %v4992
    %5749 = vmatpush1.msra.mxu0 %v4991
    %5750 = vmatprep.subr.mxu0 %v5002
    %5751 = vmatpush1.msra.mxu0 %v5001
    %5752 = vmatprep.subr.mxu0 %v5012
    %5753 = vmatpush1.msra.mxu0 %v5011
    %5754 = vmatprep.subr.mxu0 %v5022
    %5755 = vmatpush1.msra.mxu0 %v5021
    %5756 = vmatprep.subr.mxu0 %v5032
    %5757 = vmatpush1.msra.mxu0 %v5031
    %5758 = vmatprep.subr.mxu0 %v5042
    %5759 = vmatpush1.msra.mxu0 %v5041
    %5760 = vmatprep.subr.mxu0 %v5052
    %5761 = vmatpush1.msra.mxu0 %v5051
    %5762 = vmatprep.subr.mxu0 %v5062
    %5763 = vmatpush1.msra.mxu0 %v5061
    %5764 = vmatprep.subr.mxu0 %v5072
    %5765 = vmatpush1.msra.mxu0 %v5071
    %5766 = vmatprep.subr.mxu0 %v5082
    %5767 = vmatpush1.msra.mxu0 %v5081
    %5768 = vmatprep.subr.mxu0 %v5092
    %5769 = vmatpush1.msra.mxu0 %v5091
    %5770 = vmatprep.subr.mxu0 %v5102
    %5771 = vmatpush1.msra.mxu0 %v5101
    %5772 = vmatprep.subr.mxu0 %v5112
    %5773 = vmatpush1.msra.mxu0 %v5111
    %5774 = vmatprep.subr.mxu0 %v5122
    %5775 = vmatpush1.msra.mxu0 %v5121
    %5776 = vmatprep.subr.mxu0 %v5132
    %5777 = vmatpush1.msra.mxu0 %v5131
    %5778 = vmatprep.subr.mxu0 %v5142
    %5779 = vmatpush1.msra.mxu0 %v5141
    %5780 = vmatprep.subr.mxu0 %v5152
    %5781 = vmatpush1.msra.mxu0 %v5151
    %5782 = vmatprep.mubr.f32.mxu0 %v4833
    %5783 = vmatmul.mubr.f32.gmra.mrb[0].mxu0 %v4832
    %v5784 = vpop.f32.mrb[0].mxu0
    %v5785 = vadd.f32 %v5266, %v5784
    %v5786 = vpop.f32.mrb[0].mxu0
    %v5787 = vadd.f32 %v5270, %v5786
    %5788 = vdwg.mxu0
    %5789 = vmatprep.subr.mxu0 %v5162
    %5790 = vmatpush1.msra.mxu0 %v5161
    %5791 = vmatprep.subr.mxu0 %v5172
    %5792 = vmatpush1.msra.mxu0 %v5171
    %5793 = vmatprep.subr.mxu0 %v5182
    %5794 = vmatpush1.msra.mxu0 %v5181
    %5795 = vmatprep.subr.mxu0 %v5192
    %5796 = vmatpush1.msra.mxu0 %v5191
    %5797 = vmatprep.subr.mxu0 %v5202
    %5798 = vmatpush1.msra.mxu0 %v5201
    %5799 = vmatprep.subr.mxu0 %v5212
    %5800 = vmatpush1.msra.mxu0 %v5211
    %5801 = vmatprep.subr.mxu0 %v5222
    %5802 = vmatpush1.msra.mxu0 %v5221
    %5803 = vmatprep.subr.mxu0 %v5232
    %5804 = vmatpush1.msra.mxu0 %v5231
    %5805 = vmatprep.subr.mxu0 0.0
    %5806 = vmatpush1.msra.mxu0 0.0
    %5807 = vmatprep.subr.mxu0 0.0
    %5808 = vmatpush1.msra.mxu0 0.0
    %5809 = vmatprep.subr.mxu0 0.0
    %5810 = vmatpush1.msra.mxu0 0.0
    %5811 = vmatprep.subr.mxu0 0.0
    %5812 = vmatpush1.msra.mxu0 0.0
    %5813 = vmatprep.subr.mxu0 0.0
    %5814 = vmatpush1.msra.mxu0 0.0
    %5815 = vmatprep.subr.mxu0 0.0
    %5816 = vmatpush1.msra.mxu0 0.0
    %5817 = vmatprep.subr.mxu0 0.0
    %5818 = vmatpush1.msra.mxu0 0.0
    %5819 = vmatprep.subr.mxu0 0.0
    %5820 = vmatpush1.msra.mxu0 0.0
    %5821 = vmatprep.subr.mxu0 0.0
    %5822 = vmatpush1.msra.mxu0 0.0
    %5823 = vmatprep.subr.mxu0 0.0
    %5824 = vmatpush1.msra.mxu0 0.0
    %5825 = vmatprep.subr.mxu0 0.0
    %5826 = vmatpush1.msra.mxu0 0.0
    %5827 = vmatprep.subr.mxu0 0.0
    %5828 = vmatpush1.msra.mxu0 0.0
    %5829 = vmatprep.subr.mxu0 0.0
    %5830 = vmatpush1.msra.mxu0 0.0
    %5831 = vmatprep.subr.mxu0 0.0
    %5832 = vmatpush1.msra.mxu0 0.0
    %5833 = vmatprep.subr.mxu0 0.0
    %5834 = vmatpush1.msra.mxu0 0.0
    %5835 = vmatprep.subr.mxu0 0.0
    %5836 = vmatpush1.msra.mxu0 0.0
    %5837 = vmatprep.subr.mxu0 0.0
    %5838 = vmatpush1.msra.mxu0 0.0
    %5839 = vmatprep.subr.mxu0 0.0
    %5840 = vmatpush1.msra.mxu0 0.0
    %5841 = vmatprep.subr.mxu0 0.0
    %5842 = vmatpush1.msra.mxu0 0.0
    %5843 = vmatprep.subr.mxu0 0.0
    %5844 = vmatpush1.msra.mxu0 0.0
    %5845 = vmatprep.subr.mxu0 0.0
    %5846 = vmatpush1.msra.mxu0 0.0
    %5847 = vmatprep.subr.mxu0 0.0
    %5848 = vmatpush1.msra.mxu0 0.0
    %5849 = vmatprep.subr.mxu0 0.0
    %5850 = vmatpush1.msra.mxu0 0.0
    %5851 = vmatprep.subr.mxu0 0.0
    %5852 = vmatpush1.msra.mxu0 0.0
    %5853 = vmatprep.mubr.f32.mxu0 0.0
    %5854 = vmatmul.mubr.f32.gmra.mrb[0].mxu0 %v5290
    %v5855 = vpop.f32.mrb[0].mxu0
    %v5856 = vadd.f32 %v5785, %v5855
    %v5857 = vpop.f32.mrb[0].mxu0
    %v5858 = vadd.f32 %v5787, %v5857
    %5859 = vdwg.mxu0
    %5860 = vmatprep.subr.mxu0 %v4844
    %5861 = vmatpush1.msra.mxu0 %v4843
    %5862 = vmatprep.subr.mxu0 %v4854
    %5863 = vmatpush1.msra.mxu0 %v4853
    %5864 = vmatprep.subr.mxu0 %v4864
    %5865 = vmatpush1.msra.mxu0 %v4863
    %5866 = vmatprep.subr.mxu0 %v4874
    %5867 = vmatpush1.msra.mxu0 %v4873
    %5868 = vmatprep.subr.mxu0 %v4884
    %5869 = vmatpush1.msra.mxu0 %v4883
    %5870 = vmatprep.subr.mxu0 %v4894
    %5871 = vmatpush1.msra.mxu0 %v4893
    %5872 = vmatprep.subr.mxu0 %v4904
    %5873 = vmatpush1.msra.mxu0 %v4903
    %5874 = vmatprep.subr.mxu0 %v4914
    %5875 = vmatpush1.msra.mxu0 %v4913
    %5876 = vmatprep.subr.mxu0 %v4924
    %5877 = vmatpush1.msra.mxu0 %v4923
    %5878 = vmatprep.subr.mxu0 %v4934
    %5879 = vmatpush1.msra.mxu0 %v4933
    %5880 = vmatprep.subr.mxu0 %v4944
    %5881 = vmatpush1.msra.mxu0 %v4943
    %5882 = vmatprep.subr.mxu0 %v4954
    %5883 = vmatpush1.msra.mxu0 %v4953
    %5884 = vmatprep.subr.mxu0 %v4964
    %5885 = vmatpush1.msra.mxu0 %v4963
    %5886 = vmatprep.subr.mxu0 %v4974
    %5887 = vmatpush1.msra.mxu0 %v4973
    %5888 = vmatprep.subr.mxu0 %v4984
    %5889 = vmatpush1.msra.mxu0 %v4983
    %5890 = vmatprep.subr.mxu0 %v4994
    %5891 = vmatpush1.msra.mxu0 %v4993
    %5892 = vmatprep.subr.mxu0 %v5004
    %5893 = vmatpush1.msra.mxu0 %v5003
    %5894 = vmatprep.subr.mxu0 %v5014
    %5895 = vmatpush1.msra.mxu0 %v5013
    %5896 = vmatprep.subr.mxu0 %v5024
    %5897 = vmatpush1.msra.mxu0 %v5023
    %5898 = vmatprep.subr.mxu0 %v5034
    %5899 = vmatpush1.msra.mxu0 %v5033
    %5900 = vmatprep.subr.mxu0 %v5044
    %5901 = vmatpush1.msra.mxu0 %v5043
    %5902 = vmatprep.subr.mxu0 %v5054
    %5903 = vmatpush1.msra.mxu0 %v5053
    %5904 = vmatprep.subr.mxu0 %v5064
    %5905 = vmatpush1.msra.mxu0 %v5063
    %5906 = vmatprep.subr.mxu0 %v5074
    %5907 = vmatpush1.msra.mxu0 %v5073
    %5908 = vmatprep.subr.mxu0 %v5084
    %5909 = vmatpush1.msra.mxu0 %v5083
    %5910 = vmatprep.subr.mxu0 %v5094
    %5911 = vmatpush1.msra.mxu0 %v5093
    %5912 = vmatprep.subr.mxu0 %v5104
    %5913 = vmatpush1.msra.mxu0 %v5103
    %5914 = vmatprep.subr.mxu0 %v5114
    %5915 = vmatpush1.msra.mxu0 %v5113
    %5916 = vmatprep.subr.mxu0 %v5124
    %5917 = vmatpush1.msra.mxu0 %v5123
    %5918 = vmatprep.subr.mxu0 %v5134
    %5919 = vmatpush1.msra.mxu0 %v5133
    %5920 = vmatprep.subr.mxu0 %v5144
    %5921 = vmatpush1.msra.mxu0 %v5143
    %5922 = vmatprep.subr.mxu0 %v5154
    %5923 = vmatpush1.msra.mxu0 %v5153
    %5924 = vmatprep.mubr.f32.mxu0 %v4833
    %5925 = vmatmul.mubr.f32.gmra.mrb[0].mxu0 %v4832
    %v5926 = vpop.f32.mrb[0].mxu0
    %v5927 = vadd.f32 %v5274, %v5926
    %v5928 = vpop.f32.mrb[0].mxu0
    %v5929 = vadd.f32 %v5278, %v5928
    %5930 = vdwg.mxu0
    %5931 = vmatprep.subr.mxu0 %v5164
    %5932 = vmatpush1.msra.mxu0 %v5163
    %5933 = vmatprep.subr.mxu0 %v5174
    %5934 = vmatpush1.msra.mxu0 %v5173
    %5935 = vmatprep.subr.mxu0 %v5184
    %5936 = vmatpush1.msra.mxu0 %v5183
    %5937 = vmatprep.subr.mxu0 %v5194
    %5938 = vmatpush1.msra.mxu0 %v5193
    %5939 = vmatprep.subr.mxu0 %v5204
    %5940 = vmatpush1.msra.mxu0 %v5203
    %5941 = vmatprep.subr.mxu0 %v5214
    %5942 = vmatpush1.msra.mxu0 %v5213
    %5943 = vmatprep.subr.mxu0 %v5224
    %5944 = vmatpush1.msra.mxu0 %v5223
    %5945 = vmatprep.subr.mxu0 %v5234
    %5946 = vmatpush1.msra.mxu0 %v5233
    %5947 = vmatprep.subr.mxu0 0.0
    %5948 = vmatpush1.msra.mxu0 0.0
    %5949 = vmatprep.subr.mxu0 0.0
    %5950 = vmatpush1.msra.mxu0 0.0
    %5951 = vmatprep.subr.mxu0 0.0
    %5952 = vmatpush1.msra.mxu0 0.0
    %5953 = vmatprep.subr.mxu0 0.0
    %5954 = vmatpush1.msra.mxu0 0.0
    %5955 = vmatprep.subr.mxu0 0.0
    %5956 = vmatpush1.msra.mxu0 0.0
    %5957 = vmatprep.subr.mxu0 0.0
    %5958 = vmatpush1.msra.mxu0 0.0
    %5959 = vmatprep.subr.mxu0 0.0
    %5960 = vmatpush1.msra.mxu0 0.0
    %5961 = vmatprep.subr.mxu0 0.0
    %5962 = vmatpush1.msra.mxu0 0.0
    %5963 = vmatprep.subr.mxu0 0.0
    %5964 = vmatpush1.msra.mxu0 0.0
    %5965 = vmatprep.subr.mxu0 0.0
    %5966 = vmatpush1.msra.mxu0 0.0
    %5967 = vmatprep.subr.mxu0 0.0
    %5968 = vmatpush1.msra.mxu0 0.0
    %5969 = vmatprep.subr.mxu0 0.0
    %5970 = vmatpush1.msra.mxu0 0.0
    %5971 = vmatprep.subr.mxu0 0.0
    %5972 = vmatpush1.msra.mxu0 0.0
    %5973 = vmatprep.subr.mxu0 0.0
    %5974 = vmatpush1.msra.mxu0 0.0
    %5975 = vmatprep.subr.mxu0 0.0
    %5976 = vmatpush1.msra.mxu0 0.0
    %5977 = vmatprep.subr.mxu0 0.0
    %5978 = vmatpush1.msra.mxu0 0.0
    %5979 = vmatprep.subr.mxu0 0.0
    %5980 = vmatpush1.msra.mxu0 0.0
    %5981 = vmatprep.subr.mxu0 0.0
    %5982 = vmatpush1.msra.mxu0 0.0
    %5983 = vmatprep.subr.mxu0 0.0
    %5984 = vmatpush1.msra.mxu0 0.0
    %5985 = vmatprep.subr.mxu0 0.0
    %5986 = vmatpush1.msra.mxu0 0.0
    %5987 = vmatprep.subr.mxu0 0.0
    %5988 = vmatpush1.msra.mxu0 0.0
    %5989 = vmatprep.subr.mxu0 0.0
    %5990 = vmatpush1.msra.mxu0 0.0
    %5991 = vmatprep.subr.mxu0 0.0
    %5992 = vmatpush1.msra.mxu0 0.0
    %5993 = vmatprep.subr.mxu0 0.0
    %5994 = vmatpush1.msra.mxu0 0.0
    %5995 = vmatprep.mubr.f32.mxu0 0.0
    %5996 = vmatmul.mubr.f32.gmra.mrb[0].mxu0 %v5290
    %v5997 = vpop.f32.mrb[0].mxu0
    %v5998 = vadd.f32 %v5927, %v5997
    %v5999 = vpop.f32.mrb[0].mxu0
    %v6000 = vadd.f32 %v5929, %v5999
    %6001 = vdwg.mxu0
    %v6002 = vld [vmem:[#allocation58] sm:$0xff]
    %v6003 = vld [vmem:[#allocation58 + $0x8] sm:$0xff]
    %v6004 = vld [vmem:[#allocation58 + $0x10] sm:$0xff]
    %v6005 = vld [vmem:[#allocation58 + $0x18] sm:$0xff]
    %v6006 = vld [vmem:[#allocation58 + $0x20] sm:$0xff]
    %v6007 = vld [vmem:[#allocation58 + $0x28] sm:$0xff]
    %v6008 = vld [vmem:[#allocation58 + $0x30] sm:$0xff]
    %v6009 = vld [vmem:[#allocation58 + $0x38] sm:$0xff]
    %v6010 = vld [vmem:[#allocation58 + $0x40] sm:$0xff]
    %v6011 = vld [vmem:[#allocation58 + $0x48] sm:$0xff]
    %v6012 = vld [vmem:[#allocation58 + $0x50] sm:$0xff]
    %v6013 = vld [vmem:[#allocation58 + $0x58] sm:$0xff]
    %v6014 = vld [vmem:[#allocation58 + $0x60] sm:$0xff]
    %v6015 = vld [vmem:[#allocation58 + $0x68] sm:$0xff]
    %v6016 = vld [vmem:[#allocation58 + $0x70] sm:$0xff]
    %v6017 = vld [vmem:[#allocation58 + $0x78] sm:$0xff]
    %v6018 = vld [vmem:[#allocation58 + $0x80] sm:$0xff]
    %v6019 = vld [vmem:[#allocation58 + $0x88] sm:$0xff]
    %v6020 = vld [vmem:[#allocation58 + $0x90] sm:$0xff]
    %v6021 = vld [vmem:[#allocation58 + $0x98] sm:$0xff]
    %v6022 = vld [vmem:[#allocation58 + $0xa0] sm:$0xff]
    %v6023 = vld [vmem:[#allocation58 + $0xa8] sm:$0xff]
    %v6024 = vld [vmem:[#allocation58 + $0xb0] sm:$0xff]
    %v6025 = vld [vmem:[#allocation58 + $0xb8] sm:$0xff]
    %v6026 = vld [vmem:[#allocation58 + $0xc0] sm:$0xff]
    %v6027 = vld [vmem:[#allocation58 + $0xc8] sm:$0xff]
    %v6028 = vld [vmem:[#allocation58 + $0xd0] sm:$0xff]
    %v6029 = vld [vmem:[#allocation58 + $0xd8] sm:$0xff]
    %v6030 = vld [vmem:[#allocation58 + $0xe0] sm:$0xff]
    %v6031 = vld [vmem:[#allocation58 + $0xe8] sm:$0xff]
    %v6032 = vld [vmem:[#allocation58 + $0xf0] sm:$0xff]
    %v6033 = vld [vmem:[#allocation58 + $0xf8] sm:$0xff]
    %v6034 = vld [vmem:[#allocation58 + $0x100] sm:$0x1f]
    %v6035 = vld [vmem:[#allocation58 + $0x108] sm:$0x1f]
    %v6036 = vld [vmem:[#allocation59] sm:$0xff]
    %v6037 = vld [vmem:[#allocation59 + $0x8] sm:$0xff]
    %v6038 = vld [vmem:[#allocation59 + $0x10] sm:$0xff]
    %v6039 = vld [vmem:[#allocation59 + $0x18] sm:$0xff]
    %v6040 = vld [vmem:[#allocation59 + $0x20] sm:$0xff]
    %v6041 = vld [vmem:[#allocation59 + $0x28] sm:$0xff]
    %v6042 = vld [vmem:[#allocation59 + $0x30] sm:$0xff]
    %v6043 = vld [vmem:[#allocation59 + $0x38] sm:$0xff]
    %v6044 = vld [vmem:[#allocation59 + $0x40] sm:$0xff]
    %v6045 = vld [vmem:[#allocation59 + $0x48] sm:$0xff]
    %v6046 = vld [vmem:[#allocation59 + $0x50] sm:$0xff]
    %v6047 = vld [vmem:[#allocation59 + $0x58] sm:$0xff]
    %v6048 = vld [vmem:[#allocation59 + $0x60] sm:$0xff]
    %v6049 = vld [vmem:[#allocation59 + $0x68] sm:$0xff]
    %v6050 = vld [vmem:[#allocation59 + $0x70] sm:$0xff]
    %v6051 = vld [vmem:[#allocation59 + $0x78] sm:$0xff]
    %v6052 = vld [vmem:[#allocation59 + $0x80] sm:$0xff]
    %v6053 = vld [vmem:[#allocation59 + $0x88] sm:$0xff]
    %v6054 = vld [vmem:[#allocation59 + $0x90] sm:$0xff]
    %v6055 = vld [vmem:[#allocation59 + $0x98] sm:$0xff]
    %v6056 = vld [vmem:[#allocation59 + $0xa0] sm:$0xff]
    %v6057 = vld [vmem:[#allocation59 + $0xa8] sm:$0xff]
    %v6058 = vld [vmem:[#allocation59 + $0xb0] sm:$0xff]
    %v6059 = vld [vmem:[#allocation59 + $0xb8] sm:$0xff]
    %v6060 = vld [vmem:[#allocation59 + $0xc0] sm:$0xff]
    %v6061 = vld [vmem:[#allocation59 + $0xc8] sm:$0xff]
    %v6062 = vld [vmem:[#allocation59 + $0xd0] sm:$0xff]
    %v6063 = vld [vmem:[#allocation59 + $0xd8] sm:$0xff]
    %v6064 = vld [vmem:[#allocation59 + $0xe0] sm:$0xff]
    %v6065 = vld [vmem:[#allocation59 + $0xe8] sm:$0xff]
    %vm6066 = vcmask 982016
    %v6068 = vsel %vm6066, %v5430, 0
    %6070 = vmatprep.subr.mxu0 %v6037
    %6071 = vmatpush1.msra.mxu0 %v6036
    %6072 = vmatprep.subr.mxu0 %v6039
    %6073 = vmatpush1.msra.mxu0 %v6038
    %6074 = vmatprep.subr.mxu0 %v6041
    %6075 = vmatpush1.msra.mxu0 %v6040
    %6076 = vmatprep.subr.mxu0 %v6043
    %6077 = vmatpush1.msra.mxu0 %v6042
    %6078 = vmatprep.subr.mxu0 %v6045
    %6079 = vmatpush1.msra.mxu0 %v6044
    %6080 = vmatprep.subr.mxu0 %v6047
    %6081 = vmatpush1.msra.mxu0 %v6046
    %6082 = vmatprep.subr.mxu0 %v6049
    %6083 = vmatpush1.msra.mxu0 %v6048
    %6084 = vmatprep.subr.mxu0 %v6051
    %6085 = vmatpush1.msra.mxu0 %v6050
    %6086 = vmatprep.subr.mxu0 %v6053
    %6087 = vmatpush1.msra.mxu0 %v6052
    %6088 = vmatprep.subr.mxu0 %v6055
    %6089 = vmatpush1.msra.mxu0 %v6054
    %6090 = vmatprep.subr.mxu0 %v6057
    %6091 = vmatpush1.msra.mxu0 %v6056
    %6092 = vmatprep.subr.mxu0 %v6059
    %6093 = vmatpush1.msra.mxu0 %v6058
    %6094 = vmatprep.subr.mxu0 %v6061
    %6095 = vmatpush1.msra.mxu0 %v6060
    %6096 = vmatprep.subr.mxu0 %v6063
    %6097 = vmatpush1.msra.mxu0 %v6062
    %6098 = vmatprep.subr.mxu0 %v6065
    %6099 = vmatpush1.msra.mxu0 %v6064
    %6100 = vmatprep.subr.mxu0 0.0
    %6101 = vmatpush1.msra.mxu0 0.0
    %6102 = vmatprep.subr.mxu0 0.0
    %6103 = vmatpush1.msra.mxu0 0.0
    %6104 = vmatprep.subr.mxu0 0.0
    %6105 = vmatpush1.msra.mxu0 0.0
    %6106 = vmatprep.subr.mxu0 0.0
    %6107 = vmatpush1.msra.mxu0 0.0
    %6108 = vmatprep.subr.mxu0 0.0
    %6109 = vmatpush1.msra.mxu0 0.0
    %6110 = vmatprep.subr.mxu0 0.0
    %6111 = vmatpush1.msra.mxu0 0.0
    %6112 = vmatprep.subr.mxu0 0.0
    %6113 = vmatpush1.msra.mxu0 0.0
    %6114 = vmatprep.subr.mxu0 0.0
    %6115 = vmatpush1.msra.mxu0 0.0
    %6116 = vmatprep.subr.mxu0 0.0
    %6117 = vmatpush1.msra.mxu0 0.0
    %6118 = vmatprep.subr.mxu0 0.0
    %6119 = vmatpush1.msra.mxu0 0.0
    %6120 = vmatprep.subr.mxu0 0.0
    %6121 = vmatpush1.msra.mxu0 0.0
    %6122 = vmatprep.subr.mxu0 0.0
    %6123 = vmatpush1.msra.mxu0 0.0
    %6124 = vmatprep.subr.mxu0 0.0
    %6125 = vmatpush1.msra.mxu0 0.0
    %6126 = vmatprep.subr.mxu0 0.0
    %6127 = vmatpush1.msra.mxu0 0.0
    %6128 = vmatprep.subr.mxu0 0.0
    %6129 = vmatpush1.msra.mxu0 0.0
    %6130 = vmatprep.subr.mxu0 0.0
    %6131 = vmatpush1.msra.mxu0 0.0
    %6132 = vmatprep.subr.mxu0 0.0
    %6133 = vmatpush1.msra.mxu0 0.0
    %6134 = vmatprep.mubr.f32.mxu0 0.0
    %6135 = vmatmul.mubr.f32.gmra.mrb[0].mxu0 %v6068
    %v6136 = vpop.f32.mrb[0].mxu0
    %v6137 = vadd.f32 0.0, %v6136
    %v6138 = vpop.f32.mrb[0].mxu0
    %v6139 = vadd.f32 0.0, %v6138
    %6140 = vdwg.mxu0
    %v6142 = vsel %vm1590, %v6034, 0
    %v6145 = vsel %vm1590, %v6035, 0
    %6147 = vmatprep.subr.mxu0 %v6003
    %6148 = vmatpush1.msra.mxu0 %v6002
    %6149 = vmatprep.subr.mxu0 %v6005
    %6150 = vmatpush1.msra.mxu0 %v6004
    %6151 = vmatprep.subr.mxu0 %v6007
    %6152 = vmatpush1.msra.mxu0 %v6006
    %6153 = vmatprep.subr.mxu0 %v6009
    %6154 = vmatpush1.msra.mxu0 %v6008
    %6155 = vmatprep.subr.mxu0 %v6011
    %6156 = vmatpush1.msra.mxu0 %v6010
    %6157 = vmatprep.subr.mxu0 %v6013
    %6158 = vmatpush1.msra.mxu0 %v6012
    %6159 = vmatprep.subr.mxu0 %v6015
    %6160 = vmatpush1.msra.mxu0 %v6014
    %6161 = vmatprep.subr.mxu0 %v6017
    %6162 = vmatpush1.msra.mxu0 %v6016
    %6163 = vmatprep.subr.mxu0 %v6019
    %6164 = vmatpush1.msra.mxu0 %v6018
    %6165 = vmatprep.subr.mxu0 %v6021
    %6166 = vmatpush1.msra.mxu0 %v6020
    %6167 = vmatprep.subr.mxu0 %v6023
    %6168 = vmatpush1.msra.mxu0 %v6022
    %6169 = vmatprep.subr.mxu0 %v6025
    %6170 = vmatpush1.msra.mxu0 %v6024
    %6171 = vmatprep.subr.mxu0 %v6027
    %6172 = vmatpush1.msra.mxu0 %v6026
    %6173 = vmatprep.subr.mxu0 %v6029
    %6174 = vmatpush1.msra.mxu0 %v6028
    %6175 = vmatprep.subr.mxu0 %v6031
    %6176 = vmatpush1.msra.mxu0 %v6030
    %6177 = vmatprep.subr.mxu0 %v6033
    %6178 = vmatpush1.msra.mxu0 %v6032
    %6179 = vmatprep.subr.mxu0 %v6145
    %6180 = vmatpush1.msra.mxu0 %v6142
    %6181 = vmatprep.subr.mxu0 0.0
    %6182 = vmatpush1.msra.mxu0 0.0
    %6183 = vmatprep.subr.mxu0 0.0
    %6184 = vmatpush1.msra.mxu0 0.0
    %6185 = vmatprep.subr.mxu0 0.0
    %6186 = vmatpush1.msra.mxu0 0.0
    %6187 = vmatprep.subr.mxu0 0.0
    %6188 = vmatpush1.msra.mxu0 0.0
    %6189 = vmatprep.subr.mxu0 0.0
    %6190 = vmatpush1.msra.mxu0 0.0
    %6191 = vmatprep.subr.mxu0 0.0
    %6192 = vmatpush1.msra.mxu0 0.0
    %6193 = vmatprep.subr.mxu0 0.0
    %6194 = vmatpush1.msra.mxu0 0.0
    %6195 = vmatprep.subr.mxu0 0.0
    %6196 = vmatpush1.msra.mxu0 0.0
    %6197 = vmatprep.subr.mxu0 0.0
    %6198 = vmatpush1.msra.mxu0 0.0
    %6199 = vmatprep.subr.mxu0 0.0
    %6200 = vmatpush1.msra.mxu0 0.0
    %6201 = vmatprep.subr.mxu0 0.0
    %6202 = vmatpush1.msra.mxu0 0.0
    %6203 = vmatprep.subr.mxu0 0.0
    %6204 = vmatpush1.msra.mxu0 0.0
    %6205 = vmatprep.subr.mxu0 0.0
    %6206 = vmatpush1.msra.mxu0 0.0
    %6207 = vmatprep.subr.mxu0 0.0
    %6208 = vmatpush1.msra.mxu0 0.0
    %6209 = vmatprep.subr.mxu0 0.0
    %6210 = vmatpush1.msra.mxu0 0.0
    %6211 = vmatprep.mubr.f32.mxu0 %v1588
    %6212 = vmatmul.mubr.f32.gmra.mrb[0].mxu0 %v1584
    %v6213 = vpop.f32.mrb[0].mxu0
    %v6214 = vadd.f32 %v6137, %v6213
    %v6215 = vpop.f32.mrb[0].mxu0
    %v6216 = vadd.f32 %v6139, %v6215
    %6217 = vdwg.mxu0
    %v6218 = vld [vmem:[#allocation62] sm:$0x3]
    %v6220 = vlaneseq
    %v6221 = vshrl.u32 %v6220, 7
    %v6222 = vsub.s32 0, %v6221
    %v6223 = vrot.slane %v6218, %v6222
    %v6224 = vlaneseq
    %v6225 = vshrl.u32 %v6224, 7
    %v6226 = vsub.s32 1, %v6225
    %v6227 = vrot.slane %v6218, %v6226
    %v6230 = vadd.f32 %v6214, %v6223
    %v6231 = vadd.f32 %v6216, %v6227
    %v6232 = vxor.u32 %v5432, 2147483648
    %v6233 = vmul.f32 %v6232, 1.442695
    %v6234 = vpow.pop %v6233
    %v6235 = vadd.f32 %v6234, 1.0
    %v6236 = vrcp.pop %v6235
    %v6237 = vmul.f32 1.0, %v6236
    %v6238 = vmul.f32 %v2717, %v6237
    %v6239 = vld [vmem:[#allocation61] sm:$0xff]
    %v6240 = vld [vmem:[#allocation61 + $0x8] sm:$0xff]
    %v6241 = vld [vmem:[#allocation61 + $0x10] sm:$0xff]
    %v6242 = vld [vmem:[#allocation61 + $0x18] sm:$0xff]
    %v6243 = vld [vmem:[#allocation61 + $0x20] sm:$0xff]
    %v6244 = vld [vmem:[#allocation61 + $0x28] sm:$0xff]
    %v6246 = vsel %vm1502, %v6238, 0
    %6248 = vmatprep.subr.mxu0 %v6240
    %6249 = vmatpush1.msra.mxu0 %v6239
    %6250 = vmatprep.subr.mxu0 %v6242
    %6251 = vmatpush1.msra.mxu0 %v6241
    %6252 = vmatprep.subr.mxu0 %v6244
    %6253 = vmatpush1.msra.mxu0 %v6243
    %6254 = vmatprep.subr.mxu0 0.0
    %6255 = vmatpush1.msra.mxu0 0.0
    %6256 = vmatprep.subr.mxu0 0.0
    %6257 = vmatpush1.msra.mxu0 0.0
    %6258 = vmatprep.subr.mxu0 0.0
    %6259 = vmatpush1.msra.mxu0 0.0
    %6260 = vmatprep.subr.mxu0 0.0
    %6261 = vmatpush1.msra.mxu0 0.0
    %6262 = vmatprep.subr.mxu0 0.0
    %6263 = vmatpush1.msra.mxu0 0.0
    %6264 = vmatprep.subr.mxu0 0.0
    %6265 = vmatpush1.msra.mxu0 0.0
    %6266 = vmatprep.subr.mxu0 0.0
    %6267 = vmatpush1.msra.mxu0 0.0
    %6268 = vmatprep.subr.mxu0 0.0
    %6269 = vmatpush1.msra.mxu0 0.0
    %6270 = vmatprep.subr.mxu0 0.0
    %6271 = vmatpush1.msra.mxu0 0.0
    %6272 = vmatprep.subr.mxu0 0.0
    %6273 = vmatpush1.msra.mxu0 0.0
    %6274 = vmatprep.subr.mxu0 0.0
    %6275 = vmatpush1.msra.mxu0 0.0
    %6276 = vmatprep.subr.mxu0 0.0
    %6277 = vmatpush1.msra.mxu0 0.0
    %6278 = vmatprep.subr.mxu0 0.0
    %6279 = vmatpush1.msra.mxu0 0.0
    %6280 = vmatprep.subr.mxu0 0.0
    %6281 = vmatpush1.msra.mxu0 0.0
    %6282 = vmatprep.subr.mxu0 0.0
    %6283 = vmatpush1.msra.mxu0 0.0
    %6284 = vmatprep.subr.mxu0 0.0
    %6285 = vmatpush1.msra.mxu0 0.0
    %6286 = vmatprep.subr.mxu0 0.0
    %6287 = vmatpush1.msra.mxu0 0.0
    %6288 = vmatprep.subr.mxu0 0.0
    %6289 = vmatpush1.msra.mxu0 0.0
    %6290 = vmatprep.subr.mxu0 0.0
    %6291 = vmatpush1.msra.mxu0 0.0
    %6292 = vmatprep.subr.mxu0 0.0
    %6293 = vmatpush1.msra.mxu0 0.0
    %6294 = vmatprep.subr.mxu0 0.0
    %6295 = vmatpush1.msra.mxu0 0.0
    %6296 = vmatprep.subr.mxu0 0.0
    %6297 = vmatpush1.msra.mxu0 0.0
    %6298 = vmatprep.subr.mxu0 0.0
    %6299 = vmatpush1.msra.mxu0 0.0
    %6300 = vmatprep.subr.mxu0 0.0
    %6301 = vmatpush1.msra.mxu0 0.0
    %6302 = vmatprep.subr.mxu0 0.0
    %6303 = vmatpush1.msra.mxu0 0.0
    %6304 = vmatprep.subr.mxu0 0.0
    %6305 = vmatpush1.msra.mxu0 0.0
    %6306 = vmatprep.subr.mxu0 0.0
    %6307 = vmatpush1.msra.mxu0 0.0
    %6308 = vmatprep.subr.mxu0 0.0
    %6309 = vmatpush1.msra.mxu0 0.0
    %6310 = vmatprep.subr.mxu0 0.0
    %6311 = vmatpush1.msra.mxu0 0.0
    %6312 = vmatprep.mubr.f32.mxu0 0.0
    %6313 = vmatmul.mubr.f32.gmra.mrb[0].mxu0 %v6246
    %v6314 = vpop.f32.mrb[0].mxu0
    %v6315 = vadd.f32 0.0, %v6314
    %v6316 = vpop.f32.mrb[0].mxu0
    %v6317 = vadd.f32 0.0, %v6316
    %6318 = vdwg.mxu0
    %v6319 = vadd.f32 %v6230, %v6315
    %v6320 = vadd.f32 %v6231, %v6317
    %v6321 = vxor.u32 %v5572, 2147483648
    %v6322 = vmul.f32 %v6321, 1.442695
    %v6323 = vpow.pop %v6322
    %v6324 = vadd.f32 %v6323, 1.0
    %v6325 = vrcp.pop %v6324
    %v6326 = vmul.f32 1.0, %v6325
    %v6327 = vmul.f32 %v2722, %v6326
    %s6328 = scalar_lea.vmem [#allocation61], 48
    %v6329 = vld [vmem:[%s6328] sm:$0xff]
    %v6330 = vld [vmem:[%s6328 + $0x8] sm:$0xff]
    %v6331 = vld [vmem:[%s6328 + $0x10] sm:$0xff]
    %v6332 = vld [vmem:[%s6328 + $0x18] sm:$0xff]
    %v6333 = vld [vmem:[%s6328 + $0x20] sm:$0xff]
    %v6334 = vld [vmem:[%s6328 + $0x28] sm:$0xff]
    %v6336 = vsel %vm1502, %v6327, 0
    %6338 = vmatprep.subr.mxu0 %v6330
    %6339 = vmatpush1.msra.mxu0 %v6329
    %6340 = vmatprep.subr.mxu0 %v6332
    %6341 = vmatpush1.msra.mxu0 %v6331
    %6342 = vmatprep.subr.mxu0 %v6334
    %6343 = vmatpush1.msra.mxu0 %v6333
    %6344 = vmatprep.subr.mxu0 0.0
    %6345 = vmatpush1.msra.mxu0 0.0
    %6346 = vmatprep.subr.mxu0 0.0
    %6347 = vmatpush1.msra.mxu0 0.0
    %6348 = vmatprep.subr.mxu0 0.0
    %6349 = vmatpush1.msra.mxu0 0.0
    %6350 = vmatprep.subr.mxu0 0.0
    %6351 = vmatpush1.msra.mxu0 0.0
    %6352 = vmatprep.subr.mxu0 0.0
    %6353 = vmatpush1.msra.mxu0 0.0
    %6354 = vmatprep.subr.mxu0 0.0
    %6355 = vmatpush1.msra.mxu0 0.0
    %6356 = vmatprep.subr.mxu0 0.0
    %6357 = vmatpush1.msra.mxu0 0.0
    %6358 = vmatprep.subr.mxu0 0.0
    %6359 = vmatpush1.msra.mxu0 0.0
    %6360 = vmatprep.subr.mxu0 0.0
    %6361 = vmatpush1.msra.mxu0 0.0
    %6362 = vmatprep.subr.mxu0 0.0
    %6363 = vmatpush1.msra.mxu0 0.0
    %6364 = vmatprep.subr.mxu0 0.0
    %6365 = vmatpush1.msra.mxu0 0.0
    %6366 = vmatprep.subr.mxu0 0.0
    %6367 = vmatpush1.msra.mxu0 0.0
    %6368 = vmatprep.subr.mxu0 0.0
    %6369 = vmatpush1.msra.mxu0 0.0
    %6370 = vmatprep.subr.mxu0 0.0
    %6371 = vmatpush1.msra.mxu0 0.0
    %6372 = vmatprep.subr.mxu0 0.0
    %6373 = vmatpush1.msra.mxu0 0.0
    %6374 = vmatprep.subr.mxu0 0.0
    %6375 = vmatpush1.msra.mxu0 0.0
    %6376 = vmatprep.subr.mxu0 0.0
    %6377 = vmatpush1.msra.mxu0 0.0
    %6378 = vmatprep.subr.mxu0 0.0
    %6379 = vmatpush1.msra.mxu0 0.0
    %6380 = vmatprep.subr.mxu0 0.0
    %6381 = vmatpush1.msra.mxu0 0.0
    %6382 = vmatprep.subr.mxu0 0.0
    %6383 = vmatpush1.msra.mxu0 0.0
    %6384 = vmatprep.subr.mxu0 0.0
    %6385 = vmatpush1.msra.mxu0 0.0
    %6386 = vmatprep.subr.mxu0 0.0
    %6387 = vmatpush1.msra.mxu0 0.0
    %6388 = vmatprep.subr.mxu0 0.0
    %6389 = vmatpush1.msra.mxu0 0.0
    %6390 = vmatprep.subr.mxu0 0.0
    %6391 = vmatpush1.msra.mxu0 0.0
    %6392 = vmatprep.subr.mxu0 0.0
    %6393 = vmatpush1.msra.mxu0 0.0
    %6394 = vmatprep.subr.mxu0 0.0
    %6395 = vmatpush1.msra.mxu0 0.0
    %6396 = vmatprep.subr.mxu0 0.0
    %6397 = vmatpush1.msra.mxu0 0.0
    %6398 = vmatprep.subr.mxu0 0.0
    %6399 = vmatpush1.msra.mxu0 0.0
    %6400 = vmatprep.subr.mxu0 0.0
    %6401 = vmatpush1.msra.mxu0 0.0
    %6402 = vmatprep.mubr.f32.mxu0 0.0
    %6403 = vmatmul.mubr.f32.gmra.mrb[0].mxu0 %v6336
    %v6404 = vpop.f32.mrb[0].mxu0
    %v6405 = vadd.f32 0.0, %v6404
    %v6406 = vpop.f32.mrb[0].mxu0
    %v6407 = vadd.f32 0.0, %v6406
    %6408 = vdwg.mxu0
    %v6409 = vadd.f32 %v6319, %v6405
    %v6410 = vadd.f32 %v6320, %v6407
    %v6411 = vxor.u32 %v5574, 2147483648
    %v6412 = vmul.f32 %v6411, 1.442695
    %v6413 = vpow.pop %v6412
    %v6414 = vadd.f32 %v6413, 1.0
    %v6415 = vrcp.pop %v6414
    %v6416 = vmul.f32 1.0, %v6415
    %v6417 = vmul.f32 %v2727, %v6416
    %s6418 = scalar_lea.vmem [#allocation61], 96
    %v6419 = vld [vmem:[%s6418] sm:$0xff]
    %v6420 = vld [vmem:[%s6418 + $0x8] sm:$0xff]
    %v6421 = vld [vmem:[%s6418 + $0x10] sm:$0xff]
    %v6422 = vld [vmem:[%s6418 + $0x18] sm:$0xff]
    %v6423 = vld [vmem:[%s6418 + $0x20] sm:$0xff]
    %v6424 = vld [vmem:[%s6418 + $0x28] sm:$0xff]
    %v6426 = vsel %vm1502, %v6417, 0
    %6428 = vmatprep.subr.mxu0 %v6420
    %6429 = vmatpush1.msra.mxu0 %v6419
    %6430 = vmatprep.subr.mxu0 %v6422
    %6431 = vmatpush1.msra.mxu0 %v6421
    %6432 = vmatprep.subr.mxu0 %v6424
    %6433 = vmatpush1.msra.mxu0 %v6423
    %6434 = vmatprep.subr.mxu0 0.0
    %6435 = vmatpush1.msra.mxu0 0.0
    %6436 = vmatprep.subr.mxu0 0.0
    %6437 = vmatpush1.msra.mxu0 0.0
    %6438 = vmatprep.subr.mxu0 0.0
    %6439 = vmatpush1.msra.mxu0 0.0
    %6440 = vmatprep.subr.mxu0 0.0
    %6441 = vmatpush1.msra.mxu0 0.0
    %6442 = vmatprep.subr.mxu0 0.0
    %6443 = vmatpush1.msra.mxu0 0.0
    %6444 = vmatprep.subr.mxu0 0.0
    %6445 = vmatpush1.msra.mxu0 0.0
    %6446 = vmatprep.subr.mxu0 0.0
    %6447 = vmatpush1.msra.mxu0 0.0
    %6448 = vmatprep.subr.mxu0 0.0
    %6449 = vmatpush1.msra.mxu0 0.0
    %6450 = vmatprep.subr.mxu0 0.0
    %6451 = vmatpush1.msra.mxu0 0.0
    %6452 = vmatprep.subr.mxu0 0.0
    %6453 = vmatpush1.msra.mxu0 0.0
    %6454 = vmatprep.subr.mxu0 0.0
    %6455 = vmatpush1.msra.mxu0 0.0
    %6456 = vmatprep.subr.mxu0 0.0
    %6457 = vmatpush1.msra.mxu0 0.0
    %6458 = vmatprep.subr.mxu0 0.0
    %6459 = vmatpush1.msra.mxu0 0.0
    %6460 = vmatprep.subr.mxu0 0.0
    %6461 = vmatpush1.msra.mxu0 0.0
    %6462 = vmatprep.subr.mxu0 0.0
    %6463 = vmatpush1.msra.mxu0 0.0
    %6464 = vmatprep.subr.mxu0 0.0
    %6465 = vmatpush1.msra.mxu0 0.0
    %6466 = vmatprep.subr.mxu0 0.0
    %6467 = vmatpush1.msra.mxu0 0.0
    %6468 = vmatprep.subr.mxu0 0.0
    %6469 = vmatpush1.msra.mxu0 0.0
    %6470 = vmatprep.subr.mxu0 0.0
    %6471 = vmatpush1.msra.mxu0 0.0
    %6472 = vmatprep.subr.mxu0 0.0
    %6473 = vmatpush1.msra.mxu0 0.0
    %6474 = vmatprep.subr.mxu0 0.0
    %6475 = vmatpush1.msra.mxu0 0.0
    %6476 = vmatprep.subr.mxu0 0.0
    %6477 = vmatpush1.msra.mxu0 0.0
    %6478 = vmatprep.subr.mxu0 0.0
    %6479 = vmatpush1.msra.mxu0 0.0
    %6480 = vmatprep.subr.mxu0 0.0
    %6481 = vmatpush1.msra.mxu0 0.0
    %6482 = vmatprep.subr.mxu0 0.0
    %6483 = vmatpush1.msra.mxu0 0.0
    %6484 = vmatprep.subr.mxu0 0.0
    %6485 = vmatpush1.msra.mxu0 0.0
    %6486 = vmatprep.subr.mxu0 0.0
    %6487 = vmatpush1.msra.mxu0 0.0
    %6488 = vmatprep.subr.mxu0 0.0
    %6489 = vmatpush1.msra.mxu0 0.0
    %6490 = vmatprep.subr.mxu0 0.0
    %6491 = vmatpush1.msra.mxu0 0.0
    %6492 = vmatprep.mubr.f32.mxu0 0.0
    %6493 = vmatmul.mubr.f32.gmra.mrb[0].mxu0 %v6426
    %v6494 = vpop.f32.mrb[0].mxu0
    %v6495 = vadd.f32 0.0, %v6494
    %v6496 = vpop.f32.mrb[0].mxu0
    %v6497 = vadd.f32 0.0, %v6496
    %6498 = vdwg.mxu0
    %v6499 = vadd.f32 %v6409, %v6495
    %v6500 = vadd.f32 %v6410, %v6497
    %v6501 = vxor.u32 %v5714, 2147483648
    %v6502 = vmul.f32 %v6501, 1.442695
    %v6503 = vpow.pop %v6502
    %v6504 = vadd.f32 %v6503, 1.0
    %v6505 = vrcp.pop %v6504
    %v6506 = vmul.f32 1.0, %v6505
    %v6507 = vmul.f32 %v2732, %v6506
    %s6508 = scalar_lea.vmem [#allocation61], 144
    %v6509 = vld [vmem:[%s6508] sm:$0xff]
    %v6510 = vld [vmem:[%s6508 + $0x8] sm:$0xff]
    %v6511 = vld [vmem:[%s6508 + $0x10] sm:$0xff]
    %v6512 = vld [vmem:[%s6508 + $0x18] sm:$0xff]
    %v6513 = vld [vmem:[%s6508 + $0x20] sm:$0xff]
    %v6514 = vld [vmem:[%s6508 + $0x28] sm:$0xff]
    %v6516 = vsel %vm1502, %v6507, 0
    %6518 = vmatprep.subr.mxu0 %v6510
    %6519 = vmatpush1.msra.mxu0 %v6509
    %6520 = vmatprep.subr.mxu0 %v6512
    %6521 = vmatpush1.msra.mxu0 %v6511
    %6522 = vmatprep.subr.mxu0 %v6514
    %6523 = vmatpush1.msra.mxu0 %v6513
    %6524 = vmatprep.subr.mxu0 0.0
    %6525 = vmatpush1.msra.mxu0 0.0
    %6526 = vmatprep.subr.mxu0 0.0
    %6527 = vmatpush1.msra.mxu0 0.0
    %6528 = vmatprep.subr.mxu0 0.0
    %6529 = vmatpush1.msra.mxu0 0.0
    %6530 = vmatprep.subr.mxu0 0.0
    %6531 = vmatpush1.msra.mxu0 0.0
    %6532 = vmatprep.subr.mxu0 0.0
    %6533 = vmatpush1.msra.mxu0 0.0
    %6534 = vmatprep.subr.mxu0 0.0
    %6535 = vmatpush1.msra.mxu0 0.0
    %6536 = vmatprep.subr.mxu0 0.0
    %6537 = vmatpush1.msra.mxu0 0.0
    %6538 = vmatprep.subr.mxu0 0.0
    %6539 = vmatpush1.msra.mxu0 0.0
    %6540 = vmatprep.subr.mxu0 0.0
    %6541 = vmatpush1.msra.mxu0 0.0
    %6542 = vmatprep.subr.mxu0 0.0
    %6543 = vmatpush1.msra.mxu0 0.0
    %6544 = vmatprep.subr.mxu0 0.0
    %6545 = vmatpush1.msra.mxu0 0.0
    %6546 = vmatprep.subr.mxu0 0.0
    %6547 = vmatpush1.msra.mxu0 0.0
    %6548 = vmatprep.subr.mxu0 0.0
    %6549 = vmatpush1.msra.mxu0 0.0
    %6550 = vmatprep.subr.mxu0 0.0
    %6551 = vmatpush1.msra.mxu0 0.0
    %6552 = vmatprep.subr.mxu0 0.0
    %6553 = vmatpush1.msra.mxu0 0.0
    %6554 = vmatprep.subr.mxu0 0.0
    %6555 = vmatpush1.msra.mxu0 0.0
    %6556 = vmatprep.subr.mxu0 0.0
    %6557 = vmatpush1.msra.mxu0 0.0
    %6558 = vmatprep.subr.mxu0 0.0
    %6559 = vmatpush1.msra.mxu0 0.0
    %6560 = vmatprep.subr.mxu0 0.0
    %6561 = vmatpush1.msra.mxu0 0.0
    %6562 = vmatprep.subr.mxu0 0.0
    %6563 = vmatpush1.msra.mxu0 0.0
    %6564 = vmatprep.subr.mxu0 0.0
    %6565 = vmatpush1.msra.mxu0 0.0
    %6566 = vmatprep.subr.mxu0 0.0
    %6567 = vmatpush1.msra.mxu0 0.0
    %6568 = vmatprep.subr.mxu0 0.0
    %6569 = vmatpush1.msra.mxu0 0.0
    %6570 = vmatprep.subr.mxu0 0.0
    %6571 = vmatpush1.msra.mxu0 0.0
    %6572 = vmatprep.subr.mxu0 0.0
    %6573 = vmatpush1.msra.mxu0 0.0
    %6574 = vmatprep.subr.mxu0 0.0
    %6575 = vmatpush1.msra.mxu0 0.0
    %6576 = vmatprep.subr.mxu0 0.0
    %6577 = vmatpush1.msra.mxu0 0.0
    %6578 = vmatprep.subr.mxu0 0.0
    %6579 = vmatpush1.msra.mxu0 0.0
    %6580 = vmatprep.subr.mxu0 0.0
    %6581 = vmatpush1.msra.mxu0 0.0
    %6582 = vmatprep.mubr.f32.mxu0 0.0
    %6583 = vmatmul.mubr.f32.gmra.mrb[0].mxu0 %v6516
    %v6584 = vpop.f32.mrb[0].mxu0
    %v6585 = vadd.f32 0.0, %v6584
    %v6586 = vpop.f32.mrb[0].mxu0
    %v6587 = vadd.f32 0.0, %v6586
    %6588 = vdwg.mxu0
    %v6589 = vadd.f32 %v6499, %v6585
    %v6590 = vadd.f32 %v6500, %v6587
    %vm6591 = vcmp.gt.f32.partialorder %v6589, 0.0
    %vm6592 = vcmp.gt.f32.partialorder %v6590, 0.0
    %v6593 = vmul.f32 %v6589, 0.01
    %v6594 = vmul.f32 %v6590, 0.01
    %v6595 = vsel %vm6591, %v6589, %v6593
    %v6596 = vsel %vm6592, %v6590, %v6594
    %v6597 = vld [vmem:[%s111] sm:$0xff]
    %v6598 = vld [vmem:[%s111 + $0x8] sm:$0xff]
    %v6599 = vld [vmem:[%s111 + $0x10] sm:$0xff]
    %v6600 = vld [vmem:[%s111 + $0x18] sm:$0xff]
    %v6601 = vld [vmem:[%s111 + $0x20] sm:$0xff]
    %v6602 = vld [vmem:[%s111 + $0x28] sm:$0xff]
    %v6603 = vld [vmem:[%s111 + $0x30] sm:$0xff]
    %v6604 = vld [vmem:[%s111 + $0x38] sm:$0xff]
    %v6605 = vld [vmem:[%s111 + $0x40] sm:$0xff]
    %v6606 = vld [vmem:[%s111 + $0x48] sm:$0xff]
    %v6607 = vld [vmem:[%s111 + $0x50] sm:$0xff]
    %v6608 = vld [vmem:[%s111 + $0x58] sm:$0xff]
    %v6609 = vld [vmem:[%s111 + $0x60] sm:$0xff]
    %v6610 = vld [vmem:[%s111 + $0x68] sm:$0xff]
    %v6611 = vld [vmem:[%s111 + $0x70] sm:$0xff]
    %v6612 = vld [vmem:[%s111 + $0x78] sm:$0xff]
    %v6613 = vld [vmem:[%s111 + $0x80] sm:$0xff]
    %v6614 = vld [vmem:[%s111 + $0x88] sm:$0xff]
    %v6615 = vld [vmem:[%s111 + $0x90] sm:$0xff]
    %v6616 = vld [vmem:[%s111 + $0x98] sm:$0xff]
    %v6617 = vld [vmem:[%s111 + $0xa0] sm:$0xff]
    %v6618 = vld [vmem:[%s111 + $0xa8] sm:$0xff]
    %v6619 = vld [vmem:[%s111 + $0xb0] sm:$0xff]
    %v6620 = vld [vmem:[%s111 + $0xb8] sm:$0xff]
    %v6621 = vld [vmem:[%s111 + $0xc0] sm:$0xff]
    %v6622 = vld [vmem:[%s111 + $0xc8] sm:$0xff]
    %v6623 = vld [vmem:[%s111 + $0xd0] sm:$0xff]
    %v6624 = vld [vmem:[%s111 + $0xd8] sm:$0xff]
    %v6625 = vld [vmem:[%s111 + $0xe0] sm:$0xff]
    %v6626 = vld [vmem:[%s111 + $0xe8] sm:$0xff]
    %v6627 = vld [vmem:[%s111 + $0xf0] sm:$0xff]
    %v6628 = vld [vmem:[%s111 + $0xf8] sm:$0xff]
    %v6629 = vld [vmem:[%s111 + $0x100] sm:$0xff]
    %v6630 = vld [vmem:[%s111 + $0x108] sm:$0xff]
    %v6631 = vld [vmem:[%s111 + $0x110] sm:$0xff]
    %v6632 = vld [vmem:[%s111 + $0x118] sm:$0xff]
    %v6633 = vld [vmem:[%s111 + $0x120] sm:$0xff]
    %v6634 = vld [vmem:[%s111 + $0x128] sm:$0xff]
    %v6635 = vld [vmem:[%s111 + $0x130] sm:$0xff]
    %v6636 = vld [vmem:[%s111 + $0x138] sm:$0xff]
    %v6637 = vld [vmem:[%s111 + $0x140] sm:$0xff]
    %v6638 = vld [vmem:[%s111 + $0x148] sm:$0xff]
    %v6639 = vld [vmem:[%s111 + $0x150] sm:$0xff]
    %v6640 = vld [vmem:[%s111 + $0x158] sm:$0xff]
    %v6641 = vld [vmem:[%s111 + $0x160] sm:$0xff]
    %v6642 = vld [vmem:[%s111 + $0x168] sm:$0xff]
    %v6643 = vld [vmem:[%s111 + $0x170] sm:$0xff]
    %v6644 = vld [vmem:[%s111 + $0x178] sm:$0xff]
    %v6645 = vld [vmem:[%s111 + $0x180] sm:$0xff]
    %v6646 = vld [vmem:[%s111 + $0x188] sm:$0xff]
    %v6647 = vld [vmem:[%s111 + $0x190] sm:$0xff]
    %v6648 = vld [vmem:[%s111 + $0x198] sm:$0xff]
    %v6649 = vld [vmem:[%s111 + $0x1a0] sm:$0xff]
    %v6650 = vld [vmem:[%s111 + $0x1a8] sm:$0xff]
    %v6651 = vld [vmem:[%s111 + $0x1b0] sm:$0xff]
    %v6652 = vld [vmem:[%s111 + $0x1b8] sm:$0xff]
    %v6653 = vld [vmem:[%s111 + $0x1c0] sm:$0xff]
    %v6654 = vld [vmem:[%s111 + $0x1c8] sm:$0xff]
    %v6655 = vld [vmem:[%s111 + $0x1d0] sm:$0xff]
    %v6656 = vld [vmem:[%s111 + $0x1d8] sm:$0xff]
    %v6657 = vld [vmem:[%s111 + $0x1e0] sm:$0xff]
    %v6658 = vld [vmem:[%s111 + $0x1e8] sm:$0xff]
    %v6659 = vld [vmem:[%s111 + $0x1f0] sm:$0xff]
    %v6660 = vld [vmem:[%s111 + $0x1f8] sm:$0xff]
    %v6661 = vld [vmem:[#allocation64] sm:$0x3]
    %v6663 = vlaneseq
    %v6664 = vshrl.u32 %v6663, 7
    %v6665 = vsub.s32 0, %v6664
    %v6666 = vrot.slane %v6661, %v6665
    %v6667 = vlaneseq
    %v6668 = vshrl.u32 %v6667, 7
    %v6669 = vsub.s32 1, %v6668
    %v6670 = vrot.slane %v6661, %v6669
    %6673 = vmatprep.subr.mxu0 %v6598
    %6674 = vmatpush1.msra.mxu0 %v6597
    %6675 = vmatprep.subr.mxu0 %v6600
    %6676 = vmatpush1.msra.mxu0 %v6599
    %6677 = vmatprep.subr.mxu0 %v6602
    %6678 = vmatpush1.msra.mxu0 %v6601
    %6679 = vmatprep.subr.mxu0 %v6604
    %6680 = vmatpush1.msra.mxu0 %v6603
    %6681 = vmatprep.subr.mxu0 %v6606
    %6682 = vmatpush1.msra.mxu0 %v6605
    %6683 = vmatprep.subr.mxu0 %v6608
    %6684 = vmatpush1.msra.mxu0 %v6607
    %6685 = vmatprep.subr.mxu0 %v6610
    %6686 = vmatpush1.msra.mxu0 %v6609
    %6687 = vmatprep.subr.mxu0 %v6612
    %6688 = vmatpush1.msra.mxu0 %v6611
    %6689 = vmatprep.subr.mxu0 %v6614
    %6690 = vmatpush1.msra.mxu0 %v6613
    %6691 = vmatprep.subr.mxu0 %v6616
    %6692 = vmatpush1.msra.mxu0 %v6615
    %6693 = vmatprep.subr.mxu0 %v6618
    %6694 = vmatpush1.msra.mxu0 %v6617
    %6695 = vmatprep.subr.mxu0 %v6620
    %6696 = vmatpush1.msra.mxu0 %v6619
    %6697 = vmatprep.subr.mxu0 %v6622
    %6698 = vmatpush1.msra.mxu0 %v6621
    %6699 = vmatprep.subr.mxu0 %v6624
    %6700 = vmatpush1.msra.mxu0 %v6623
    %6701 = vmatprep.subr.mxu0 %v6626
    %6702 = vmatpush1.msra.mxu0 %v6625
    %6703 = vmatprep.subr.mxu0 %v6628
    %6704 = vmatpush1.msra.mxu0 %v6627
    %6705 = vmatprep.subr.mxu0 %v6630
    %6706 = vmatpush1.msra.mxu0 %v6629
    %6707 = vmatprep.subr.mxu0 %v6632
    %6708 = vmatpush1.msra.mxu0 %v6631
    %6709 = vmatprep.subr.mxu0 %v6634
    %6710 = vmatpush1.msra.mxu0 %v6633
    %6711 = vmatprep.subr.mxu0 %v6636
    %6712 = vmatpush1.msra.mxu0 %v6635
    %6713 = vmatprep.subr.mxu0 %v6638
    %6714 = vmatpush1.msra.mxu0 %v6637
    %6715 = vmatprep.subr.mxu0 %v6640
    %6716 = vmatpush1.msra.mxu0 %v6639
    %6717 = vmatprep.subr.mxu0 %v6642
    %6718 = vmatpush1.msra.mxu0 %v6641
    %6719 = vmatprep.subr.mxu0 %v6644
    %6720 = vmatpush1.msra.mxu0 %v6643
    %6721 = vmatprep.subr.mxu0 %v6646
    %6722 = vmatpush1.msra.mxu0 %v6645
    %6723 = vmatprep.subr.mxu0 %v6648
    %6724 = vmatpush1.msra.mxu0 %v6647
    %6725 = vmatprep.subr.mxu0 %v6650
    %6726 = vmatpush1.msra.mxu0 %v6649
    %6727 = vmatprep.subr.mxu0 %v6652
    %6728 = vmatpush1.msra.mxu0 %v6651
    %6729 = vmatprep.subr.mxu0 %v6654
    %6730 = vmatpush1.msra.mxu0 %v6653
    %6731 = vmatprep.subr.mxu0 %v6656
    %6732 = vmatpush1.msra.mxu0 %v6655
    %6733 = vmatprep.subr.mxu0 %v6658
    %6734 = vmatpush1.msra.mxu0 %v6657
    %6735 = vmatprep.subr.mxu0 %v6660
    %6736 = vmatpush1.msra.mxu0 %v6659
    %6737 = vmatprep.mubr.f32.mxu0 %v6596
    %6738 = vmatmul.mubr.f32.gmra.mrb[0].mxu0 %v6595
    %v6739 = vpop.f32.mrb[0].mxu0
    %v6740 = vadd.f32 %v6666, %v6739
    %v6741 = vpop.f32.mrb[0].mxu0
    %v6742 = vadd.f32 %v6670, %v6741
    %6743 = vdwg.mxu0
    %vm6744 = vcmp.gt.f32.partialorder %v6740, 0.0
    %vm6745 = vcmp.gt.f32.partialorder %v6742, 0.0
    %v6746 = vmul.f32 %v6740, 0.01
    %v6747 = vmul.f32 %v6742, 0.01
    %v6748 = vsel %vm6744, %v6740, %v6746
    %v6749 = vsel %vm6745, %v6742, %v6747
    %v6750 = vld [vmem:[#allocation65] sm:$0xff]
    %v6751 = vld [vmem:[#allocation65 + $0x8] sm:$0xff]
    %v6752 = vld [vmem:[#allocation65 + $0x10] sm:$0xff]
    %v6753 = vld [vmem:[#allocation65 + $0x18] sm:$0xff]
    %v6754 = vld [vmem:[#allocation65 + $0x20] sm:$0xff]
    %v6755 = vld [vmem:[#allocation65 + $0x28] sm:$0xff]
    %v6756 = vld [vmem:[#allocation65 + $0x30] sm:$0xff]
    %v6757 = vld [vmem:[#allocation65 + $0x38] sm:$0xff]
    %v6758 = vld [vmem:[#allocation65 + $0x40] sm:$0xff]
    %v6759 = vld [vmem:[#allocation65 + $0x48] sm:$0xff]
    %v6760 = vld [vmem:[#allocation65 + $0x50] sm:$0xff]
    %v6761 = vld [vmem:[#allocation65 + $0x58] sm:$0xff]
    %v6762 = vld [vmem:[#allocation65 + $0x60] sm:$0xff]
    %v6763 = vld [vmem:[#allocation65 + $0x68] sm:$0xff]
    %v6764 = vld [vmem:[#allocation65 + $0x70] sm:$0xff]
    %v6765 = vld [vmem:[#allocation65 + $0x78] sm:$0xff]
    %v6766 = vld [vmem:[#allocation65 + $0x80] sm:$0xff]
    %v6767 = vld [vmem:[#allocation65 + $0x88] sm:$0xff]
    %v6768 = vld [vmem:[#allocation65 + $0x90] sm:$0xff]
    %v6769 = vld [vmem:[#allocation65 + $0x98] sm:$0xff]
    %v6770 = vld [vmem:[#allocation67] sm:$0x1]
    %v6772 = vlaneseq
    %v6773 = vshrl.u32 %v6772, 7
    %v6774 = vsub.s32 0, %v6773
    %v6775 = vrot.slane %v6770, %v6774
    %v6778 = vsel %vm1388, %v6749, 0
    %6780 = vmatprep.subr.mxu0 0.0
    %6781 = vmatpush1.msra.mxu0 %v6750
    %6782 = vmatprep.subr.mxu0 0.0
    %6783 = vmatpush1.msra.mxu0 %v6751
    %6784 = vmatprep.subr.mxu0 0.0
    %6785 = vmatpush1.msra.mxu0 %v6752
    %6786 = vmatprep.subr.mxu0 0.0
    %6787 = vmatpush1.msra.mxu0 %v6753
    %6788 = vmatprep.subr.mxu0 0.0
    %6789 = vmatpush1.msra.mxu0 %v6754
    %6790 = vmatprep.subr.mxu0 0.0
    %6791 = vmatpush1.msra.mxu0 %v6755
    %6792 = vmatprep.subr.mxu0 0.0
    %6793 = vmatpush1.msra.mxu0 %v6756
    %6794 = vmatprep.subr.mxu0 0.0
    %6795 = vmatpush1.msra.mxu0 %v6757
    %6796 = vmatprep.subr.mxu0 0.0
    %6797 = vmatpush1.msra.mxu0 %v6758
    %6798 = vmatprep.subr.mxu0 0.0
    %6799 = vmatpush1.msra.mxu0 %v6759
    %6800 = vmatprep.subr.mxu0 0.0
    %6801 = vmatpush1.msra.mxu0 %v6760
    %6802 = vmatprep.subr.mxu0 0.0
    %6803 = vmatpush1.msra.mxu0 %v6761
    %6804 = vmatprep.subr.mxu0 0.0
    %6805 = vmatpush1.msra.mxu0 %v6762
    %6806 = vmatprep.subr.mxu0 0.0
    %6807 = vmatpush1.msra.mxu0 %v6763
    %6808 = vmatprep.subr.mxu0 0.0
    %6809 = vmatpush1.msra.mxu0 %v6764
    %6810 = vmatprep.subr.mxu0 0.0
    %6811 = vmatpush1.msra.mxu0 %v6765
    %6812 = vmatprep.subr.mxu0 0.0
    %6813 = vmatpush1.msra.mxu0 %v6766
    %6814 = vmatprep.subr.mxu0 0.0
    %6815 = vmatpush1.msra.mxu0 %v6767
    %6816 = vmatprep.subr.mxu0 0.0
    %6817 = vmatpush1.msra.mxu0 %v6768
    %6818 = vmatprep.subr.mxu0 0.0
    %6819 = vmatpush1.msra.mxu0 %v6769
    %6820 = vmatprep.subr.mxu0 0.0
    %6821 = vmatpush1.msra.mxu0 0.0
    %6822 = vmatprep.subr.mxu0 0.0
    %6823 = vmatpush1.msra.mxu0 0.0
    %6824 = vmatprep.subr.mxu0 0.0
    %6825 = vmatpush1.msra.mxu0 0.0
    %6826 = vmatprep.subr.mxu0 0.0
    %6827 = vmatpush1.msra.mxu0 0.0
    %6828 = vmatprep.subr.mxu0 0.0
    %6829 = vmatpush1.msra.mxu0 0.0
    %6830 = vmatprep.subr.mxu0 0.0
    %6831 = vmatpush1.msra.mxu0 0.0
    %6832 = vmatprep.subr.mxu0 0.0
    %6833 = vmatpush1.msra.mxu0 0.0
    %6834 = vmatprep.subr.mxu0 0.0
    %6835 = vmatpush1.msra.mxu0 0.0
    %6836 = vmatprep.subr.mxu0 0.0
    %6837 = vmatpush1.msra.mxu0 0.0
    %6838 = vmatprep.subr.mxu0 0.0
    %6839 = vmatpush1.msra.mxu0 0.0
    %6840 = vmatprep.subr.mxu0 0.0
    %6841 = vmatpush1.msra.mxu0 0.0
    %6842 = vmatprep.subr.mxu0 0.0
    %6843 = vmatpush1.msra.mxu0 0.0
    %6844 = vmatprep.mubr.f32.mxu0 %v6778
    %6845 = vmatmul.mubr.f32.gmra.mrb[0].mxu0 %v6748
    %v6846 = vpop.f32.mrb[0].mxu0
    %v6847 = vadd.f32 %v6775, %v6846
    %v6848 = vpop.f32.mrb[0].mxu0
    %6849 = vdwg.mxu0
    %vm6850 = vcmp.gt.f32.partialorder %v6847, 0.0
    %v6851 = vmul.f32 %v6847, 0.01
    %v6852 = vsel %vm6850, %v6847, %v6851
    %v6853 = vld [vmem:[%s119] sm:$0xff]
    %v6854 = vld [vmem:[%s119 + $0x8] sm:$0xff]
    %v6855 = vld [vmem:[%s119 + $0x10] sm:$0xff]
    %v6856 = vld [vmem:[%s119 + $0x18] sm:$0xff]
    %v6857 = vld [vmem:[%s119 + $0x20] sm:$0xff]
    %v6858 = vld [vmem:[%s119 + $0x28] sm:$0xff]
    %v6859 = vld [vmem:[%s119 + $0x30] sm:$0xff]
    %v6860 = vld [vmem:[%s119 + $0x38] sm:$0xff]
    %v6861 = vld [vmem:[%s119 + $0x40] sm:$0xff]
    %v6862 = vld [vmem:[%s119 + $0x48] sm:$0xff]
    %v6863 = vld [vmem:[%s119 + $0x50] sm:$0xff]
    %v6864 = vld [vmem:[%s119 + $0x58] sm:$0xff]
    %v6865 = vld [vmem:[%s119 + $0x60] sm:$0xff]
    %v6866 = vld [vmem:[%s119 + $0x68] sm:$0xff]
    %v6867 = vld [vmem:[%s119 + $0x70] sm:$0xff]
    %v6868 = vld [vmem:[%s119 + $0x78] sm:$0xff]
    %v6869 = vld [vmem:[#allocation68] sm:$0x1]
    %v6871 = vlaneseq
    %v6872 = vshrl.u32 %v6871, 7
    %v6873 = vsub.s32 0, %v6872
    %v6874 = vrot.slane %v6869, %v6873
    %6876 = vmatprep.subr.mxu0 0.0
    %6877 = vmatpush1.msra.mxu0 %v6853
    %6878 = vmatprep.subr.mxu0 0.0
    %6879 = vmatpush1.msra.mxu0 %v6854
    %6880 = vmatprep.subr.mxu0 0.0
    %6881 = vmatpush1.msra.mxu0 %v6855
    %6882 = vmatprep.subr.mxu0 0.0
    %6883 = vmatpush1.msra.mxu0 %v6856
    %6884 = vmatprep.subr.mxu0 0.0
    %6885 = vmatpush1.msra.mxu0 %v6857
    %6886 = vmatprep.subr.mxu0 0.0
    %6887 = vmatpush1.msra.mxu0 %v6858
    %6888 = vmatprep.subr.mxu0 0.0
    %6889 = vmatpush1.msra.mxu0 %v6859
    %6890 = vmatprep.subr.mxu0 0.0
    %6891 = vmatpush1.msra.mxu0 %v6860
    %6892 = vmatprep.subr.mxu0 0.0
    %6893 = vmatpush1.msra.mxu0 %v6861
    %6894 = vmatprep.subr.mxu0 0.0
    %6895 = vmatpush1.msra.mxu0 %v6862
    %6896 = vmatprep.subr.mxu0 0.0
    %6897 = vmatpush1.msra.mxu0 %v6863
    %6898 = vmatprep.subr.mxu0 0.0
    %6899 = vmatpush1.msra.mxu0 %v6864
    %6900 = vmatprep.subr.mxu0 0.0
    %6901 = vmatpush1.msra.mxu0 %v6865
    %6902 = vmatprep.subr.mxu0 0.0
    %6903 = vmatpush1.msra.mxu0 %v6866
    %6904 = vmatprep.subr.mxu0 0.0
    %6905 = vmatpush1.msra.mxu0 %v6867
    %6906 = vmatprep.subr.mxu0 0.0
    %6907 = vmatpush1.msra.mxu0 %v6868
    %6908 = vmatprep.subr.mxu0 0.0
    %6909 = vmatpush1.msra.mxu0 0.0
    %6910 = vmatprep.subr.mxu0 0.0
    %6911 = vmatpush1.msra.mxu0 0.0
    %6912 = vmatprep.subr.mxu0 0.0
    %6913 = vmatpush1.msra.mxu0 0.0
    %6914 = vmatprep.subr.mxu0 0.0
    %6915 = vmatpush1.msra.mxu0 0.0
    %6916 = vmatprep.subr.mxu0 0.0
    %6917 = vmatpush1.msra.mxu0 0.0
    %6918 = vmatprep.subr.mxu0 0.0
    %6919 = vmatpush1.msra.mxu0 0.0
    %6920 = vmatprep.subr.mxu0 0.0
    %6921 = vmatpush1.msra.mxu0 0.0
    %6922 = vmatprep.subr.mxu0 0.0
    %6923 = vmatpush1.msra.mxu0 0.0
    %6924 = vmatprep.subr.mxu0 0.0
    %6925 = vmatpush1.msra.mxu0 0.0
    %6926 = vmatprep.subr.mxu0 0.0
    %6927 = vmatpush1.msra.mxu0 0.0
    %6928 = vmatprep.subr.mxu0 0.0
    %6929 = vmatpush1.msra.mxu0 0.0
    %6930 = vmatprep.subr.mxu0 0.0
    %6931 = vmatpush1.msra.mxu0 0.0
    %6932 = vmatprep.subr.mxu0 0.0
    %6933 = vmatpush1.msra.mxu0 0.0
    %6934 = vmatprep.subr.mxu0 0.0
    %6935 = vmatpush1.msra.mxu0 0.0
    %6936 = vmatprep.subr.mxu0 0.0
    %6937 = vmatpush1.msra.mxu0 0.0
    %6938 = vmatprep.subr.mxu0 0.0
    %6939 = vmatpush1.msra.mxu0 0.0
    %6940 = vmatprep.mubr.f32.mxu0 0.0
    %6941 = vmatmul.mubr.f32.gmra.mrb[0].mxu0 %v6852
    %v6942 = vpop.f32.mrb[0].mxu0
    %v6943 = vadd.f32 %v6874, %v6942
    %v6944 = vpop.f32.mrb[0].mxu0
    %6945 = vdwg.mxu0
    %v6946 = vxor.u32 %v5998, 2147483648
    %v6947 = vxor.u32 %v6000, 2147483648
    %v6948 = vmul.f32 %v6946, 1.442695
    %v6949 = vpow.pop %v6948
    %v6950 = vmul.f32 %v6947, 1.442695
    %v6951 = vpow.pop %v6950
    %v6952 = vadd.f32 %v6949, 1.0
    %v6953 = vadd.f32 %v6951, 1.0
    %v6954 = vrcp.pop %v6952
    %v6955 = vmul.f32 1.0, %v6954
    %v6956 = vrcp.pop %v6953
    %v6957 = vmul.f32 1.0, %v6956
    %v6960 = vcombine.low %v6955, %v6957
    %v6962 = vunpack.c.l.s4 1983009808
    %v6963 = vunpack.c.0.s8 %v6962
    %v6964 = vlaneseq
    %v6965 = vshrl.u32 %v6964, 7
    %v6966 = vsub.s32 %v6963, %v6965
    %v6967 = vrot.slane %v6960, %v6966
    %v6969 = vmul.f32 %v818, %v6967
    %v6972 = vunpack.c.l.s4 1983009808
    %v6973 = vunpack.c.0.s8 %v6972
    %v6974 = vlaneseq
    %v6975 = vshrl.u32 %v6974, 7
    %v6976 = vsub.s32 %v6973, %v6975
    %v6977 = vrot.slane %v6969, %v6976
    %v6978 = vcombine.high %v6977, %v6977
    %v6981 = vadd.f32 %v5856, %v6977
    %v6982 = vadd.f32 %v5858, %v6978
    %v6983 = vsub.f32 %v2365, %v6943
    %v6984 = vmul.f32 %v6983, %v6983
    %vm6985 = vcmask 58368
    %v6986 = vsel %vm6985, %v6984, 0.0
    %6987 = vadd.xlane.f32.xlu0 %v6986
    %v6988 = vpop.xlane.xlu0 %6987
    %v6989 = vrot.slane %v6988, 4
    %v6990 = vadd.f32 %v6988, %v6989
    %v6991 = vrot.slane %v6990, 2
    %v6992 = vadd.f32 %v6990, %v6991
    %v6993 = vrot.slane %v6992, 1
    %v6994 = vadd.f32 %v6992, %v6993
    %s6995 = vtos %v6994
    %v6996 = vstv %s6995
    %v6997 = vrcp.pop 16.0
    %v6998 = vmul.f32 %v6996, %v6997
    %v6999 = vsub.f32 %v5716, %v798
    %v7000 = vmul.f32 %v6999, %v6999
    %v7001 = vsel %vm4197, %v7000, 0.0
    %7002 = vadd.xlane.f32.xlu0 %v7001
    %v7003 = vpop.xlane.xlu0 %7002
    %v7004 = vrot.slane %v7003, 4
    %v7005 = vadd.f32 %v7003, %v7004
    %v7006 = vrot.slane %v7005, 2
    %v7007 = vadd.f32 %v7005, %v7006
    %v7008 = vrot.slane %v7007, 1
    %v7009 = vadd.f32 %v7007, %v7008
    %s7010 = vtos %v7009
    %v7011 = vstv %s7010
    %v7012 = vrcp.pop 100.0
    %v7013 = vmul.f32 %v7011, %v7012
    %v7016 = vunpack.c.l.s4 1983009808
    %v7017 = vunpack.c.0.s8 %v7016
    %v7018 = vlaneseq
    %v7019 = vshrl.u32 %v7018, 7
    %v7020 = vsub.s32 %v7017, %v7019
    %v7021 = vrot.slane %v815, %v7020
    %v7022 = vcombine.high %v7021, %v7021
    %v7025 = vsub.f32 %v6981, %v7021
    %v7026 = vsub.f32 %v6982, %v7022
    %v7027 = vmul.f32 %v7025, %v7025
    %v7028 = vmul.f32 %v7026, %v7026
    %v7029 = vsel %vm1208, %v7027, 0.0
    %vm7030 = vcmask 648192
    %v7031 = vsel %vm7030, %v7028, 0.0
    %v7032 = vadd.f32 %v7029, %v7031
    %7033 = vadd.xlane.f32.xlu0 %v7032
    %v7034 = vpop.xlane.xlu0 %7033
    %v7035 = vrot.slane %v7034, 4
    %v7036 = vadd.f32 %v7034, %v7035
    %v7037 = vrot.slane %v7036, 2
    %v7038 = vadd.f32 %v7036, %v7037
    %v7039 = vrot.slane %v7038, 1
    %v7040 = vadd.f32 %v7038, %v7039
    %s7041 = vtos %v7040
    %v7042 = vstv %s7041
    %v7043 = vrcp.pop 416.0
    %v7044 = vmul.f32 %v7042, %v7043
    %v7045 = vadd.f32 %v7013, %v7044
    %v7046 = vmul.f32 %v7045, 0.5
    %v7047 = vadd.f32 %v6998, %v7046
    %vm7048 = vcmask 0
    %7049 = vst.msk [vmem:[#allocation70] sm:$0x1] %vm7048, %v7047
    // Predicated region
    $region422: #{anymal_forward.1} parent=1 // pred_check
      _
    $region423: #{anymal_forward.1} parent=1 // pred_check_branch
      %7051 = sbr.rel (0) target = $region425
    $region424: #{anymal_forward.1} parent=1 // pred_region
      %s7053 = ssub.s32 16, 16
      %7054 = vsyncadd [#allocation4], %s7053
      %s7056 = sshll.u32 [#allocation70], 4
      %s7057 = int_to_ptr.vmem [resolvable:$true] %s7056
      %7059 = dma.vmem_to_hbm [thread:$0]  %s7057, 16, %s123, [#allocation4]
    $region425: #{anymal_forward.1} parent=1 // pred_fallthru
      _
    // Predicated region
    $region426: #{anymal_forward.1} parent=1 // pred_check
      _
    $region427: #{anymal_forward.1} parent=1 // pred_check_branch
      %7061 = sbr.rel (0) target = $region429
    $region428: #{anymal_forward.1} parent=1 // pred_region
      _
    $region429: #{anymal_forward.1} parent=1 // pred_fallthru
      _
    // Predicated region
    $region430: #{anymal_forward.1} parent=1 // pred_check
      _
    $region431: #{anymal_forward.1} parent=1 // pred_check_branch
      %7063 = sbr.rel (0) target = $region433
    $region432: #{anymal_forward.1} parent=1 // pred_region
      %7064 = dma.done [#allocation4], 16
    $region433: #{anymal_forward.1} parent=1 // pred_fallthru
      _
    // Predicated region
    $region434: #{anymal_forward.1} parent=1 // pred_check
      _
    $region435: #{anymal_forward.1} parent=1 // pred_check_branch
      %7066 = sbr.rel (0) target = $region437
    $region436: #{anymal_forward.1} parent=1 // pred_region
      _
    $region437: #{anymal_forward.1} parent=1 // pred_fallthru
      _
    %7067 = vsyncpa [#allocation3], 1
    %7068 = vsyncpa [#allocation6], 1
    %7069 = vsyncpa [#allocation9], 1
    %7070 = vsyncpa [#allocation12], 1
    %7071 = vsyncpa [#allocation15], 1
    %7072 = vsyncpa [#allocation18], 1
    %7073 = vsyncpa [#allocation21], 1
    %7074 = vsyncpa [#allocation24], 1
    %7075 = vsyncpa [#allocation27], 1
    %7076 = vsyncpa [#allocation30], 1
    %7077 = vsyncpa [#allocation33], 1
    %7078 = vsyncpa [#allocation36], 1
    %7079 = vsyncpa [#allocation39], 1
    %7080 = vsyncpa [#allocation42], 1
    %7081 = vsyncpa [#allocation45], 1
    %7082 = vsyncpa [#allocation48], 1
    %7083 = vsyncpa [#allocation51], 1
    %7084 = vsyncpa [#allocation54], 1
    %7085 = vsyncpa [#allocation57], 1
    %7086 = vsyncpa [#allocation60], 1
    %7087 = vsyncpa [#allocation63], 1
    %7088 = vsyncpa [#allocation66], 1
    %7089 = vsyncpa [#allocation69], 1
    %7090 = vsyncpa [#allocation4], 1

</llo_original>
